<compile_context>
chip_gen: v5e
topology: v5e:2x2
jax: 0.10.0
libtpu: 0.0.40
codegen_flags: <defaults>
</compile_context>

<pallas_src>
import jax
import jax.numpy as jnp
from jax.experimental import pallas as pl
from jax.experimental.pallas import tpu as pltpu


# -----------------------------------------------------------------------------
# Fused Pallas kernel: all BiLSTM layers + final Linear in one pallas_call
# -----------------------------------------------------------------------------
def _make_bilstm_kernel(num_layers, T, B, H):
    """Ref order: x, [w_ih, w_hh_f, w_hh_b, b] * L, fc_w, fc_b,
                  out, gates_f, gates_b, act_f, act_b (scratch)."""
    G = 4 * H
    unroll = True if T <= 16 else 4          # bounded unroll for production T

    def kernel(x_ref, *args):
        w_refs = args[:4 * num_layers]
        (fc_w_ref, fc_b_ref, out_ref,
         gates_f_scr, gates_b_scr, act_f_scr, act_b_scr) = args[4 * num_layers:]

        def activ(g):
            # permuted packing [i, f, o, g]: one EUP sigmoid slab + one tanh
            sig = jax.nn.sigmoid(g[:, 0:3 * H])
            gg = jnp.tanh(g[:, 3 * H:4 * H])
            return sig[:, 0:H], sig[:, H:2 * H], sig[:, 2 * H:3 * H], gg

        zeros = jnp.zeros((B, H), jnp.float32)
        h_f_last = zeros
        h_b_last = zeros

        for layer in range(num_layers):
            w_ih_ref, w_hh_f_ref, w_hh_b_ref, b_ref = \
                w_refs[4 * layer:4 * layer + 4]
            is_last = (layer == num_layers - 1)

            # ---- Hoisted input projection: one MXU matmul per direction over
            #      all T timesteps, written straight into 2D per-direction
            #      scratch (no (T*B, 8H) transient, no reshape copies).
            if layer == 0:
                d_in = x_ref.shape[-1]
                x2d = x_ref[...].reshape(T * B, d_in)
                gates_f_scr[...] = (
                    jnp.dot(x2d, w_ih_ref[:, 0:G],
                            preferred_element_type=jnp.float32)
                    + b_ref[:, 0:G])
                if is_last:
                    # backward direction only ever needs its first step (t=T-1)
                    gb_last = (
                        jnp.dot(x2d[(T - 1) * B:T * B, :], w_ih_ref[:, G:2 * G],
                                preferred_element_type=jnp.float32)
                        + b_ref[:, G:2 * G])
                else:
                    gates_b_scr[...] = (
                        jnp.dot(x2d, w_ih_ref[:, G:2 * G],
                                preferred_element_type=jnp.float32)
                        + b_ref[:, G:2 * G])
            else:
                # Input of layer l>=1 is [act_f || act_b]; avoid a concat by
                # splitting W_ih row-wise (static, sublane-aligned slices).
                af = act_f_scr[...]
                ab = act_b_scr[...]
                gates_f_scr[...] = (
                    jnp.dot(af, w_ih_ref[0:H, 0:G],
                            preferred_element_type=jnp.float32)
                    + jnp.dot(ab, w_ih_ref[H:2 * H, 0:G],
                              preferred_element_type=jnp.float32)
                    + b_ref[:, 0:G])
                if is_last:
                    gb_last = (
                        jnp.dot(af[(T - 1) * B:T * B, :], w_ih_ref[0:H, G:2 * G],
                                preferred_element_type=jnp.float32)
                        + jnp.dot(ab[(T - 1) * B:T * B, :],
                                  w_ih_ref[H:2 * H, G:2 * G],
                                  preferred_element_type=jnp.float32)
                        + b_ref[:, G:2 * G])
                else:
                    gates_b_scr[...] = (
                        jnp.dot(af, w_ih_ref[0:H, G:2 * G],
                                preferred_element_type=jnp.float32)
                        + jnp.dot(ab, w_ih_ref[H:2 * H, G:2 * G],
                                  preferred_element_type=jnp.float32)
                        + b_ref[:, G:2 * G])

            # ---- Recurrence -------------------------------------------------
            if not is_last:
                # Interleave fwd and bwd time scans: two independent serial
                # chains per iteration -> MXU/EUP/VPU latency overlap.
                def body(s, carry):
                    h_f, c_f, h_b, c_b = carry
                    of = pl.multiple_of(s * B, B)
                    ob = pl.multiple_of((T - 1 - s) * B, B)
                    g_f = (gates_f_scr[pl.ds(of, B), :]
                           + jnp.dot(h_f, w_hh_f_ref[...],
                                     preferred_element_type=jnp.float32))
                    g_b = (gates_b_scr[pl.ds(ob, B), :]
                           + jnp.dot(h_b, w_hh_b_ref[...],
                                     preferred_element_type=jnp.float32))
                    i_f, f_f, o_f, gg_f = activ(g_f)
                    i_b, f_b, o_b, gg_b = activ(g_b)
                    c_f = f_f * c_f + i_f * gg_f
                    h_f = o_f * jnp.tanh(c_f)
                    c_b = f_b * c_b + i_b * gg_b
                    h_b = o_b * jnp.tanh(c_b)
                    act_f_scr[pl.ds(of, B), :] = h_f
                    act_b_scr[pl.ds(ob, B), :] = h_b
                    return h_f, c_f, h_b, c_b

                jax.lax.fori_loop(0, T, body, (zeros, zeros, zeros, zeros),
                                  unroll=unroll)
                # NOTE: nn.LSTM inter-layer dropout is training-only; eval
                # forward applies nothing here.
            else:
                # Last layer: forward scan keeps only the running h (no per-t
                # stores); backward direction is exactly one step at t=T-1.
                def body(s, carry):
                    h_f, c_f = carry
                    of = pl.multiple_of(s * B, B)
                    g_f = (gates_f_scr[pl.ds(of, B), :]
                           + jnp.dot(h_f, w_hh_f_ref[...],
                                     preferred_element_type=jnp.float32))
                    i_f, f_f, o_f, gg_f = activ(g_f)
                    c_f = f_f * c_f + i_f * gg_f
                    h_f = o_f * jnp.tanh(c_f)
                    return h_f, c_f

                h_f_last, _ = jax.lax.fori_loop(0, T, body, (zeros, zeros),
                                                unroll=unroll)
                # first backward step: h0 = c0 = 0, so the W_hh term vanishes
                i_b, f_b, o_b, gg_b = activ(gb_last)
                c_b = i_b * gg_b
                h_b_last = o_b * jnp.tanh(c_b)

        # ---- Fused final Linear on lstm_out[:, -1, :] = [h_fwd(T-1) || h_bwd@T-1]
        out = (jnp.dot(h_f_last, fc_w_ref[0:H, :],
                       preferred_element_type=jnp.float32)
               + jnp.dot(h_b_last, fc_w_ref[H:2 * H, :],
                         preferred_element_type=jnp.float32)
               + fc_b_ref[...])
        out_ref[...] = out.astype(out_ref.dtype)

    return kernel


# -----------------------------------------------------------------------------
# Wrapper
# -----------------------------------------------------------------------------
def bilstm_forward(params, x):
    """Equivalent of BiLSTMModel.forward for an eval-mode module.
    `params` must be kernel-ready (gate columns permuted by prepare_params).
    x: (B, T, D) batch_first."""
    layers = params["layers"]
    num_layers = len(layers)
    H = layers[0][1].shape[0]            # w_hh_f: (H, 4H)
    O = params["fc_w"].shape[1]
    B, T, _ = x.shape

    x_tbd = jnp.transpose(x, (1, 0, 2))  # (B,T,D) -> (T,B,D): time-major

    inputs = [x_tbd]
    for lyr in layers:
        inputs.extend(lyr)               # (w_ih, w_hh_f, w_hh_b, b)
    inputs += [params["fc_w"], params["fc_b"]]

    return pl.pallas_call(
        _make_bilstm_kernel(num_layers, T, B, H),
        out_shape=jax.ShapeDtypeStruct((B, O), jnp.float32),
        scratch_shapes=[
            pltpu.VMEM((T * B, 4 * H), jnp.float32),   # precomputed fwd gates
            pltpu.VMEM((T * B, 4 * H), jnp.float32),   # precomputed bwd gates
            pltpu.VMEM((T * B, H), jnp.float32),       # fwd hidden states, all t
            pltpu.VMEM((T * B, H), jnp.float32),       # bwd hidden states, all t
        ],
    )(*inputs)


# -----------------------------------------------------------------------------
# Gate-column repacking: PyTorch [i, f, g, o] -> kernel [i, f, o, g]
# (zero runtime cost inside the kernel: one sigmoid slab + one tanh per step)
# -----------------------------------------------------------------------------
def _permute_ifog(m4, axis=-1):
    i, f, g, o = jnp.split(m4, 4, axis=axis)
    return jnp.concatenate([i, f, o, g], axis=axis)


def prepare_params(params):
    new_layers = []
    for (w_ih, w_hh_f, w_hh_b, b) in params["layers"]:
        G = w_hh_f.shape[1]                              # 4H
        w_ih_f, w_ih_b = w_ih[:, :G], w_ih[:, G:]
        b_f, b_b = b[:, :G], b[:, G:]
        new_layers.append((
            jnp.concatenate([_permute_ifog(w_ih_f), _permute_ifog(w_ih_b)],
                            axis=1),
            _permute_ifog(w_hh_f),
            _permute_ifog(w_hh_b),
            jnp.concatenate([_permute_ifog(b_f), _permute_ifog(b_b)], axis=1),
        ))
    return {"layers": new_layers,
            "fc_w": params["fc_w"],
            "fc_b": params["fc_b"]}


# -----------------------------------------------------------------------------
# Deterministic parameter init (PyTorch-style uniform(-1/sqrt(H), 1/sqrt(H)))
# Gate order here is canonical PyTorch [i, f, g, o].
# -----------------------------------------------------------------------------
def init_params(key, input_size, hidden_size, num_layers, output_size):
    H = hidden_size
    bound = 1.0 / float(H) ** 0.5

    def u(k, shape):
        return jax.random.uniform(k, shape, jnp.float32, -bound, bound)

    layers = []
    for layer in range(num_layers):
        d_in = input_size if layer == 0 else 2 * H
        key, *ks = jax.random.split(key, 9)
        # PyTorch stores weight_ih as (4H, d_in); pre-transpose for x @ W.
        w_ih_f = u(ks[0], (d_in, 4 * H))
        w_hh_f = u(ks[1], (H, 4 * H))
        b_f = u(ks[2], (4 * H,)) + u(ks[3], (4 * H,))      # b_ih + b_hh
        w_ih_b = u(ks[4], (d_in, 4 * H))
        w_hh_b = u(ks[5], (H, 4 * H))
        b_b = u(ks[6], (4 * H,)) + u(ks[7], (4 * H,))
        w_ih = jnp.concatenate([w_ih_f, w_ih_b], axis=1)   # (d_in, 8H) fwd||bwd
        b = jnp.concatenate([b_f, b_b])[None, :]           # (1, 8H)
        layers.append((w_ih, w_hh_f, w_hh_b, b))

    key, k1, k2 = jax.random.split(key, 3)
    return {"layers": layers,
            "fc_w": u(k1, (2 * H, output_size)),
            "fc_b": u(k2, (1, output_size))}


# -----------------------------------------------------------------------------
# Pure-JAX reference (numerical sanity check; uses canonical [i,f,g,o] params)
# -----------------------------------------------------------------------------
def reference_forward(params, x):
    x_tbd = jnp.transpose(x, (1, 0, 2))
    B = x_tbd.shape[1]
    for (w_ih, w_hh_f, w_hh_b, b) in params["layers"]:
        H = w_hh_f.shape[0]

        def run_dir(w_ih_d, w_hh_d, b_d, xs):
            def step(carry, x_t):
                h, c = carry
                gates = x_t @ w_ih_d + h @ w_hh_d + b_d
                i = jax.nn.sigmoid(gates[:, 0 * H:1 * H])
                f = jax.nn.sigmoid(gates[:, 1 * H:2 * H])
                g = jnp.tanh(gates[:, 2 * H:3 * H])
                o = jax.nn.sigmoid(gates[:, 3 * H:4 * H])
                c = f * c + i * g
                h = o * jnp.tanh(c)
                return (h, c), h

            init = (jnp.zeros((B, H), jnp.float32),
                    jnp.zeros((B, H), jnp.float32))
            _, hs = jax.lax.scan(step, init, xs)
            return hs

        out_f = run_dir(w_ih[:, :4 * H], w_hh_f, b[0, :4 * H], x_tbd)
        out_b = run_dir(w_ih[:, 4 * H:], w_hh_b, b[0, 4 * H:], x_tbd[::-1])[::-1]
        x_tbd = jnp.concatenate([out_f, out_b], axis=-1)
    return x_tbd[-1] @ params["fc_w"] + params["fc_b"][0]


# -----------------------------------------------------------------------------
if __name__ == "__main__":
    B, T = 8, 8            # batch (sublane-aligned), sequence length
    D, H = 16, 128         # input_size, hidden_size (per-gate = 128 lanes)
    L, O = 2, 8            # num_layers, output_size

    key = jax.random.PRNGKey(0)
    kx, kp = jax.random.split(key)
    x = jax.random.normal(kx, (B, T, D), jnp.float32)   # (B, T, D) batch_first
    params = init_params(kp, D, H, L, O)
    kparams = prepare_params(params)                    # [i,f,g,o] -> [i,f,o,g]

    out = jax.jit(bilstm_forward)(kparams, x)
    out = jax.block_until_ready(out)

    ref = reference_forward(params, x)
    assert out.shape == (B, O)
    assert jnp.allclose(out, ref, atol=2e-3, rtol=2e-3), "mismatch vs reference"

    print("KERNEL_OK")
</pallas_src>

<mosaic_0001>
module attributes {stable_mosaic.version = 11 : i64} {
  func.func @kernel(%arg0: memref<8x8x16xf32, #tpu.memory_space<vmem>>, %arg1: memref<16x1024xf32, #tpu.memory_space<vmem>>, %arg2: memref<128x512xf32, #tpu.memory_space<vmem>>, %arg3: memref<128x512xf32, #tpu.memory_space<vmem>>, %arg4: memref<1x1024xf32, #tpu.memory_space<vmem>>, %arg5: memref<256x1024xf32, #tpu.memory_space<vmem>>, %arg6: memref<128x512xf32, #tpu.memory_space<vmem>>, %arg7: memref<128x512xf32, #tpu.memory_space<vmem>>, %arg8: memref<1x1024xf32, #tpu.memory_space<vmem>>, %arg9: memref<256x8xf32, #tpu.memory_space<vmem>>, %arg10: memref<1x8xf32, #tpu.memory_space<vmem>>, %arg11: memref<8x8xf32, #tpu.memory_space<vmem>>, %arg12: memref<64x512xf32, #tpu.memory_space<vmem>>, %arg13: memref<64x512xf32, #tpu.memory_space<vmem>>, %arg14: memref<64x128xf32, #tpu.memory_space<vmem>>, %arg15: memref<64x128xf32, #tpu.memory_space<vmem>>) attributes {dimension_semantics = [], scalar_prefetch = 0 : i64, scratch_operands = 4 : i64, tpu.core_type = #tpu.core_type<tc>} {
    %cst = arith.constant 0.000000e+00 : f32
    %0 = vector.broadcast %cst : f32 to vector<8x128xf32>
    %c0 = arith.constant 0 : index
    %c0_0 = arith.constant 0 : index
    %c0_1 = arith.constant 0 : index
    %1 = vector.load %arg0[%c0, %c0_0, %c0_1] : memref<8x8x16xf32, #tpu.memory_space<vmem>>, vector<8x8x16xf32>
    %2 = vector.shape_cast %1 : vector<8x8x16xf32> to vector<64x16xf32>
    %c0_2 = arith.constant 0 : index
    %c0_3 = arith.constant 0 : index
    %3 = vector.load %arg1[%c0_2, %c0_3] : memref<16x1024xf32, #tpu.memory_space<vmem>>, vector<16x512xf32>
    %cst_4 = arith.constant dense<0.000000e+00> : vector<64x512xf32>
    %4 = tpu.matmul %2, %3, %cst_4 {dimension_numbers = #tpu.dot_dimension_numbers<[1], [0], [0], [1], [0, 0, 1, 1], [], []>} : vector<64x16xf32>, vector<16x512xf32>, vector<64x512xf32> -> vector<64x512xf32>
    %c0_5 = arith.constant 0 : index
    %c0_6 = arith.constant 0 : index
    %5 = vector.load %arg4[%c0_5, %c0_6] : memref<1x1024xf32, #tpu.memory_space<vmem>>, vector<1x512xf32>
    %6 = vector.broadcast %5 : vector<1x512xf32> to vector<64x512xf32>
    %7 = arith.addf %4, %6 : vector<64x512xf32>
    %c0_7 = arith.constant 0 : index
    %c0_8 = arith.constant 0 : index
    %8 = vector.load %arg12[%c0_7, %c0_8] : memref<64x512xf32, #tpu.memory_space<vmem>>, vector<64x512xf32>
    tpu.vector_store %arg12[%c0_7, %c0_8], %7 {strides = array<i32>} : memref<64x512xf32, #tpu.memory_space<vmem>>, vector<64x512xf32>,
    %c0_9 = arith.constant 0 : index
    %c512 = arith.constant 512 : index
    %9 = vector.load %arg1[%c0_9, %c512] : memref<16x1024xf32, #tpu.memory_space<vmem>>, vector<16x512xf32>
    %cst_10 = arith.constant dense<0.000000e+00> : vector<64x512xf32>
    %10 = tpu.matmul %2, %9, %cst_10 {dimension_numbers = #tpu.dot_dimension_numbers<[1], [0], [0], [1], [0, 0, 1, 1], [], []>} : vector<64x16xf32>, vector<16x512xf32>, vector<64x512xf32> -> vector<64x512xf32>
    %c0_11 = arith.constant 0 : index
    %c512_12 = arith.constant 512 : index
    %11 = vector.load %arg4[%c0_11, %c512_12] : memref<1x1024xf32, #tpu.memory_space<vmem>>, vector<1x512xf32>
    %12 = vector.broadcast %11 : vector<1x512xf32> to vector<64x512xf32>
    %13 = arith.addf %10, %12 : vector<64x512xf32>
    %c0_13 = arith.constant 0 : index
    %c0_14 = arith.constant 0 : index
    %14 = vector.load %arg13[%c0_13, %c0_14] : memref<64x512xf32, #tpu.memory_space<vmem>>, vector<64x512xf32>
    tpu.vector_store %arg13[%c0_13, %c0_14], %13 {strides = array<i32>} : memref<64x512xf32, #tpu.memory_space<vmem>>, vector<64x512xf32>,
    %c0_i32 = arith.constant 0 : i32
    %c8_i32 = arith.constant 8 : i32
    %15 = arith.muli %c0_i32, %c8_i32 : i32
    %16 = tpu.assume_multiple %15, 8 : i32
    %c7_i32 = arith.constant 7 : i32
    %17 = arith.subi %c7_i32, %c0_i32 : i32
    %c8_i32_15 = arith.constant 8 : i32
    %18 = arith.muli %17, %c8_i32_15 : i32
    %19 = tpu.assume_multiple %18, 8 : i32
    %20 = arith.index_cast %16 : i32 to index
    %c0_16 = arith.constant 0 : index
    %21 = vector.load %arg12[%20, %c0_16] : memref<64x512xf32, #tpu.memory_space<vmem>>, vector<8x512xf32>
    %c0_17 = arith.constant 0 : index
    %c0_18 = arith.constant 0 : index
    %22 = vector.load %arg2[%c0_17, %c0_18] : memref<128x512xf32, #tpu.memory_space<vmem>>, vector<128x512xf32>
    %cst_19 = arith.constant dense<0.000000e+00> : vector<8x512xf32>
    %23 = tpu.matmul %0, %22, %cst_19 {dimension_numbers = #tpu.dot_dimension_numbers<[1], [0], [0], [1], [0, 0, 1, 1], [], []>} : vector<8x128xf32>, vector<128x512xf32>, vector<8x512xf32> -> vector<8x512xf32>
    %24 = arith.addf %21, %23 : vector<8x512xf32>
    %25 = arith.index_cast %19 : i32 to index
    %c0_20 = arith.constant 0 : index
    %26 = vector.load %arg13[%25, %c0_20] : memref<64x512xf32, #tpu.memory_space<vmem>>, vector<8x512xf32>
    %c0_21 = arith.constant 0 : index
    %c0_22 = arith.constant 0 : index
    %27 = vector.load %arg3[%c0_21, %c0_22] : memref<128x512xf32, #tpu.memory_space<vmem>>, vector<128x512xf32>
    %cst_23 = arith.constant dense<0.000000e+00> : vector<8x512xf32>
    %28 = tpu.matmul %0, %27, %cst_23 {dimension_numbers = #tpu.dot_dimension_numbers<[1], [0], [0], [1], [0, 0, 1, 1], [], []>} : vector<8x128xf32>, vector<128x512xf32>, vector<8x512xf32> -> vector<8x512xf32>
    %29 = arith.addf %26, %28 : vector<8x512xf32>
    %30 = vector.extract_strided_slice %24 {offsets = [0, 0], sizes = [8, 384], strides = [1, 1]} : vector<8x512xf32> to vector<8x384xf32>
    %31 = arith.negf %30 : vector<8x384xf32>
    %32 = math.exp %31 : vector<8x384xf32>
    %cst_24 = arith.constant 1.000000e+00 : f32
    %33 = vector.broadcast %cst_24 : f32 to vector<8x384xf32>
    %34 = arith.addf %33, %32 : vector<8x384xf32>
    %35 = arith.divf %33, %34 : vector<8x384xf32>
    %36 = vector.extract_strided_slice %24 {offsets = [0, 384], sizes = [8, 128], strides = [1, 1]} : vector<8x512xf32> to vector<8x128xf32>
    %37 = math.tanh %36 : vector<8x128xf32>
    %38 = vector.extract_strided_slice %35 {offsets = [0, 0], sizes = [8, 128], strides = [1, 1]} : vector<8x384xf32> to vector<8x128xf32>
    %39 = vector.extract_strided_slice %35 {offsets = [0, 128], sizes = [8, 128], strides = [1, 1]} : vector<8x384xf32> to vector<8x128xf32>
    %40 = vector.extract_strided_slice %35 {offsets = [0, 256], sizes = [8, 128], strides = [1, 1]} : vector<8x384xf32> to vector<8x128xf32>
    %41 = vector.extract_strided_slice %29 {offsets = [0, 0], sizes = [8, 384], strides = [1, 1]} : vector<8x512xf32> to vector<8x384xf32>
    %42 = arith.negf %41 : vector<8x384xf32>
    %43 = math.exp %42 : vector<8x384xf32>
    %cst_25 = arith.constant 1.000000e+00 : f32
    %44 = vector.broadcast %cst_25 : f32 to vector<8x384xf32>
    %45 = arith.addf %44, %43 : vector<8x384xf32>
    %46 = arith.divf %44, %45 : vector<8x384xf32>
    %47 = vector.extract_strided_slice %29 {offsets = [0, 384], sizes = [8, 128], strides = [1, 1]} : vector<8x512xf32> to vector<8x128xf32>
    %48 = math.tanh %47 : vector<8x128xf32>
    %49 = vector.extract_strided_slice %46 {offsets = [0, 0], sizes = [8, 128], strides = [1, 1]} : vector<8x384xf32> to vector<8x128xf32>
    %50 = vector.extract_strided_slice %46 {offsets = [0, 128], sizes = [8, 128], strides = [1, 1]} : vector<8x384xf32> to vector<8x128xf32>
    %51 = vector.extract_strided_slice %46 {offsets = [0, 256], sizes = [8, 128], strides = [1, 1]} : vector<8x384xf32> to vector<8x128xf32>
    %52 = arith.mulf %39, %0 : vector<8x128xf32>
    %53 = arith.mulf %38, %37 : vector<8x128xf32>
    %54 = arith.addf %52, %53 : vector<8x128xf32>
    %55 = math.tanh %54 : vector<8x128xf32>
    %56 = arith.mulf %40, %55 : vector<8x128xf32>
    %57 = arith.mulf %50, %0 : vector<8x128xf32>
    %58 = arith.mulf %49, %48 : vector<8x128xf32>
    %59 = arith.addf %57, %58 : vector<8x128xf32>
    %60 = math.tanh %59 : vector<8x128xf32>
    %61 = arith.mulf %51, %60 : vector<8x128xf32>
    %62 = arith.index_cast %16 : i32 to index
    %c0_26 = arith.constant 0 : index
    %63 = vector.load %arg14[%62, %c0_26] : memref<64x128xf32, #tpu.memory_space<vmem>>, vector<8x128xf32>
    tpu.vector_store %arg14[%62, %c0_26], %56 {strides = array<i32>} : memref<64x128xf32, #tpu.memory_space<vmem>>, vector<8x128xf32>,
    %64 = arith.index_cast %19 : i32 to index
    %c0_27 = arith.constant 0 : index
    %65 = vector.load %arg15[%64, %c0_27] : memref<64x128xf32, #tpu.memory_space<vmem>>, vector<8x128xf32>
    tpu.vector_store %arg15[%64, %c0_27], %61 {strides = array<i32>} : memref<64x128xf32, #tpu.memory_space<vmem>>, vector<8x128xf32>,
    %c1_i32 = arith.constant 1 : i32
    %c8_i32_28 = arith.constant 8 : i32
    %66 = arith.muli %c1_i32, %c8_i32_28 : i32
    %67 = tpu.assume_multiple %66, 8 : i32
    %c7_i32_29 = arith.constant 7 : i32
    %68 = arith.subi %c7_i32_29, %c1_i32 : i32
    %c8_i32_30 = arith.constant 8 : i32
    %69 = arith.muli %68, %c8_i32_30 : i32
    %70 = tpu.assume_multiple %69, 8 : i32
    %71 = arith.index_cast %67 : i32 to index
    %c0_31 = arith.constant 0 : index
    %72 = vector.load %arg12[%71, %c0_31] : memref<64x512xf32, #tpu.memory_space<vmem>>, vector<8x512xf32>
    %c0_32 = arith.constant 0 : index
    %c0_33 = arith.constant 0 : index
    %73 = vector.load %arg2[%c0_32, %c0_33] : memref<128x512xf32, #tpu.memory_space<vmem>>, vector<128x512xf32>
    %cst_34 = arith.constant dense<0.000000e+00> : vector<8x512xf32>
    %74 = tpu.matmul %56, %73, %cst_34 {dimension_numbers = #tpu.dot_dimension_numbers<[1], [0], [0], [1], [0, 0, 1, 1], [], []>} : vector<8x128xf32>, vector<128x512xf32>, vector<8x512xf32> -> vector<8x512xf32>
    %75 = arith.addf %72, %74 : vector<8x512xf32>
    %76 = arith.index_cast %70 : i32 to index
    %c0_35 = arith.constant 0 : index
    %77 = vector.load %arg13[%76, %c0_35] : memref<64x512xf32, #tpu.memory_space<vmem>>, vector<8x512xf32>
    %c0_36 = arith.constant 0 : index
    %c0_37 = arith.constant 0 : index
    %78 = vector.load %arg3[%c0_36, %c0_37] : memref<128x512xf32, #tpu.memory_space<vmem>>, vector<128x512xf32>
    %cst_38 = arith.constant dense<0.000000e+00> : vector<8x512xf32>
    %79 = tpu.matmul %61, %78, %cst_38 {dimension_numbers = #tpu.dot_dimension_numbers<[1], [0], [0], [1], [0, 0, 1, 1], [], []>} : vector<8x128xf32>, vector<128x512xf32>, vector<8x512xf32> -> vector<8x512xf32>
    %80 = arith.addf %77, %79 : vector<8x512xf32>
    %81 = vector.extract_strided_slice %75 {offsets = [0, 0], sizes = [8, 384], strides = [1, 1]} : vector<8x512xf32> to vector<8x384xf32>
    %82 = arith.negf %81 : vector<8x384xf32>
    %83 = math.exp %82 : vector<8x384xf32>
    %cst_39 = arith.constant 1.000000e+00 : f32
    %84 = vector.broadcast %cst_39 : f32 to vector<8x384xf32>
    %85 = arith.addf %84, %83 : vector<8x384xf32>
    %86 = arith.divf %84, %85 : vector<8x384xf32>
    %87 = vector.extract_strided_slice %75 {offsets = [0, 384], sizes = [8, 128], strides = [1, 1]} : vector<8x512xf32> to vector<8x128xf32>
    %88 = math.tanh %87 : vector<8x128xf32>
    %89 = vector.extract_strided_slice %86 {offsets = [0, 0], sizes = [8, 128], strides = [1, 1]} : vector<8x384xf32> to vector<8x128xf32>
    %90 = vector.extract_strided_slice %86 {offsets = [0, 128], sizes = [8, 128], strides = [1, 1]} : vector<8x384xf32> to vector<8x128xf32>
    %91 = vector.extract_strided_slice %86 {offsets = [0, 256], sizes = [8, 128], strides = [1, 1]} : vector<8x384xf32> to vector<8x128xf32>
    %92 = vector.extract_strided_slice %80 {offsets = [0, 0], sizes = [8, 384], strides = [1, 1]} : vector<8x512xf32> to vector<8x384xf32>
    %93 = arith.negf %92 : vector<8x384xf32>
    %94 = math.exp %93 : vector<8x384xf32>
    %cst_40 = arith.constant 1.000000e+00 : f32
    %95 = vector.broadcast %cst_40 : f32 to vector<8x384xf32>
    %96 = arith.addf %95, %94 : vector<8x384xf32>
    %97 = arith.divf %95, %96 : vector<8x384xf32>
    %98 = vector.extract_strided_slice %80 {offsets = [0, 384], sizes = [8, 128], strides = [1, 1]} : vector<8x512xf32> to vector<8x128xf32>
    %99 = math.tanh %98 : vector<8x128xf32>
    %100 = vector.extract_strided_slice %97 {offsets = [0, 0], sizes = [8, 128], strides = [1, 1]} : vector<8x384xf32> to vector<8x128xf32>
    %101 = vector.extract_strided_slice %97 {offsets = [0, 128], sizes = [8, 128], strides = [1, 1]} : vector<8x384xf32> to vector<8x128xf32>
    %102 = vector.extract_strided_slice %97 {offsets = [0, 256], sizes = [8, 128], strides = [1, 1]} : vector<8x384xf32> to vector<8x128xf32>
    %103 = arith.mulf %90, %54 : vector<8x128xf32>
    %104 = arith.mulf %89, %88 : vector<8x128xf32>
    %105 = arith.addf %103, %104 : vector<8x128xf32>
    %106 = math.tanh %105 : vector<8x128xf32>
    %107 = arith.mulf %91, %106 : vector<8x128xf32>
    %108 = arith.mulf %101, %59 : vector<8x128xf32>
    %109 = arith.mulf %100, %99 : vector<8x128xf32>
    %110 = arith.addf %108, %109 : vector<8x128xf32>
    %111 = math.tanh %110 : vector<8x128xf32>
    %112 = arith.mulf %102, %111 : vector<8x128xf32>
    %113 = arith.index_cast %67 : i32 to index
    %c0_41 = arith.constant 0 : index
    %114 = vector.load %arg14[%113, %c0_41] : memref<64x128xf32, #tpu.memory_space<vmem>>, vector<8x128xf32>
    tpu.vector_store %arg14[%113, %c0_41], %107 {strides = array<i32>} : memref<64x128xf32, #tpu.memory_space<vmem>>, vector<8x128xf32>,
    %115 = arith.index_cast %70 : i32 to index
    %c0_42 = arith.constant 0 : index
    %116 = vector.load %arg15[%115, %c0_42] : memref<64x128xf32, #tpu.memory_space<vmem>>, vector<8x128xf32>
    tpu.vector_store %arg15[%115, %c0_42], %112 {strides = array<i32>} : memref<64x128xf32, #tpu.memory_space<vmem>>, vector<8x128xf32>,
    %c2_i32 = arith.constant 2 : i32
    %c8_i32_43 = arith.constant 8 : i32
    %117 = arith.muli %c2_i32, %c8_i32_43 : i32
    %118 = tpu.assume_multiple %117, 8 : i32
    %c7_i32_44 = arith.constant 7 : i32
    %119 = arith.subi %c7_i32_44, %c2_i32 : i32
    %c8_i32_45 = arith.constant 8 : i32
    %120 = arith.muli %119, %c8_i32_45 : i32
    %121 = tpu.assume_multiple %120, 8 : i32
    %122 = arith.index_cast %118 : i32 to index
    %c0_46 = arith.constant 0 : index
    %123 = vector.load %arg12[%122, %c0_46] : memref<64x512xf32, #tpu.memory_space<vmem>>, vector<8x512xf32>
    %c0_47 = arith.constant 0 : index
    %c0_48 = arith.constant 0 : index
    %124 = vector.load %arg2[%c0_47, %c0_48] : memref<128x512xf32, #tpu.memory_space<vmem>>, vector<128x512xf32>
    %cst_49 = arith.constant dense<0.000000e+00> : vector<8x512xf32>
    %125 = tpu.matmul %107, %124, %cst_49 {dimension_numbers = #tpu.dot_dimension_numbers<[1], [0], [0], [1], [0, 0, 1, 1], [], []>} : vector<8x128xf32>, vector<128x512xf32>, vector<8x512xf32> -> vector<8x512xf32>
    %126 = arith.addf %123, %125 : vector<8x512xf32>
    %127 = arith.index_cast %121 : i32 to index
    %c0_50 = arith.constant 0 : index
    %128 = vector.load %arg13[%127, %c0_50] : memref<64x512xf32, #tpu.memory_space<vmem>>, vector<8x512xf32>
    %c0_51 = arith.constant 0 : index
    %c0_52 = arith.constant 0 : index
    %129 = vector.load %arg3[%c0_51, %c0_52] : memref<128x512xf32, #tpu.memory_space<vmem>>, vector<128x512xf32>
    %cst_53 = arith.constant dense<0.000000e+00> : vector<8x512xf32>
    %130 = tpu.matmul %112, %129, %cst_53 {dimension_numbers = #tpu.dot_dimension_numbers<[1], [0], [0], [1], [0, 0, 1, 1], [], []>} : vector<8x128xf32>, vector<128x512xf32>, vector<8x512xf32> -> vector<8x512xf32>
    %131 = arith.addf %128, %130 : vector<8x512xf32>
    %132 = vector.extract_strided_slice %126 {offsets = [0, 0], sizes = [8, 384], strides = [1, 1]} : vector<8x512xf32> to vector<8x384xf32>
    %133 = arith.negf %132 : vector<8x384xf32>
    %134 = math.exp %133 : vector<8x384xf32>
    %cst_54 = arith.constant 1.000000e+00 : f32
    %135 = vector.broadcast %cst_54 : f32 to vector<8x384xf32>
    %136 = arith.addf %135, %134 : vector<8x384xf32>
    %137 = arith.divf %135, %136 : vector<8x384xf32>
    %138 = vector.extract_strided_slice %126 {offsets = [0, 384], sizes = [8, 128], strides = [1, 1]} : vector<8x512xf32> to vector<8x128xf32>
    %139 = math.tanh %138 : vector<8x128xf32>
    %140 = vector.extract_strided_slice %137 {offsets = [0, 0], sizes = [8, 128], strides = [1, 1]} : vector<8x384xf32> to vector<8x128xf32>
    %141 = vector.extract_strided_slice %137 {offsets = [0, 128], sizes = [8, 128], strides = [1, 1]} : vector<8x384xf32> to vector<8x128xf32>
    %142 = vector.extract_strided_slice %137 {offsets = [0, 256], sizes = [8, 128], strides = [1, 1]} : vector<8x384xf32> to vector<8x128xf32>
    %143 = vector.extract_strided_slice %131 {offsets = [0, 0], sizes = [8, 384], strides = [1, 1]} : vector<8x512xf32> to vector<8x384xf32>
    %144 = arith.negf %143 : vector<8x384xf32>
    %145 = math.exp %144 : vector<8x384xf32>
    %cst_55 = arith.constant 1.000000e+00 : f32
    %146 = vector.broadcast %cst_55 : f32 to vector<8x384xf32>
    %147 = arith.addf %146, %145 : vector<8x384xf32>
    %148 = arith.divf %146, %147 : vector<8x384xf32>
    %149 = vector.extract_strided_slice %131 {offsets = [0, 384], sizes = [8, 128], strides = [1, 1]} : vector<8x512xf32> to vector<8x128xf32>
    %150 = math.tanh %149 : vector<8x128xf32>
    %151 = vector.extract_strided_slice %148 {offsets = [0, 0], sizes = [8, 128], strides = [1, 1]} : vector<8x384xf32> to vector<8x128xf32>
    %152 = vector.extract_strided_slice %148 {offsets = [0, 128], sizes = [8, 128], strides = [1, 1]} : vector<8x384xf32> to vector<8x128xf32>
    %153 = vector.extract_strided_slice %148 {offsets = [0, 256], sizes = [8, 128], strides = [1, 1]} : vector<8x384xf32> to vector<8x128xf32>
    %154 = arith.mulf %141, %105 : vector<8x128xf32>
    %155 = arith.mulf %140, %139 : vector<8x128xf32>
    %156 = arith.addf %154, %155 : vector<8x128xf32>
    %157 = math.tanh %156 : vector<8x128xf32>
    %158 = arith.mulf %142, %157 : vector<8x128xf32>
    %159 = arith.mulf %152, %110 : vector<8x128xf32>
    %160 = arith.mulf %151, %150 : vector<8x128xf32>
    %161 = arith.addf %159, %160 : vector<8x128xf32>
    %162 = math.tanh %161 : vector<8x128xf32>
    %163 = arith.mulf %153, %162 : vector<8x128xf32>
    %164 = arith.index_cast %118 : i32 to index
    %c0_56 = arith.constant 0 : index
    %165 = vector.load %arg14[%164, %c0_56] : memref<64x128xf32, #tpu.memory_space<vmem>>, vector<8x128xf32>
    tpu.vector_store %arg14[%164, %c0_56], %158 {strides = array<i32>} : memref<64x128xf32, #tpu.memory_space<vmem>>, vector<8x128xf32>,
    %166 = arith.index_cast %121 : i32 to index
    %c0_57 = arith.constant 0 : index
    %167 = vector.load %arg15[%166, %c0_57] : memref<64x128xf32, #tpu.memory_space<vmem>>, vector<8x128xf32>
    tpu.vector_store %arg15[%166, %c0_57], %163 {strides = array<i32>} : memref<64x128xf32, #tpu.memory_space<vmem>>, vector<8x128xf32>,
    %c3_i32 = arith.constant 3 : i32
    %c8_i32_58 = arith.constant 8 : i32
    %168 = arith.muli %c3_i32, %c8_i32_58 : i32
    %169 = tpu.assume_multiple %168, 8 : i32
    %c7_i32_59 = arith.constant 7 : i32
    %170 = arith.subi %c7_i32_59, %c3_i32 : i32
    %c8_i32_60 = arith.constant 8 : i32
    %171 = arith.muli %170, %c8_i32_60 : i32
    %172 = tpu.assume_multiple %171, 8 : i32
    %173 = arith.index_cast %169 : i32 to index
    %c0_61 = arith.constant 0 : index
    %174 = vector.load %arg12[%173, %c0_61] : memref<64x512xf32, #tpu.memory_space<vmem>>, vector<8x512xf32>
    %c0_62 = arith.constant 0 : index
    %c0_63 = arith.constant 0 : index
    %175 = vector.load %arg2[%c0_62, %c0_63] : memref<128x512xf32, #tpu.memory_space<vmem>>, vector<128x512xf32>
    %cst_64 = arith.constant dense<0.000000e+00> : vector<8x512xf32>
    %176 = tpu.matmul %158, %175, %cst_64 {dimension_numbers = #tpu.dot_dimension_numbers<[1], [0], [0], [1], [0, 0, 1, 1], [], []>} : vector<8x128xf32>, vector<128x512xf32>, vector<8x512xf32> -> vector<8x512xf32>
    %177 = arith.addf %174, %176 : vector<8x512xf32>
    %178 = arith.index_cast %172 : i32 to index
    %c0_65 = arith.constant 0 : index
    %179 = vector.load %arg13[%178, %c0_65] : memref<64x512xf32, #tpu.memory_space<vmem>>, vector<8x512xf32>
    %c0_66 = arith.constant 0 : index
    %c0_67 = arith.constant 0 : index
    %180 = vector.load %arg3[%c0_66, %c0_67] : memref<128x512xf32, #tpu.memory_space<vmem>>, vector<128x512xf32>
    %cst_68 = arith.constant dense<0.000000e+00> : vector<8x512xf32>
    %181 = tpu.matmul %163, %180, %cst_68 {dimension_numbers = #tpu.dot_dimension_numbers<[1], [0], [0], [1], [0, 0, 1, 1], [], []>} : vector<8x128xf32>, vector<128x512xf32>, vector<8x512xf32> -> vector<8x512xf32>
    %182 = arith.addf %179, %181 : vector<8x512xf32>
    %183 = vector.extract_strided_slice %177 {offsets = [0, 0], sizes = [8, 384], strides = [1, 1]} : vector<8x512xf32> to vector<8x384xf32>
    %184 = arith.negf %183 : vector<8x384xf32>
    %185 = math.exp %184 : vector<8x384xf32>
    %cst_69 = arith.constant 1.000000e+00 : f32
    %186 = vector.broadcast %cst_69 : f32 to vector<8x384xf32>
    %187 = arith.addf %186, %185 : vector<8x384xf32>
    %188 = arith.divf %186, %187 : vector<8x384xf32>
    %189 = vector.extract_strided_slice %177 {offsets = [0, 384], sizes = [8, 128], strides = [1, 1]} : vector<8x512xf32> to vector<8x128xf32>
    %190 = math.tanh %189 : vector<8x128xf32>
    %191 = vector.extract_strided_slice %188 {offsets = [0, 0], sizes = [8, 128], strides = [1, 1]} : vector<8x384xf32> to vector<8x128xf32>
    %192 = vector.extract_strided_slice %188 {offsets = [0, 128], sizes = [8, 128], strides = [1, 1]} : vector<8x384xf32> to vector<8x128xf32>
    %193 = vector.extract_strided_slice %188 {offsets = [0, 256], sizes = [8, 128], strides = [1, 1]} : vector<8x384xf32> to vector<8x128xf32>
    %194 = vector.extract_strided_slice %182 {offsets = [0, 0], sizes = [8, 384], strides = [1, 1]} : vector<8x512xf32> to vector<8x384xf32>
    %195 = arith.negf %194 : vector<8x384xf32>
    %196 = math.exp %195 : vector<8x384xf32>
    %cst_70 = arith.constant 1.000000e+00 : f32
    %197 = vector.broadcast %cst_70 : f32 to vector<8x384xf32>
    %198 = arith.addf %197, %196 : vector<8x384xf32>
    %199 = arith.divf %197, %198 : vector<8x384xf32>
    %200 = vector.extract_strided_slice %182 {offsets = [0, 384], sizes = [8, 128], strides = [1, 1]} : vector<8x512xf32> to vector<8x128xf32>
    %201 = math.tanh %200 : vector<8x128xf32>
    %202 = vector.extract_strided_slice %199 {offsets = [0, 0], sizes = [8, 128], strides = [1, 1]} : vector<8x384xf32> to vector<8x128xf32>
    %203 = vector.extract_strided_slice %199 {offsets = [0, 128], sizes = [8, 128], strides = [1, 1]} : vector<8x384xf32> to vector<8x128xf32>
    %204 = vector.extract_strided_slice %199 {offsets = [0, 256], sizes = [8, 128], strides = [1, 1]} : vector<8x384xf32> to vector<8x128xf32>
    %205 = arith.mulf %192, %156 : vector<8x128xf32>
    %206 = arith.mulf %191, %190 : vector<8x128xf32>
    %207 = arith.addf %205, %206 : vector<8x128xf32>
    %208 = math.tanh %207 : vector<8x128xf32>
    %209 = arith.mulf %193, %208 : vector<8x128xf32>
    %210 = arith.mulf %203, %161 : vector<8x128xf32>
    %211 = arith.mulf %202, %201 : vector<8x128xf32>
    %212 = arith.addf %210, %211 : vector<8x128xf32>
    %213 = math.tanh %212 : vector<8x128xf32>
    %214 = arith.mulf %204, %213 : vector<8x128xf32>
    %215 = arith.index_cast %169 : i32 to index
    %c0_71 = arith.constant 0 : index
    %216 = vector.load %arg14[%215, %c0_71] : memref<64x128xf32, #tpu.memory_space<vmem>>, vector<8x128xf32>
    tpu.vector_store %arg14[%215, %c0_71], %209 {strides = array<i32>} : memref<64x128xf32, #tpu.memory_space<vmem>>, vector<8x128xf32>,
    %217 = arith.index_cast %172 : i32 to index
    %c0_72 = arith.constant 0 : index
    %218 = vector.load %arg15[%217, %c0_72] : memref<64x128xf32, #tpu.memory_space<vmem>>, vector<8x128xf32>
    tpu.vector_store %arg15[%217, %c0_72], %214 {strides = array<i32>} : memref<64x128xf32, #tpu.memory_space<vmem>>, vector<8x128xf32>,
    %c4_i32 = arith.constant 4 : i32
    %c8_i32_73 = arith.constant 8 : i32
    %219 = arith.muli %c4_i32, %c8_i32_73 : i32
    %220 = tpu.assume_multiple %219, 8 : i32
    %c7_i32_74 = arith.constant 7 : i32
    %221 = arith.subi %c7_i32_74, %c4_i32 : i32
    %c8_i32_75 = arith.constant 8 : i32
    %222 = arith.muli %221, %c8_i32_75 : i32
    %223 = tpu.assume_multiple %222, 8 : i32
    %224 = arith.index_cast %220 : i32 to index
    %c0_76 = arith.constant 0 : index
    %225 = vector.load %arg12[%224, %c0_76] : memref<64x512xf32, #tpu.memory_space<vmem>>, vector<8x512xf32>
    %c0_77 = arith.constant 0 : index
    %c0_78 = arith.constant 0 : index
    %226 = vector.load %arg2[%c0_77, %c0_78] : memref<128x512xf32, #tpu.memory_space<vmem>>, vector<128x512xf32>
    %cst_79 = arith.constant dense<0.000000e+00> : vector<8x512xf32>
    %227 = tpu.matmul %209, %226, %cst_79 {dimension_numbers = #tpu.dot_dimension_numbers<[1], [0], [0], [1], [0, 0, 1, 1], [], []>} : vector<8x128xf32>, vector<128x512xf32>, vector<8x512xf32> -> vector<8x512xf32>
    %228 = arith.addf %225, %227 : vector<8x512xf32>
    %229 = arith.index_cast %223 : i32 to index
    %c0_80 = arith.constant 0 : index
    %230 = vector.load %arg13[%229, %c0_80] : memref<64x512xf32, #tpu.memory_space<vmem>>, vector<8x512xf32>
    %c0_81 = arith.constant 0 : index
    %c0_82 = arith.constant 0 : index
    %231 = vector.load %arg3[%c0_81, %c0_82] : memref<128x512xf32, #tpu.memory_space<vmem>>, vector<128x512xf32>
    %cst_83 = arith.constant dense<0.000000e+00> : vector<8x512xf32>
    %232 = tpu.matmul %214, %231, %cst_83 {dimension_numbers = #tpu.dot_dimension_numbers<[1], [0], [0], [1], [0, 0, 1, 1], [], []>} : vector<8x128xf32>, vector<128x512xf32>, vector<8x512xf32> -> vector<8x512xf32>
    %233 = arith.addf %230, %232 : vector<8x512xf32>
    %234 = vector.extract_strided_slice %228 {offsets = [0, 0], sizes = [8, 384], strides = [1, 1]} : vector<8x512xf32> to vector<8x384xf32>
    %235 = arith.negf %234 : vector<8x384xf32>
    %236 = math.exp %235 : vector<8x384xf32>
    %cst_84 = arith.constant 1.000000e+00 : f32
    %237 = vector.broadcast %cst_84 : f32 to vector<8x384xf32>
    %238 = arith.addf %237, %236 : vector<8x384xf32>
    %239 = arith.divf %237, %238 : vector<8x384xf32>
    %240 = vector.extract_strided_slice %228 {offsets = [0, 384], sizes = [8, 128], strides = [1, 1]} : vector<8x512xf32> to vector<8x128xf32>
    %241 = math.tanh %240 : vector<8x128xf32>
    %242 = vector.extract_strided_slice %239 {offsets = [0, 0], sizes = [8, 128], strides = [1, 1]} : vector<8x384xf32> to vector<8x128xf32>
    %243 = vector.extract_strided_slice %239 {offsets = [0, 128], sizes = [8, 128], strides = [1, 1]} : vector<8x384xf32> to vector<8x128xf32>
    %244 = vector.extract_strided_slice %239 {offsets = [0, 256], sizes = [8, 128], strides = [1, 1]} : vector<8x384xf32> to vector<8x128xf32>
    %245 = vector.extract_strided_slice %233 {offsets = [0, 0], sizes = [8, 384], strides = [1, 1]} : vector<8x512xf32> to vector<8x384xf32>
    %246 = arith.negf %245 : vector<8x384xf32>
    %247 = math.exp %246 : vector<8x384xf32>
    %cst_85 = arith.constant 1.000000e+00 : f32
    %248 = vector.broadcast %cst_85 : f32 to vector<8x384xf32>
    %249 = arith.addf %248, %247 : vector<8x384xf32>
    %250 = arith.divf %248, %249 : vector<8x384xf32>
    %251 = vector.extract_strided_slice %233 {offsets = [0, 384], sizes = [8, 128], strides = [1, 1]} : vector<8x512xf32> to vector<8x128xf32>
    %252 = math.tanh %251 : vector<8x128xf32>
    %253 = vector.extract_strided_slice %250 {offsets = [0, 0], sizes = [8, 128], strides = [1, 1]} : vector<8x384xf32> to vector<8x128xf32>
    %254 = vector.extract_strided_slice %250 {offsets = [0, 128], sizes = [8, 128], strides = [1, 1]} : vector<8x384xf32> to vector<8x128xf32>
    %255 = vector.extract_strided_slice %250 {offsets = [0, 256], sizes = [8, 128], strides = [1, 1]} : vector<8x384xf32> to vector<8x128xf32>
    %256 = arith.mulf %243, %207 : vector<8x128xf32>
    %257 = arith.mulf %242, %241 : vector<8x128xf32>
    %258 = arith.addf %256, %257 : vector<8x128xf32>
    %259 = math.tanh %258 : vector<8x128xf32>
    %260 = arith.mulf %244, %259 : vector<8x128xf32>
    %261 = arith.mulf %254, %212 : vector<8x128xf32>
    %262 = arith.mulf %253, %252 : vector<8x128xf32>
    %263 = arith.addf %261, %262 : vector<8x128xf32>
    %264 = math.tanh %263 : vector<8x128xf32>
    %265 = arith.mulf %255, %264 : vector<8x128xf32>
    %266 = arith.index_cast %220 : i32 to index
    %c0_86 = arith.constant 0 : index
    %267 = vector.load %arg14[%266, %c0_86] : memref<64x128xf32, #tpu.memory_space<vmem>>, vector<8x128xf32>
    tpu.vector_store %arg14[%266, %c0_86], %260 {strides = array<i32>} : memref<64x128xf32, #tpu.memory_space<vmem>>, vector<8x128xf32>,
    %268 = arith.index_cast %223 : i32 to index
    %c0_87 = arith.constant 0 : index
    %269 = vector.load %arg15[%268, %c0_87] : memref<64x128xf32, #tpu.memory_space<vmem>>, vector<8x128xf32>
    tpu.vector_store %arg15[%268, %c0_87], %265 {strides = array<i32>} : memref<64x128xf32, #tpu.memory_space<vmem>>, vector<8x128xf32>,
    %c5_i32 = arith.constant 5 : i32
    %c8_i32_88 = arith.constant 8 : i32
    %270 = arith.muli %c5_i32, %c8_i32_88 : i32
    %271 = tpu.assume_multiple %270, 8 : i32
    %c7_i32_89 = arith.constant 7 : i32
    %272 = arith.subi %c7_i32_89, %c5_i32 : i32
    %c8_i32_90 = arith.constant 8 : i32
    %273 = arith.muli %272, %c8_i32_90 : i32
    %274 = tpu.assume_multiple %273, 8 : i32
    %275 = arith.index_cast %271 : i32 to index
    %c0_91 = arith.constant 0 : index
    %276 = vector.load %arg12[%275, %c0_91] : memref<64x512xf32, #tpu.memory_space<vmem>>, vector<8x512xf32>
    %c0_92 = arith.constant 0 : index
    %c0_93 = arith.constant 0 : index
    %277 = vector.load %arg2[%c0_92, %c0_93] : memref<128x512xf32, #tpu.memory_space<vmem>>, vector<128x512xf32>
    %cst_94 = arith.constant dense<0.000000e+00> : vector<8x512xf32>
    %278 = tpu.matmul %260, %277, %cst_94 {dimension_numbers = #tpu.dot_dimension_numbers<[1], [0], [0], [1], [0, 0, 1, 1], [], []>} : vector<8x128xf32>, vector<128x512xf32>, vector<8x512xf32> -> vector<8x512xf32>
    %279 = arith.addf %276, %278 : vector<8x512xf32>
    %280 = arith.index_cast %274 : i32 to index
    %c0_95 = arith.constant 0 : index
    %281 = vector.load %arg13[%280, %c0_95] : memref<64x512xf32, #tpu.memory_space<vmem>>, vector<8x512xf32>
    %c0_96 = arith.constant 0 : index
    %c0_97 = arith.constant 0 : index
    %282 = vector.load %arg3[%c0_96, %c0_97] : memref<128x512xf32, #tpu.memory_space<vmem>>, vector<128x512xf32>
    %cst_98 = arith.constant dense<0.000000e+00> : vector<8x512xf32>
    %283 = tpu.matmul %265, %282, %cst_98 {dimension_numbers = #tpu.dot_dimension_numbers<[1], [0], [0], [1], [0, 0, 1, 1], [], []>} : vector<8x128xf32>, vector<128x512xf32>, vector<8x512xf32> -> vector<8x512xf32>
    %284 = arith.addf %281, %283 : vector<8x512xf32>
    %285 = vector.extract_strided_slice %279 {offsets = [0, 0], sizes = [8, 384], strides = [1, 1]} : vector<8x512xf32> to vector<8x384xf32>
    %286 = arith.negf %285 : vector<8x384xf32>
    %287 = math.exp %286 : vector<8x384xf32>
    %cst_99 = arith.constant 1.000000e+00 : f32
    %288 = vector.broadcast %cst_99 : f32 to vector<8x384xf32>
    %289 = arith.addf %288, %287 : vector<8x384xf32>
    %290 = arith.divf %288, %289 : vector<8x384xf32>
    %291 = vector.extract_strided_slice %279 {offsets = [0, 384], sizes = [8, 128], strides = [1, 1]} : vector<8x512xf32> to vector<8x128xf32>
    %292 = math.tanh %291 : vector<8x128xf32>
    %293 = vector.extract_strided_slice %290 {offsets = [0, 0], sizes = [8, 128], strides = [1, 1]} : vector<8x384xf32> to vector<8x128xf32>
    %294 = vector.extract_strided_slice %290 {offsets = [0, 128], sizes = [8, 128], strides = [1, 1]} : vector<8x384xf32> to vector<8x128xf32>
    %295 = vector.extract_strided_slice %290 {offsets = [0, 256], sizes = [8, 128], strides = [1, 1]} : vector<8x384xf32> to vector<8x128xf32>
    %296 = vector.extract_strided_slice %284 {offsets = [0, 0], sizes = [8, 384], strides = [1, 1]} : vector<8x512xf32> to vector<8x384xf32>
    %297 = arith.negf %296 : vector<8x384xf32>
    %298 = math.exp %297 : vector<8x384xf32>
    %cst_100 = arith.constant 1.000000e+00 : f32
    %299 = vector.broadcast %cst_100 : f32 to vector<8x384xf32>
    %300 = arith.addf %299, %298 : vector<8x384xf32>
    %301 = arith.divf %299, %300 : vector<8x384xf32>
    %302 = vector.extract_strided_slice %284 {offsets = [0, 384], sizes = [8, 128], strides = [1, 1]} : vector<8x512xf32> to vector<8x128xf32>
    %303 = math.tanh %302 : vector<8x128xf32>
    %304 = vector.extract_strided_slice %301 {offsets = [0, 0], sizes = [8, 128], strides = [1, 1]} : vector<8x384xf32> to vector<8x128xf32>
    %305 = vector.extract_strided_slice %301 {offsets = [0, 128], sizes = [8, 128], strides = [1, 1]} : vector<8x384xf32> to vector<8x128xf32>
    %306 = vector.extract_strided_slice %301 {offsets = [0, 256], sizes = [8, 128], strides = [1, 1]} : vector<8x384xf32> to vector<8x128xf32>
    %307 = arith.mulf %294, %258 : vector<8x128xf32>
    %308 = arith.mulf %293, %292 : vector<8x128xf32>
    %309 = arith.addf %307, %308 : vector<8x128xf32>
    %310 = math.tanh %309 : vector<8x128xf32>
    %311 = arith.mulf %295, %310 : vector<8x128xf32>
    %312 = arith.mulf %305, %263 : vector<8x128xf32>
    %313 = arith.mulf %304, %303 : vector<8x128xf32>
    %314 = arith.addf %312, %313 : vector<8x128xf32>
    %315 = math.tanh %314 : vector<8x128xf32>
    %316 = arith.mulf %306, %315 : vector<8x128xf32>
    %317 = arith.index_cast %271 : i32 to index
    %c0_101 = arith.constant 0 : index
    %318 = vector.load %arg14[%317, %c0_101] : memref<64x128xf32, #tpu.memory_space<vmem>>, vector<8x128xf32>
    tpu.vector_store %arg14[%317, %c0_101], %311 {strides = array<i32>} : memref<64x128xf32, #tpu.memory_space<vmem>>, vector<8x128xf32>,
    %319 = arith.index_cast %274 : i32 to index
    %c0_102 = arith.constant 0 : index
    %320 = vector.load %arg15[%319, %c0_102] : memref<64x128xf32, #tpu.memory_space<vmem>>, vector<8x128xf32>
    tpu.vector_store %arg15[%319, %c0_102], %316 {strides = array<i32>} : memref<64x128xf32, #tpu.memory_space<vmem>>, vector<8x128xf32>,
    %c6_i32 = arith.constant 6 : i32
    %c8_i32_103 = arith.constant 8 : i32
    %321 = arith.muli %c6_i32, %c8_i32_103 : i32
    %322 = tpu.assume_multiple %321, 8 : i32
    %c7_i32_104 = arith.constant 7 : i32
    %323 = arith.subi %c7_i32_104, %c6_i32 : i32
    %c8_i32_105 = arith.constant 8 : i32
    %324 = arith.muli %323, %c8_i32_105 : i32
    %325 = tpu.assume_multiple %324, 8 : i32
    %326 = arith.index_cast %322 : i32 to index
    %c0_106 = arith.constant 0 : index
    %327 = vector.load %arg12[%326, %c0_106] : memref<64x512xf32, #tpu.memory_space<vmem>>, vector<8x512xf32>
    %c0_107 = arith.constant 0 : index
    %c0_108 = arith.constant 0 : index
    %328 = vector.load %arg2[%c0_107, %c0_108] : memref<128x512xf32, #tpu.memory_space<vmem>>, vector<128x512xf32>
    %cst_109 = arith.constant dense<0.000000e+00> : vector<8x512xf32>
    %329 = tpu.matmul %311, %328, %cst_109 {dimension_numbers = #tpu.dot_dimension_numbers<[1], [0], [0], [1], [0, 0, 1, 1], [], []>} : vector<8x128xf32>, vector<128x512xf32>, vector<8x512xf32> -> vector<8x512xf32>
    %330 = arith.addf %327, %329 : vector<8x512xf32>
    %331 = arith.index_cast %325 : i32 to index
    %c0_110 = arith.constant 0 : index
    %332 = vector.load %arg13[%331, %c0_110] : memref<64x512xf32, #tpu.memory_space<vmem>>, vector<8x512xf32>
    %c0_111 = arith.constant 0 : index
    %c0_112 = arith.constant 0 : index
    %333 = vector.load %arg3[%c0_111, %c0_112] : memref<128x512xf32, #tpu.memory_space<vmem>>, vector<128x512xf32>
    %cst_113 = arith.constant dense<0.000000e+00> : vector<8x512xf32>
    %334 = tpu.matmul %316, %333, %cst_113 {dimension_numbers = #tpu.dot_dimension_numbers<[1], [0], [0], [1], [0, 0, 1, 1], [], []>} : vector<8x128xf32>, vector<128x512xf32>, vector<8x512xf32> -> vector<8x512xf32>
    %335 = arith.addf %332, %334 : vector<8x512xf32>
    %336 = vector.extract_strided_slice %330 {offsets = [0, 0], sizes = [8, 384], strides = [1, 1]} : vector<8x512xf32> to vector<8x384xf32>
    %337 = arith.negf %336 : vector<8x384xf32>
    %338 = math.exp %337 : vector<8x384xf32>
    %cst_114 = arith.constant 1.000000e+00 : f32
    %339 = vector.broadcast %cst_114 : f32 to vector<8x384xf32>
    %340 = arith.addf %339, %338 : vector<8x384xf32>
    %341 = arith.divf %339, %340 : vector<8x384xf32>
    %342 = vector.extract_strided_slice %330 {offsets = [0, 384], sizes = [8, 128], strides = [1, 1]} : vector<8x512xf32> to vector<8x128xf32>
    %343 = math.tanh %342 : vector<8x128xf32>
    %344 = vector.extract_strided_slice %341 {offsets = [0, 0], sizes = [8, 128], strides = [1, 1]} : vector<8x384xf32> to vector<8x128xf32>
    %345 = vector.extract_strided_slice %341 {offsets = [0, 128], sizes = [8, 128], strides = [1, 1]} : vector<8x384xf32> to vector<8x128xf32>
    %346 = vector.extract_strided_slice %341 {offsets = [0, 256], sizes = [8, 128], strides = [1, 1]} : vector<8x384xf32> to vector<8x128xf32>
    %347 = vector.extract_strided_slice %335 {offsets = [0, 0], sizes = [8, 384], strides = [1, 1]} : vector<8x512xf32> to vector<8x384xf32>
    %348 = arith.negf %347 : vector<8x384xf32>
    %349 = math.exp %348 : vector<8x384xf32>
    %cst_115 = arith.constant 1.000000e+00 : f32
    %350 = vector.broadcast %cst_115 : f32 to vector<8x384xf32>
    %351 = arith.addf %350, %349 : vector<8x384xf32>
    %352 = arith.divf %350, %351 : vector<8x384xf32>
    %353 = vector.extract_strided_slice %335 {offsets = [0, 384], sizes = [8, 128], strides = [1, 1]} : vector<8x512xf32> to vector<8x128xf32>
    %354 = math.tanh %353 : vector<8x128xf32>
    %355 = vector.extract_strided_slice %352 {offsets = [0, 0], sizes = [8, 128], strides = [1, 1]} : vector<8x384xf32> to vector<8x128xf32>
    %356 = vector.extract_strided_slice %352 {offsets = [0, 128], sizes = [8, 128], strides = [1, 1]} : vector<8x384xf32> to vector<8x128xf32>
    %357 = vector.extract_strided_slice %352 {offsets = [0, 256], sizes = [8, 128], strides = [1, 1]} : vector<8x384xf32> to vector<8x128xf32>
    %358 = arith.mulf %345, %309 : vector<8x128xf32>
    %359 = arith.mulf %344, %343 : vector<8x128xf32>
    %360 = arith.addf %358, %359 : vector<8x128xf32>
    %361 = math.tanh %360 : vector<8x128xf32>
    %362 = arith.mulf %346, %361 : vector<8x128xf32>
    %363 = arith.mulf %356, %314 : vector<8x128xf32>
    %364 = arith.mulf %355, %354 : vector<8x128xf32>
    %365 = arith.addf %363, %364 : vector<8x128xf32>
    %366 = math.tanh %365 : vector<8x128xf32>
    %367 = arith.mulf %357, %366 : vector<8x128xf32>
    %368 = arith.index_cast %322 : i32 to index
    %c0_116 = arith.constant 0 : index
    %369 = vector.load %arg14[%368, %c0_116] : memref<64x128xf32, #tpu.memory_space<vmem>>, vector<8x128xf32>
    tpu.vector_store %arg14[%368, %c0_116], %362 {strides = array<i32>} : memref<64x128xf32, #tpu.memory_space<vmem>>, vector<8x128xf32>,
    %370 = arith.index_cast %325 : i32 to index
    %c0_117 = arith.constant 0 : index
    %371 = vector.load %arg15[%370, %c0_117] : memref<64x128xf32, #tpu.memory_space<vmem>>, vector<8x128xf32>
    tpu.vector_store %arg15[%370, %c0_117], %367 {strides = array<i32>} : memref<64x128xf32, #tpu.memory_space<vmem>>, vector<8x128xf32>,
    %c7_i32_118 = arith.constant 7 : i32
    %c8_i32_119 = arith.constant 8 : i32
    %372 = arith.muli %c7_i32_118, %c8_i32_119 : i32
    %373 = tpu.assume_multiple %372, 8 : i32
    %c7_i32_120 = arith.constant 7 : i32
    %374 = arith.subi %c7_i32_120, %c7_i32_118 : i32
    %c8_i32_121 = arith.constant 8 : i32
    %375 = arith.muli %374, %c8_i32_121 : i32
    %376 = tpu.assume_multiple %375, 8 : i32
    %377 = arith.index_cast %373 : i32 to index
    %c0_122 = arith.constant 0 : index
    %378 = vector.load %arg12[%377, %c0_122] : memref<64x512xf32, #tpu.memory_space<vmem>>, vector<8x512xf32>
    %c0_123 = arith.constant 0 : index
    %c0_124 = arith.constant 0 : index
    %379 = vector.load %arg2[%c0_123, %c0_124] : memref<128x512xf32, #tpu.memory_space<vmem>>, vector<128x512xf32>
    %cst_125 = arith.constant dense<0.000000e+00> : vector<8x512xf32>
    %380 = tpu.matmul %362, %379, %cst_125 {dimension_numbers = #tpu.dot_dimension_numbers<[1], [0], [0], [1], [0, 0, 1, 1], [], []>} : vector<8x128xf32>, vector<128x512xf32>, vector<8x512xf32> -> vector<8x512xf32>
    %381 = arith.addf %378, %380 : vector<8x512xf32>
    %382 = arith.index_cast %376 : i32 to index
    %c0_126 = arith.constant 0 : index
    %383 = vector.load %arg13[%382, %c0_126] : memref<64x512xf32, #tpu.memory_space<vmem>>, vector<8x512xf32>
    %c0_127 = arith.constant 0 : index
    %c0_128 = arith.constant 0 : index
    %384 = vector.load %arg3[%c0_127, %c0_128] : memref<128x512xf32, #tpu.memory_space<vmem>>, vector<128x512xf32>
    %cst_129 = arith.constant dense<0.000000e+00> : vector<8x512xf32>
    %385 = tpu.matmul %367, %384, %cst_129 {dimension_numbers = #tpu.dot_dimension_numbers<[1], [0], [0], [1], [0, 0, 1, 1], [], []>} : vector<8x128xf32>, vector<128x512xf32>, vector<8x512xf32> -> vector<8x512xf32>
    %386 = arith.addf %383, %385 : vector<8x512xf32>
    %387 = vector.extract_strided_slice %381 {offsets = [0, 0], sizes = [8, 384], strides = [1, 1]} : vector<8x512xf32> to vector<8x384xf32>
    %388 = arith.negf %387 : vector<8x384xf32>
    %389 = math.exp %388 : vector<8x384xf32>
    %cst_130 = arith.constant 1.000000e+00 : f32
    %390 = vector.broadcast %cst_130 : f32 to vector<8x384xf32>
    %391 = arith.addf %390, %389 : vector<8x384xf32>
    %392 = arith.divf %390, %391 : vector<8x384xf32>
    %393 = vector.extract_strided_slice %381 {offsets = [0, 384], sizes = [8, 128], strides = [1, 1]} : vector<8x512xf32> to vector<8x128xf32>
    %394 = math.tanh %393 : vector<8x128xf32>
    %395 = vector.extract_strided_slice %392 {offsets = [0, 0], sizes = [8, 128], strides = [1, 1]} : vector<8x384xf32> to vector<8x128xf32>
    %396 = vector.extract_strided_slice %392 {offsets = [0, 128], sizes = [8, 128], strides = [1, 1]} : vector<8x384xf32> to vector<8x128xf32>
    %397 = vector.extract_strided_slice %392 {offsets = [0, 256], sizes = [8, 128], strides = [1, 1]} : vector<8x384xf32> to vector<8x128xf32>
    %398 = vector.extract_strided_slice %386 {offsets = [0, 0], sizes = [8, 384], strides = [1, 1]} : vector<8x512xf32> to vector<8x384xf32>
    %399 = arith.negf %398 : vector<8x384xf32>
    %400 = math.exp %399 : vector<8x384xf32>
    %cst_131 = arith.constant 1.000000e+00 : f32
    %401 = vector.broadcast %cst_131 : f32 to vector<8x384xf32>
    %402 = arith.addf %401, %400 : vector<8x384xf32>
    %403 = arith.divf %401, %402 : vector<8x384xf32>
    %404 = vector.extract_strided_slice %386 {offsets = [0, 384], sizes = [8, 128], strides = [1, 1]} : vector<8x512xf32> to vector<8x128xf32>
    %405 = math.tanh %404 : vector<8x128xf32>
    %406 = vector.extract_strided_slice %403 {offsets = [0, 0], sizes = [8, 128], strides = [1, 1]} : vector<8x384xf32> to vector<8x128xf32>
    %407 = vector.extract_strided_slice %403 {offsets = [0, 128], sizes = [8, 128], strides = [1, 1]} : vector<8x384xf32> to vector<8x128xf32>
    %408 = vector.extract_strided_slice %403 {offsets = [0, 256], sizes = [8, 128], strides = [1, 1]} : vector<8x384xf32> to vector<8x128xf32>
    %409 = arith.mulf %396, %360 : vector<8x128xf32>
    %410 = arith.mulf %395, %394 : vector<8x128xf32>
    %411 = arith.addf %409, %410 : vector<8x128xf32>
    %412 = math.tanh %411 : vector<8x128xf32>
    %413 = arith.mulf %397, %412 : vector<8x128xf32>
    %414 = arith.mulf %407, %365 : vector<8x128xf32>
    %415 = arith.mulf %406, %405 : vector<8x128xf32>
    %416 = arith.addf %414, %415 : vector<8x128xf32>
    %417 = math.tanh %416 : vector<8x128xf32>
    %418 = arith.mulf %408, %417 : vector<8x128xf32>
    %419 = arith.index_cast %373 : i32 to index
    %c0_132 = arith.constant 0 : index
    %420 = vector.load %arg14[%419, %c0_132] : memref<64x128xf32, #tpu.memory_space<vmem>>, vector<8x128xf32>
    tpu.vector_store %arg14[%419, %c0_132], %413 {strides = array<i32>} : memref<64x128xf32, #tpu.memory_space<vmem>>, vector<8x128xf32>,
    %421 = arith.index_cast %376 : i32 to index
    %c0_133 = arith.constant 0 : index
    %422 = vector.load %arg15[%421, %c0_133] : memref<64x128xf32, #tpu.memory_space<vmem>>, vector<8x128xf32>
    tpu.vector_store %arg15[%421, %c0_133], %418 {strides = array<i32>} : memref<64x128xf32, #tpu.memory_space<vmem>>, vector<8x128xf32>,
    %c8_i32_134 = arith.constant 8 : i32
    %c0_135 = arith.constant 0 : index
    %c0_136 = arith.constant 0 : index
    %423 = vector.load %arg14[%c0_135, %c0_136] : memref<64x128xf32, #tpu.memory_space<vmem>>, vector<64x128xf32>
    %c0_137 = arith.constant 0 : index
    %c0_138 = arith.constant 0 : index
    %424 = vector.load %arg15[%c0_137, %c0_138] : memref<64x128xf32, #tpu.memory_space<vmem>>, vector<64x128xf32>
    %c0_139 = arith.constant 0 : index
    %c0_140 = arith.constant 0 : index
    %425 = vector.load %arg5[%c0_139, %c0_140] : memref<256x1024xf32, #tpu.memory_space<vmem>>, vector<128x512xf32>
    %cst_141 = arith.constant dense<0.000000e+00> : vector<64x512xf32>
    %426 = tpu.matmul %423, %425, %cst_141 {dimension_numbers = #tpu.dot_dimension_numbers<[1], [0], [0], [1], [0, 0, 1, 1], [], []>} : vector<64x128xf32>, vector<128x512xf32>, vector<64x512xf32> -> vector<64x512xf32>
    %c128 = arith.constant 128 : index
    %c0_142 = arith.constant 0 : index
    %427 = vector.load %arg5[%c128, %c0_142] : memref<256x1024xf32, #tpu.memory_space<vmem>>, vector<128x512xf32>
    %cst_143 = arith.constant dense<0.000000e+00> : vector<64x512xf32>
    %428 = tpu.matmul %424, %427, %cst_143 {dimension_numbers = #tpu.dot_dimension_numbers<[1], [0], [0], [1], [0, 0, 1, 1], [], []>} : vector<64x128xf32>, vector<128x512xf32>, vector<64x512xf32> -> vector<64x512xf32>
    %429 = arith.addf %426, %428 : vector<64x512xf32>
    %c0_144 = arith.constant 0 : index
    %c0_145 = arith.constant 0 : index
    %430 = vector.load %arg8[%c0_144, %c0_145] : memref<1x1024xf32, #tpu.memory_space<vmem>>, vector<1x512xf32>
    %431 = vector.broadcast %430 : vector<1x512xf32> to vector<64x512xf32>
    %432 = arith.addf %429, %431 : vector<64x512xf32>
    %c0_146 = arith.constant 0 : index
    %c0_147 = arith.constant 0 : index
    %433 = vector.load %arg12[%c0_146, %c0_147] : memref<64x512xf32, #tpu.memory_space<vmem>>, vector<64x512xf32>
    tpu.vector_store %arg12[%c0_146, %c0_147], %432 {strides = array<i32>} : memref<64x512xf32, #tpu.memory_space<vmem>>, vector<64x512xf32>,
    %434 = vector.extract_strided_slice %423 {offsets = [56, 0], sizes = [8, 128], strides = [1, 1]} : vector<64x128xf32> to vector<8x128xf32>
    %c0_148 = arith.constant 0 : index
    %c512_149 = arith.constant 512 : index
    %435 = vector.load %arg5[%c0_148, %c512_149] : memref<256x1024xf32, #tpu.memory_space<vmem>>, vector<128x512xf32>
    %cst_150 = arith.constant dense<0.000000e+00> : vector<8x512xf32>
    %436 = tpu.matmul %434, %435, %cst_150 {dimension_numbers = #tpu.dot_dimension_numbers<[1], [0], [0], [1], [0, 0, 1, 1], [], []>} : vector<8x128xf32>, vector<128x512xf32>, vector<8x512xf32> -> vector<8x512xf32>
    %437 = vector.extract_strided_slice %424 {offsets = [56, 0], sizes = [8, 128], strides = [1, 1]} : vector<64x128xf32> to vector<8x128xf32>
    %c128_151 = arith.constant 128 : index
    %c512_152 = arith.constant 512 : index
    %438 = vector.load %arg5[%c128_151, %c512_152] : memref<256x1024xf32, #tpu.memory_space<vmem>>, vector<128x512xf32>
    %cst_153 = arith.constant dense<0.000000e+00> : vector<8x512xf32>
    %439 = tpu.matmul %437, %438, %cst_153 {dimension_numbers = #tpu.dot_dimension_numbers<[1], [0], [0], [1], [0, 0, 1, 1], [], []>} : vector<8x128xf32>, vector<128x512xf32>, vector<8x512xf32> -> vector<8x512xf32>
    %440 = arith.addf %436, %439 : vector<8x512xf32>
    %c0_154 = arith.constant 0 : index
    %c512_155 = arith.constant 512 : index
    %441 = vector.load %arg8[%c0_154, %c512_155] : memref<1x1024xf32, #tpu.memory_space<vmem>>, vector<1x512xf32>
    %442 = vector.broadcast %441 : vector<1x512xf32> to vector<8x512xf32>
    %443 = arith.addf %440, %442 : vector<8x512xf32>
    %c0_i32_156 = arith.constant 0 : i32
    %c8_i32_157 = arith.constant 8 : i32
    %444 = arith.muli %c0_i32_156, %c8_i32_157 : i32
    %445 = tpu.assume_multiple %444, 8 : i32
    %446 = arith.index_cast %445 : i32 to index
    %c0_158 = arith.constant 0 : index
    %447 = vector.load %arg12[%446, %c0_158] : memref<64x512xf32, #tpu.memory_space<vmem>>, vector<8x512xf32>
    %c0_159 = arith.constant 0 : index
    %c0_160 = arith.constant 0 : index
    %448 = vector.load %arg6[%c0_159, %c0_160] : memref<128x512xf32, #tpu.memory_space<vmem>>, vector<128x512xf32>
    %cst_161 = arith.constant dense<0.000000e+00> : vector<8x512xf32>
    %449 = tpu.matmul %0, %448, %cst_161 {dimension_numbers = #tpu.dot_dimension_numbers<[1], [0], [0], [1], [0, 0, 1, 1], [], []>} : vector<8x128xf32>, vector<128x512xf32>, vector<8x512xf32> -> vector<8x512xf32>
    %450 = arith.addf %447, %449 : vector<8x512xf32>
    %451 = vector.extract_strided_slice %450 {offsets = [0, 0], sizes = [8, 384], strides = [1, 1]} : vector<8x512xf32> to vector<8x384xf32>
    %452 = arith.negf %451 : vector<8x384xf32>
    %453 = math.exp %452 : vector<8x384xf32>
    %cst_162 = arith.constant 1.000000e+00 : f32
    %454 = vector.broadcast %cst_162 : f32 to vector<8x384xf32>
    %455 = arith.addf %454, %453 : vector<8x384xf32>
    %456 = arith.divf %454, %455 : vector<8x384xf32>
    %457 = vector.extract_strided_slice %450 {offsets = [0, 384], sizes = [8, 128], strides = [1, 1]} : vector<8x512xf32> to vector<8x128xf32>
    %458 = math.tanh %457 : vector<8x128xf32>
    %459 = vector.extract_strided_slice %456 {offsets = [0, 0], sizes = [8, 128], strides = [1, 1]} : vector<8x384xf32> to vector<8x128xf32>
    %460 = vector.extract_strided_slice %456 {offsets = [0, 128], sizes = [8, 128], strides = [1, 1]} : vector<8x384xf32> to vector<8x128xf32>
    %461 = vector.extract_strided_slice %456 {offsets = [0, 256], sizes = [8, 128], strides = [1, 1]} : vector<8x384xf32> to vector<8x128xf32>
    %462 = arith.mulf %460, %0 : vector<8x128xf32>
    %463 = arith.mulf %459, %458 : vector<8x128xf32>
    %464 = arith.addf %462, %463 : vector<8x128xf32>
    %465 = math.tanh %464 : vector<8x128xf32>
    %466 = arith.mulf %461, %465 : vector<8x128xf32>
    %c1_i32_163 = arith.constant 1 : i32
    %c8_i32_164 = arith.constant 8 : i32
    %467 = arith.muli %c1_i32_163, %c8_i32_164 : i32
    %468 = tpu.assume_multiple %467, 8 : i32
    %469 = arith.index_cast %468 : i32 to index
    %c0_165 = arith.constant 0 : index
    %470 = vector.load %arg12[%469, %c0_165] : memref<64x512xf32, #tpu.memory_space<vmem>>, vector<8x512xf32>
    %c0_166 = arith.constant 0 : index
    %c0_167 = arith.constant 0 : index
    %471 = vector.load %arg6[%c0_166, %c0_167] : memref<128x512xf32, #tpu.memory_space<vmem>>, vector<128x512xf32>
    %cst_168 = arith.constant dense<0.000000e+00> : vector<8x512xf32>
    %472 = tpu.matmul %466, %471, %cst_168 {dimension_numbers = #tpu.dot_dimension_numbers<[1], [0], [0], [1], [0, 0, 1, 1], [], []>} : vector<8x128xf32>, vector<128x512xf32>, vector<8x512xf32> -> vector<8x512xf32>
    %473 = arith.addf %470, %472 : vector<8x512xf32>
    %474 = vector.extract_strided_slice %473 {offsets = [0, 0], sizes = [8, 384], strides = [1, 1]} : vector<8x512xf32> to vector<8x384xf32>
    %475 = arith.negf %474 : vector<8x384xf32>
    %476 = math.exp %475 : vector<8x384xf32>
    %cst_169 = arith.constant 1.000000e+00 : f32
    %477 = vector.broadcast %cst_169 : f32 to vector<8x384xf32>
    %478 = arith.addf %477, %476 : vector<8x384xf32>
    %479 = arith.divf %477, %478 : vector<8x384xf32>
    %480 = vector.extract_strided_slice %473 {offsets = [0, 384], sizes = [8, 128], strides = [1, 1]} : vector<8x512xf32> to vector<8x128xf32>
    %481 = math.tanh %480 : vector<8x128xf32>
    %482 = vector.extract_strided_slice %479 {offsets = [0, 0], sizes = [8, 128], strides = [1, 1]} : vector<8x384xf32> to vector<8x128xf32>
    %483 = vector.extract_strided_slice %479 {offsets = [0, 128], sizes = [8, 128], strides = [1, 1]} : vector<8x384xf32> to vector<8x128xf32>
    %484 = vector.extract_strided_slice %479 {offsets = [0, 256], sizes = [8, 128], strides = [1, 1]} : vector<8x384xf32> to vector<8x128xf32>
    %485 = arith.mulf %483, %464 : vector<8x128xf32>
    %486 = arith.mulf %482, %481 : vector<8x128xf32>
    %487 = arith.addf %485, %486 : vector<8x128xf32>
    %488 = math.tanh %487 : vector<8x128xf32>
    %489 = arith.mulf %484, %488 : vector<8x128xf32>
    %c2_i32_170 = arith.constant 2 : i32
    %c8_i32_171 = arith.constant 8 : i32
    %490 = arith.muli %c2_i32_170, %c8_i32_171 : i32
    %491 = tpu.assume_multiple %490, 8 : i32
    %492 = arith.index_cast %491 : i32 to index
    %c0_172 = arith.constant 0 : index
    %493 = vector.load %arg12[%492, %c0_172] : memref<64x512xf32, #tpu.memory_space<vmem>>, vector<8x512xf32>
    %c0_173 = arith.constant 0 : index
    %c0_174 = arith.constant 0 : index
    %494 = vector.load %arg6[%c0_173, %c0_174] : memref<128x512xf32, #tpu.memory_space<vmem>>, vector<128x512xf32>
    %cst_175 = arith.constant dense<0.000000e+00> : vector<8x512xf32>
    %495 = tpu.matmul %489, %494, %cst_175 {dimension_numbers = #tpu.dot_dimension_numbers<[1], [0], [0], [1], [0, 0, 1, 1], [], []>} : vector<8x128xf32>, vector<128x512xf32>, vector<8x512xf32> -> vector<8x512xf32>
    %496 = arith.addf %493, %495 : vector<8x512xf32>
    %497 = vector.extract_strided_slice %496 {offsets = [0, 0], sizes = [8, 384], strides = [1, 1]} : vector<8x512xf32> to vector<8x384xf32>
    %498 = arith.negf %497 : vector<8x384xf32>
    %499 = math.exp %498 : vector<8x384xf32>
    %cst_176 = arith.constant 1.000000e+00 : f32
    %500 = vector.broadcast %cst_176 : f32 to vector<8x384xf32>
    %501 = arith.addf %500, %499 : vector<8x384xf32>
    %502 = arith.divf %500, %501 : vector<8x384xf32>
    %503 = vector.extract_strided_slice %496 {offsets = [0, 384], sizes = [8, 128], strides = [1, 1]} : vector<8x512xf32> to vector<8x128xf32>
    %504 = math.tanh %503 : vector<8x128xf32>
    %505 = vector.extract_strided_slice %502 {offsets = [0, 0], sizes = [8, 128], strides = [1, 1]} : vector<8x384xf32> to vector<8x128xf32>
    %506 = vector.extract_strided_slice %502 {offsets = [0, 128], sizes = [8, 128], strides = [1, 1]} : vector<8x384xf32> to vector<8x128xf32>
    %507 = vector.extract_strided_slice %502 {offsets = [0, 256], sizes = [8, 128], strides = [1, 1]} : vector<8x384xf32> to vector<8x128xf32>
    %508 = arith.mulf %506, %487 : vector<8x128xf32>
    %509 = arith.mulf %505, %504 : vector<8x128xf32>
    %510 = arith.addf %508, %509 : vector<8x128xf32>
    %511 = math.tanh %510 : vector<8x128xf32>
    %512 = arith.mulf %507, %511 : vector<8x128xf32>
    %c3_i32_177 = arith.constant 3 : i32
    %c8_i32_178 = arith.constant 8 : i32
    %513 = arith.muli %c3_i32_177, %c8_i32_178 : i32
    %514 = tpu.assume_multiple %513, 8 : i32
    %515 = arith.index_cast %514 : i32 to index
    %c0_179 = arith.constant 0 : index
    %516 = vector.load %arg12[%515, %c0_179] : memref<64x512xf32, #tpu.memory_space<vmem>>, vector<8x512xf32>
    %c0_180 = arith.constant 0 : index
    %c0_181 = arith.constant 0 : index
    %517 = vector.load %arg6[%c0_180, %c0_181] : memref<128x512xf32, #tpu.memory_space<vmem>>, vector<128x512xf32>
    %cst_182 = arith.constant dense<0.000000e+00> : vector<8x512xf32>
    %518 = tpu.matmul %512, %517, %cst_182 {dimension_numbers = #tpu.dot_dimension_numbers<[1], [0], [0], [1], [0, 0, 1, 1], [], []>} : vector<8x128xf32>, vector<128x512xf32>, vector<8x512xf32> -> vector<8x512xf32>
    %519 = arith.addf %516, %518 : vector<8x512xf32>
    %520 = vector.extract_strided_slice %519 {offsets = [0, 0], sizes = [8, 384], strides = [1, 1]} : vector<8x512xf32> to vector<8x384xf32>
    %521 = arith.negf %520 : vector<8x384xf32>
    %522 = math.exp %521 : vector<8x384xf32>
    %cst_183 = arith.constant 1.000000e+00 : f32
    %523 = vector.broadcast %cst_183 : f32 to vector<8x384xf32>
    %524 = arith.addf %523, %522 : vector<8x384xf32>
    %525 = arith.divf %523, %524 : vector<8x384xf32>
    %526 = vector.extract_strided_slice %519 {offsets = [0, 384], sizes = [8, 128], strides = [1, 1]} : vector<8x512xf32> to vector<8x128xf32>
    %527 = math.tanh %526 : vector<8x128xf32>
    %528 = vector.extract_strided_slice %525 {offsets = [0, 0], sizes = [8, 128], strides = [1, 1]} : vector<8x384xf32> to vector<8x128xf32>
    %529 = vector.extract_strided_slice %525 {offsets = [0, 128], sizes = [8, 128], strides = [1, 1]} : vector<8x384xf32> to vector<8x128xf32>
    %530 = vector.extract_strided_slice %525 {offsets = [0, 256], sizes = [8, 128], strides = [1, 1]} : vector<8x384xf32> to vector<8x128xf32>
    %531 = arith.mulf %529, %510 : vector<8x128xf32>
    %532 = arith.mulf %528, %527 : vector<8x128xf32>
    %533 = arith.addf %531, %532 : vector<8x128xf32>
    %534 = math.tanh %533 : vector<8x128xf32>
    %535 = arith.mulf %530, %534 : vector<8x128xf32>
    %c4_i32_184 = arith.constant 4 : i32
    %c8_i32_185 = arith.constant 8 : i32
    %536 = arith.muli %c4_i32_184, %c8_i32_185 : i32
    %537 = tpu.assume_multiple %536, 8 : i32
    %538 = arith.index_cast %537 : i32 to index
    %c0_186 = arith.constant 0 : index
    %539 = vector.load %arg12[%538, %c0_186] : memref<64x512xf32, #tpu.memory_space<vmem>>, vector<8x512xf32>
    %c0_187 = arith.constant 0 : index
    %c0_188 = arith.constant 0 : index
    %540 = vector.load %arg6[%c0_187, %c0_188] : memref<128x512xf32, #tpu.memory_space<vmem>>, vector<128x512xf32>
    %cst_189 = arith.constant dense<0.000000e+00> : vector<8x512xf32>
    %541 = tpu.matmul %535, %540, %cst_189 {dimension_numbers = #tpu.dot_dimension_numbers<[1], [0], [0], [1], [0, 0, 1, 1], [], []>} : vector<8x128xf32>, vector<128x512xf32>, vector<8x512xf32> -> vector<8x512xf32>
    %542 = arith.addf %539, %541 : vector<8x512xf32>
    %543 = vector.extract_strided_slice %542 {offsets = [0, 0], sizes = [8, 384], strides = [1, 1]} : vector<8x512xf32> to vector<8x384xf32>
    %544 = arith.negf %543 : vector<8x384xf32>
    %545 = math.exp %544 : vector<8x384xf32>
    %cst_190 = arith.constant 1.000000e+00 : f32
    %546 = vector.broadcast %cst_190 : f32 to vector<8x384xf32>
    %547 = arith.addf %546, %545 : vector<8x384xf32>
    %548 = arith.divf %546, %547 : vector<8x384xf32>
    %549 = vector.extract_strided_slice %542 {offsets = [0, 384], sizes = [8, 128], strides = [1, 1]} : vector<8x512xf32> to vector<8x128xf32>
    %550 = math.tanh %549 : vector<8x128xf32>
    %551 = vector.extract_strided_slice %548 {offsets = [0, 0], sizes = [8, 128], strides = [1, 1]} : vector<8x384xf32> to vector<8x128xf32>
    %552 = vector.extract_strided_slice %548 {offsets = [0, 128], sizes = [8, 128], strides = [1, 1]} : vector<8x384xf32> to vector<8x128xf32>
    %553 = vector.extract_strided_slice %548 {offsets = [0, 256], sizes = [8, 128], strides = [1, 1]} : vector<8x384xf32> to vector<8x128xf32>
    %554 = arith.mulf %552, %533 : vector<8x128xf32>
    %555 = arith.mulf %551, %550 : vector<8x128xf32>
    %556 = arith.addf %554, %555 : vector<8x128xf32>
    %557 = math.tanh %556 : vector<8x128xf32>
    %558 = arith.mulf %553, %557 : vector<8x128xf32>
    %c5_i32_191 = arith.constant 5 : i32
    %c8_i32_192 = arith.constant 8 : i32
    %559 = arith.muli %c5_i32_191, %c8_i32_192 : i32
    %560 = tpu.assume_multiple %559, 8 : i32
    %561 = arith.index_cast %560 : i32 to index
    %c0_193 = arith.constant 0 : index
    %562 = vector.load %arg12[%561, %c0_193] : memref<64x512xf32, #tpu.memory_space<vmem>>, vector<8x512xf32>
    %c0_194 = arith.constant 0 : index
    %c0_195 = arith.constant 0 : index
    %563 = vector.load %arg6[%c0_194, %c0_195] : memref<128x512xf32, #tpu.memory_space<vmem>>, vector<128x512xf32>
    %cst_196 = arith.constant dense<0.000000e+00> : vector<8x512xf32>
    %564 = tpu.matmul %558, %563, %cst_196 {dimension_numbers = #tpu.dot_dimension_numbers<[1], [0], [0], [1], [0, 0, 1, 1], [], []>} : vector<8x128xf32>, vector<128x512xf32>, vector<8x512xf32> -> vector<8x512xf32>
    %565 = arith.addf %562, %564 : vector<8x512xf32>
    %566 = vector.extract_strided_slice %565 {offsets = [0, 0], sizes = [8, 384], strides = [1, 1]} : vector<8x512xf32> to vector<8x384xf32>
    %567 = arith.negf %566 : vector<8x384xf32>
    %568 = math.exp %567 : vector<8x384xf32>
    %cst_197 = arith.constant 1.000000e+00 : f32
    %569 = vector.broadcast %cst_197 : f32 to vector<8x384xf32>
    %570 = arith.addf %569, %568 : vector<8x384xf32>
    %571 = arith.divf %569, %570 : vector<8x384xf32>
    %572 = vector.extract_strided_slice %565 {offsets = [0, 384], sizes = [8, 128], strides = [1, 1]} : vector<8x512xf32> to vector<8x128xf32>
    %573 = math.tanh %572 : vector<8x128xf32>
    %574 = vector.extract_strided_slice %571 {offsets = [0, 0], sizes = [8, 128], strides = [1, 1]} : vector<8x384xf32> to vector<8x128xf32>
    %575 = vector.extract_strided_slice %571 {offsets = [0, 128], sizes = [8, 128], strides = [1, 1]} : vector<8x384xf32> to vector<8x128xf32>
    %576 = vector.extract_strided_slice %571 {offsets = [0, 256], sizes = [8, 128], strides = [1, 1]} : vector<8x384xf32> to vector<8x128xf32>
    %577 = arith.mulf %575, %556 : vector<8x128xf32>
    %578 = arith.mulf %574, %573 : vector<8x128xf32>
    %579 = arith.addf %577, %578 : vector<8x128xf32>
    %580 = math.tanh %579 : vector<8x128xf32>
    %581 = arith.mulf %576, %580 : vector<8x128xf32>
    %c6_i32_198 = arith.constant 6 : i32
    %c8_i32_199 = arith.constant 8 : i32
    %582 = arith.muli %c6_i32_198, %c8_i32_199 : i32
    %583 = tpu.assume_multiple %582, 8 : i32
    %584 = arith.index_cast %583 : i32 to index
    %c0_200 = arith.constant 0 : index
    %585 = vector.load %arg12[%584, %c0_200] : memref<64x512xf32, #tpu.memory_space<vmem>>, vector<8x512xf32>
    %c0_201 = arith.constant 0 : index
    %c0_202 = arith.constant 0 : index
    %586 = vector.load %arg6[%c0_201, %c0_202] : memref<128x512xf32, #tpu.memory_space<vmem>>, vector<128x512xf32>
    %cst_203 = arith.constant dense<0.000000e+00> : vector<8x512xf32>
    %587 = tpu.matmul %581, %586, %cst_203 {dimension_numbers = #tpu.dot_dimension_numbers<[1], [0], [0], [1], [0, 0, 1, 1], [], []>} : vector<8x128xf32>, vector<128x512xf32>, vector<8x512xf32> -> vector<8x512xf32>
    %588 = arith.addf %585, %587 : vector<8x512xf32>
    %589 = vector.extract_strided_slice %588 {offsets = [0, 0], sizes = [8, 384], strides = [1, 1]} : vector<8x512xf32> to vector<8x384xf32>
    %590 = arith.negf %589 : vector<8x384xf32>
    %591 = math.exp %590 : vector<8x384xf32>
    %cst_204 = arith.constant 1.000000e+00 : f32
    %592 = vector.broadcast %cst_204 : f32 to vector<8x384xf32>
    %593 = arith.addf %592, %591 : vector<8x384xf32>
    %594 = arith.divf %592, %593 : vector<8x384xf32>
    %595 = vector.extract_strided_slice %588 {offsets = [0, 384], sizes = [8, 128], strides = [1, 1]} : vector<8x512xf32> to vector<8x128xf32>
    %596 = math.tanh %595 : vector<8x128xf32>
    %597 = vector.extract_strided_slice %594 {offsets = [0, 0], sizes = [8, 128], strides = [1, 1]} : vector<8x384xf32> to vector<8x128xf32>
    %598 = vector.extract_strided_slice %594 {offsets = [0, 128], sizes = [8, 128], strides = [1, 1]} : vector<8x384xf32> to vector<8x128xf32>
    %599 = vector.extract_strided_slice %594 {offsets = [0, 256], sizes = [8, 128], strides = [1, 1]} : vector<8x384xf32> to vector<8x128xf32>
    %600 = arith.mulf %598, %579 : vector<8x128xf32>
    %601 = arith.mulf %597, %596 : vector<8x128xf32>
    %602 = arith.addf %600, %601 : vector<8x128xf32>
    %603 = math.tanh %602 : vector<8x128xf32>
    %604 = arith.mulf %599, %603 : vector<8x128xf32>
    %c7_i32_205 = arith.constant 7 : i32
    %c8_i32_206 = arith.constant 8 : i32
    %605 = arith.muli %c7_i32_205, %c8_i32_206 : i32
    %606 = tpu.assume_multiple %605, 8 : i32
    %607 = arith.index_cast %606 : i32 to index
    %c0_207 = arith.constant 0 : index
    %608 = vector.load %arg12[%607, %c0_207] : memref<64x512xf32, #tpu.memory_space<vmem>>, vector<8x512xf32>
    %c0_208 = arith.constant 0 : index
    %c0_209 = arith.constant 0 : index
    %609 = vector.load %arg6[%c0_208, %c0_209] : memref<128x512xf32, #tpu.memory_space<vmem>>, vector<128x512xf32>
    %cst_210 = arith.constant dense<0.000000e+00> : vector<8x512xf32>
    %610 = tpu.matmul %604, %609, %cst_210 {dimension_numbers = #tpu.dot_dimension_numbers<[1], [0], [0], [1], [0, 0, 1, 1], [], []>} : vector<8x128xf32>, vector<128x512xf32>, vector<8x512xf32> -> vector<8x512xf32>
    %611 = arith.addf %608, %610 : vector<8x512xf32>
    %612 = vector.extract_strided_slice %611 {offsets = [0, 0], sizes = [8, 384], strides = [1, 1]} : vector<8x512xf32> to vector<8x384xf32>
    %613 = arith.negf %612 : vector<8x384xf32>
    %614 = math.exp %613 : vector<8x384xf32>
    %cst_211 = arith.constant 1.000000e+00 : f32
    %615 = vector.broadcast %cst_211 : f32 to vector<8x384xf32>
    %616 = arith.addf %615, %614 : vector<8x384xf32>
    %617 = arith.divf %615, %616 : vector<8x384xf32>
    %618 = vector.extract_strided_slice %611 {offsets = [0, 384], sizes = [8, 128], strides = [1, 1]} : vector<8x512xf32> to vector<8x128xf32>
    %619 = math.tanh %618 : vector<8x128xf32>
    %620 = vector.extract_strided_slice %617 {offsets = [0, 0], sizes = [8, 128], strides = [1, 1]} : vector<8x384xf32> to vector<8x128xf32>
    %621 = vector.extract_strided_slice %617 {offsets = [0, 128], sizes = [8, 128], strides = [1, 1]} : vector<8x384xf32> to vector<8x128xf32>
    %622 = vector.extract_strided_slice %617 {offsets = [0, 256], sizes = [8, 128], strides = [1, 1]} : vector<8x384xf32> to vector<8x128xf32>
    %623 = arith.mulf %621, %602 : vector<8x128xf32>
    %624 = arith.mulf %620, %619 : vector<8x128xf32>
    %625 = arith.addf %623, %624 : vector<8x128xf32>
    %626 = math.tanh %625 : vector<8x128xf32>
    %627 = arith.mulf %622, %626 : vector<8x128xf32>
    %c8_i32_212 = arith.constant 8 : i32
    %628 = vector.extract_strided_slice %443 {offsets = [0, 0], sizes = [8, 384], strides = [1, 1]} : vector<8x512xf32> to vector<8x384xf32>
    %629 = arith.negf %628 : vector<8x384xf32>
    %630 = math.exp %629 : vector<8x384xf32>
    %cst_213 = arith.constant 1.000000e+00 : f32
    %631 = vector.broadcast %cst_213 : f32 to vector<8x384xf32>
    %632 = arith.addf %631, %630 : vector<8x384xf32>
    %633 = arith.divf %631, %632 : vector<8x384xf32>
    %634 = vector.extract_strided_slice %443 {offsets = [0, 384], sizes = [8, 128], strides = [1, 1]} : vector<8x512xf32> to vector<8x128xf32>
    %635 = math.tanh %634 : vector<8x128xf32>
    %636 = vector.extract_strided_slice %633 {offsets = [0, 0], sizes = [8, 128], strides = [1, 1]} : vector<8x384xf32> to vector<8x128xf32>
    %637 = vector.extract_strided_slice %633 {offsets = [0, 256], sizes = [8, 128], strides = [1, 1]} : vector<8x384xf32> to vector<8x128xf32>
    %638 = arith.mulf %636, %635 : vector<8x128xf32>
    %639 = math.tanh %638 : vector<8x128xf32>
    %640 = arith.mulf %637, %639 : vector<8x128xf32>
    %c0_214 = arith.constant 0 : index
    %c0_215 = arith.constant 0 : index
    %641 = vector.load %arg9[%c0_214, %c0_215] : memref<256x8xf32, #tpu.memory_space<vmem>>, vector<128x8xf32>
    %cst_216 = arith.constant dense<0.000000e+00> : vector<8x8xf32>
    %642 = tpu.matmul %627, %641, %cst_216 {dimension_numbers = #tpu.dot_dimension_numbers<[1], [0], [0], [1], [0, 0, 1, 1], [], []>} : vector<8x128xf32>, vector<128x8xf32>, vector<8x8xf32> -> vector<8x8xf32>
    %c128_217 = arith.constant 128 : index
    %c0_218 = arith.constant 0 : index
    %643 = vector.load %arg9[%c128_217, %c0_218] : memref<256x8xf32, #tpu.memory_space<vmem>>, vector<128x8xf32>
    %cst_219 = arith.constant dense<0.000000e+00> : vector<8x8xf32>
    %644 = tpu.matmul %640, %643, %cst_219 {dimension_numbers = #tpu.dot_dimension_numbers<[1], [0], [0], [1], [0, 0, 1, 1], [], []>} : vector<8x128xf32>, vector<128x8xf32>, vector<8x8xf32> -> vector<8x8xf32>
    %645 = arith.addf %642, %644 : vector<8x8xf32>
    %c0_220 = arith.constant 0 : index
    %c0_221 = arith.constant 0 : index
    %646 = vector.load %arg10[%c0_220, %c0_221] : memref<1x8xf32, #tpu.memory_space<vmem>>, vector<1x8xf32>
    %647 = vector.broadcast %646 : vector<1x8xf32> to vector<8x8xf32>
    %648 = arith.addf %645, %647 : vector<8x8xf32>
    %c0_222 = arith.constant 0 : index
    %c0_223 = arith.constant 0 : index
    %649 = vector.load %arg11[%c0_222, %c0_223] : memref<8x8xf32, #tpu.memory_space<vmem>>, vector<8x8xf32>
    tpu.vector_store %arg11[%c0_222, %c0_223], %648 {strides = array<i32>} : memref<8x8xf32, #tpu.memory_space<vmem>>, vector<8x8xf32>,
    return
  }
}

</mosaic_0001>

<llo_original>
// kernel: bilstm_forward.1
$region0: #{bilstm_forward.1}
  #allocation0 [shape = 'u32[]', space=smem, size = 0x4, offset = 0x4, fixed_abs, tag = 'smem constant byte address 0x4 - core index']
  #allocation1 [shape = 'u32[72,128]{1,0:T(1,128)}', space=vmem, size = 0x9000, scoped, tag = 'internal scratch']
  #allocation2 [shape = 'f32[64,512]{1,0:T(8,128)}', space=vmem, size = 0x20000, scoped, tag = 'scratch operand']
  #allocation3 [shape = 'f32[64,512]{1,0:T(8,128)}', space=vmem, size = 0x20000, scoped, tag = 'scratch operand']
  #allocation4 [shape = 'f32[64,128]{1,0:T(8,128)}', space=vmem, size = 0x8000, scoped, tag = 'scratch operand']
  #allocation5 [shape = 'f32[64,128]{1,0:T(8,128)}', space=vmem, size = 0x8000, scoped, tag = 'scratch operand']
  %s0 = inlined_call_operand.vmem [shape: f32[8,8,16], index: 0, kind: input, shape index: {}]
  %s1 = inlined_call_operand.vmem [shape: f32[16,1024], index: 1, kind: input, shape index: {}]
  %s2 = inlined_call_operand.hbm [shape: f32[128,512], index: 2, kind: input, shape index: {}]
  %s3 = inlined_call_operand.hbm [shape: f32[128,512], index: 3, kind: input, shape index: {}]
  %s4 = inlined_call_operand.vmem [shape: f32[1,1024], index: 4, kind: input, shape index: {}]
  %s5 = inlined_call_operand.hbm [shape: f32[256,1024], index: 5, kind: input, shape index: {}]
  %s6 = inlined_call_operand.hbm [shape: f32[128,512], index: 6, kind: input, shape index: {}]
  %s7 = inlined_call_operand.hbm [shape: f32[128,512], index: 7, kind: input, shape index: {}]
  %s8 = inlined_call_operand.vmem [shape: f32[1,1024], index: 8, kind: input, shape index: {}]
  %s9 = inlined_call_operand.vmem [shape: f32[256,8], index: 9, kind: input, shape index: {}]
  %s10 = inlined_call_operand.vmem [shape: f32[1,8], index: 10, kind: input, shape index: {}]
  %s11 = inlined_call_operand.hbm [shape: f32[8,8], index: 11, kind: output, shape index: {}]
  %s12 = sld [smem:[#allocation0]]
  $region74: #{bilstm_forward.1} parent=0
    _
  %s14 = ssub.s32 1, %s12
  %s15 = scalar_select 0, %s14, %s12
  $region1: #{bilstm_forward.1} parent=0
    #allocation6 [shape = 'u8[262144]{0}', space=vmem, size = 0x40000, scoped, tag = 'input window, operand 2, single buffered']
    #allocation7 [shape = 's32[1]{0}', space=sflag, size = 0x4, scoped, tag = 'scoped memory for bilstm_forward.1']
    #allocation8 [shape = 's32[1]{0}', space=sflag, size = 0x4, scoped, tag = 'scoped memory for bilstm_forward.1']
    #allocation9 [shape = 'u8[262144]{0}', space=vmem, size = 0x40000, scoped, tag = 'input window, operand 3, single buffered']
    #allocation10 [shape = 's32[1]{0}', space=sflag, size = 0x4, scoped, tag = 'scoped memory for bilstm_forward.1']
    #allocation11 [shape = 'u8[1048576]{0}', space=vmem, size = 0x100000, scoped, tag = 'input window, operand 5, single buffered']
    #allocation12 [shape = 'u8[262144]{0}', space=vmem, size = 0x40000, scoped, tag = 'input window, operand 6, single buffered']
    #allocation13 [shape = 's32[1]{0}', space=sflag, size = 0x4, scoped, tag = 'scoped memory for bilstm_forward.1']
    #allocation14 [shape = 'u8[262144]{0}', space=vmem, size = 0x40000, scoped, tag = 'input window, operand 7, single buffered']
    #allocation15 [shape = 'u8[4096]{0}', space=vmem, size = 0x1000, scoped, tag = 'output window, operand 0, single buffered']
    %16 = vsyncpa [#allocation7], 0
    %17 = vsyncpa [#allocation10], 0
    %18 = vsyncpa [#allocation13], 0
    %19 = vsyncpa [#allocation8], 0
    // Predicated region
    $region2: #{bilstm_forward.1} parent=1 // pred_check
      _
    $region3: #{bilstm_forward.1} parent=1 // pred_check_branch
      %21 = sbr.rel (0) target = $region5
    $region4: #{bilstm_forward.1} parent=1 // pred_region
      _
    $region5: #{bilstm_forward.1} parent=1 // pred_fallthru
      _
    // Predicated region
    $region6: #{bilstm_forward.1} parent=1 // pred_check
      _
    $region7: #{bilstm_forward.1} parent=1 // pred_check_branch
      %23 = sbr.rel (0) target = $region9
    $region8: #{bilstm_forward.1} parent=1 // pred_region
      _
    $region9: #{bilstm_forward.1} parent=1 // pred_fallthru
      _
    // Predicated region
    $region10: #{bilstm_forward.1} parent=1 // pred_check
      _
    $region11: #{bilstm_forward.1} parent=1 // pred_check_branch
      %25 = sbr.rel (0) target = $region13
    $region12: #{bilstm_forward.1} parent=1 // pred_region
      %27 = vsyncadd [#allocation7], 0
      %s28 = sshll.u32 %s2, 4
      %s29 = int_to_ptr.hbm [resolvable:$true] %s28
      %s30 = sshll.u32 [#allocation6], 4
      %s31 = int_to_ptr.vmem [resolvable:$true] %s30
      %36 = dma.hbm_to_vmem [thread:$0]  %s29, 8192, %s31, [#allocation7], 512, 512, 32
    $region13: #{bilstm_forward.1} parent=1 // pred_fallthru
      _
    // Predicated region
    $region14: #{bilstm_forward.1} parent=1 // pred_check
      _
    $region15: #{bilstm_forward.1} parent=1 // pred_check_branch
      %38 = sbr.rel (0) target = $region17
    $region16: #{bilstm_forward.1} parent=1 // pred_region
      %40 = vsyncadd [#allocation10], 0
      %s41 = sshll.u32 %s3, 4
      %s42 = int_to_ptr.hbm [resolvable:$true] %s41
      %s43 = sshll.u32 [#allocation9], 4
      %s44 = int_to_ptr.vmem [resolvable:$true] %s43
      %49 = dma.hbm_to_vmem [thread:$0]  %s42, 8192, %s44, [#allocation10], 512, 512, 32
    $region17: #{bilstm_forward.1} parent=1 // pred_fallthru
      _
    // Predicated region
    $region18: #{bilstm_forward.1} parent=1 // pred_check
      _
    $region19: #{bilstm_forward.1} parent=1 // pred_check_branch
      %51 = sbr.rel (0) target = $region21
    $region20: #{bilstm_forward.1} parent=1 // pred_region
      _
    $region21: #{bilstm_forward.1} parent=1 // pred_fallthru
      _
    // Predicated region
    $region22: #{bilstm_forward.1} parent=1 // pred_check
      _
    $region23: #{bilstm_forward.1} parent=1 // pred_check_branch
      %53 = sbr.rel (0) target = $region25
    $region24: #{bilstm_forward.1} parent=1 // pred_region
      %55 = vsyncadd [#allocation10], 0
      %s56 = sshll.u32 %s5, 4
      %s57 = int_to_ptr.hbm [resolvable:$true] %s56
      %s58 = sshll.u32 [#allocation11], 4
      %s59 = int_to_ptr.vmem [resolvable:$true] %s58
      %64 = dma.hbm_to_vmem [thread:$0]  %s57, 32768, %s59, [#allocation10], 1024, 1024, 64
    $region25: #{bilstm_forward.1} parent=1 // pred_fallthru
      _
    // Predicated region
    $region26: #{bilstm_forward.1} parent=1 // pred_check
      _
    $region27: #{bilstm_forward.1} parent=1 // pred_check_branch
      %66 = sbr.rel (0) target = $region29
    $region28: #{bilstm_forward.1} parent=1 // pred_region
      %68 = vsyncadd [#allocation13], 0
      %s69 = sshll.u32 %s6, 4
      %s70 = int_to_ptr.hbm [resolvable:$true] %s69
      %s71 = sshll.u32 [#allocation12], 4
      %s72 = int_to_ptr.vmem [resolvable:$true] %s71
      %77 = dma.hbm_to_vmem [thread:$0]  %s70, 8192, %s72, [#allocation13], 512, 512, 32
    $region29: #{bilstm_forward.1} parent=1 // pred_fallthru
      _
    // Predicated region
    $region30: #{bilstm_forward.1} parent=1 // pred_check
      _
    $region31: #{bilstm_forward.1} parent=1 // pred_check_branch
      %79 = sbr.rel (0) target = $region33
    $region32: #{bilstm_forward.1} parent=1 // pred_region
      %81 = vsyncadd [#allocation13], 0
      %s82 = sshll.u32 %s7, 4
      %s83 = int_to_ptr.hbm [resolvable:$true] %s82
      %s84 = sshll.u32 [#allocation14], 4
      %s85 = int_to_ptr.vmem [resolvable:$true] %s84
      %90 = dma.hbm_to_vmem [thread:$0]  %s83, 8192, %s85, [#allocation13], 512, 512, 32
    $region33: #{bilstm_forward.1} parent=1 // pred_fallthru
      _
    // Predicated region
    $region34: #{bilstm_forward.1} parent=1 // pred_check
      _
    $region35: #{bilstm_forward.1} parent=1 // pred_check_branch
      %92 = sbr.rel (0) target = $region37
    $region36: #{bilstm_forward.1} parent=1 // pred_region
      _
    $region37: #{bilstm_forward.1} parent=1 // pred_fallthru
      _
    // Predicated region
    $region38: #{bilstm_forward.1} parent=1 // pred_check
      _
    $region39: #{bilstm_forward.1} parent=1 // pred_check_branch
      %94 = sbr.rel (0) target = $region41
    $region40: #{bilstm_forward.1} parent=1 // pred_region
      _
    $region41: #{bilstm_forward.1} parent=1 // pred_fallthru
      _
    // Predicated region
    $region42: #{bilstm_forward.1} parent=1 // pred_check
      _
    $region43: #{bilstm_forward.1} parent=1 // pred_check_branch
      %96 = sbr.rel (0) target = $region45
    $region44: #{bilstm_forward.1} parent=1 // pred_region
      _
    $region45: #{bilstm_forward.1} parent=1 // pred_fallthru
      _
    // Predicated region
    $region46: #{bilstm_forward.1} parent=1 // pred_check
      _
    $region47: #{bilstm_forward.1} parent=1 // pred_check_branch
      %98 = sbr.rel (0) target = $region49
    $region48: #{bilstm_forward.1} parent=1 // pred_region
      %100 = dma.done [#allocation7], 8192
    $region49: #{bilstm_forward.1} parent=1 // pred_fallthru
      _
    // Predicated region
    $region50: #{bilstm_forward.1} parent=1 // pred_check
      _
    $region51: #{bilstm_forward.1} parent=1 // pred_check_branch
      %102 = sbr.rel (0) target = $region53
    $region52: #{bilstm_forward.1} parent=1 // pred_region
      %104 = dma.done [#allocation10], 8192
    $region53: #{bilstm_forward.1} parent=1 // pred_fallthru
      _
    // Predicated region
    $region54: #{bilstm_forward.1} parent=1 // pred_check
      _
    $region55: #{bilstm_forward.1} parent=1 // pred_check_branch
      %106 = sbr.rel (0) target = $region57
    $region56: #{bilstm_forward.1} parent=1 // pred_region
      %108 = dma.done [#allocation10], 32768
    $region57: #{bilstm_forward.1} parent=1 // pred_fallthru
      _
    // Predicated region
    $region58: #{bilstm_forward.1} parent=1 // pred_check
      _
    $region59: #{bilstm_forward.1} parent=1 // pred_check_branch
      %110 = sbr.rel (0) target = $region61
    $region60: #{bilstm_forward.1} parent=1 // pred_region
      %112 = dma.done [#allocation13], 8192
    $region61: #{bilstm_forward.1} parent=1 // pred_fallthru
      _
    // Predicated region
    $region62: #{bilstm_forward.1} parent=1 // pred_check
      _
    $region63: #{bilstm_forward.1} parent=1 // pred_check_branch
      %114 = sbr.rel (0) target = $region65
    $region64: #{bilstm_forward.1} parent=1 // pred_region
      %116 = dma.done [#allocation13], 8192
    $region65: #{bilstm_forward.1} parent=1 // pred_fallthru
      _
    %v117 = vld [vmem:[%s0] sm:$0xff]
    %v118 = vld [vmem:[%s0 + $0x8] sm:$0xff]
    %v119 = vld [vmem:[%s0 + $0x10] sm:$0xff]
    %v120 = vld [vmem:[%s0 + $0x18] sm:$0xff]
    %v121 = vld [vmem:[%s0 + $0x20] sm:$0xff]
    %v122 = vld [vmem:[%s0 + $0x28] sm:$0xff]
    %v123 = vld [vmem:[%s0 + $0x30] sm:$0xff]
    %v124 = vld [vmem:[%s0 + $0x38] sm:$0xff]
    %v125 = vld [vmem:[%s1] sm:$0xff]
    %v126 = vld [vmem:[%s1 + $0x8] sm:$0xff]
    %v127 = vld [vmem:[%s1 + $0x10] sm:$0xff]
    %v128 = vld [vmem:[%s1 + $0x18] sm:$0xff]
    %v129 = vld [vmem:[%s1 + $0x40] sm:$0xff]
    %v130 = vld [vmem:[%s1 + $0x48] sm:$0xff]
    %v131 = vld [vmem:[%s1 + $0x50] sm:$0xff]
    %v132 = vld [vmem:[%s1 + $0x58] sm:$0xff]
    %v133 = vld [vmem:[%s4] sm:$0xf]
    %v135 = vperm.slane %v133, 0
    %v136 = vperm.slane %v133, 1
    %v137 = vperm.slane %v133, 2
    %v138 = vperm.slane %v133, 3
    %vm143 = vcmask 130048
    %v145 = vsel %vm143, %v117, 0
    %v148 = vsel %vm143, %v118, 0
    %v151 = vsel %vm143, %v119, 0
    %v154 = vsel %vm143, %v120, 0
    %v157 = vsel %vm143, %v121, 0
    %v160 = vsel %vm143, %v122, 0
    %v163 = vsel %vm143, %v123, 0
    %v166 = vsel %vm143, %v124, 0
    %168 = vmatpush.msra.mxu0 0.0
    %169 = vmatpush.msra.mxu0 0.0
    %170 = vmatpush.msra.mxu0 0.0
    %171 = vmatpush.msra.mxu0 0.0
    %172 = vmatpush.msra.mxu0 0.0
    %173 = vmatpush.msra.mxu0 0.0
    %174 = vmatpush.msra.mxu0 0.0
    %175 = vmatpush.msra.mxu0 0.0
    %176 = vmatpush.msra.mxu0 0.0
    %177 = vmatpush.msra.mxu0 0.0
    %178 = vmatpush.msra.mxu0 0.0
    %179 = vmatpush.msra.mxu0 0.0
    %180 = vmatpush.msra.mxu0 0.0
    %181 = vmatpush.msra.mxu0 0.0
    %182 = vmatpush.msra.mxu0 %v129
    %183 = vmatpush.msra.mxu0 %v125
    %184 = vmatmul.f32.gmra.mxu0 %v145
    %v185 = vpop.f32.mrf.mxu0
    %v186 = vadd.f32 %v135, %v185
    %187 = vmatmul.f32.gmra.mxu0 %v148
    %v188 = vpop.f32.mrf.mxu0
    %v189 = vadd.f32 %v135, %v188
    %190 = vmatmul.f32.gmra.mxu0 %v151
    %v191 = vpop.f32.mrf.mxu0
    %v192 = vadd.f32 %v135, %v191
    %193 = vmatmul.f32.gmra.mxu0 %v154
    %v194 = vpop.f32.mrf.mxu0
    %v195 = vadd.f32 %v135, %v194
    %196 = vmatmul.f32.gmra.mxu0 %v157
    %v197 = vpop.f32.mrf.mxu0
    %v198 = vadd.f32 %v135, %v197
    %199 = vmatmul.f32.gmra.mxu0 %v160
    %v200 = vpop.f32.mrf.mxu0
    %v201 = vadd.f32 %v135, %v200
    %202 = vmatmul.f32.gmra.mxu0 %v163
    %v203 = vpop.f32.mrf.mxu0
    %v204 = vadd.f32 %v135, %v203
    %205 = vmatmul.f32.gmra.mxu0 %v166
    %v206 = vpop.f32.mrf.mxu0
    %v207 = vadd.f32 %v135, %v206
    %208 = vdwg.mxu0
    %209 = vmatpush.msra.mxu0 0.0
    %210 = vmatpush.msra.mxu0 0.0
    %211 = vmatpush.msra.mxu0 0.0
    %212 = vmatpush.msra.mxu0 0.0
    %213 = vmatpush.msra.mxu0 0.0
    %214 = vmatpush.msra.mxu0 0.0
    %215 = vmatpush.msra.mxu0 0.0
    %216 = vmatpush.msra.mxu0 0.0
    %217 = vmatpush.msra.mxu0 0.0
    %218 = vmatpush.msra.mxu0 0.0
    %219 = vmatpush.msra.mxu0 0.0
    %220 = vmatpush.msra.mxu0 0.0
    %221 = vmatpush.msra.mxu0 0.0
    %222 = vmatpush.msra.mxu0 0.0
    %223 = vmatpush.msra.mxu0 %v130
    %224 = vmatpush.msra.mxu0 %v126
    %225 = vmatmul.f32.gmra.mxu0 %v145
    %v226 = vpop.f32.mrf.mxu0
    %v227 = vadd.f32 %v136, %v226
    %228 = vmatmul.f32.gmra.mxu0 %v148
    %v229 = vpop.f32.mrf.mxu0
    %v230 = vadd.f32 %v136, %v229
    %231 = vmatmul.f32.gmra.mxu0 %v151
    %v232 = vpop.f32.mrf.mxu0
    %v233 = vadd.f32 %v136, %v232
    %234 = vmatmul.f32.gmra.mxu0 %v154
    %v235 = vpop.f32.mrf.mxu0
    %v236 = vadd.f32 %v136, %v235
    %237 = vmatmul.f32.gmra.mxu0 %v157
    %v238 = vpop.f32.mrf.mxu0
    %v239 = vadd.f32 %v136, %v238
    %240 = vmatmul.f32.gmra.mxu0 %v160
    %v241 = vpop.f32.mrf.mxu0
    %v242 = vadd.f32 %v136, %v241
    %243 = vmatmul.f32.gmra.mxu0 %v163
    %v244 = vpop.f32.mrf.mxu0
    %v245 = vadd.f32 %v136, %v244
    %246 = vmatmul.f32.gmra.mxu0 %v166
    %v247 = vpop.f32.mrf.mxu0
    %v248 = vadd.f32 %v136, %v247
    %249 = vdwg.mxu0
    %250 = vmatpush.msra.mxu0 0.0
    %251 = vmatpush.msra.mxu0 0.0
    %252 = vmatpush.msra.mxu0 0.0
    %253 = vmatpush.msra.mxu0 0.0
    %254 = vmatpush.msra.mxu0 0.0
    %255 = vmatpush.msra.mxu0 0.0
    %256 = vmatpush.msra.mxu0 0.0
    %257 = vmatpush.msra.mxu0 0.0
    %258 = vmatpush.msra.mxu0 0.0
    %259 = vmatpush.msra.mxu0 0.0
    %260 = vmatpush.msra.mxu0 0.0
    %261 = vmatpush.msra.mxu0 0.0
    %262 = vmatpush.msra.mxu0 0.0
    %263 = vmatpush.msra.mxu0 0.0
    %264 = vmatpush.msra.mxu0 %v131
    %265 = vmatpush.msra.mxu0 %v127
    %266 = vmatmul.f32.gmra.mxu0 %v145
    %v267 = vpop.f32.mrf.mxu0
    %v268 = vadd.f32 %v137, %v267
    %269 = vmatmul.f32.gmra.mxu0 %v148
    %v270 = vpop.f32.mrf.mxu0
    %v271 = vadd.f32 %v137, %v270
    %272 = vmatmul.f32.gmra.mxu0 %v151
    %v273 = vpop.f32.mrf.mxu0
    %v274 = vadd.f32 %v137, %v273
    %275 = vmatmul.f32.gmra.mxu0 %v154
    %v276 = vpop.f32.mrf.mxu0
    %v277 = vadd.f32 %v137, %v276
    %278 = vmatmul.f32.gmra.mxu0 %v157
    %v279 = vpop.f32.mrf.mxu0
    %v280 = vadd.f32 %v137, %v279
    %281 = vmatmul.f32.gmra.mxu0 %v160
    %v282 = vpop.f32.mrf.mxu0
    %v283 = vadd.f32 %v137, %v282
    %284 = vmatmul.f32.gmra.mxu0 %v163
    %v285 = vpop.f32.mrf.mxu0
    %v286 = vadd.f32 %v137, %v285
    %287 = vmatmul.f32.gmra.mxu0 %v166
    %v288 = vpop.f32.mrf.mxu0
    %v289 = vadd.f32 %v137, %v288
    %290 = vdwg.mxu0
    %291 = vmatpush.msra.mxu0 0.0
    %292 = vmatpush.msra.mxu0 0.0
    %293 = vmatpush.msra.mxu0 0.0
    %294 = vmatpush.msra.mxu0 0.0
    %295 = vmatpush.msra.mxu0 0.0
    %296 = vmatpush.msra.mxu0 0.0
    %297 = vmatpush.msra.mxu0 0.0
    %298 = vmatpush.msra.mxu0 0.0
    %299 = vmatpush.msra.mxu0 0.0
    %300 = vmatpush.msra.mxu0 0.0
    %301 = vmatpush.msra.mxu0 0.0
    %302 = vmatpush.msra.mxu0 0.0
    %303 = vmatpush.msra.mxu0 0.0
    %304 = vmatpush.msra.mxu0 0.0
    %305 = vmatpush.msra.mxu0 %v132
    %306 = vmatpush.msra.mxu0 %v128
    %307 = vmatmul.f32.gmra.mxu0 %v145
    %v308 = vpop.f32.mrf.mxu0
    %v309 = vadd.f32 %v138, %v308
    %310 = vmatmul.f32.gmra.mxu0 %v148
    %v311 = vpop.f32.mrf.mxu0
    %v312 = vadd.f32 %v138, %v311
    %313 = vmatmul.f32.gmra.mxu0 %v151
    %v314 = vpop.f32.mrf.mxu0
    %v315 = vadd.f32 %v138, %v314
    %316 = vmatmul.f32.gmra.mxu0 %v154
    %v317 = vpop.f32.mrf.mxu0
    %v318 = vadd.f32 %v138, %v317
    %319 = vmatmul.f32.gmra.mxu0 %v157
    %v320 = vpop.f32.mrf.mxu0
    %v321 = vadd.f32 %v138, %v320
    %322 = vmatmul.f32.gmra.mxu0 %v160
    %v323 = vpop.f32.mrf.mxu0
    %v324 = vadd.f32 %v138, %v323
    %325 = vmatmul.f32.gmra.mxu0 %v163
    %v326 = vpop.f32.mrf.mxu0
    %v327 = vadd.f32 %v138, %v326
    %328 = vmatmul.f32.gmra.mxu0 %v166
    %v329 = vpop.f32.mrf.mxu0
    %v330 = vadd.f32 %v138, %v329
    %331 = vdwg.mxu0
    %332 = vst [vmem:[#allocation2] sm:$0xff] %v186
    %333 = vst [vmem:[#allocation2 + $0x8] sm:$0xff] %v227
    %334 = vst [vmem:[#allocation2 + $0x10] sm:$0xff] %v268
    %335 = vst [vmem:[#allocation2 + $0x18] sm:$0xff] %v309
    %336 = vst [vmem:[#allocation2 + $0x20] sm:$0xff] %v189
    %337 = vst [vmem:[#allocation2 + $0x28] sm:$0xff] %v230
    %338 = vst [vmem:[#allocation2 + $0x30] sm:$0xff] %v271
    %339 = vst [vmem:[#allocation2 + $0x38] sm:$0xff] %v312
    %340 = vst [vmem:[#allocation2 + $0x40] sm:$0xff] %v192
    %341 = vst [vmem:[#allocation2 + $0x48] sm:$0xff] %v233
    %342 = vst [vmem:[#allocation2 + $0x50] sm:$0xff] %v274
    %343 = vst [vmem:[#allocation2 + $0x58] sm:$0xff] %v315
    %344 = vst [vmem:[#allocation2 + $0x60] sm:$0xff] %v195
    %345 = vst [vmem:[#allocation2 + $0x68] sm:$0xff] %v236
    %346 = vst [vmem:[#allocation2 + $0x70] sm:$0xff] %v277
    %347 = vst [vmem:[#allocation2 + $0x78] sm:$0xff] %v318
    %348 = vst [vmem:[#allocation2 + $0x80] sm:$0xff] %v198
    %349 = vst [vmem:[#allocation2 + $0x88] sm:$0xff] %v239
    %350 = vst [vmem:[#allocation2 + $0x90] sm:$0xff] %v280
    %351 = vst [vmem:[#allocation2 + $0x98] sm:$0xff] %v321
    %352 = vst [vmem:[#allocation2 + $0xa0] sm:$0xff] %v201
    %353 = vst [vmem:[#allocation2 + $0xa8] sm:$0xff] %v242
    %354 = vst [vmem:[#allocation2 + $0xb0] sm:$0xff] %v283
    %355 = vst [vmem:[#allocation2 + $0xb8] sm:$0xff] %v324
    %356 = vst [vmem:[#allocation2 + $0xc0] sm:$0xff] %v204
    %357 = vst [vmem:[#allocation2 + $0xc8] sm:$0xff] %v245
    %358 = vst [vmem:[#allocation2 + $0xd0] sm:$0xff] %v286
    %359 = vst [vmem:[#allocation2 + $0xd8] sm:$0xff] %v327
    %360 = vst [vmem:[#allocation2 + $0xe0] sm:$0xff] %v207
    %361 = vst [vmem:[#allocation2 + $0xe8] sm:$0xff] %v248
    %362 = vst [vmem:[#allocation2 + $0xf0] sm:$0xff] %v289
    %363 = vst [vmem:[#allocation2 + $0xf8] sm:$0xff] %v330
    %v364 = vld [vmem:[%s1 + $0x20] sm:$0xff]
    %v365 = vld [vmem:[%s1 + $0x28] sm:$0xff]
    %v366 = vld [vmem:[%s1 + $0x30] sm:$0xff]
    %v367 = vld [vmem:[%s1 + $0x38] sm:$0xff]
    %v368 = vld [vmem:[%s1 + $0x60] sm:$0xff]
    %v369 = vld [vmem:[%s1 + $0x68] sm:$0xff]
    %v370 = vld [vmem:[%s1 + $0x70] sm:$0xff]
    %v371 = vld [vmem:[%s1 + $0x78] sm:$0xff]
    %v372 = vld [vmem:[%s4 + $0x4] sm:$0xf]
    %v374 = vperm.slane %v372, 0
    %v375 = vperm.slane %v372, 1
    %v376 = vperm.slane %v372, 2
    %v377 = vperm.slane %v372, 3
    %382 = vmatpush.msra.mxu0 0.0
    %383 = vmatpush.msra.mxu0 0.0
    %384 = vmatpush.msra.mxu0 0.0
    %385 = vmatpush.msra.mxu0 0.0
    %386 = vmatpush.msra.mxu0 0.0
    %387 = vmatpush.msra.mxu0 0.0
    %388 = vmatpush.msra.mxu0 0.0
    %389 = vmatpush.msra.mxu0 0.0
    %390 = vmatpush.msra.mxu0 0.0
    %391 = vmatpush.msra.mxu0 0.0
    %392 = vmatpush.msra.mxu0 0.0
    %393 = vmatpush.msra.mxu0 0.0
    %394 = vmatpush.msra.mxu0 0.0
    %395 = vmatpush.msra.mxu0 0.0
    %396 = vmatpush.msra.mxu0 %v368
    %397 = vmatpush.msra.mxu0 %v364
    %398 = vmatmul.f32.gmra.mxu0 %v145
    %v399 = vpop.f32.mrf.mxu0
    %v400 = vadd.f32 %v374, %v399
    %401 = vmatmul.f32.gmra.mxu0 %v148
    %v402 = vpop.f32.mrf.mxu0
    %v403 = vadd.f32 %v374, %v402
    %404 = vmatmul.f32.gmra.mxu0 %v151
    %v405 = vpop.f32.mrf.mxu0
    %v406 = vadd.f32 %v374, %v405
    %407 = vmatmul.f32.gmra.mxu0 %v154
    %v408 = vpop.f32.mrf.mxu0
    %v409 = vadd.f32 %v374, %v408
    %410 = vmatmul.f32.gmra.mxu0 %v157
    %v411 = vpop.f32.mrf.mxu0
    %v412 = vadd.f32 %v374, %v411
    %413 = vmatmul.f32.gmra.mxu0 %v160
    %v414 = vpop.f32.mrf.mxu0
    %v415 = vadd.f32 %v374, %v414
    %416 = vmatmul.f32.gmra.mxu0 %v163
    %v417 = vpop.f32.mrf.mxu0
    %v418 = vadd.f32 %v374, %v417
    %419 = vmatmul.f32.gmra.mxu0 %v166
    %v420 = vpop.f32.mrf.mxu0
    %v421 = vadd.f32 %v374, %v420
    %422 = vdwg.mxu0
    %423 = vmatpush.msra.mxu0 0.0
    %424 = vmatpush.msra.mxu0 0.0
    %425 = vmatpush.msra.mxu0 0.0
    %426 = vmatpush.msra.mxu0 0.0
    %427 = vmatpush.msra.mxu0 0.0
    %428 = vmatpush.msra.mxu0 0.0
    %429 = vmatpush.msra.mxu0 0.0
    %430 = vmatpush.msra.mxu0 0.0
    %431 = vmatpush.msra.mxu0 0.0
    %432 = vmatpush.msra.mxu0 0.0
    %433 = vmatpush.msra.mxu0 0.0
    %434 = vmatpush.msra.mxu0 0.0
    %435 = vmatpush.msra.mxu0 0.0
    %436 = vmatpush.msra.mxu0 0.0
    %437 = vmatpush.msra.mxu0 %v369
    %438 = vmatpush.msra.mxu0 %v365
    %439 = vmatmul.f32.gmra.mxu0 %v145
    %v440 = vpop.f32.mrf.mxu0
    %v441 = vadd.f32 %v375, %v440
    %442 = vmatmul.f32.gmra.mxu0 %v148
    %v443 = vpop.f32.mrf.mxu0
    %v444 = vadd.f32 %v375, %v443
    %445 = vmatmul.f32.gmra.mxu0 %v151
    %v446 = vpop.f32.mrf.mxu0
    %v447 = vadd.f32 %v375, %v446
    %448 = vmatmul.f32.gmra.mxu0 %v154
    %v449 = vpop.f32.mrf.mxu0
    %v450 = vadd.f32 %v375, %v449
    %451 = vmatmul.f32.gmra.mxu0 %v157
    %v452 = vpop.f32.mrf.mxu0
    %v453 = vadd.f32 %v375, %v452
    %454 = vmatmul.f32.gmra.mxu0 %v160
    %v455 = vpop.f32.mrf.mxu0
    %v456 = vadd.f32 %v375, %v455
    %457 = vmatmul.f32.gmra.mxu0 %v163
    %v458 = vpop.f32.mrf.mxu0
    %v459 = vadd.f32 %v375, %v458
    %460 = vmatmul.f32.gmra.mxu0 %v166
    %v461 = vpop.f32.mrf.mxu0
    %v462 = vadd.f32 %v375, %v461
    %463 = vdwg.mxu0
    %464 = vmatpush.msra.mxu0 0.0
    %465 = vmatpush.msra.mxu0 0.0
    %466 = vmatpush.msra.mxu0 0.0
    %467 = vmatpush.msra.mxu0 0.0
    %468 = vmatpush.msra.mxu0 0.0
    %469 = vmatpush.msra.mxu0 0.0
    %470 = vmatpush.msra.mxu0 0.0
    %471 = vmatpush.msra.mxu0 0.0
    %472 = vmatpush.msra.mxu0 0.0
    %473 = vmatpush.msra.mxu0 0.0
    %474 = vmatpush.msra.mxu0 0.0
    %475 = vmatpush.msra.mxu0 0.0
    %476 = vmatpush.msra.mxu0 0.0
    %477 = vmatpush.msra.mxu0 0.0
    %478 = vmatpush.msra.mxu0 %v370
    %479 = vmatpush.msra.mxu0 %v366
    %480 = vmatmul.f32.gmra.mxu0 %v145
    %v481 = vpop.f32.mrf.mxu0
    %v482 = vadd.f32 %v376, %v481
    %483 = vmatmul.f32.gmra.mxu0 %v148
    %v484 = vpop.f32.mrf.mxu0
    %v485 = vadd.f32 %v376, %v484
    %486 = vmatmul.f32.gmra.mxu0 %v151
    %v487 = vpop.f32.mrf.mxu0
    %v488 = vadd.f32 %v376, %v487
    %489 = vmatmul.f32.gmra.mxu0 %v154
    %v490 = vpop.f32.mrf.mxu0
    %v491 = vadd.f32 %v376, %v490
    %492 = vmatmul.f32.gmra.mxu0 %v157
    %v493 = vpop.f32.mrf.mxu0
    %v494 = vadd.f32 %v376, %v493
    %495 = vmatmul.f32.gmra.mxu0 %v160
    %v496 = vpop.f32.mrf.mxu0
    %v497 = vadd.f32 %v376, %v496
    %498 = vmatmul.f32.gmra.mxu0 %v163
    %v499 = vpop.f32.mrf.mxu0
    %v500 = vadd.f32 %v376, %v499
    %501 = vmatmul.f32.gmra.mxu0 %v166
    %v502 = vpop.f32.mrf.mxu0
    %v503 = vadd.f32 %v376, %v502
    %504 = vdwg.mxu0
    %505 = vmatpush.msra.mxu0 0.0
    %506 = vmatpush.msra.mxu0 0.0
    %507 = vmatpush.msra.mxu0 0.0
    %508 = vmatpush.msra.mxu0 0.0
    %509 = vmatpush.msra.mxu0 0.0
    %510 = vmatpush.msra.mxu0 0.0
    %511 = vmatpush.msra.mxu0 0.0
    %512 = vmatpush.msra.mxu0 0.0
    %513 = vmatpush.msra.mxu0 0.0
    %514 = vmatpush.msra.mxu0 0.0
    %515 = vmatpush.msra.mxu0 0.0
    %516 = vmatpush.msra.mxu0 0.0
    %517 = vmatpush.msra.mxu0 0.0
    %518 = vmatpush.msra.mxu0 0.0
    %519 = vmatpush.msra.mxu0 %v371
    %520 = vmatpush.msra.mxu0 %v367
    %521 = vmatmul.f32.gmra.mxu0 %v145
    %v522 = vpop.f32.mrf.mxu0
    %v523 = vadd.f32 %v377, %v522
    %524 = vmatmul.f32.gmra.mxu0 %v148
    %v525 = vpop.f32.mrf.mxu0
    %v526 = vadd.f32 %v377, %v525
    %527 = vmatmul.f32.gmra.mxu0 %v151
    %v528 = vpop.f32.mrf.mxu0
    %v529 = vadd.f32 %v377, %v528
    %530 = vmatmul.f32.gmra.mxu0 %v154
    %v531 = vpop.f32.mrf.mxu0
    %v532 = vadd.f32 %v377, %v531
    %533 = vmatmul.f32.gmra.mxu0 %v157
    %v534 = vpop.f32.mrf.mxu0
    %v535 = vadd.f32 %v377, %v534
    %536 = vmatmul.f32.gmra.mxu0 %v160
    %v537 = vpop.f32.mrf.mxu0
    %v538 = vadd.f32 %v377, %v537
    %539 = vmatmul.f32.gmra.mxu0 %v163
    %v540 = vpop.f32.mrf.mxu0
    %v541 = vadd.f32 %v377, %v540
    %542 = vmatmul.f32.gmra.mxu0 %v166
    %v543 = vpop.f32.mrf.mxu0
    %v544 = vadd.f32 %v377, %v543
    %545 = vdwg.mxu0
    %546 = vst [vmem:[#allocation3] sm:$0xff] %v400
    %547 = vst [vmem:[#allocation3 + $0x8] sm:$0xff] %v441
    %548 = vst [vmem:[#allocation3 + $0x10] sm:$0xff] %v482
    %549 = vst [vmem:[#allocation3 + $0x18] sm:$0xff] %v523
    %550 = vst [vmem:[#allocation3 + $0x20] sm:$0xff] %v403
    %551 = vst [vmem:[#allocation3 + $0x28] sm:$0xff] %v444
    %552 = vst [vmem:[#allocation3 + $0x30] sm:$0xff] %v485
    %553 = vst [vmem:[#allocation3 + $0x38] sm:$0xff] %v526
    %554 = vst [vmem:[#allocation3 + $0x40] sm:$0xff] %v406
    %555 = vst [vmem:[#allocation3 + $0x48] sm:$0xff] %v447
    %556 = vst [vmem:[#allocation3 + $0x50] sm:$0xff] %v488
    %557 = vst [vmem:[#allocation3 + $0x58] sm:$0xff] %v529
    %558 = vst [vmem:[#allocation3 + $0x60] sm:$0xff] %v409
    %559 = vst [vmem:[#allocation3 + $0x68] sm:$0xff] %v450
    %560 = vst [vmem:[#allocation3 + $0x70] sm:$0xff] %v491
    %561 = vst [vmem:[#allocation3 + $0x78] sm:$0xff] %v532
    %562 = vst [vmem:[#allocation3 + $0x80] sm:$0xff] %v412
    %563 = vst [vmem:[#allocation3 + $0x88] sm:$0xff] %v453
    %564 = vst [vmem:[#allocation3 + $0x90] sm:$0xff] %v494
    %565 = vst [vmem:[#allocation3 + $0x98] sm:$0xff] %v535
    %566 = vst [vmem:[#allocation3 + $0xa0] sm:$0xff] %v415
    %567 = vst [vmem:[#allocation3 + $0xa8] sm:$0xff] %v456
    %568 = vst [vmem:[#allocation3 + $0xb0] sm:$0xff] %v497
    %569 = vst [vmem:[#allocation3 + $0xb8] sm:$0xff] %v538
    %570 = vst [vmem:[#allocation3 + $0xc0] sm:$0xff] %v418
    %571 = vst [vmem:[#allocation3 + $0xc8] sm:$0xff] %v459
    %572 = vst [vmem:[#allocation3 + $0xd0] sm:$0xff] %v500
    %573 = vst [vmem:[#allocation3 + $0xd8] sm:$0xff] %v541
    %574 = vst [vmem:[#allocation3 + $0xe0] sm:$0xff] %v421
    %575 = vst [vmem:[#allocation3 + $0xe8] sm:$0xff] %v462
    %576 = vst [vmem:[#allocation3 + $0xf0] sm:$0xff] %v503
    %577 = vst [vmem:[#allocation3 + $0xf8] sm:$0xff] %v544
    %s578 = smul.u32 0, 4
    %s579 = smul.addr %s578, 8
    %s580 = scalar_lea.vmem [#allocation2], %s579
    %v581 = vld [vmem:[%s580] sm:$0xff]
    %v582 = vld [vmem:[%s580 + $0x8] sm:$0xff]
    %v583 = vld [vmem:[%s580 + $0x10] sm:$0xff]
    %v584 = vld [vmem:[%s580 + $0x18] sm:$0xff]
    %v585 = vld [vmem:[#allocation6] sm:$0xff]
    %v586 = vld [vmem:[#allocation6 + $0x8] sm:$0xff]
    %v587 = vld [vmem:[#allocation6 + $0x10] sm:$0xff]
    %v588 = vld [vmem:[#allocation6 + $0x18] sm:$0xff]
    %v589 = vld [vmem:[#allocation6 + $0x20] sm:$0xff]
    %v590 = vld [vmem:[#allocation6 + $0x28] sm:$0xff]
    %v591 = vld [vmem:[#allocation6 + $0x30] sm:$0xff]
    %v592 = vld [vmem:[#allocation6 + $0x38] sm:$0xff]
    %v593 = vld [vmem:[#allocation6 + $0x40] sm:$0xff]
    %v594 = vld [vmem:[#allocation6 + $0x48] sm:$0xff]
    %v595 = vld [vmem:[#allocation6 + $0x50] sm:$0xff]
    %v596 = vld [vmem:[#allocation6 + $0x58] sm:$0xff]
    %v597 = vld [vmem:[#allocation6 + $0x60] sm:$0xff]
    %v598 = vld [vmem:[#allocation6 + $0x68] sm:$0xff]
    %v599 = vld [vmem:[#allocation6 + $0x70] sm:$0xff]
    %v600 = vld [vmem:[#allocation6 + $0x78] sm:$0xff]
    %v601 = vld [vmem:[#allocation6 + $0x80] sm:$0xff]
    %v602 = vld [vmem:[#allocation6 + $0x88] sm:$0xff]
    %v603 = vld [vmem:[#allocation6 + $0x90] sm:$0xff]
    %v604 = vld [vmem:[#allocation6 + $0x98] sm:$0xff]
    %v605 = vld [vmem:[#allocation6 + $0xa0] sm:$0xff]
    %v606 = vld [vmem:[#allocation6 + $0xa8] sm:$0xff]
    %v607 = vld [vmem:[#allocation6 + $0xb0] sm:$0xff]
    %v608 = vld [vmem:[#allocation6 + $0xb8] sm:$0xff]
    %v609 = vld [vmem:[#allocation6 + $0xc0] sm:$0xff]
    %v610 = vld [vmem:[#allocation6 + $0xc8] sm:$0xff]
    %v611 = vld [vmem:[#allocation6 + $0xd0] sm:$0xff]
    %v612 = vld [vmem:[#allocation6 + $0xd8] sm:$0xff]
    %v613 = vld [vmem:[#allocation6 + $0xe0] sm:$0xff]
    %v614 = vld [vmem:[#allocation6 + $0xe8] sm:$0xff]
    %v615 = vld [vmem:[#allocation6 + $0xf0] sm:$0xff]
    %v616 = vld [vmem:[#allocation6 + $0xf8] sm:$0xff]
    %v617 = vld [vmem:[#allocation6 + $0x100] sm:$0xff]
    %v618 = vld [vmem:[#allocation6 + $0x108] sm:$0xff]
    %v619 = vld [vmem:[#allocation6 + $0x110] sm:$0xff]
    %v620 = vld [vmem:[#allocation6 + $0x118] sm:$0xff]
    %v621 = vld [vmem:[#allocation6 + $0x120] sm:$0xff]
    %v622 = vld [vmem:[#allocation6 + $0x128] sm:$0xff]
    %v623 = vld [vmem:[#allocation6 + $0x130] sm:$0xff]
    %v624 = vld [vmem:[#allocation6 + $0x138] sm:$0xff]
    %v625 = vld [vmem:[#allocation6 + $0x140] sm:$0xff]
    %v626 = vld [vmem:[#allocation6 + $0x148] sm:$0xff]
    %v627 = vld [vmem:[#allocation6 + $0x150] sm:$0xff]
    %v628 = vld [vmem:[#allocation6 + $0x158] sm:$0xff]
    %v629 = vld [vmem:[#allocation6 + $0x160] sm:$0xff]
    %v630 = vld [vmem:[#allocation6 + $0x168] sm:$0xff]
    %v631 = vld [vmem:[#allocation6 + $0x170] sm:$0xff]
    %v632 = vld [vmem:[#allocation6 + $0x178] sm:$0xff]
    %v633 = vld [vmem:[#allocation6 + $0x180] sm:$0xff]
    %v634 = vld [vmem:[#allocation6 + $0x188] sm:$0xff]
    %v635 = vld [vmem:[#allocation6 + $0x190] sm:$0xff]
    %v636 = vld [vmem:[#allocation6 + $0x198] sm:$0xff]
    %v637 = vld [vmem:[#allocation6 + $0x1a0] sm:$0xff]
    %v638 = vld [vmem:[#allocation6 + $0x1a8] sm:$0xff]
    %v639 = vld [vmem:[#allocation6 + $0x1b0] sm:$0xff]
    %v640 = vld [vmem:[#allocation6 + $0x1b8] sm:$0xff]
    %v641 = vld [vmem:[#allocation6 + $0x1c0] sm:$0xff]
    %v642 = vld [vmem:[#allocation6 + $0x1c8] sm:$0xff]
    %v643 = vld [vmem:[#allocation6 + $0x1d0] sm:$0xff]
    %v644 = vld [vmem:[#allocation6 + $0x1d8] sm:$0xff]
    %v645 = vld [vmem:[#allocation6 + $0x1e0] sm:$0xff]
    %v646 = vld [vmem:[#allocation6 + $0x1e8] sm:$0xff]
    %v647 = vld [vmem:[#allocation6 + $0x1f0] sm:$0xff]
    %v648 = vld [vmem:[#allocation6 + $0x1f8] sm:$0xff]
    %649 = vmatpush.msra.mxu0 %v645
    %650 = vmatpush.msra.mxu0 %v641
    %651 = vmatpush.msra.mxu0 %v637
    %652 = vmatpush.msra.mxu0 %v633
    %653 = vmatpush.msra.mxu0 %v629
    %654 = vmatpush.msra.mxu0 %v625
    %655 = vmatpush.msra.mxu0 %v621
    %656 = vmatpush.msra.mxu0 %v617
    %657 = vmatpush.msra.mxu0 %v613
    %658 = vmatpush.msra.mxu0 %v609
    %659 = vmatpush.msra.mxu0 %v605
    %660 = vmatpush.msra.mxu0 %v601
    %661 = vmatpush.msra.mxu0 %v597
    %662 = vmatpush.msra.mxu0 %v593
    %663 = vmatpush.msra.mxu0 %v589
    %664 = vmatpush.msra.mxu0 %v585
    %665 = vmatmul.f32.gmra.mxu0 0.0
    %v666 = vpop.f32.mrf.mxu0
    %v667 = vadd.f32 0.0, %v666
    %668 = vdwg.mxu0
    %669 = vmatpush.msra.mxu0 %v646
    %670 = vmatpush.msra.mxu0 %v642
    %671 = vmatpush.msra.mxu0 %v638
    %672 = vmatpush.msra.mxu0 %v634
    %673 = vmatpush.msra.mxu0 %v630
    %674 = vmatpush.msra.mxu0 %v626
    %675 = vmatpush.msra.mxu0 %v622
    %676 = vmatpush.msra.mxu0 %v618
    %677 = vmatpush.msra.mxu0 %v614
    %678 = vmatpush.msra.mxu0 %v610
    %679 = vmatpush.msra.mxu0 %v606
    %680 = vmatpush.msra.mxu0 %v602
    %681 = vmatpush.msra.mxu0 %v598
    %682 = vmatpush.msra.mxu0 %v594
    %683 = vmatpush.msra.mxu0 %v590
    %684 = vmatpush.msra.mxu0 %v586
    %685 = vmatmul.f32.gmra.mxu0 0.0
    %v686 = vpop.f32.mrf.mxu0
    %v687 = vadd.f32 0.0, %v686
    %688 = vdwg.mxu0
    %689 = vmatpush.msra.mxu0 %v647
    %690 = vmatpush.msra.mxu0 %v643
    %691 = vmatpush.msra.mxu0 %v639
    %692 = vmatpush.msra.mxu0 %v635
    %693 = vmatpush.msra.mxu0 %v631
    %694 = vmatpush.msra.mxu0 %v627
    %695 = vmatpush.msra.mxu0 %v623
    %696 = vmatpush.msra.mxu0 %v619
    %697 = vmatpush.msra.mxu0 %v615
    %698 = vmatpush.msra.mxu0 %v611
    %699 = vmatpush.msra.mxu0 %v607
    %700 = vmatpush.msra.mxu0 %v603
    %701 = vmatpush.msra.mxu0 %v599
    %702 = vmatpush.msra.mxu0 %v595
    %703 = vmatpush.msra.mxu0 %v591
    %704 = vmatpush.msra.mxu0 %v587
    %705 = vmatmul.f32.gmra.mxu0 0.0
    %v706 = vpop.f32.mrf.mxu0
    %v707 = vadd.f32 0.0, %v706
    %708 = vdwg.mxu0
    %709 = vmatpush.msra.mxu0 %v648
    %710 = vmatpush.msra.mxu0 %v644
    %711 = vmatpush.msra.mxu0 %v640
    %712 = vmatpush.msra.mxu0 %v636
    %713 = vmatpush.msra.mxu0 %v632
    %714 = vmatpush.msra.mxu0 %v628
    %715 = vmatpush.msra.mxu0 %v624
    %716 = vmatpush.msra.mxu0 %v620
    %717 = vmatpush.msra.mxu0 %v616
    %718 = vmatpush.msra.mxu0 %v612
    %719 = vmatpush.msra.mxu0 %v608
    %720 = vmatpush.msra.mxu0 %v604
    %721 = vmatpush.msra.mxu0 %v600
    %722 = vmatpush.msra.mxu0 %v596
    %723 = vmatpush.msra.mxu0 %v592
    %724 = vmatpush.msra.mxu0 %v588
    %725 = vmatmul.f32.gmra.mxu0 0.0
    %v726 = vpop.f32.mrf.mxu0
    %v727 = vadd.f32 0.0, %v726
    %728 = vdwg.mxu0
    %v729 = vadd.f32 %v581, %v667
    %v730 = vadd.f32 %v582, %v687
    %v731 = vadd.f32 %v583, %v707
    %v732 = vadd.f32 %v584, %v727
    %s733 = smul.u32 7, 4
    %s734 = smul.addr %s733, 8
    %s735 = scalar_lea.vmem [#allocation3], %s734
    %v736 = vld [vmem:[%s735] sm:$0xff]
    %v737 = vld [vmem:[%s735 + $0x8] sm:$0xff]
    %v738 = vld [vmem:[%s735 + $0x10] sm:$0xff]
    %v739 = vld [vmem:[%s735 + $0x18] sm:$0xff]
    %v740 = vld [vmem:[#allocation9] sm:$0xff]
    %v741 = vld [vmem:[#allocation9 + $0x8] sm:$0xff]
    %v742 = vld [vmem:[#allocation9 + $0x10] sm:$0xff]
    %v743 = vld [vmem:[#allocation9 + $0x18] sm:$0xff]
    %v744 = vld [vmem:[#allocation9 + $0x20] sm:$0xff]
    %v745 = vld [vmem:[#allocation9 + $0x28] sm:$0xff]
    %v746 = vld [vmem:[#allocation9 + $0x30] sm:$0xff]
    %v747 = vld [vmem:[#allocation9 + $0x38] sm:$0xff]
    %v748 = vld [vmem:[#allocation9 + $0x40] sm:$0xff]
    %v749 = vld [vmem:[#allocation9 + $0x48] sm:$0xff]
    %v750 = vld [vmem:[#allocation9 + $0x50] sm:$0xff]
    %v751 = vld [vmem:[#allocation9 + $0x58] sm:$0xff]
    %v752 = vld [vmem:[#allocation9 + $0x60] sm:$0xff]
    %v753 = vld [vmem:[#allocation9 + $0x68] sm:$0xff]
    %v754 = vld [vmem:[#allocation9 + $0x70] sm:$0xff]
    %v755 = vld [vmem:[#allocation9 + $0x78] sm:$0xff]
    %v756 = vld [vmem:[#allocation9 + $0x80] sm:$0xff]
    %v757 = vld [vmem:[#allocation9 + $0x88] sm:$0xff]
    %v758 = vld [vmem:[#allocation9 + $0x90] sm:$0xff]
    %v759 = vld [vmem:[#allocation9 + $0x98] sm:$0xff]
    %v760 = vld [vmem:[#allocation9 + $0xa0] sm:$0xff]
    %v761 = vld [vmem:[#allocation9 + $0xa8] sm:$0xff]
    %v762 = vld [vmem:[#allocation9 + $0xb0] sm:$0xff]
    %v763 = vld [vmem:[#allocation9 + $0xb8] sm:$0xff]
    %v764 = vld [vmem:[#allocation9 + $0xc0] sm:$0xff]
    %v765 = vld [vmem:[#allocation9 + $0xc8] sm:$0xff]
    %v766 = vld [vmem:[#allocation9 + $0xd0] sm:$0xff]
    %v767 = vld [vmem:[#allocation9 + $0xd8] sm:$0xff]
    %v768 = vld [vmem:[#allocation9 + $0xe0] sm:$0xff]
    %v769 = vld [vmem:[#allocation9 + $0xe8] sm:$0xff]
    %v770 = vld [vmem:[#allocation9 + $0xf0] sm:$0xff]
    %v771 = vld [vmem:[#allocation9 + $0xf8] sm:$0xff]
    %v772 = vld [vmem:[#allocation9 + $0x100] sm:$0xff]
    %v773 = vld [vmem:[#allocation9 + $0x108] sm:$0xff]
    %v774 = vld [vmem:[#allocation9 + $0x110] sm:$0xff]
    %v775 = vld [vmem:[#allocation9 + $0x118] sm:$0xff]
    %v776 = vld [vmem:[#allocation9 + $0x120] sm:$0xff]
    %v777 = vld [vmem:[#allocation9 + $0x128] sm:$0xff]
    %v778 = vld [vmem:[#allocation9 + $0x130] sm:$0xff]
    %v779 = vld [vmem:[#allocation9 + $0x138] sm:$0xff]
    %v780 = vld [vmem:[#allocation9 + $0x140] sm:$0xff]
    %v781 = vld [vmem:[#allocation9 + $0x148] sm:$0xff]
    %v782 = vld [vmem:[#allocation9 + $0x150] sm:$0xff]
    %v783 = vld [vmem:[#allocation9 + $0x158] sm:$0xff]
    %v784 = vld [vmem:[#allocation9 + $0x160] sm:$0xff]
    %v785 = vld [vmem:[#allocation9 + $0x168] sm:$0xff]
    %v786 = vld [vmem:[#allocation9 + $0x170] sm:$0xff]
    %v787 = vld [vmem:[#allocation9 + $0x178] sm:$0xff]
    %v788 = vld [vmem:[#allocation9 + $0x180] sm:$0xff]
    %v789 = vld [vmem:[#allocation9 + $0x188] sm:$0xff]
    %v790 = vld [vmem:[#allocation9 + $0x190] sm:$0xff]
    %v791 = vld [vmem:[#allocation9 + $0x198] sm:$0xff]
    %v792 = vld [vmem:[#allocation9 + $0x1a0] sm:$0xff]
    %v793 = vld [vmem:[#allocation9 + $0x1a8] sm:$0xff]
    %v794 = vld [vmem:[#allocation9 + $0x1b0] sm:$0xff]
    %v795 = vld [vmem:[#allocation9 + $0x1b8] sm:$0xff]
    %v796 = vld [vmem:[#allocation9 + $0x1c0] sm:$0xff]
    %v797 = vld [vmem:[#allocation9 + $0x1c8] sm:$0xff]
    %v798 = vld [vmem:[#allocation9 + $0x1d0] sm:$0xff]
    %v799 = vld [vmem:[#allocation9 + $0x1d8] sm:$0xff]
    %v800 = vld [vmem:[#allocation9 + $0x1e0] sm:$0xff]
    %v801 = vld [vmem:[#allocation9 + $0x1e8] sm:$0xff]
    %v802 = vld [vmem:[#allocation9 + $0x1f0] sm:$0xff]
    %v803 = vld [vmem:[#allocation9 + $0x1f8] sm:$0xff]
    %804 = vmatpush.msra.mxu0 %v800
    %805 = vmatpush.msra.mxu0 %v796
    %806 = vmatpush.msra.mxu0 %v792
    %807 = vmatpush.msra.mxu0 %v788
    %808 = vmatpush.msra.mxu0 %v784
    %809 = vmatpush.msra.mxu0 %v780
    %810 = vmatpush.msra.mxu0 %v776
    %811 = vmatpush.msra.mxu0 %v772
    %812 = vmatpush.msra.mxu0 %v768
    %813 = vmatpush.msra.mxu0 %v764
    %814 = vmatpush.msra.mxu0 %v760
    %815 = vmatpush.msra.mxu0 %v756
    %816 = vmatpush.msra.mxu0 %v752
    %817 = vmatpush.msra.mxu0 %v748
    %818 = vmatpush.msra.mxu0 %v744
    %819 = vmatpush.msra.mxu0 %v740
    %820 = vmatmul.f32.gmra.mxu0 0.0
    %v821 = vpop.f32.mrf.mxu0
    %v822 = vadd.f32 0.0, %v821
    %823 = vdwg.mxu0
    %824 = vmatpush.msra.mxu0 %v801
    %825 = vmatpush.msra.mxu0 %v797
    %826 = vmatpush.msra.mxu0 %v793
    %827 = vmatpush.msra.mxu0 %v789
    %828 = vmatpush.msra.mxu0 %v785
    %829 = vmatpush.msra.mxu0 %v781
    %830 = vmatpush.msra.mxu0 %v777
    %831 = vmatpush.msra.mxu0 %v773
    %832 = vmatpush.msra.mxu0 %v769
    %833 = vmatpush.msra.mxu0 %v765
    %834 = vmatpush.msra.mxu0 %v761
    %835 = vmatpush.msra.mxu0 %v757
    %836 = vmatpush.msra.mxu0 %v753
    %837 = vmatpush.msra.mxu0 %v749
    %838 = vmatpush.msra.mxu0 %v745
    %839 = vmatpush.msra.mxu0 %v741
    %840 = vmatmul.f32.gmra.mxu0 0.0
    %v841 = vpop.f32.mrf.mxu0
    %v842 = vadd.f32 0.0, %v841
    %843 = vdwg.mxu0
    %844 = vmatpush.msra.mxu0 %v802
    %845 = vmatpush.msra.mxu0 %v798
    %846 = vmatpush.msra.mxu0 %v794
    %847 = vmatpush.msra.mxu0 %v790
    %848 = vmatpush.msra.mxu0 %v786
    %849 = vmatpush.msra.mxu0 %v782
    %850 = vmatpush.msra.mxu0 %v778
    %851 = vmatpush.msra.mxu0 %v774
    %852 = vmatpush.msra.mxu0 %v770
    %853 = vmatpush.msra.mxu0 %v766
    %854 = vmatpush.msra.mxu0 %v762
    %855 = vmatpush.msra.mxu0 %v758
    %856 = vmatpush.msra.mxu0 %v754
    %857 = vmatpush.msra.mxu0 %v750
    %858 = vmatpush.msra.mxu0 %v746
    %859 = vmatpush.msra.mxu0 %v742
    %860 = vmatmul.f32.gmra.mxu0 0.0
    %v861 = vpop.f32.mrf.mxu0
    %v862 = vadd.f32 0.0, %v861
    %863 = vdwg.mxu0
    %864 = vmatpush.msra.mxu0 %v803
    %865 = vmatpush.msra.mxu0 %v799
    %866 = vmatpush.msra.mxu0 %v795
    %867 = vmatpush.msra.mxu0 %v791
    %868 = vmatpush.msra.mxu0 %v787
    %869 = vmatpush.msra.mxu0 %v783
    %870 = vmatpush.msra.mxu0 %v779
    %871 = vmatpush.msra.mxu0 %v775
    %872 = vmatpush.msra.mxu0 %v771
    %873 = vmatpush.msra.mxu0 %v767
    %874 = vmatpush.msra.mxu0 %v763
    %875 = vmatpush.msra.mxu0 %v759
    %876 = vmatpush.msra.mxu0 %v755
    %877 = vmatpush.msra.mxu0 %v751
    %878 = vmatpush.msra.mxu0 %v747
    %879 = vmatpush.msra.mxu0 %v743
    %880 = vmatmul.f32.gmra.mxu0 0.0
    %v881 = vpop.f32.mrf.mxu0
    %v882 = vadd.f32 0.0, %v881
    %883 = vdwg.mxu0
    %v884 = vadd.f32 %v736, %v822
    %v885 = vadd.f32 %v737, %v842
    %v886 = vadd.f32 %v738, %v862
    %v887 = vadd.f32 %v739, %v882
    %v888 = vxor.u32 %v729, 2147483648
    %v889 = vxor.u32 %v730, 2147483648
    %v890 = vxor.u32 %v731, 2147483648
    %v891 = vmul.f32 %v888, 1.442695
    %v892 = vpow.pop %v891
    %v893 = vmul.f32 %v889, 1.442695
    %v894 = vpow.pop %v893
    %v895 = vmul.f32 %v890, 1.442695
    %v896 = vpow.pop %v895
    %v897 = vadd.f32 %v892, 1.0
    %v898 = vadd.f32 %v894, 1.0
    %v899 = vadd.f32 %v896, 1.0
    %v900 = vrcp.pop %v897
    %v901 = vmul.f32 %v897, %v900
    %v902 = vsub.f32 1.0, %v901
    %v903 = vmul.f32 %v900, %v902
    %v904 = vadd.f32 %v900, %v903
    %vm905 = vweird.f32 %v897
    %vm906 = vweird.f32 %v900
    %vm907 = vmor %vm905, %vm906
    %v908 = vsel %vm907, %v900, %v904
    %v909 = vand.u32 2147483647, %v897
    %vm910 = vcmp.eq.f32.partialorder %v909, 8.507059e+37
    %v911 = vand.u32 %v897, 2147483648
    %v912 = vor.u32 1.1754944e-38, %v911
    %v913 = vsel %vm910, %v912, %v908
    %v914 = vmul.f32 1.0, %v913
    %v915 = vrcp.pop %v898
    %v916 = vmul.f32 %v898, %v915
    %v917 = vsub.f32 1.0, %v916
    %v918 = vmul.f32 %v915, %v917
    %v919 = vadd.f32 %v915, %v918
    %vm920 = vweird.f32 %v898
    %vm921 = vweird.f32 %v915
    %vm922 = vmor %vm920, %vm921
    %v923 = vsel %vm922, %v915, %v919
    %v924 = vand.u32 2147483647, %v898
    %vm925 = vcmp.eq.f32.partialorder %v924, 8.507059e+37
    %v926 = vand.u32 %v898, 2147483648
    %v927 = vor.u32 1.1754944e-38, %v926
    %v928 = vsel %vm925, %v927, %v923
    %v929 = vmul.f32 1.0, %v928
    %v930 = vrcp.pop %v899
    %v931 = vmul.f32 %v899, %v930
    %v932 = vsub.f32 1.0, %v931
    %v933 = vmul.f32 %v930, %v932
    %v934 = vadd.f32 %v930, %v933
    %vm935 = vweird.f32 %v899
    %vm936 = vweird.f32 %v930
    %vm937 = vmor %vm935, %vm936
    %v938 = vsel %vm937, %v930, %v934
    %v939 = vand.u32 2147483647, %v899
    %vm940 = vcmp.eq.f32.partialorder %v939, 8.507059e+37
    %v941 = vand.u32 %v899, 2147483648
    %v942 = vor.u32 1.1754944e-38, %v941
    %v943 = vsel %vm940, %v942, %v938
    %v944 = vmul.f32 1.0, %v943
    %v945 = vtanh.pop %v732
    %v946 = vxor.u32 %v884, 2147483648
    %v947 = vxor.u32 %v885, 2147483648
    %v948 = vxor.u32 %v886, 2147483648
    %v949 = vmul.f32 %v946, 1.442695
    %v950 = vpow.pop %v949
    %v951 = vmul.f32 %v947, 1.442695
    %v952 = vpow.pop %v951
    %v953 = vmul.f32 %v948, 1.442695
    %v954 = vpow.pop %v953
    %v955 = vadd.f32 %v950, 1.0
    %v956 = vadd.f32 %v952, 1.0
    %v957 = vadd.f32 %v954, 1.0
    %v958 = vrcp.pop %v955
    %v959 = vmul.f32 %v955, %v958
    %v960 = vsub.f32 1.0, %v959
    %v961 = vmul.f32 %v958, %v960
    %v962 = vadd.f32 %v958, %v961
    %vm963 = vweird.f32 %v955
    %vm964 = vweird.f32 %v958
    %vm965 = vmor %vm963, %vm964
    %v966 = vsel %vm965, %v958, %v962
    %v967 = vand.u32 2147483647, %v955
    %vm968 = vcmp.eq.f32.partialorder %v967, 8.507059e+37
    %v969 = vand.u32 %v955, 2147483648
    %v970 = vor.u32 1.1754944e-38, %v969
    %v971 = vsel %vm968, %v970, %v966
    %v972 = vmul.f32 1.0, %v971
    %v973 = vrcp.pop %v956
    %v974 = vmul.f32 %v956, %v973
    %v975 = vsub.f32 1.0, %v974
    %v976 = vmul.f32 %v973, %v975
    %v977 = vadd.f32 %v973, %v976
    %vm978 = vweird.f32 %v956
    %vm979 = vweird.f32 %v973
    %vm980 = vmor %vm978, %vm979
    %v981 = vsel %vm980, %v973, %v977
    %v982 = vand.u32 2147483647, %v956
    %vm983 = vcmp.eq.f32.partialorder %v982, 8.507059e+37
    %v984 = vand.u32 %v956, 2147483648
    %v985 = vor.u32 1.1754944e-38, %v984
    %v986 = vsel %vm983, %v985, %v981
    %v987 = vmul.f32 1.0, %v986
    %v988 = vrcp.pop %v957
    %v989 = vmul.f32 %v957, %v988
    %v990 = vsub.f32 1.0, %v989
    %v991 = vmul.f32 %v988, %v990
    %v992 = vadd.f32 %v988, %v991
    %vm993 = vweird.f32 %v957
    %vm994 = vweird.f32 %v988
    %vm995 = vmor %vm993, %vm994
    %v996 = vsel %vm995, %v988, %v992
    %v997 = vand.u32 2147483647, %v957
    %vm998 = vcmp.eq.f32.partialorder %v997, 8.507059e+37
    %v999 = vand.u32 %v957, 2147483648
    %v1000 = vor.u32 1.1754944e-38, %v999
    %v1001 = vsel %vm998, %v1000, %v996
    %v1002 = vmul.f32 1.0, %v1001
    %v1003 = vtanh.pop %v887
    %v1004 = vmul.f32 %v929, 0.0
    %v1005 = vmul.f32 %v914, %v945
    %v1006 = vadd.f32 %v1004, %v1005
    %v1007 = vtanh.pop %v1006
    %v1008 = vmul.f32 %v944, %v1007
    %v1009 = vmul.f32 %v987, 0.0
    %v1010 = vmul.f32 %v972, %v1003
    %v1011 = vadd.f32 %v1009, %v1010
    %v1012 = vtanh.pop %v1011
    %v1013 = vmul.f32 %v1002, %v1012
    %1014 = vst [vmem:[#allocation4] sm:$0xff] %v1008
    %s1015 = scalar_lea.vmem [#allocation5], 56
    %1016 = vst [vmem:[%s1015] sm:$0xff] %v1013
    %s1017 = smul.u32 1, 4
    %s1018 = smul.addr %s1017, 8
    %s1019 = scalar_lea.vmem [#allocation2], %s1018
    %v1020 = vld [vmem:[%s1019] sm:$0xff]
    %v1021 = vld [vmem:[%s1019 + $0x8] sm:$0xff]
    %v1022 = vld [vmem:[%s1019 + $0x10] sm:$0xff]
    %v1023 = vld [vmem:[%s1019 + $0x18] sm:$0xff]
    %v1024 = vld [vmem:[#allocation6] sm:$0xff]
    %v1025 = vld [vmem:[#allocation6 + $0x8] sm:$0xff]
    %v1026 = vld [vmem:[#allocation6 + $0x10] sm:$0xff]
    %v1027 = vld [vmem:[#allocation6 + $0x18] sm:$0xff]
    %v1028 = vld [vmem:[#allocation6 + $0x20] sm:$0xff]
    %v1029 = vld [vmem:[#allocation6 + $0x28] sm:$0xff]
    %v1030 = vld [vmem:[#allocation6 + $0x30] sm:$0xff]
    %v1031 = vld [vmem:[#allocation6 + $0x38] sm:$0xff]
    %v1032 = vld [vmem:[#allocation6 + $0x40] sm:$0xff]
    %v1033 = vld [vmem:[#allocation6 + $0x48] sm:$0xff]
    %v1034 = vld [vmem:[#allocation6 + $0x50] sm:$0xff]
    %v1035 = vld [vmem:[#allocation6 + $0x58] sm:$0xff]
    %v1036 = vld [vmem:[#allocation6 + $0x60] sm:$0xff]
    %v1037 = vld [vmem:[#allocation6 + $0x68] sm:$0xff]
    %v1038 = vld [vmem:[#allocation6 + $0x70] sm:$0xff]
    %v1039 = vld [vmem:[#allocation6 + $0x78] sm:$0xff]
    %v1040 = vld [vmem:[#allocation6 + $0x80] sm:$0xff]
    %v1041 = vld [vmem:[#allocation6 + $0x88] sm:$0xff]
    %v1042 = vld [vmem:[#allocation6 + $0x90] sm:$0xff]
    %v1043 = vld [vmem:[#allocation6 + $0x98] sm:$0xff]
    %v1044 = vld [vmem:[#allocation6 + $0xa0] sm:$0xff]
    %v1045 = vld [vmem:[#allocation6 + $0xa8] sm:$0xff]
    %v1046 = vld [vmem:[#allocation6 + $0xb0] sm:$0xff]
    %v1047 = vld [vmem:[#allocation6 + $0xb8] sm:$0xff]
    %v1048 = vld [vmem:[#allocation6 + $0xc0] sm:$0xff]
    %v1049 = vld [vmem:[#allocation6 + $0xc8] sm:$0xff]
    %v1050 = vld [vmem:[#allocation6 + $0xd0] sm:$0xff]
    %v1051 = vld [vmem:[#allocation6 + $0xd8] sm:$0xff]
    %v1052 = vld [vmem:[#allocation6 + $0xe0] sm:$0xff]
    %v1053 = vld [vmem:[#allocation6 + $0xe8] sm:$0xff]
    %v1054 = vld [vmem:[#allocation6 + $0xf0] sm:$0xff]
    %v1055 = vld [vmem:[#allocation6 + $0xf8] sm:$0xff]
    %v1056 = vld [vmem:[#allocation6 + $0x100] sm:$0xff]
    %v1057 = vld [vmem:[#allocation6 + $0x108] sm:$0xff]
    %v1058 = vld [vmem:[#allocation6 + $0x110] sm:$0xff]
    %v1059 = vld [vmem:[#allocation6 + $0x118] sm:$0xff]
    %v1060 = vld [vmem:[#allocation6 + $0x120] sm:$0xff]
    %v1061 = vld [vmem:[#allocation6 + $0x128] sm:$0xff]
    %v1062 = vld [vmem:[#allocation6 + $0x130] sm:$0xff]
    %v1063 = vld [vmem:[#allocation6 + $0x138] sm:$0xff]
    %v1064 = vld [vmem:[#allocation6 + $0x140] sm:$0xff]
    %v1065 = vld [vmem:[#allocation6 + $0x148] sm:$0xff]
    %v1066 = vld [vmem:[#allocation6 + $0x150] sm:$0xff]
    %v1067 = vld [vmem:[#allocation6 + $0x158] sm:$0xff]
    %v1068 = vld [vmem:[#allocation6 + $0x160] sm:$0xff]
    %v1069 = vld [vmem:[#allocation6 + $0x168] sm:$0xff]
    %v1070 = vld [vmem:[#allocation6 + $0x170] sm:$0xff]
    %v1071 = vld [vmem:[#allocation6 + $0x178] sm:$0xff]
    %v1072 = vld [vmem:[#allocation6 + $0x180] sm:$0xff]
    %v1073 = vld [vmem:[#allocation6 + $0x188] sm:$0xff]
    %v1074 = vld [vmem:[#allocation6 + $0x190] sm:$0xff]
    %v1075 = vld [vmem:[#allocation6 + $0x198] sm:$0xff]
    %v1076 = vld [vmem:[#allocation6 + $0x1a0] sm:$0xff]
    %v1077 = vld [vmem:[#allocation6 + $0x1a8] sm:$0xff]
    %v1078 = vld [vmem:[#allocation6 + $0x1b0] sm:$0xff]
    %v1079 = vld [vmem:[#allocation6 + $0x1b8] sm:$0xff]
    %v1080 = vld [vmem:[#allocation6 + $0x1c0] sm:$0xff]
    %v1081 = vld [vmem:[#allocation6 + $0x1c8] sm:$0xff]
    %v1082 = vld [vmem:[#allocation6 + $0x1d0] sm:$0xff]
    %v1083 = vld [vmem:[#allocation6 + $0x1d8] sm:$0xff]
    %v1084 = vld [vmem:[#allocation6 + $0x1e0] sm:$0xff]
    %v1085 = vld [vmem:[#allocation6 + $0x1e8] sm:$0xff]
    %v1086 = vld [vmem:[#allocation6 + $0x1f0] sm:$0xff]
    %v1087 = vld [vmem:[#allocation6 + $0x1f8] sm:$0xff]
    %1088 = vmatpush.msra.mxu0 %v1084
    %1089 = vmatpush.msra.mxu0 %v1080
    %1090 = vmatpush.msra.mxu0 %v1076
    %1091 = vmatpush.msra.mxu0 %v1072
    %1092 = vmatpush.msra.mxu0 %v1068
    %1093 = vmatpush.msra.mxu0 %v1064
    %1094 = vmatpush.msra.mxu0 %v1060
    %1095 = vmatpush.msra.mxu0 %v1056
    %1096 = vmatpush.msra.mxu0 %v1052
    %1097 = vmatpush.msra.mxu0 %v1048
    %1098 = vmatpush.msra.mxu0 %v1044
    %1099 = vmatpush.msra.mxu0 %v1040
    %1100 = vmatpush.msra.mxu0 %v1036
    %1101 = vmatpush.msra.mxu0 %v1032
    %1102 = vmatpush.msra.mxu0 %v1028
    %1103 = vmatpush.msra.mxu0 %v1024
    %1104 = vmatmul.f32.gmra.mxu0 %v1008
    %v1105 = vpop.f32.mrf.mxu0
    %v1106 = vadd.f32 0.0, %v1105
    %1107 = vdwg.mxu0
    %1108 = vmatpush.msra.mxu0 %v1085
    %1109 = vmatpush.msra.mxu0 %v1081
    %1110 = vmatpush.msra.mxu0 %v1077
    %1111 = vmatpush.msra.mxu0 %v1073
    %1112 = vmatpush.msra.mxu0 %v1069
    %1113 = vmatpush.msra.mxu0 %v1065
    %1114 = vmatpush.msra.mxu0 %v1061
    %1115 = vmatpush.msra.mxu0 %v1057
    %1116 = vmatpush.msra.mxu0 %v1053
    %1117 = vmatpush.msra.mxu0 %v1049
    %1118 = vmatpush.msra.mxu0 %v1045
    %1119 = vmatpush.msra.mxu0 %v1041
    %1120 = vmatpush.msra.mxu0 %v1037
    %1121 = vmatpush.msra.mxu0 %v1033
    %1122 = vmatpush.msra.mxu0 %v1029
    %1123 = vmatpush.msra.mxu0 %v1025
    %1124 = vmatmul.f32.gmra.mxu0 %v1008
    %v1125 = vpop.f32.mrf.mxu0
    %v1126 = vadd.f32 0.0, %v1125
    %1127 = vdwg.mxu0
    %1128 = vmatpush.msra.mxu0 %v1086
    %1129 = vmatpush.msra.mxu0 %v1082
    %1130 = vmatpush.msra.mxu0 %v1078
    %1131 = vmatpush.msra.mxu0 %v1074
    %1132 = vmatpush.msra.mxu0 %v1070
    %1133 = vmatpush.msra.mxu0 %v1066
    %1134 = vmatpush.msra.mxu0 %v1062
    %1135 = vmatpush.msra.mxu0 %v1058
    %1136 = vmatpush.msra.mxu0 %v1054
    %1137 = vmatpush.msra.mxu0 %v1050
    %1138 = vmatpush.msra.mxu0 %v1046
    %1139 = vmatpush.msra.mxu0 %v1042
    %1140 = vmatpush.msra.mxu0 %v1038
    %1141 = vmatpush.msra.mxu0 %v1034
    %1142 = vmatpush.msra.mxu0 %v1030
    %1143 = vmatpush.msra.mxu0 %v1026
    %1144 = vmatmul.f32.gmra.mxu0 %v1008
    %v1145 = vpop.f32.mrf.mxu0
    %v1146 = vadd.f32 0.0, %v1145
    %1147 = vdwg.mxu0
    %1148 = vmatpush.msra.mxu0 %v1087
    %1149 = vmatpush.msra.mxu0 %v1083
    %1150 = vmatpush.msra.mxu0 %v1079
    %1151 = vmatpush.msra.mxu0 %v1075
    %1152 = vmatpush.msra.mxu0 %v1071
    %1153 = vmatpush.msra.mxu0 %v1067
    %1154 = vmatpush.msra.mxu0 %v1063
    %1155 = vmatpush.msra.mxu0 %v1059
    %1156 = vmatpush.msra.mxu0 %v1055
    %1157 = vmatpush.msra.mxu0 %v1051
    %1158 = vmatpush.msra.mxu0 %v1047
    %1159 = vmatpush.msra.mxu0 %v1043
    %1160 = vmatpush.msra.mxu0 %v1039
    %1161 = vmatpush.msra.mxu0 %v1035
    %1162 = vmatpush.msra.mxu0 %v1031
    %1163 = vmatpush.msra.mxu0 %v1027
    %1164 = vmatmul.f32.gmra.mxu0 %v1008
    %v1165 = vpop.f32.mrf.mxu0
    %v1166 = vadd.f32 0.0, %v1165
    %1167 = vdwg.mxu0
    %v1168 = vadd.f32 %v1020, %v1106
    %v1169 = vadd.f32 %v1021, %v1126
    %v1170 = vadd.f32 %v1022, %v1146
    %v1171 = vadd.f32 %v1023, %v1166
    %s1172 = smul.u32 6, 4
    %s1173 = smul.addr %s1172, 8
    %s1174 = scalar_lea.vmem [#allocation3], %s1173
    %v1175 = vld [vmem:[%s1174] sm:$0xff]
    %v1176 = vld [vmem:[%s1174 + $0x8] sm:$0xff]
    %v1177 = vld [vmem:[%s1174 + $0x10] sm:$0xff]
    %v1178 = vld [vmem:[%s1174 + $0x18] sm:$0xff]
    %v1179 = vld [vmem:[#allocation9] sm:$0xff]
    %v1180 = vld [vmem:[#allocation9 + $0x8] sm:$0xff]
    %v1181 = vld [vmem:[#allocation9 + $0x10] sm:$0xff]
    %v1182 = vld [vmem:[#allocation9 + $0x18] sm:$0xff]
    %v1183 = vld [vmem:[#allocation9 + $0x20] sm:$0xff]
    %v1184 = vld [vmem:[#allocation9 + $0x28] sm:$0xff]
    %v1185 = vld [vmem:[#allocation9 + $0x30] sm:$0xff]
    %v1186 = vld [vmem:[#allocation9 + $0x38] sm:$0xff]
    %v1187 = vld [vmem:[#allocation9 + $0x40] sm:$0xff]
    %v1188 = vld [vmem:[#allocation9 + $0x48] sm:$0xff]
    %v1189 = vld [vmem:[#allocation9 + $0x50] sm:$0xff]
    %v1190 = vld [vmem:[#allocation9 + $0x58] sm:$0xff]
    %v1191 = vld [vmem:[#allocation9 + $0x60] sm:$0xff]
    %v1192 = vld [vmem:[#allocation9 + $0x68] sm:$0xff]
    %v1193 = vld [vmem:[#allocation9 + $0x70] sm:$0xff]
    %v1194 = vld [vmem:[#allocation9 + $0x78] sm:$0xff]
    %v1195 = vld [vmem:[#allocation9 + $0x80] sm:$0xff]
    %v1196 = vld [vmem:[#allocation9 + $0x88] sm:$0xff]
    %v1197 = vld [vmem:[#allocation9 + $0x90] sm:$0xff]
    %v1198 = vld [vmem:[#allocation9 + $0x98] sm:$0xff]
    %v1199 = vld [vmem:[#allocation9 + $0xa0] sm:$0xff]
    %v1200 = vld [vmem:[#allocation9 + $0xa8] sm:$0xff]
    %v1201 = vld [vmem:[#allocation9 + $0xb0] sm:$0xff]
    %v1202 = vld [vmem:[#allocation9 + $0xb8] sm:$0xff]
    %v1203 = vld [vmem:[#allocation9 + $0xc0] sm:$0xff]
    %v1204 = vld [vmem:[#allocation9 + $0xc8] sm:$0xff]
    %v1205 = vld [vmem:[#allocation9 + $0xd0] sm:$0xff]
    %v1206 = vld [vmem:[#allocation9 + $0xd8] sm:$0xff]
    %v1207 = vld [vmem:[#allocation9 + $0xe0] sm:$0xff]
    %v1208 = vld [vmem:[#allocation9 + $0xe8] sm:$0xff]
    %v1209 = vld [vmem:[#allocation9 + $0xf0] sm:$0xff]
    %v1210 = vld [vmem:[#allocation9 + $0xf8] sm:$0xff]
    %v1211 = vld [vmem:[#allocation9 + $0x100] sm:$0xff]
    %v1212 = vld [vmem:[#allocation9 + $0x108] sm:$0xff]
    %v1213 = vld [vmem:[#allocation9 + $0x110] sm:$0xff]
    %v1214 = vld [vmem:[#allocation9 + $0x118] sm:$0xff]
    %v1215 = vld [vmem:[#allocation9 + $0x120] sm:$0xff]
    %v1216 = vld [vmem:[#allocation9 + $0x128] sm:$0xff]
    %v1217 = vld [vmem:[#allocation9 + $0x130] sm:$0xff]
    %v1218 = vld [vmem:[#allocation9 + $0x138] sm:$0xff]
    %v1219 = vld [vmem:[#allocation9 + $0x140] sm:$0xff]
    %v1220 = vld [vmem:[#allocation9 + $0x148] sm:$0xff]
    %v1221 = vld [vmem:[#allocation9 + $0x150] sm:$0xff]
    %v1222 = vld [vmem:[#allocation9 + $0x158] sm:$0xff]
    %v1223 = vld [vmem:[#allocation9 + $0x160] sm:$0xff]
    %v1224 = vld [vmem:[#allocation9 + $0x168] sm:$0xff]
    %v1225 = vld [vmem:[#allocation9 + $0x170] sm:$0xff]
    %v1226 = vld [vmem:[#allocation9 + $0x178] sm:$0xff]
    %v1227 = vld [vmem:[#allocation9 + $0x180] sm:$0xff]
    %v1228 = vld [vmem:[#allocation9 + $0x188] sm:$0xff]
    %v1229 = vld [vmem:[#allocation9 + $0x190] sm:$0xff]
    %v1230 = vld [vmem:[#allocation9 + $0x198] sm:$0xff]
    %v1231 = vld [vmem:[#allocation9 + $0x1a0] sm:$0xff]
    %v1232 = vld [vmem:[#allocation9 + $0x1a8] sm:$0xff]
    %v1233 = vld [vmem:[#allocation9 + $0x1b0] sm:$0xff]
    %v1234 = vld [vmem:[#allocation9 + $0x1b8] sm:$0xff]
    %v1235 = vld [vmem:[#allocation9 + $0x1c0] sm:$0xff]
    %v1236 = vld [vmem:[#allocation9 + $0x1c8] sm:$0xff]
    %v1237 = vld [vmem:[#allocation9 + $0x1d0] sm:$0xff]
    %v1238 = vld [vmem:[#allocation9 + $0x1d8] sm:$0xff]
    %v1239 = vld [vmem:[#allocation9 + $0x1e0] sm:$0xff]
    %v1240 = vld [vmem:[#allocation9 + $0x1e8] sm:$0xff]
    %v1241 = vld [vmem:[#allocation9 + $0x1f0] sm:$0xff]
    %v1242 = vld [vmem:[#allocation9 + $0x1f8] sm:$0xff]
    %1243 = vmatpush.msra.mxu0 %v1239
    %1244 = vmatpush.msra.mxu0 %v1235
    %1245 = vmatpush.msra.mxu0 %v1231
    %1246 = vmatpush.msra.mxu0 %v1227
    %1247 = vmatpush.msra.mxu0 %v1223
    %1248 = vmatpush.msra.mxu0 %v1219
    %1249 = vmatpush.msra.mxu0 %v1215
    %1250 = vmatpush.msra.mxu0 %v1211
    %1251 = vmatpush.msra.mxu0 %v1207
    %1252 = vmatpush.msra.mxu0 %v1203
    %1253 = vmatpush.msra.mxu0 %v1199
    %1254 = vmatpush.msra.mxu0 %v1195
    %1255 = vmatpush.msra.mxu0 %v1191
    %1256 = vmatpush.msra.mxu0 %v1187
    %1257 = vmatpush.msra.mxu0 %v1183
    %1258 = vmatpush.msra.mxu0 %v1179
    %1259 = vmatmul.f32.gmra.mxu0 %v1013
    %v1260 = vpop.f32.mrf.mxu0
    %v1261 = vadd.f32 0.0, %v1260
    %1262 = vdwg.mxu0
    %1263 = vmatpush.msra.mxu0 %v1240
    %1264 = vmatpush.msra.mxu0 %v1236
    %1265 = vmatpush.msra.mxu0 %v1232
    %1266 = vmatpush.msra.mxu0 %v1228
    %1267 = vmatpush.msra.mxu0 %v1224
    %1268 = vmatpush.msra.mxu0 %v1220
    %1269 = vmatpush.msra.mxu0 %v1216
    %1270 = vmatpush.msra.mxu0 %v1212
    %1271 = vmatpush.msra.mxu0 %v1208
    %1272 = vmatpush.msra.mxu0 %v1204
    %1273 = vmatpush.msra.mxu0 %v1200
    %1274 = vmatpush.msra.mxu0 %v1196
    %1275 = vmatpush.msra.mxu0 %v1192
    %1276 = vmatpush.msra.mxu0 %v1188
    %1277 = vmatpush.msra.mxu0 %v1184
    %1278 = vmatpush.msra.mxu0 %v1180
    %1279 = vmatmul.f32.gmra.mxu0 %v1013
    %v1280 = vpop.f32.mrf.mxu0
    %v1281 = vadd.f32 0.0, %v1280
    %1282 = vdwg.mxu0
    %1283 = vmatpush.msra.mxu0 %v1241
    %1284 = vmatpush.msra.mxu0 %v1237
    %1285 = vmatpush.msra.mxu0 %v1233
    %1286 = vmatpush.msra.mxu0 %v1229
    %1287 = vmatpush.msra.mxu0 %v1225
    %1288 = vmatpush.msra.mxu0 %v1221
    %1289 = vmatpush.msra.mxu0 %v1217
    %1290 = vmatpush.msra.mxu0 %v1213
    %1291 = vmatpush.msra.mxu0 %v1209
    %1292 = vmatpush.msra.mxu0 %v1205
    %1293 = vmatpush.msra.mxu0 %v1201
    %1294 = vmatpush.msra.mxu0 %v1197
    %1295 = vmatpush.msra.mxu0 %v1193
    %1296 = vmatpush.msra.mxu0 %v1189
    %1297 = vmatpush.msra.mxu0 %v1185
    %1298 = vmatpush.msra.mxu0 %v1181
    %1299 = vmatmul.f32.gmra.mxu0 %v1013
    %v1300 = vpop.f32.mrf.mxu0
    %v1301 = vadd.f32 0.0, %v1300
    %1302 = vdwg.mxu0
    %1303 = vmatpush.msra.mxu0 %v1242
    %1304 = vmatpush.msra.mxu0 %v1238
    %1305 = vmatpush.msra.mxu0 %v1234
    %1306 = vmatpush.msra.mxu0 %v1230
    %1307 = vmatpush.msra.mxu0 %v1226
    %1308 = vmatpush.msra.mxu0 %v1222
    %1309 = vmatpush.msra.mxu0 %v1218
    %1310 = vmatpush.msra.mxu0 %v1214
    %1311 = vmatpush.msra.mxu0 %v1210
    %1312 = vmatpush.msra.mxu0 %v1206
    %1313 = vmatpush.msra.mxu0 %v1202
    %1314 = vmatpush.msra.mxu0 %v1198
    %1315 = vmatpush.msra.mxu0 %v1194
    %1316 = vmatpush.msra.mxu0 %v1190
    %1317 = vmatpush.msra.mxu0 %v1186
    %1318 = vmatpush.msra.mxu0 %v1182
    %1319 = vmatmul.f32.gmra.mxu0 %v1013
    %v1320 = vpop.f32.mrf.mxu0
    %v1321 = vadd.f32 0.0, %v1320
    %1322 = vdwg.mxu0
    %v1323 = vadd.f32 %v1175, %v1261
    %v1324 = vadd.f32 %v1176, %v1281
    %v1325 = vadd.f32 %v1177, %v1301
    %v1326 = vadd.f32 %v1178, %v1321
    %v1327 = vxor.u32 %v1168, 2147483648
    %v1328 = vxor.u32 %v1169, 2147483648
    %v1329 = vxor.u32 %v1170, 2147483648
    %v1330 = vmul.f32 %v1327, 1.442695
    %v1331 = vpow.pop %v1330
    %v1332 = vmul.f32 %v1328, 1.442695
    %v1333 = vpow.pop %v1332
    %v1334 = vmul.f32 %v1329, 1.442695
    %v1335 = vpow.pop %v1334
    %v1336 = vadd.f32 %v1331, 1.0
    %v1337 = vadd.f32 %v1333, 1.0
    %v1338 = vadd.f32 %v1335, 1.0
    %v1339 = vrcp.pop %v1336
    %v1340 = vmul.f32 %v1336, %v1339
    %v1341 = vsub.f32 1.0, %v1340
    %v1342 = vmul.f32 %v1339, %v1341
    %v1343 = vadd.f32 %v1339, %v1342
    %vm1344 = vweird.f32 %v1336
    %vm1345 = vweird.f32 %v1339
    %vm1346 = vmor %vm1344, %vm1345
    %v1347 = vsel %vm1346, %v1339, %v1343
    %v1348 = vand.u32 2147483647, %v1336
    %vm1349 = vcmp.eq.f32.partialorder %v1348, 8.507059e+37
    %v1350 = vand.u32 %v1336, 2147483648
    %v1351 = vor.u32 1.1754944e-38, %v1350
    %v1352 = vsel %vm1349, %v1351, %v1347
    %v1353 = vmul.f32 1.0, %v1352
    %v1354 = vrcp.pop %v1337
    %v1355 = vmul.f32 %v1337, %v1354
    %v1356 = vsub.f32 1.0, %v1355
    %v1357 = vmul.f32 %v1354, %v1356
    %v1358 = vadd.f32 %v1354, %v1357
    %vm1359 = vweird.f32 %v1337
    %vm1360 = vweird.f32 %v1354
    %vm1361 = vmor %vm1359, %vm1360
    %v1362 = vsel %vm1361, %v1354, %v1358
    %v1363 = vand.u32 2147483647, %v1337
    %vm1364 = vcmp.eq.f32.partialorder %v1363, 8.507059e+37
    %v1365 = vand.u32 %v1337, 2147483648
    %v1366 = vor.u32 1.1754944e-38, %v1365
    %v1367 = vsel %vm1364, %v1366, %v1362
    %v1368 = vmul.f32 1.0, %v1367
    %v1369 = vrcp.pop %v1338
    %v1370 = vmul.f32 %v1338, %v1369
    %v1371 = vsub.f32 1.0, %v1370
    %v1372 = vmul.f32 %v1369, %v1371
    %v1373 = vadd.f32 %v1369, %v1372
    %vm1374 = vweird.f32 %v1338
    %vm1375 = vweird.f32 %v1369
    %vm1376 = vmor %vm1374, %vm1375
    %v1377 = vsel %vm1376, %v1369, %v1373
    %v1378 = vand.u32 2147483647, %v1338
    %vm1379 = vcmp.eq.f32.partialorder %v1378, 8.507059e+37
    %v1380 = vand.u32 %v1338, 2147483648
    %v1381 = vor.u32 1.1754944e-38, %v1380
    %v1382 = vsel %vm1379, %v1381, %v1377
    %v1383 = vmul.f32 1.0, %v1382
    %v1384 = vtanh.pop %v1171
    %v1385 = vxor.u32 %v1323, 2147483648
    %v1386 = vxor.u32 %v1324, 2147483648
    %v1387 = vxor.u32 %v1325, 2147483648
    %v1388 = vmul.f32 %v1385, 1.442695
    %v1389 = vpow.pop %v1388
    %v1390 = vmul.f32 %v1386, 1.442695
    %v1391 = vpow.pop %v1390
    %v1392 = vmul.f32 %v1387, 1.442695
    %v1393 = vpow.pop %v1392
    %v1394 = vadd.f32 %v1389, 1.0
    %v1395 = vadd.f32 %v1391, 1.0
    %v1396 = vadd.f32 %v1393, 1.0
    %v1397 = vrcp.pop %v1394
    %v1398 = vmul.f32 %v1394, %v1397
    %v1399 = vsub.f32 1.0, %v1398
    %v1400 = vmul.f32 %v1397, %v1399
    %v1401 = vadd.f32 %v1397, %v1400
    %vm1402 = vweird.f32 %v1394
    %vm1403 = vweird.f32 %v1397
    %vm1404 = vmor %vm1402, %vm1403
    %v1405 = vsel %vm1404, %v1397, %v1401
    %v1406 = vand.u32 2147483647, %v1394
    %vm1407 = vcmp.eq.f32.partialorder %v1406, 8.507059e+37
    %v1408 = vand.u32 %v1394, 2147483648
    %v1409 = vor.u32 1.1754944e-38, %v1408
    %v1410 = vsel %vm1407, %v1409, %v1405
    %v1411 = vmul.f32 1.0, %v1410
    %v1412 = vrcp.pop %v1395
    %v1413 = vmul.f32 %v1395, %v1412
    %v1414 = vsub.f32 1.0, %v1413
    %v1415 = vmul.f32 %v1412, %v1414
    %v1416 = vadd.f32 %v1412, %v1415
    %vm1417 = vweird.f32 %v1395
    %vm1418 = vweird.f32 %v1412
    %vm1419 = vmor %vm1417, %vm1418
    %v1420 = vsel %vm1419, %v1412, %v1416
    %v1421 = vand.u32 2147483647, %v1395
    %vm1422 = vcmp.eq.f32.partialorder %v1421, 8.507059e+37
    %v1423 = vand.u32 %v1395, 2147483648
    %v1424 = vor.u32 1.1754944e-38, %v1423
    %v1425 = vsel %vm1422, %v1424, %v1420
    %v1426 = vmul.f32 1.0, %v1425
    %v1427 = vrcp.pop %v1396
    %v1428 = vmul.f32 %v1396, %v1427
    %v1429 = vsub.f32 1.0, %v1428
    %v1430 = vmul.f32 %v1427, %v1429
    %v1431 = vadd.f32 %v1427, %v1430
    %vm1432 = vweird.f32 %v1396
    %vm1433 = vweird.f32 %v1427
    %vm1434 = vmor %vm1432, %vm1433
    %v1435 = vsel %vm1434, %v1427, %v1431
    %v1436 = vand.u32 2147483647, %v1396
    %vm1437 = vcmp.eq.f32.partialorder %v1436, 8.507059e+37
    %v1438 = vand.u32 %v1396, 2147483648
    %v1439 = vor.u32 1.1754944e-38, %v1438
    %v1440 = vsel %vm1437, %v1439, %v1435
    %v1441 = vmul.f32 1.0, %v1440
    %v1442 = vtanh.pop %v1326
    %v1443 = vmul.f32 %v1368, %v1006
    %v1444 = vmul.f32 %v1353, %v1384
    %v1445 = vadd.f32 %v1443, %v1444
    %v1446 = vtanh.pop %v1445
    %v1447 = vmul.f32 %v1383, %v1446
    %v1448 = vmul.f32 %v1426, %v1011
    %v1449 = vmul.f32 %v1411, %v1442
    %v1450 = vadd.f32 %v1448, %v1449
    %v1451 = vtanh.pop %v1450
    %v1452 = vmul.f32 %v1441, %v1451
    %s1453 = scalar_lea.vmem [#allocation4], 8
    %1454 = vst [vmem:[%s1453] sm:$0xff] %v1447
    %s1455 = scalar_lea.vmem [#allocation5], 48
    %1456 = vst [vmem:[%s1455] sm:$0xff] %v1452
    %s1457 = smul.u32 2, 4
    %s1458 = smul.addr %s1457, 8
    %s1459 = scalar_lea.vmem [#allocation2], %s1458
    %v1460 = vld [vmem:[%s1459] sm:$0xff]
    %v1461 = vld [vmem:[%s1459 + $0x8] sm:$0xff]
    %v1462 = vld [vmem:[%s1459 + $0x10] sm:$0xff]
    %v1463 = vld [vmem:[%s1459 + $0x18] sm:$0xff]
    %v1464 = vld [vmem:[#allocation6] sm:$0xff]
    %v1465 = vld [vmem:[#allocation6 + $0x8] sm:$0xff]
    %v1466 = vld [vmem:[#allocation6 + $0x10] sm:$0xff]
    %v1467 = vld [vmem:[#allocation6 + $0x18] sm:$0xff]
    %v1468 = vld [vmem:[#allocation6 + $0x20] sm:$0xff]
    %v1469 = vld [vmem:[#allocation6 + $0x28] sm:$0xff]
    %v1470 = vld [vmem:[#allocation6 + $0x30] sm:$0xff]
    %v1471 = vld [vmem:[#allocation6 + $0x38] sm:$0xff]
    %v1472 = vld [vmem:[#allocation6 + $0x40] sm:$0xff]
    %v1473 = vld [vmem:[#allocation6 + $0x48] sm:$0xff]
    %v1474 = vld [vmem:[#allocation6 + $0x50] sm:$0xff]
    %v1475 = vld [vmem:[#allocation6 + $0x58] sm:$0xff]
    %v1476 = vld [vmem:[#allocation6 + $0x60] sm:$0xff]
    %v1477 = vld [vmem:[#allocation6 + $0x68] sm:$0xff]
    %v1478 = vld [vmem:[#allocation6 + $0x70] sm:$0xff]
    %v1479 = vld [vmem:[#allocation6 + $0x78] sm:$0xff]
    %v1480 = vld [vmem:[#allocation6 + $0x80] sm:$0xff]
    %v1481 = vld [vmem:[#allocation6 + $0x88] sm:$0xff]
    %v1482 = vld [vmem:[#allocation6 + $0x90] sm:$0xff]
    %v1483 = vld [vmem:[#allocation6 + $0x98] sm:$0xff]
    %v1484 = vld [vmem:[#allocation6 + $0xa0] sm:$0xff]
    %v1485 = vld [vmem:[#allocation6 + $0xa8] sm:$0xff]
    %v1486 = vld [vmem:[#allocation6 + $0xb0] sm:$0xff]
    %v1487 = vld [vmem:[#allocation6 + $0xb8] sm:$0xff]
    %v1488 = vld [vmem:[#allocation6 + $0xc0] sm:$0xff]
    %v1489 = vld [vmem:[#allocation6 + $0xc8] sm:$0xff]
    %v1490 = vld [vmem:[#allocation6 + $0xd0] sm:$0xff]
    %v1491 = vld [vmem:[#allocation6 + $0xd8] sm:$0xff]
    %v1492 = vld [vmem:[#allocation6 + $0xe0] sm:$0xff]
    %v1493 = vld [vmem:[#allocation6 + $0xe8] sm:$0xff]
    %v1494 = vld [vmem:[#allocation6 + $0xf0] sm:$0xff]
    %v1495 = vld [vmem:[#allocation6 + $0xf8] sm:$0xff]
    %v1496 = vld [vmem:[#allocation6 + $0x100] sm:$0xff]
    %v1497 = vld [vmem:[#allocation6 + $0x108] sm:$0xff]
    %v1498 = vld [vmem:[#allocation6 + $0x110] sm:$0xff]
    %v1499 = vld [vmem:[#allocation6 + $0x118] sm:$0xff]
    %v1500 = vld [vmem:[#allocation6 + $0x120] sm:$0xff]
    %v1501 = vld [vmem:[#allocation6 + $0x128] sm:$0xff]
    %v1502 = vld [vmem:[#allocation6 + $0x130] sm:$0xff]
    %v1503 = vld [vmem:[#allocation6 + $0x138] sm:$0xff]
    %v1504 = vld [vmem:[#allocation6 + $0x140] sm:$0xff]
    %v1505 = vld [vmem:[#allocation6 + $0x148] sm:$0xff]
    %v1506 = vld [vmem:[#allocation6 + $0x150] sm:$0xff]
    %v1507 = vld [vmem:[#allocation6 + $0x158] sm:$0xff]
    %v1508 = vld [vmem:[#allocation6 + $0x160] sm:$0xff]
    %v1509 = vld [vmem:[#allocation6 + $0x168] sm:$0xff]
    %v1510 = vld [vmem:[#allocation6 + $0x170] sm:$0xff]
    %v1511 = vld [vmem:[#allocation6 + $0x178] sm:$0xff]
    %v1512 = vld [vmem:[#allocation6 + $0x180] sm:$0xff]
    %v1513 = vld [vmem:[#allocation6 + $0x188] sm:$0xff]
    %v1514 = vld [vmem:[#allocation6 + $0x190] sm:$0xff]
    %v1515 = vld [vmem:[#allocation6 + $0x198] sm:$0xff]
    %v1516 = vld [vmem:[#allocation6 + $0x1a0] sm:$0xff]
    %v1517 = vld [vmem:[#allocation6 + $0x1a8] sm:$0xff]
    %v1518 = vld [vmem:[#allocation6 + $0x1b0] sm:$0xff]
    %v1519 = vld [vmem:[#allocation6 + $0x1b8] sm:$0xff]
    %v1520 = vld [vmem:[#allocation6 + $0x1c0] sm:$0xff]
    %v1521 = vld [vmem:[#allocation6 + $0x1c8] sm:$0xff]
    %v1522 = vld [vmem:[#allocation6 + $0x1d0] sm:$0xff]
    %v1523 = vld [vmem:[#allocation6 + $0x1d8] sm:$0xff]
    %v1524 = vld [vmem:[#allocation6 + $0x1e0] sm:$0xff]
    %v1525 = vld [vmem:[#allocation6 + $0x1e8] sm:$0xff]
    %v1526 = vld [vmem:[#allocation6 + $0x1f0] sm:$0xff]
    %v1527 = vld [vmem:[#allocation6 + $0x1f8] sm:$0xff]
    %1528 = vmatpush.msra.mxu0 %v1524
    %1529 = vmatpush.msra.mxu0 %v1520
    %1530 = vmatpush.msra.mxu0 %v1516
    %1531 = vmatpush.msra.mxu0 %v1512
    %1532 = vmatpush.msra.mxu0 %v1508
    %1533 = vmatpush.msra.mxu0 %v1504
    %1534 = vmatpush.msra.mxu0 %v1500
    %1535 = vmatpush.msra.mxu0 %v1496
    %1536 = vmatpush.msra.mxu0 %v1492
    %1537 = vmatpush.msra.mxu0 %v1488
    %1538 = vmatpush.msra.mxu0 %v1484
    %1539 = vmatpush.msra.mxu0 %v1480
    %1540 = vmatpush.msra.mxu0 %v1476
    %1541 = vmatpush.msra.mxu0 %v1472
    %1542 = vmatpush.msra.mxu0 %v1468
    %1543 = vmatpush.msra.mxu0 %v1464
    %1544 = vmatmul.f32.gmra.mxu0 %v1447
    %v1545 = vpop.f32.mrf.mxu0
    %v1546 = vadd.f32 0.0, %v1545
    %1547 = vdwg.mxu0
    %1548 = vmatpush.msra.mxu0 %v1525
    %1549 = vmatpush.msra.mxu0 %v1521
    %1550 = vmatpush.msra.mxu0 %v1517
    %1551 = vmatpush.msra.mxu0 %v1513
    %1552 = vmatpush.msra.mxu0 %v1509
    %1553 = vmatpush.msra.mxu0 %v1505
    %1554 = vmatpush.msra.mxu0 %v1501
    %1555 = vmatpush.msra.mxu0 %v1497
    %1556 = vmatpush.msra.mxu0 %v1493
    %1557 = vmatpush.msra.mxu0 %v1489
    %1558 = vmatpush.msra.mxu0 %v1485
    %1559 = vmatpush.msra.mxu0 %v1481
    %1560 = vmatpush.msra.mxu0 %v1477
    %1561 = vmatpush.msra.mxu0 %v1473
    %1562 = vmatpush.msra.mxu0 %v1469
    %1563 = vmatpush.msra.mxu0 %v1465
    %1564 = vmatmul.f32.gmra.mxu0 %v1447
    %v1565 = vpop.f32.mrf.mxu0
    %v1566 = vadd.f32 0.0, %v1565
    %1567 = vdwg.mxu0
    %1568 = vmatpush.msra.mxu0 %v1526
    %1569 = vmatpush.msra.mxu0 %v1522
    %1570 = vmatpush.msra.mxu0 %v1518
    %1571 = vmatpush.msra.mxu0 %v1514
    %1572 = vmatpush.msra.mxu0 %v1510
    %1573 = vmatpush.msra.mxu0 %v1506
    %1574 = vmatpush.msra.mxu0 %v1502
    %1575 = vmatpush.msra.mxu0 %v1498
    %1576 = vmatpush.msra.mxu0 %v1494
    %1577 = vmatpush.msra.mxu0 %v1490
    %1578 = vmatpush.msra.mxu0 %v1486
    %1579 = vmatpush.msra.mxu0 %v1482
    %1580 = vmatpush.msra.mxu0 %v1478
    %1581 = vmatpush.msra.mxu0 %v1474
    %1582 = vmatpush.msra.mxu0 %v1470
    %1583 = vmatpush.msra.mxu0 %v1466
    %1584 = vmatmul.f32.gmra.mxu0 %v1447
    %v1585 = vpop.f32.mrf.mxu0
    %v1586 = vadd.f32 0.0, %v1585
    %1587 = vdwg.mxu0
    %1588 = vmatpush.msra.mxu0 %v1527
    %1589 = vmatpush.msra.mxu0 %v1523
    %1590 = vmatpush.msra.mxu0 %v1519
    %1591 = vmatpush.msra.mxu0 %v1515
    %1592 = vmatpush.msra.mxu0 %v1511
    %1593 = vmatpush.msra.mxu0 %v1507
    %1594 = vmatpush.msra.mxu0 %v1503
    %1595 = vmatpush.msra.mxu0 %v1499
    %1596 = vmatpush.msra.mxu0 %v1495
    %1597 = vmatpush.msra.mxu0 %v1491
    %1598 = vmatpush.msra.mxu0 %v1487
    %1599 = vmatpush.msra.mxu0 %v1483
    %1600 = vmatpush.msra.mxu0 %v1479
    %1601 = vmatpush.msra.mxu0 %v1475
    %1602 = vmatpush.msra.mxu0 %v1471
    %1603 = vmatpush.msra.mxu0 %v1467
    %1604 = vmatmul.f32.gmra.mxu0 %v1447
    %v1605 = vpop.f32.mrf.mxu0
    %v1606 = vadd.f32 0.0, %v1605
    %1607 = vdwg.mxu0
    %v1608 = vadd.f32 %v1460, %v1546
    %v1609 = vadd.f32 %v1461, %v1566
    %v1610 = vadd.f32 %v1462, %v1586
    %v1611 = vadd.f32 %v1463, %v1606
    %s1612 = smul.u32 5, 4
    %s1613 = smul.addr %s1612, 8
    %s1614 = scalar_lea.vmem [#allocation3], %s1613
    %v1615 = vld [vmem:[%s1614] sm:$0xff]
    %v1616 = vld [vmem:[%s1614 + $0x8] sm:$0xff]
    %v1617 = vld [vmem:[%s1614 + $0x10] sm:$0xff]
    %v1618 = vld [vmem:[%s1614 + $0x18] sm:$0xff]
    %v1619 = vld [vmem:[#allocation9] sm:$0xff]
    %v1620 = vld [vmem:[#allocation9 + $0x8] sm:$0xff]
    %v1621 = vld [vmem:[#allocation9 + $0x10] sm:$0xff]
    %v1622 = vld [vmem:[#allocation9 + $0x18] sm:$0xff]
    %v1623 = vld [vmem:[#allocation9 + $0x20] sm:$0xff]
    %v1624 = vld [vmem:[#allocation9 + $0x28] sm:$0xff]
    %v1625 = vld [vmem:[#allocation9 + $0x30] sm:$0xff]
    %v1626 = vld [vmem:[#allocation9 + $0x38] sm:$0xff]
    %v1627 = vld [vmem:[#allocation9 + $0x40] sm:$0xff]
    %v1628 = vld [vmem:[#allocation9 + $0x48] sm:$0xff]
    %v1629 = vld [vmem:[#allocation9 + $0x50] sm:$0xff]
    %v1630 = vld [vmem:[#allocation9 + $0x58] sm:$0xff]
    %v1631 = vld [vmem:[#allocation9 + $0x60] sm:$0xff]
    %v1632 = vld [vmem:[#allocation9 + $0x68] sm:$0xff]
    %v1633 = vld [vmem:[#allocation9 + $0x70] sm:$0xff]
    %v1634 = vld [vmem:[#allocation9 + $0x78] sm:$0xff]
    %v1635 = vld [vmem:[#allocation9 + $0x80] sm:$0xff]
    %v1636 = vld [vmem:[#allocation9 + $0x88] sm:$0xff]
    %v1637 = vld [vmem:[#allocation9 + $0x90] sm:$0xff]
    %v1638 = vld [vmem:[#allocation9 + $0x98] sm:$0xff]
    %v1639 = vld [vmem:[#allocation9 + $0xa0] sm:$0xff]
    %v1640 = vld [vmem:[#allocation9 + $0xa8] sm:$0xff]
    %v1641 = vld [vmem:[#allocation9 + $0xb0] sm:$0xff]
    %v1642 = vld [vmem:[#allocation9 + $0xb8] sm:$0xff]
    %v1643 = vld [vmem:[#allocation9 + $0xc0] sm:$0xff]
    %v1644 = vld [vmem:[#allocation9 + $0xc8] sm:$0xff]
    %v1645 = vld [vmem:[#allocation9 + $0xd0] sm:$0xff]
    %v1646 = vld [vmem:[#allocation9 + $0xd8] sm:$0xff]
    %v1647 = vld [vmem:[#allocation9 + $0xe0] sm:$0xff]
    %v1648 = vld [vmem:[#allocation9 + $0xe8] sm:$0xff]
    %v1649 = vld [vmem:[#allocation9 + $0xf0] sm:$0xff]
    %v1650 = vld [vmem:[#allocation9 + $0xf8] sm:$0xff]
    %v1651 = vld [vmem:[#allocation9 + $0x100] sm:$0xff]
    %v1652 = vld [vmem:[#allocation9 + $0x108] sm:$0xff]
    %v1653 = vld [vmem:[#allocation9 + $0x110] sm:$0xff]
    %v1654 = vld [vmem:[#allocation9 + $0x118] sm:$0xff]
    %v1655 = vld [vmem:[#allocation9 + $0x120] sm:$0xff]
    %v1656 = vld [vmem:[#allocation9 + $0x128] sm:$0xff]
    %v1657 = vld [vmem:[#allocation9 + $0x130] sm:$0xff]
    %v1658 = vld [vmem:[#allocation9 + $0x138] sm:$0xff]
    %v1659 = vld [vmem:[#allocation9 + $0x140] sm:$0xff]
    %v1660 = vld [vmem:[#allocation9 + $0x148] sm:$0xff]
    %v1661 = vld [vmem:[#allocation9 + $0x150] sm:$0xff]
    %v1662 = vld [vmem:[#allocation9 + $0x158] sm:$0xff]
    %v1663 = vld [vmem:[#allocation9 + $0x160] sm:$0xff]
    %v1664 = vld [vmem:[#allocation9 + $0x168] sm:$0xff]
    %v1665 = vld [vmem:[#allocation9 + $0x170] sm:$0xff]
    %v1666 = vld [vmem:[#allocation9 + $0x178] sm:$0xff]
    %v1667 = vld [vmem:[#allocation9 + $0x180] sm:$0xff]
    %v1668 = vld [vmem:[#allocation9 + $0x188] sm:$0xff]
    %v1669 = vld [vmem:[#allocation9 + $0x190] sm:$0xff]
    %v1670 = vld [vmem:[#allocation9 + $0x198] sm:$0xff]
    %v1671 = vld [vmem:[#allocation9 + $0x1a0] sm:$0xff]
    %v1672 = vld [vmem:[#allocation9 + $0x1a8] sm:$0xff]
    %v1673 = vld [vmem:[#allocation9 + $0x1b0] sm:$0xff]
    %v1674 = vld [vmem:[#allocation9 + $0x1b8] sm:$0xff]
    %v1675 = vld [vmem:[#allocation9 + $0x1c0] sm:$0xff]
    %v1676 = vld [vmem:[#allocation9 + $0x1c8] sm:$0xff]
    %v1677 = vld [vmem:[#allocation9 + $0x1d0] sm:$0xff]
    %v1678 = vld [vmem:[#allocation9 + $0x1d8] sm:$0xff]
    %v1679 = vld [vmem:[#allocation9 + $0x1e0] sm:$0xff]
    %v1680 = vld [vmem:[#allocation9 + $0x1e8] sm:$0xff]
    %v1681 = vld [vmem:[#allocation9 + $0x1f0] sm:$0xff]
    %v1682 = vld [vmem:[#allocation9 + $0x1f8] sm:$0xff]
    %1683 = vmatpush.msra.mxu0 %v1679
    %1684 = vmatpush.msra.mxu0 %v1675
    %1685 = vmatpush.msra.mxu0 %v1671
    %1686 = vmatpush.msra.mxu0 %v1667
    %1687 = vmatpush.msra.mxu0 %v1663
    %1688 = vmatpush.msra.mxu0 %v1659
    %1689 = vmatpush.msra.mxu0 %v1655
    %1690 = vmatpush.msra.mxu0 %v1651
    %1691 = vmatpush.msra.mxu0 %v1647
    %1692 = vmatpush.msra.mxu0 %v1643
    %1693 = vmatpush.msra.mxu0 %v1639
    %1694 = vmatpush.msra.mxu0 %v1635
    %1695 = vmatpush.msra.mxu0 %v1631
    %1696 = vmatpush.msra.mxu0 %v1627
    %1697 = vmatpush.msra.mxu0 %v1623
    %1698 = vmatpush.msra.mxu0 %v1619
    %1699 = vmatmul.f32.gmra.mxu0 %v1452
    %v1700 = vpop.f32.mrf.mxu0
    %v1701 = vadd.f32 0.0, %v1700
    %1702 = vdwg.mxu0
    %1703 = vmatpush.msra.mxu0 %v1680
    %1704 = vmatpush.msra.mxu0 %v1676
    %1705 = vmatpush.msra.mxu0 %v1672
    %1706 = vmatpush.msra.mxu0 %v1668
    %1707 = vmatpush.msra.mxu0 %v1664
    %1708 = vmatpush.msra.mxu0 %v1660
    %1709 = vmatpush.msra.mxu0 %v1656
    %1710 = vmatpush.msra.mxu0 %v1652
    %1711 = vmatpush.msra.mxu0 %v1648
    %1712 = vmatpush.msra.mxu0 %v1644
    %1713 = vmatpush.msra.mxu0 %v1640
    %1714 = vmatpush.msra.mxu0 %v1636
    %1715 = vmatpush.msra.mxu0 %v1632
    %1716 = vmatpush.msra.mxu0 %v1628
    %1717 = vmatpush.msra.mxu0 %v1624
    %1718 = vmatpush.msra.mxu0 %v1620
    %1719 = vmatmul.f32.gmra.mxu0 %v1452
    %v1720 = vpop.f32.mrf.mxu0
    %v1721 = vadd.f32 0.0, %v1720
    %1722 = vdwg.mxu0
    %1723 = vmatpush.msra.mxu0 %v1681
    %1724 = vmatpush.msra.mxu0 %v1677
    %1725 = vmatpush.msra.mxu0 %v1673
    %1726 = vmatpush.msra.mxu0 %v1669
    %1727 = vmatpush.msra.mxu0 %v1665
    %1728 = vmatpush.msra.mxu0 %v1661
    %1729 = vmatpush.msra.mxu0 %v1657
    %1730 = vmatpush.msra.mxu0 %v1653
    %1731 = vmatpush.msra.mxu0 %v1649
    %1732 = vmatpush.msra.mxu0 %v1645
    %1733 = vmatpush.msra.mxu0 %v1641
    %1734 = vmatpush.msra.mxu0 %v1637
    %1735 = vmatpush.msra.mxu0 %v1633
    %1736 = vmatpush.msra.mxu0 %v1629
    %1737 = vmatpush.msra.mxu0 %v1625
    %1738 = vmatpush.msra.mxu0 %v1621
    %1739 = vmatmul.f32.gmra.mxu0 %v1452
    %v1740 = vpop.f32.mrf.mxu0
    %v1741 = vadd.f32 0.0, %v1740
    %1742 = vdwg.mxu0
    %1743 = vmatpush.msra.mxu0 %v1682
    %1744 = vmatpush.msra.mxu0 %v1678
    %1745 = vmatpush.msra.mxu0 %v1674
    %1746 = vmatpush.msra.mxu0 %v1670
    %1747 = vmatpush.msra.mxu0 %v1666
    %1748 = vmatpush.msra.mxu0 %v1662
    %1749 = vmatpush.msra.mxu0 %v1658
    %1750 = vmatpush.msra.mxu0 %v1654
    %1751 = vmatpush.msra.mxu0 %v1650
    %1752 = vmatpush.msra.mxu0 %v1646
    %1753 = vmatpush.msra.mxu0 %v1642
    %1754 = vmatpush.msra.mxu0 %v1638
    %1755 = vmatpush.msra.mxu0 %v1634
    %1756 = vmatpush.msra.mxu0 %v1630
    %1757 = vmatpush.msra.mxu0 %v1626
    %1758 = vmatpush.msra.mxu0 %v1622
    %1759 = vmatmul.f32.gmra.mxu0 %v1452
    %v1760 = vpop.f32.mrf.mxu0
    %v1761 = vadd.f32 0.0, %v1760
    %1762 = vdwg.mxu0
    %v1763 = vadd.f32 %v1615, %v1701
    %v1764 = vadd.f32 %v1616, %v1721
    %v1765 = vadd.f32 %v1617, %v1741
    %v1766 = vadd.f32 %v1618, %v1761
    %v1767 = vxor.u32 %v1608, 2147483648
    %v1768 = vxor.u32 %v1609, 2147483648
    %v1769 = vxor.u32 %v1610, 2147483648
    %v1770 = vmul.f32 %v1767, 1.442695
    %v1771 = vpow.pop %v1770
    %v1772 = vmul.f32 %v1768, 1.442695
    %v1773 = vpow.pop %v1772
    %v1774 = vmul.f32 %v1769, 1.442695
    %v1775 = vpow.pop %v1774
    %v1776 = vadd.f32 %v1771, 1.0
    %v1777 = vadd.f32 %v1773, 1.0
    %v1778 = vadd.f32 %v1775, 1.0
    %v1779 = vrcp.pop %v1776
    %v1780 = vmul.f32 %v1776, %v1779
    %v1781 = vsub.f32 1.0, %v1780
    %v1782 = vmul.f32 %v1779, %v1781
    %v1783 = vadd.f32 %v1779, %v1782
    %vm1784 = vweird.f32 %v1776
    %vm1785 = vweird.f32 %v1779
    %vm1786 = vmor %vm1784, %vm1785
    %v1787 = vsel %vm1786, %v1779, %v1783
    %v1788 = vand.u32 2147483647, %v1776
    %vm1789 = vcmp.eq.f32.partialorder %v1788, 8.507059e+37
    %v1790 = vand.u32 %v1776, 2147483648
    %v1791 = vor.u32 1.1754944e-38, %v1790
    %v1792 = vsel %vm1789, %v1791, %v1787
    %v1793 = vmul.f32 1.0, %v1792
    %v1794 = vrcp.pop %v1777
    %v1795 = vmul.f32 %v1777, %v1794
    %v1796 = vsub.f32 1.0, %v1795
    %v1797 = vmul.f32 %v1794, %v1796
    %v1798 = vadd.f32 %v1794, %v1797
    %vm1799 = vweird.f32 %v1777
    %vm1800 = vweird.f32 %v1794
    %vm1801 = vmor %vm1799, %vm1800
    %v1802 = vsel %vm1801, %v1794, %v1798
    %v1803 = vand.u32 2147483647, %v1777
    %vm1804 = vcmp.eq.f32.partialorder %v1803, 8.507059e+37
    %v1805 = vand.u32 %v1777, 2147483648
    %v1806 = vor.u32 1.1754944e-38, %v1805
    %v1807 = vsel %vm1804, %v1806, %v1802
    %v1808 = vmul.f32 1.0, %v1807
    %v1809 = vrcp.pop %v1778
    %v1810 = vmul.f32 %v1778, %v1809
    %v1811 = vsub.f32 1.0, %v1810
    %v1812 = vmul.f32 %v1809, %v1811
    %v1813 = vadd.f32 %v1809, %v1812
    %vm1814 = vweird.f32 %v1778
    %vm1815 = vweird.f32 %v1809
    %vm1816 = vmor %vm1814, %vm1815
    %v1817 = vsel %vm1816, %v1809, %v1813
    %v1818 = vand.u32 2147483647, %v1778
    %vm1819 = vcmp.eq.f32.partialorder %v1818, 8.507059e+37
    %v1820 = vand.u32 %v1778, 2147483648
    %v1821 = vor.u32 1.1754944e-38, %v1820
    %v1822 = vsel %vm1819, %v1821, %v1817
    %v1823 = vmul.f32 1.0, %v1822
    %v1824 = vtanh.pop %v1611
    %v1825 = vxor.u32 %v1763, 2147483648
    %v1826 = vxor.u32 %v1764, 2147483648
    %v1827 = vxor.u32 %v1765, 2147483648
    %v1828 = vmul.f32 %v1825, 1.442695
    %v1829 = vpow.pop %v1828
    %v1830 = vmul.f32 %v1826, 1.442695
    %v1831 = vpow.pop %v1830
    %v1832 = vmul.f32 %v1827, 1.442695
    %v1833 = vpow.pop %v1832
    %v1834 = vadd.f32 %v1829, 1.0
    %v1835 = vadd.f32 %v1831, 1.0
    %v1836 = vadd.f32 %v1833, 1.0
    %v1837 = vrcp.pop %v1834
    %v1838 = vmul.f32 %v1834, %v1837
    %v1839 = vsub.f32 1.0, %v1838
    %v1840 = vmul.f32 %v1837, %v1839
    %v1841 = vadd.f32 %v1837, %v1840
    %vm1842 = vweird.f32 %v1834
    %vm1843 = vweird.f32 %v1837
    %vm1844 = vmor %vm1842, %vm1843
    %v1845 = vsel %vm1844, %v1837, %v1841
    %v1846 = vand.u32 2147483647, %v1834
    %vm1847 = vcmp.eq.f32.partialorder %v1846, 8.507059e+37
    %v1848 = vand.u32 %v1834, 2147483648
    %v1849 = vor.u32 1.1754944e-38, %v1848
    %v1850 = vsel %vm1847, %v1849, %v1845
    %v1851 = vmul.f32 1.0, %v1850
    %v1852 = vrcp.pop %v1835
    %v1853 = vmul.f32 %v1835, %v1852
    %v1854 = vsub.f32 1.0, %v1853
    %v1855 = vmul.f32 %v1852, %v1854
    %v1856 = vadd.f32 %v1852, %v1855
    %vm1857 = vweird.f32 %v1835
    %vm1858 = vweird.f32 %v1852
    %vm1859 = vmor %vm1857, %vm1858
    %v1860 = vsel %vm1859, %v1852, %v1856
    %v1861 = vand.u32 2147483647, %v1835
    %vm1862 = vcmp.eq.f32.partialorder %v1861, 8.507059e+37
    %v1863 = vand.u32 %v1835, 2147483648
    %v1864 = vor.u32 1.1754944e-38, %v1863
    %v1865 = vsel %vm1862, %v1864, %v1860
    %v1866 = vmul.f32 1.0, %v1865
    %v1867 = vrcp.pop %v1836
    %v1868 = vmul.f32 %v1836, %v1867
    %v1869 = vsub.f32 1.0, %v1868
    %v1870 = vmul.f32 %v1867, %v1869
    %v1871 = vadd.f32 %v1867, %v1870
    %vm1872 = vweird.f32 %v1836
    %vm1873 = vweird.f32 %v1867
    %vm1874 = vmor %vm1872, %vm1873
    %v1875 = vsel %vm1874, %v1867, %v1871
    %v1876 = vand.u32 2147483647, %v1836
    %vm1877 = vcmp.eq.f32.partialorder %v1876, 8.507059e+37
    %v1878 = vand.u32 %v1836, 2147483648
    %v1879 = vor.u32 1.1754944e-38, %v1878
    %v1880 = vsel %vm1877, %v1879, %v1875
    %v1881 = vmul.f32 1.0, %v1880
    %v1882 = vtanh.pop %v1766
    %v1883 = vmul.f32 %v1808, %v1445
    %v1884 = vmul.f32 %v1793, %v1824
    %v1885 = vadd.f32 %v1883, %v1884
    %v1886 = vtanh.pop %v1885
    %v1887 = vmul.f32 %v1823, %v1886
    %v1888 = vmul.f32 %v1866, %v1450
    %v1889 = vmul.f32 %v1851, %v1882
    %v1890 = vadd.f32 %v1888, %v1889
    %v1891 = vtanh.pop %v1890
    %v1892 = vmul.f32 %v1881, %v1891
    %s1893 = scalar_lea.vmem [#allocation4], 16
    %1894 = vst [vmem:[%s1893] sm:$0xff] %v1887
    %s1895 = scalar_lea.vmem [#allocation5], 40
    %1896 = vst [vmem:[%s1895] sm:$0xff] %v1892
    %s1897 = smul.u32 3, 4
    %s1898 = smul.addr %s1897, 8
    %s1899 = scalar_lea.vmem [#allocation2], %s1898
    %v1900 = vld [vmem:[%s1899] sm:$0xff]
    %v1901 = vld [vmem:[%s1899 + $0x8] sm:$0xff]
    %v1902 = vld [vmem:[%s1899 + $0x10] sm:$0xff]
    %v1903 = vld [vmem:[%s1899 + $0x18] sm:$0xff]
    %v1904 = vld [vmem:[#allocation6] sm:$0xff]
    %v1905 = vld [vmem:[#allocation6 + $0x8] sm:$0xff]
    %v1906 = vld [vmem:[#allocation6 + $0x10] sm:$0xff]
    %v1907 = vld [vmem:[#allocation6 + $0x18] sm:$0xff]
    %v1908 = vld [vmem:[#allocation6 + $0x20] sm:$0xff]
    %v1909 = vld [vmem:[#allocation6 + $0x28] sm:$0xff]
    %v1910 = vld [vmem:[#allocation6 + $0x30] sm:$0xff]
    %v1911 = vld [vmem:[#allocation6 + $0x38] sm:$0xff]
    %v1912 = vld [vmem:[#allocation6 + $0x40] sm:$0xff]
    %v1913 = vld [vmem:[#allocation6 + $0x48] sm:$0xff]
    %v1914 = vld [vmem:[#allocation6 + $0x50] sm:$0xff]
    %v1915 = vld [vmem:[#allocation6 + $0x58] sm:$0xff]
    %v1916 = vld [vmem:[#allocation6 + $0x60] sm:$0xff]
    %v1917 = vld [vmem:[#allocation6 + $0x68] sm:$0xff]
    %v1918 = vld [vmem:[#allocation6 + $0x70] sm:$0xff]
    %v1919 = vld [vmem:[#allocation6 + $0x78] sm:$0xff]
    %v1920 = vld [vmem:[#allocation6 + $0x80] sm:$0xff]
    %v1921 = vld [vmem:[#allocation6 + $0x88] sm:$0xff]
    %v1922 = vld [vmem:[#allocation6 + $0x90] sm:$0xff]
    %v1923 = vld [vmem:[#allocation6 + $0x98] sm:$0xff]
    %v1924 = vld [vmem:[#allocation6 + $0xa0] sm:$0xff]
    %v1925 = vld [vmem:[#allocation6 + $0xa8] sm:$0xff]
    %v1926 = vld [vmem:[#allocation6 + $0xb0] sm:$0xff]
    %v1927 = vld [vmem:[#allocation6 + $0xb8] sm:$0xff]
    %v1928 = vld [vmem:[#allocation6 + $0xc0] sm:$0xff]
    %v1929 = vld [vmem:[#allocation6 + $0xc8] sm:$0xff]
    %v1930 = vld [vmem:[#allocation6 + $0xd0] sm:$0xff]
    %v1931 = vld [vmem:[#allocation6 + $0xd8] sm:$0xff]
    %v1932 = vld [vmem:[#allocation6 + $0xe0] sm:$0xff]
    %v1933 = vld [vmem:[#allocation6 + $0xe8] sm:$0xff]
    %v1934 = vld [vmem:[#allocation6 + $0xf0] sm:$0xff]
    %v1935 = vld [vmem:[#allocation6 + $0xf8] sm:$0xff]
    %v1936 = vld [vmem:[#allocation6 + $0x100] sm:$0xff]
    %v1937 = vld [vmem:[#allocation6 + $0x108] sm:$0xff]
    %v1938 = vld [vmem:[#allocation6 + $0x110] sm:$0xff]
    %v1939 = vld [vmem:[#allocation6 + $0x118] sm:$0xff]
    %v1940 = vld [vmem:[#allocation6 + $0x120] sm:$0xff]
    %v1941 = vld [vmem:[#allocation6 + $0x128] sm:$0xff]
    %v1942 = vld [vmem:[#allocation6 + $0x130] sm:$0xff]
    %v1943 = vld [vmem:[#allocation6 + $0x138] sm:$0xff]
    %v1944 = vld [vmem:[#allocation6 + $0x140] sm:$0xff]
    %v1945 = vld [vmem:[#allocation6 + $0x148] sm:$0xff]
    %v1946 = vld [vmem:[#allocation6 + $0x150] sm:$0xff]
    %v1947 = vld [vmem:[#allocation6 + $0x158] sm:$0xff]
    %v1948 = vld [vmem:[#allocation6 + $0x160] sm:$0xff]
    %v1949 = vld [vmem:[#allocation6 + $0x168] sm:$0xff]
    %v1950 = vld [vmem:[#allocation6 + $0x170] sm:$0xff]
    %v1951 = vld [vmem:[#allocation6 + $0x178] sm:$0xff]
    %v1952 = vld [vmem:[#allocation6 + $0x180] sm:$0xff]
    %v1953 = vld [vmem:[#allocation6 + $0x188] sm:$0xff]
    %v1954 = vld [vmem:[#allocation6 + $0x190] sm:$0xff]
    %v1955 = vld [vmem:[#allocation6 + $0x198] sm:$0xff]
    %v1956 = vld [vmem:[#allocation6 + $0x1a0] sm:$0xff]
    %v1957 = vld [vmem:[#allocation6 + $0x1a8] sm:$0xff]
    %v1958 = vld [vmem:[#allocation6 + $0x1b0] sm:$0xff]
    %v1959 = vld [vmem:[#allocation6 + $0x1b8] sm:$0xff]
    %v1960 = vld [vmem:[#allocation6 + $0x1c0] sm:$0xff]
    %v1961 = vld [vmem:[#allocation6 + $0x1c8] sm:$0xff]
    %v1962 = vld [vmem:[#allocation6 + $0x1d0] sm:$0xff]
    %v1963 = vld [vmem:[#allocation6 + $0x1d8] sm:$0xff]
    %v1964 = vld [vmem:[#allocation6 + $0x1e0] sm:$0xff]
    %v1965 = vld [vmem:[#allocation6 + $0x1e8] sm:$0xff]
    %v1966 = vld [vmem:[#allocation6 + $0x1f0] sm:$0xff]
    %v1967 = vld [vmem:[#allocation6 + $0x1f8] sm:$0xff]
    %1968 = vmatpush.msra.mxu0 %v1964
    %1969 = vmatpush.msra.mxu0 %v1960
    %1970 = vmatpush.msra.mxu0 %v1956
    %1971 = vmatpush.msra.mxu0 %v1952
    %1972 = vmatpush.msra.mxu0 %v1948
    %1973 = vmatpush.msra.mxu0 %v1944
    %1974 = vmatpush.msra.mxu0 %v1940
    %1975 = vmatpush.msra.mxu0 %v1936
    %1976 = vmatpush.msra.mxu0 %v1932
    %1977 = vmatpush.msra.mxu0 %v1928
    %1978 = vmatpush.msra.mxu0 %v1924
    %1979 = vmatpush.msra.mxu0 %v1920
    %1980 = vmatpush.msra.mxu0 %v1916
    %1981 = vmatpush.msra.mxu0 %v1912
    %1982 = vmatpush.msra.mxu0 %v1908
    %1983 = vmatpush.msra.mxu0 %v1904
    %1984 = vmatmul.f32.gmra.mxu0 %v1887
    %v1985 = vpop.f32.mrf.mxu0
    %v1986 = vadd.f32 0.0, %v1985
    %1987 = vdwg.mxu0
    %1988 = vmatpush.msra.mxu0 %v1965
    %1989 = vmatpush.msra.mxu0 %v1961
    %1990 = vmatpush.msra.mxu0 %v1957
    %1991 = vmatpush.msra.mxu0 %v1953
    %1992 = vmatpush.msra.mxu0 %v1949
    %1993 = vmatpush.msra.mxu0 %v1945
    %1994 = vmatpush.msra.mxu0 %v1941
    %1995 = vmatpush.msra.mxu0 %v1937
    %1996 = vmatpush.msra.mxu0 %v1933
    %1997 = vmatpush.msra.mxu0 %v1929
    %1998 = vmatpush.msra.mxu0 %v1925
    %1999 = vmatpush.msra.mxu0 %v1921
    %2000 = vmatpush.msra.mxu0 %v1917
    %2001 = vmatpush.msra.mxu0 %v1913
    %2002 = vmatpush.msra.mxu0 %v1909
    %2003 = vmatpush.msra.mxu0 %v1905
    %2004 = vmatmul.f32.gmra.mxu0 %v1887
    %v2005 = vpop.f32.mrf.mxu0
    %v2006 = vadd.f32 0.0, %v2005
    %2007 = vdwg.mxu0
    %2008 = vmatpush.msra.mxu0 %v1966
    %2009 = vmatpush.msra.mxu0 %v1962
    %2010 = vmatpush.msra.mxu0 %v1958
    %2011 = vmatpush.msra.mxu0 %v1954
    %2012 = vmatpush.msra.mxu0 %v1950
    %2013 = vmatpush.msra.mxu0 %v1946
    %2014 = vmatpush.msra.mxu0 %v1942
    %2015 = vmatpush.msra.mxu0 %v1938
    %2016 = vmatpush.msra.mxu0 %v1934
    %2017 = vmatpush.msra.mxu0 %v1930
    %2018 = vmatpush.msra.mxu0 %v1926
    %2019 = vmatpush.msra.mxu0 %v1922
    %2020 = vmatpush.msra.mxu0 %v1918
    %2021 = vmatpush.msra.mxu0 %v1914
    %2022 = vmatpush.msra.mxu0 %v1910
    %2023 = vmatpush.msra.mxu0 %v1906
    %2024 = vmatmul.f32.gmra.mxu0 %v1887
    %v2025 = vpop.f32.mrf.mxu0
    %v2026 = vadd.f32 0.0, %v2025
    %2027 = vdwg.mxu0
    %2028 = vmatpush.msra.mxu0 %v1967
    %2029 = vmatpush.msra.mxu0 %v1963
    %2030 = vmatpush.msra.mxu0 %v1959
    %2031 = vmatpush.msra.mxu0 %v1955
    %2032 = vmatpush.msra.mxu0 %v1951
    %2033 = vmatpush.msra.mxu0 %v1947
    %2034 = vmatpush.msra.mxu0 %v1943
    %2035 = vmatpush.msra.mxu0 %v1939
    %2036 = vmatpush.msra.mxu0 %v1935
    %2037 = vmatpush.msra.mxu0 %v1931
    %2038 = vmatpush.msra.mxu0 %v1927
    %2039 = vmatpush.msra.mxu0 %v1923
    %2040 = vmatpush.msra.mxu0 %v1919
    %2041 = vmatpush.msra.mxu0 %v1915
    %2042 = vmatpush.msra.mxu0 %v1911
    %2043 = vmatpush.msra.mxu0 %v1907
    %2044 = vmatmul.f32.gmra.mxu0 %v1887
    %v2045 = vpop.f32.mrf.mxu0
    %v2046 = vadd.f32 0.0, %v2045
    %2047 = vdwg.mxu0
    %v2048 = vadd.f32 %v1900, %v1986
    %v2049 = vadd.f32 %v1901, %v2006
    %v2050 = vadd.f32 %v1902, %v2026
    %v2051 = vadd.f32 %v1903, %v2046
    %s2052 = smul.u32 4, 4
    %s2053 = smul.addr %s2052, 8
    %s2054 = scalar_lea.vmem [#allocation3], %s2053
    %v2055 = vld [vmem:[%s2054] sm:$0xff]
    %v2056 = vld [vmem:[%s2054 + $0x8] sm:$0xff]
    %v2057 = vld [vmem:[%s2054 + $0x10] sm:$0xff]
    %v2058 = vld [vmem:[%s2054 + $0x18] sm:$0xff]
    %v2059 = vld [vmem:[#allocation9] sm:$0xff]
    %v2060 = vld [vmem:[#allocation9 + $0x8] sm:$0xff]
    %v2061 = vld [vmem:[#allocation9 + $0x10] sm:$0xff]
    %v2062 = vld [vmem:[#allocation9 + $0x18] sm:$0xff]
    %v2063 = vld [vmem:[#allocation9 + $0x20] sm:$0xff]
    %v2064 = vld [vmem:[#allocation9 + $0x28] sm:$0xff]
    %v2065 = vld [vmem:[#allocation9 + $0x30] sm:$0xff]
    %v2066 = vld [vmem:[#allocation9 + $0x38] sm:$0xff]
    %v2067 = vld [vmem:[#allocation9 + $0x40] sm:$0xff]
    %v2068 = vld [vmem:[#allocation9 + $0x48] sm:$0xff]
    %v2069 = vld [vmem:[#allocation9 + $0x50] sm:$0xff]
    %v2070 = vld [vmem:[#allocation9 + $0x58] sm:$0xff]
    %v2071 = vld [vmem:[#allocation9 + $0x60] sm:$0xff]
    %v2072 = vld [vmem:[#allocation9 + $0x68] sm:$0xff]
    %v2073 = vld [vmem:[#allocation9 + $0x70] sm:$0xff]
    %v2074 = vld [vmem:[#allocation9 + $0x78] sm:$0xff]
    %v2075 = vld [vmem:[#allocation9 + $0x80] sm:$0xff]
    %v2076 = vld [vmem:[#allocation9 + $0x88] sm:$0xff]
    %v2077 = vld [vmem:[#allocation9 + $0x90] sm:$0xff]
    %v2078 = vld [vmem:[#allocation9 + $0x98] sm:$0xff]
    %v2079 = vld [vmem:[#allocation9 + $0xa0] sm:$0xff]
    %v2080 = vld [vmem:[#allocation9 + $0xa8] sm:$0xff]
    %v2081 = vld [vmem:[#allocation9 + $0xb0] sm:$0xff]
    %v2082 = vld [vmem:[#allocation9 + $0xb8] sm:$0xff]
    %v2083 = vld [vmem:[#allocation9 + $0xc0] sm:$0xff]
    %v2084 = vld [vmem:[#allocation9 + $0xc8] sm:$0xff]
    %v2085 = vld [vmem:[#allocation9 + $0xd0] sm:$0xff]
    %v2086 = vld [vmem:[#allocation9 + $0xd8] sm:$0xff]
    %v2087 = vld [vmem:[#allocation9 + $0xe0] sm:$0xff]
    %v2088 = vld [vmem:[#allocation9 + $0xe8] sm:$0xff]
    %v2089 = vld [vmem:[#allocation9 + $0xf0] sm:$0xff]
    %v2090 = vld [vmem:[#allocation9 + $0xf8] sm:$0xff]
    %v2091 = vld [vmem:[#allocation9 + $0x100] sm:$0xff]
    %v2092 = vld [vmem:[#allocation9 + $0x108] sm:$0xff]
    %v2093 = vld [vmem:[#allocation9 + $0x110] sm:$0xff]
    %v2094 = vld [vmem:[#allocation9 + $0x118] sm:$0xff]
    %v2095 = vld [vmem:[#allocation9 + $0x120] sm:$0xff]
    %v2096 = vld [vmem:[#allocation9 + $0x128] sm:$0xff]
    %v2097 = vld [vmem:[#allocation9 + $0x130] sm:$0xff]
    %v2098 = vld [vmem:[#allocation9 + $0x138] sm:$0xff]
    %v2099 = vld [vmem:[#allocation9 + $0x140] sm:$0xff]
    %v2100 = vld [vmem:[#allocation9 + $0x148] sm:$0xff]
    %v2101 = vld [vmem:[#allocation9 + $0x150] sm:$0xff]
    %v2102 = vld [vmem:[#allocation9 + $0x158] sm:$0xff]
    %v2103 = vld [vmem:[#allocation9 + $0x160] sm:$0xff]
    %v2104 = vld [vmem:[#allocation9 + $0x168] sm:$0xff]
    %v2105 = vld [vmem:[#allocation9 + $0x170] sm:$0xff]
    %v2106 = vld [vmem:[#allocation9 + $0x178] sm:$0xff]
    %v2107 = vld [vmem:[#allocation9 + $0x180] sm:$0xff]
    %v2108 = vld [vmem:[#allocation9 + $0x188] sm:$0xff]
    %v2109 = vld [vmem:[#allocation9 + $0x190] sm:$0xff]
    %v2110 = vld [vmem:[#allocation9 + $0x198] sm:$0xff]
    %v2111 = vld [vmem:[#allocation9 + $0x1a0] sm:$0xff]
    %v2112 = vld [vmem:[#allocation9 + $0x1a8] sm:$0xff]
    %v2113 = vld [vmem:[#allocation9 + $0x1b0] sm:$0xff]
    %v2114 = vld [vmem:[#allocation9 + $0x1b8] sm:$0xff]
    %v2115 = vld [vmem:[#allocation9 + $0x1c0] sm:$0xff]
    %v2116 = vld [vmem:[#allocation9 + $0x1c8] sm:$0xff]
    %v2117 = vld [vmem:[#allocation9 + $0x1d0] sm:$0xff]
    %v2118 = vld [vmem:[#allocation9 + $0x1d8] sm:$0xff]
    %v2119 = vld [vmem:[#allocation9 + $0x1e0] sm:$0xff]
    %v2120 = vld [vmem:[#allocation9 + $0x1e8] sm:$0xff]
    %v2121 = vld [vmem:[#allocation9 + $0x1f0] sm:$0xff]
    %v2122 = vld [vmem:[#allocation9 + $0x1f8] sm:$0xff]
    %2123 = vmatpush.msra.mxu0 %v2119
    %2124 = vmatpush.msra.mxu0 %v2115
    %2125 = vmatpush.msra.mxu0 %v2111
    %2126 = vmatpush.msra.mxu0 %v2107
    %2127 = vmatpush.msra.mxu0 %v2103
    %2128 = vmatpush.msra.mxu0 %v2099
    %2129 = vmatpush.msra.mxu0 %v2095
    %2130 = vmatpush.msra.mxu0 %v2091
    %2131 = vmatpush.msra.mxu0 %v2087
    %2132 = vmatpush.msra.mxu0 %v2083
    %2133 = vmatpush.msra.mxu0 %v2079
    %2134 = vmatpush.msra.mxu0 %v2075
    %2135 = vmatpush.msra.mxu0 %v2071
    %2136 = vmatpush.msra.mxu0 %v2067
    %2137 = vmatpush.msra.mxu0 %v2063
    %2138 = vmatpush.msra.mxu0 %v2059
    %2139 = vmatmul.f32.gmra.mxu0 %v1892
    %v2140 = vpop.f32.mrf.mxu0
    %v2141 = vadd.f32 0.0, %v2140
    %2142 = vdwg.mxu0
    %2143 = vmatpush.msra.mxu0 %v2120
    %2144 = vmatpush.msra.mxu0 %v2116
    %2145 = vmatpush.msra.mxu0 %v2112
    %2146 = vmatpush.msra.mxu0 %v2108
    %2147 = vmatpush.msra.mxu0 %v2104
    %2148 = vmatpush.msra.mxu0 %v2100
    %2149 = vmatpush.msra.mxu0 %v2096
    %2150 = vmatpush.msra.mxu0 %v2092
    %2151 = vmatpush.msra.mxu0 %v2088
    %2152 = vmatpush.msra.mxu0 %v2084
    %2153 = vmatpush.msra.mxu0 %v2080
    %2154 = vmatpush.msra.mxu0 %v2076
    %2155 = vmatpush.msra.mxu0 %v2072
    %2156 = vmatpush.msra.mxu0 %v2068
    %2157 = vmatpush.msra.mxu0 %v2064
    %2158 = vmatpush.msra.mxu0 %v2060
    %2159 = vmatmul.f32.gmra.mxu0 %v1892
    %v2160 = vpop.f32.mrf.mxu0
    %v2161 = vadd.f32 0.0, %v2160
    %2162 = vdwg.mxu0
    %2163 = vmatpush.msra.mxu0 %v2121
    %2164 = vmatpush.msra.mxu0 %v2117
    %2165 = vmatpush.msra.mxu0 %v2113
    %2166 = vmatpush.msra.mxu0 %v2109
    %2167 = vmatpush.msra.mxu0 %v2105
    %2168 = vmatpush.msra.mxu0 %v2101
    %2169 = vmatpush.msra.mxu0 %v2097
    %2170 = vmatpush.msra.mxu0 %v2093
    %2171 = vmatpush.msra.mxu0 %v2089
    %2172 = vmatpush.msra.mxu0 %v2085
    %2173 = vmatpush.msra.mxu0 %v2081
    %2174 = vmatpush.msra.mxu0 %v2077
    %2175 = vmatpush.msra.mxu0 %v2073
    %2176 = vmatpush.msra.mxu0 %v2069
    %2177 = vmatpush.msra.mxu0 %v2065
    %2178 = vmatpush.msra.mxu0 %v2061
    %2179 = vmatmul.f32.gmra.mxu0 %v1892
    %v2180 = vpop.f32.mrf.mxu0
    %v2181 = vadd.f32 0.0, %v2180
    %2182 = vdwg.mxu0
    %2183 = vmatpush.msra.mxu0 %v2122
    %2184 = vmatpush.msra.mxu0 %v2118
    %2185 = vmatpush.msra.mxu0 %v2114
    %2186 = vmatpush.msra.mxu0 %v2110
    %2187 = vmatpush.msra.mxu0 %v2106
    %2188 = vmatpush.msra.mxu0 %v2102
    %2189 = vmatpush.msra.mxu0 %v2098
    %2190 = vmatpush.msra.mxu0 %v2094
    %2191 = vmatpush.msra.mxu0 %v2090
    %2192 = vmatpush.msra.mxu0 %v2086
    %2193 = vmatpush.msra.mxu0 %v2082
    %2194 = vmatpush.msra.mxu0 %v2078
    %2195 = vmatpush.msra.mxu0 %v2074
    %2196 = vmatpush.msra.mxu0 %v2070
    %2197 = vmatpush.msra.mxu0 %v2066
    %2198 = vmatpush.msra.mxu0 %v2062
    %2199 = vmatmul.f32.gmra.mxu0 %v1892
    %v2200 = vpop.f32.mrf.mxu0
    %v2201 = vadd.f32 0.0, %v2200
    %2202 = vdwg.mxu0
    %v2203 = vadd.f32 %v2055, %v2141
    %v2204 = vadd.f32 %v2056, %v2161
    %v2205 = vadd.f32 %v2057, %v2181
    %v2206 = vadd.f32 %v2058, %v2201
    %v2207 = vxor.u32 %v2048, 2147483648
    %v2208 = vxor.u32 %v2049, 2147483648
    %v2209 = vxor.u32 %v2050, 2147483648
    %v2210 = vmul.f32 %v2207, 1.442695
    %v2211 = vpow.pop %v2210
    %v2212 = vmul.f32 %v2208, 1.442695
    %v2213 = vpow.pop %v2212
    %v2214 = vmul.f32 %v2209, 1.442695
    %v2215 = vpow.pop %v2214
    %v2216 = vadd.f32 %v2211, 1.0
    %v2217 = vadd.f32 %v2213, 1.0
    %v2218 = vadd.f32 %v2215, 1.0
    %v2219 = vrcp.pop %v2216
    %v2220 = vmul.f32 %v2216, %v2219
    %v2221 = vsub.f32 1.0, %v2220
    %v2222 = vmul.f32 %v2219, %v2221
    %v2223 = vadd.f32 %v2219, %v2222
    %vm2224 = vweird.f32 %v2216
    %vm2225 = vweird.f32 %v2219
    %vm2226 = vmor %vm2224, %vm2225
    %v2227 = vsel %vm2226, %v2219, %v2223
    %v2228 = vand.u32 2147483647, %v2216
    %vm2229 = vcmp.eq.f32.partialorder %v2228, 8.507059e+37
    %v2230 = vand.u32 %v2216, 2147483648
    %v2231 = vor.u32 1.1754944e-38, %v2230
    %v2232 = vsel %vm2229, %v2231, %v2227
    %v2233 = vmul.f32 1.0, %v2232
    %v2234 = vrcp.pop %v2217
    %v2235 = vmul.f32 %v2217, %v2234
    %v2236 = vsub.f32 1.0, %v2235
    %v2237 = vmul.f32 %v2234, %v2236
    %v2238 = vadd.f32 %v2234, %v2237
    %vm2239 = vweird.f32 %v2217
    %vm2240 = vweird.f32 %v2234
    %vm2241 = vmor %vm2239, %vm2240
    %v2242 = vsel %vm2241, %v2234, %v2238
    %v2243 = vand.u32 2147483647, %v2217
    %vm2244 = vcmp.eq.f32.partialorder %v2243, 8.507059e+37
    %v2245 = vand.u32 %v2217, 2147483648
    %v2246 = vor.u32 1.1754944e-38, %v2245
    %v2247 = vsel %vm2244, %v2246, %v2242
    %v2248 = vmul.f32 1.0, %v2247
    %v2249 = vrcp.pop %v2218
    %v2250 = vmul.f32 %v2218, %v2249
    %v2251 = vsub.f32 1.0, %v2250
    %v2252 = vmul.f32 %v2249, %v2251
    %v2253 = vadd.f32 %v2249, %v2252
    %vm2254 = vweird.f32 %v2218
    %vm2255 = vweird.f32 %v2249
    %vm2256 = vmor %vm2254, %vm2255
    %v2257 = vsel %vm2256, %v2249, %v2253
    %v2258 = vand.u32 2147483647, %v2218
    %vm2259 = vcmp.eq.f32.partialorder %v2258, 8.507059e+37
    %v2260 = vand.u32 %v2218, 2147483648
    %v2261 = vor.u32 1.1754944e-38, %v2260
    %v2262 = vsel %vm2259, %v2261, %v2257
    %v2263 = vmul.f32 1.0, %v2262
    %v2264 = vtanh.pop %v2051
    %v2265 = vxor.u32 %v2203, 2147483648
    %v2266 = vxor.u32 %v2204, 2147483648
    %v2267 = vxor.u32 %v2205, 2147483648
    %v2268 = vmul.f32 %v2265, 1.442695
    %v2269 = vpow.pop %v2268
    %v2270 = vmul.f32 %v2266, 1.442695
    %v2271 = vpow.pop %v2270
    %v2272 = vmul.f32 %v2267, 1.442695
    %v2273 = vpow.pop %v2272
    %v2274 = vadd.f32 %v2269, 1.0
    %v2275 = vadd.f32 %v2271, 1.0
    %v2276 = vadd.f32 %v2273, 1.0
    %v2277 = vrcp.pop %v2274
    %v2278 = vmul.f32 %v2274, %v2277
    %v2279 = vsub.f32 1.0, %v2278
    %v2280 = vmul.f32 %v2277, %v2279
    %v2281 = vadd.f32 %v2277, %v2280
    %vm2282 = vweird.f32 %v2274
    %vm2283 = vweird.f32 %v2277
    %vm2284 = vmor %vm2282, %vm2283
    %v2285 = vsel %vm2284, %v2277, %v2281
    %v2286 = vand.u32 2147483647, %v2274
    %vm2287 = vcmp.eq.f32.partialorder %v2286, 8.507059e+37
    %v2288 = vand.u32 %v2274, 2147483648
    %v2289 = vor.u32 1.1754944e-38, %v2288
    %v2290 = vsel %vm2287, %v2289, %v2285
    %v2291 = vmul.f32 1.0, %v2290
    %v2292 = vrcp.pop %v2275
    %v2293 = vmul.f32 %v2275, %v2292
    %v2294 = vsub.f32 1.0, %v2293
    %v2295 = vmul.f32 %v2292, %v2294
    %v2296 = vadd.f32 %v2292, %v2295
    %vm2297 = vweird.f32 %v2275
    %vm2298 = vweird.f32 %v2292
    %vm2299 = vmor %vm2297, %vm2298
    %v2300 = vsel %vm2299, %v2292, %v2296
    %v2301 = vand.u32 2147483647, %v2275
    %vm2302 = vcmp.eq.f32.partialorder %v2301, 8.507059e+37
    %v2303 = vand.u32 %v2275, 2147483648
    %v2304 = vor.u32 1.1754944e-38, %v2303
    %v2305 = vsel %vm2302, %v2304, %v2300
    %v2306 = vmul.f32 1.0, %v2305
    %v2307 = vrcp.pop %v2276
    %v2308 = vmul.f32 %v2276, %v2307
    %v2309 = vsub.f32 1.0, %v2308
    %v2310 = vmul.f32 %v2307, %v2309
    %v2311 = vadd.f32 %v2307, %v2310
    %vm2312 = vweird.f32 %v2276
    %vm2313 = vweird.f32 %v2307
    %vm2314 = vmor %vm2312, %vm2313
    %v2315 = vsel %vm2314, %v2307, %v2311
    %v2316 = vand.u32 2147483647, %v2276
    %vm2317 = vcmp.eq.f32.partialorder %v2316, 8.507059e+37
    %v2318 = vand.u32 %v2276, 2147483648
    %v2319 = vor.u32 1.1754944e-38, %v2318
    %v2320 = vsel %vm2317, %v2319, %v2315
    %v2321 = vmul.f32 1.0, %v2320
    %v2322 = vtanh.pop %v2206
    %v2323 = vmul.f32 %v2248, %v1885
    %v2324 = vmul.f32 %v2233, %v2264
    %v2325 = vadd.f32 %v2323, %v2324
    %v2326 = vtanh.pop %v2325
    %v2327 = vmul.f32 %v2263, %v2326
    %v2328 = vmul.f32 %v2306, %v1890
    %v2329 = vmul.f32 %v2291, %v2322
    %v2330 = vadd.f32 %v2328, %v2329
    %v2331 = vtanh.pop %v2330
    %v2332 = vmul.f32 %v2321, %v2331
    %s2333 = scalar_lea.vmem [#allocation4], 24
    %2334 = vst [vmem:[%s2333] sm:$0xff] %v2327
    %s2335 = scalar_lea.vmem [#allocation5], 32
    %2336 = vst [vmem:[%s2335] sm:$0xff] %v2332
    %s2337 = smul.addr %s2052, 8
    %s2338 = scalar_lea.vmem [#allocation2], %s2337
    %v2339 = vld [vmem:[%s2338] sm:$0xff]
    %v2340 = vld [vmem:[%s2338 + $0x8] sm:$0xff]
    %v2341 = vld [vmem:[%s2338 + $0x10] sm:$0xff]
    %v2342 = vld [vmem:[%s2338 + $0x18] sm:$0xff]
    %v2343 = vld [vmem:[#allocation6] sm:$0xff]
    %v2344 = vld [vmem:[#allocation6 + $0x8] sm:$0xff]
    %v2345 = vld [vmem:[#allocation6 + $0x10] sm:$0xff]
    %v2346 = vld [vmem:[#allocation6 + $0x18] sm:$0xff]
    %v2347 = vld [vmem:[#allocation6 + $0x20] sm:$0xff]
    %v2348 = vld [vmem:[#allocation6 + $0x28] sm:$0xff]
    %v2349 = vld [vmem:[#allocation6 + $0x30] sm:$0xff]
    %v2350 = vld [vmem:[#allocation6 + $0x38] sm:$0xff]
    %v2351 = vld [vmem:[#allocation6 + $0x40] sm:$0xff]
    %v2352 = vld [vmem:[#allocation6 + $0x48] sm:$0xff]
    %v2353 = vld [vmem:[#allocation6 + $0x50] sm:$0xff]
    %v2354 = vld [vmem:[#allocation6 + $0x58] sm:$0xff]
    %v2355 = vld [vmem:[#allocation6 + $0x60] sm:$0xff]
    %v2356 = vld [vmem:[#allocation6 + $0x68] sm:$0xff]
    %v2357 = vld [vmem:[#allocation6 + $0x70] sm:$0xff]
    %v2358 = vld [vmem:[#allocation6 + $0x78] sm:$0xff]
    %v2359 = vld [vmem:[#allocation6 + $0x80] sm:$0xff]
    %v2360 = vld [vmem:[#allocation6 + $0x88] sm:$0xff]
    %v2361 = vld [vmem:[#allocation6 + $0x90] sm:$0xff]
    %v2362 = vld [vmem:[#allocation6 + $0x98] sm:$0xff]
    %v2363 = vld [vmem:[#allocation6 + $0xa0] sm:$0xff]
    %v2364 = vld [vmem:[#allocation6 + $0xa8] sm:$0xff]
    %v2365 = vld [vmem:[#allocation6 + $0xb0] sm:$0xff]
    %v2366 = vld [vmem:[#allocation6 + $0xb8] sm:$0xff]
    %v2367 = vld [vmem:[#allocation6 + $0xc0] sm:$0xff]
    %v2368 = vld [vmem:[#allocation6 + $0xc8] sm:$0xff]
    %v2369 = vld [vmem:[#allocation6 + $0xd0] sm:$0xff]
    %v2370 = vld [vmem:[#allocation6 + $0xd8] sm:$0xff]
    %v2371 = vld [vmem:[#allocation6 + $0xe0] sm:$0xff]
    %v2372 = vld [vmem:[#allocation6 + $0xe8] sm:$0xff]
    %v2373 = vld [vmem:[#allocation6 + $0xf0] sm:$0xff]
    %v2374 = vld [vmem:[#allocation6 + $0xf8] sm:$0xff]
    %v2375 = vld [vmem:[#allocation6 + $0x100] sm:$0xff]
    %v2376 = vld [vmem:[#allocation6 + $0x108] sm:$0xff]
    %v2377 = vld [vmem:[#allocation6 + $0x110] sm:$0xff]
    %v2378 = vld [vmem:[#allocation6 + $0x118] sm:$0xff]
    %v2379 = vld [vmem:[#allocation6 + $0x120] sm:$0xff]
    %v2380 = vld [vmem:[#allocation6 + $0x128] sm:$0xff]
    %v2381 = vld [vmem:[#allocation6 + $0x130] sm:$0xff]
    %v2382 = vld [vmem:[#allocation6 + $0x138] sm:$0xff]
    %v2383 = vld [vmem:[#allocation6 + $0x140] sm:$0xff]
    %v2384 = vld [vmem:[#allocation6 + $0x148] sm:$0xff]
    %v2385 = vld [vmem:[#allocation6 + $0x150] sm:$0xff]
    %v2386 = vld [vmem:[#allocation6 + $0x158] sm:$0xff]
    %v2387 = vld [vmem:[#allocation6 + $0x160] sm:$0xff]
    %v2388 = vld [vmem:[#allocation6 + $0x168] sm:$0xff]
    %v2389 = vld [vmem:[#allocation6 + $0x170] sm:$0xff]
    %v2390 = vld [vmem:[#allocation6 + $0x178] sm:$0xff]
    %v2391 = vld [vmem:[#allocation6 + $0x180] sm:$0xff]
    %v2392 = vld [vmem:[#allocation6 + $0x188] sm:$0xff]
    %v2393 = vld [vmem:[#allocation6 + $0x190] sm:$0xff]
    %v2394 = vld [vmem:[#allocation6 + $0x198] sm:$0xff]
    %v2395 = vld [vmem:[#allocation6 + $0x1a0] sm:$0xff]
    %v2396 = vld [vmem:[#allocation6 + $0x1a8] sm:$0xff]
    %v2397 = vld [vmem:[#allocation6 + $0x1b0] sm:$0xff]
    %v2398 = vld [vmem:[#allocation6 + $0x1b8] sm:$0xff]
    %v2399 = vld [vmem:[#allocation6 + $0x1c0] sm:$0xff]
    %v2400 = vld [vmem:[#allocation6 + $0x1c8] sm:$0xff]
    %v2401 = vld [vmem:[#allocation6 + $0x1d0] sm:$0xff]
    %v2402 = vld [vmem:[#allocation6 + $0x1d8] sm:$0xff]
    %v2403 = vld [vmem:[#allocation6 + $0x1e0] sm:$0xff]
    %v2404 = vld [vmem:[#allocation6 + $0x1e8] sm:$0xff]
    %v2405 = vld [vmem:[#allocation6 + $0x1f0] sm:$0xff]
    %v2406 = vld [vmem:[#allocation6 + $0x1f8] sm:$0xff]
    %2407 = vmatpush.msra.mxu0 %v2403
    %2408 = vmatpush.msra.mxu0 %v2399
    %2409 = vmatpush.msra.mxu0 %v2395
    %2410 = vmatpush.msra.mxu0 %v2391
    %2411 = vmatpush.msra.mxu0 %v2387
    %2412 = vmatpush.msra.mxu0 %v2383
    %2413 = vmatpush.msra.mxu0 %v2379
    %2414 = vmatpush.msra.mxu0 %v2375
    %2415 = vmatpush.msra.mxu0 %v2371
    %2416 = vmatpush.msra.mxu0 %v2367
    %2417 = vmatpush.msra.mxu0 %v2363
    %2418 = vmatpush.msra.mxu0 %v2359
    %2419 = vmatpush.msra.mxu0 %v2355
    %2420 = vmatpush.msra.mxu0 %v2351
    %2421 = vmatpush.msra.mxu0 %v2347
    %2422 = vmatpush.msra.mxu0 %v2343
    %2423 = vmatmul.f32.gmra.mxu0 %v2327
    %v2424 = vpop.f32.mrf.mxu0
    %v2425 = vadd.f32 0.0, %v2424
    %2426 = vdwg.mxu0
    %2427 = vmatpush.msra.mxu0 %v2404
    %2428 = vmatpush.msra.mxu0 %v2400
    %2429 = vmatpush.msra.mxu0 %v2396
    %2430 = vmatpush.msra.mxu0 %v2392
    %2431 = vmatpush.msra.mxu0 %v2388
    %2432 = vmatpush.msra.mxu0 %v2384
    %2433 = vmatpush.msra.mxu0 %v2380
    %2434 = vmatpush.msra.mxu0 %v2376
    %2435 = vmatpush.msra.mxu0 %v2372
    %2436 = vmatpush.msra.mxu0 %v2368
    %2437 = vmatpush.msra.mxu0 %v2364
    %2438 = vmatpush.msra.mxu0 %v2360
    %2439 = vmatpush.msra.mxu0 %v2356
    %2440 = vmatpush.msra.mxu0 %v2352
    %2441 = vmatpush.msra.mxu0 %v2348
    %2442 = vmatpush.msra.mxu0 %v2344
    %2443 = vmatmul.f32.gmra.mxu0 %v2327
    %v2444 = vpop.f32.mrf.mxu0
    %v2445 = vadd.f32 0.0, %v2444
    %2446 = vdwg.mxu0
    %2447 = vmatpush.msra.mxu0 %v2405
    %2448 = vmatpush.msra.mxu0 %v2401
    %2449 = vmatpush.msra.mxu0 %v2397
    %2450 = vmatpush.msra.mxu0 %v2393
    %2451 = vmatpush.msra.mxu0 %v2389
    %2452 = vmatpush.msra.mxu0 %v2385
    %2453 = vmatpush.msra.mxu0 %v2381
    %2454 = vmatpush.msra.mxu0 %v2377
    %2455 = vmatpush.msra.mxu0 %v2373
    %2456 = vmatpush.msra.mxu0 %v2369
    %2457 = vmatpush.msra.mxu0 %v2365
    %2458 = vmatpush.msra.mxu0 %v2361
    %2459 = vmatpush.msra.mxu0 %v2357
    %2460 = vmatpush.msra.mxu0 %v2353
    %2461 = vmatpush.msra.mxu0 %v2349
    %2462 = vmatpush.msra.mxu0 %v2345
    %2463 = vmatmul.f32.gmra.mxu0 %v2327
    %v2464 = vpop.f32.mrf.mxu0
    %v2465 = vadd.f32 0.0, %v2464
    %2466 = vdwg.mxu0
    %2467 = vmatpush.msra.mxu0 %v2406
    %2468 = vmatpush.msra.mxu0 %v2402
    %2469 = vmatpush.msra.mxu0 %v2398
    %2470 = vmatpush.msra.mxu0 %v2394
    %2471 = vmatpush.msra.mxu0 %v2390
    %2472 = vmatpush.msra.mxu0 %v2386
    %2473 = vmatpush.msra.mxu0 %v2382
    %2474 = vmatpush.msra.mxu0 %v2378
    %2475 = vmatpush.msra.mxu0 %v2374
    %2476 = vmatpush.msra.mxu0 %v2370
    %2477 = vmatpush.msra.mxu0 %v2366
    %2478 = vmatpush.msra.mxu0 %v2362
    %2479 = vmatpush.msra.mxu0 %v2358
    %2480 = vmatpush.msra.mxu0 %v2354
    %2481 = vmatpush.msra.mxu0 %v2350
    %2482 = vmatpush.msra.mxu0 %v2346
    %2483 = vmatmul.f32.gmra.mxu0 %v2327
    %v2484 = vpop.f32.mrf.mxu0
    %v2485 = vadd.f32 0.0, %v2484
    %2486 = vdwg.mxu0
    %v2487 = vadd.f32 %v2339, %v2425
    %v2488 = vadd.f32 %v2340, %v2445
    %v2489 = vadd.f32 %v2341, %v2465
    %v2490 = vadd.f32 %v2342, %v2485
    %s2491 = smul.addr %s1897, 8
    %s2492 = scalar_lea.vmem [#allocation3], %s2491
    %v2493 = vld [vmem:[%s2492] sm:$0xff]
    %v2494 = vld [vmem:[%s2492 + $0x8] sm:$0xff]
    %v2495 = vld [vmem:[%s2492 + $0x10] sm:$0xff]
    %v2496 = vld [vmem:[%s2492 + $0x18] sm:$0xff]
    %v2497 = vld [vmem:[#allocation9] sm:$0xff]
    %v2498 = vld [vmem:[#allocation9 + $0x8] sm:$0xff]
    %v2499 = vld [vmem:[#allocation9 + $0x10] sm:$0xff]
    %v2500 = vld [vmem:[#allocation9 + $0x18] sm:$0xff]
    %v2501 = vld [vmem:[#allocation9 + $0x20] sm:$0xff]
    %v2502 = vld [vmem:[#allocation9 + $0x28] sm:$0xff]
    %v2503 = vld [vmem:[#allocation9 + $0x30] sm:$0xff]
    %v2504 = vld [vmem:[#allocation9 + $0x38] sm:$0xff]
    %v2505 = vld [vmem:[#allocation9 + $0x40] sm:$0xff]
    %v2506 = vld [vmem:[#allocation9 + $0x48] sm:$0xff]
    %v2507 = vld [vmem:[#allocation9 + $0x50] sm:$0xff]
    %v2508 = vld [vmem:[#allocation9 + $0x58] sm:$0xff]
    %v2509 = vld [vmem:[#allocation9 + $0x60] sm:$0xff]
    %v2510 = vld [vmem:[#allocation9 + $0x68] sm:$0xff]
    %v2511 = vld [vmem:[#allocation9 + $0x70] sm:$0xff]
    %v2512 = vld [vmem:[#allocation9 + $0x78] sm:$0xff]
    %v2513 = vld [vmem:[#allocation9 + $0x80] sm:$0xff]
    %v2514 = vld [vmem:[#allocation9 + $0x88] sm:$0xff]
    %v2515 = vld [vmem:[#allocation9 + $0x90] sm:$0xff]
    %v2516 = vld [vmem:[#allocation9 + $0x98] sm:$0xff]
    %v2517 = vld [vmem:[#allocation9 + $0xa0] sm:$0xff]
    %v2518 = vld [vmem:[#allocation9 + $0xa8] sm:$0xff]
    %v2519 = vld [vmem:[#allocation9 + $0xb0] sm:$0xff]
    %v2520 = vld [vmem:[#allocation9 + $0xb8] sm:$0xff]
    %v2521 = vld [vmem:[#allocation9 + $0xc0] sm:$0xff]
    %v2522 = vld [vmem:[#allocation9 + $0xc8] sm:$0xff]
    %v2523 = vld [vmem:[#allocation9 + $0xd0] sm:$0xff]
    %v2524 = vld [vmem:[#allocation9 + $0xd8] sm:$0xff]
    %v2525 = vld [vmem:[#allocation9 + $0xe0] sm:$0xff]
    %v2526 = vld [vmem:[#allocation9 + $0xe8] sm:$0xff]
    %v2527 = vld [vmem:[#allocation9 + $0xf0] sm:$0xff]
    %v2528 = vld [vmem:[#allocation9 + $0xf8] sm:$0xff]
    %v2529 = vld [vmem:[#allocation9 + $0x100] sm:$0xff]
    %v2530 = vld [vmem:[#allocation9 + $0x108] sm:$0xff]
    %v2531 = vld [vmem:[#allocation9 + $0x110] sm:$0xff]
    %v2532 = vld [vmem:[#allocation9 + $0x118] sm:$0xff]
    %v2533 = vld [vmem:[#allocation9 + $0x120] sm:$0xff]
    %v2534 = vld [vmem:[#allocation9 + $0x128] sm:$0xff]
    %v2535 = vld [vmem:[#allocation9 + $0x130] sm:$0xff]
    %v2536 = vld [vmem:[#allocation9 + $0x138] sm:$0xff]
    %v2537 = vld [vmem:[#allocation9 + $0x140] sm:$0xff]
    %v2538 = vld [vmem:[#allocation9 + $0x148] sm:$0xff]
    %v2539 = vld [vmem:[#allocation9 + $0x150] sm:$0xff]
    %v2540 = vld [vmem:[#allocation9 + $0x158] sm:$0xff]
    %v2541 = vld [vmem:[#allocation9 + $0x160] sm:$0xff]
    %v2542 = vld [vmem:[#allocation9 + $0x168] sm:$0xff]
    %v2543 = vld [vmem:[#allocation9 + $0x170] sm:$0xff]
    %v2544 = vld [vmem:[#allocation9 + $0x178] sm:$0xff]
    %v2545 = vld [vmem:[#allocation9 + $0x180] sm:$0xff]
    %v2546 = vld [vmem:[#allocation9 + $0x188] sm:$0xff]
    %v2547 = vld [vmem:[#allocation9 + $0x190] sm:$0xff]
    %v2548 = vld [vmem:[#allocation9 + $0x198] sm:$0xff]
    %v2549 = vld [vmem:[#allocation9 + $0x1a0] sm:$0xff]
    %v2550 = vld [vmem:[#allocation9 + $0x1a8] sm:$0xff]
    %v2551 = vld [vmem:[#allocation9 + $0x1b0] sm:$0xff]
    %v2552 = vld [vmem:[#allocation9 + $0x1b8] sm:$0xff]
    %v2553 = vld [vmem:[#allocation9 + $0x1c0] sm:$0xff]
    %v2554 = vld [vmem:[#allocation9 + $0x1c8] sm:$0xff]
    %v2555 = vld [vmem:[#allocation9 + $0x1d0] sm:$0xff]
    %v2556 = vld [vmem:[#allocation9 + $0x1d8] sm:$0xff]
    %v2557 = vld [vmem:[#allocation9 + $0x1e0] sm:$0xff]
    %v2558 = vld [vmem:[#allocation9 + $0x1e8] sm:$0xff]
    %v2559 = vld [vmem:[#allocation9 + $0x1f0] sm:$0xff]
    %v2560 = vld [vmem:[#allocation9 + $0x1f8] sm:$0xff]
    %2561 = vmatpush.msra.mxu0 %v2557
    %2562 = vmatpush.msra.mxu0 %v2553
    %2563 = vmatpush.msra.mxu0 %v2549
    %2564 = vmatpush.msra.mxu0 %v2545
    %2565 = vmatpush.msra.mxu0 %v2541
    %2566 = vmatpush.msra.mxu0 %v2537
    %2567 = vmatpush.msra.mxu0 %v2533
    %2568 = vmatpush.msra.mxu0 %v2529
    %2569 = vmatpush.msra.mxu0 %v2525
    %2570 = vmatpush.msra.mxu0 %v2521
    %2571 = vmatpush.msra.mxu0 %v2517
    %2572 = vmatpush.msra.mxu0 %v2513
    %2573 = vmatpush.msra.mxu0 %v2509
    %2574 = vmatpush.msra.mxu0 %v2505
    %2575 = vmatpush.msra.mxu0 %v2501
    %2576 = vmatpush.msra.mxu0 %v2497
    %2577 = vmatmul.f32.gmra.mxu0 %v2332
    %v2578 = vpop.f32.mrf.mxu0
    %v2579 = vadd.f32 0.0, %v2578
    %2580 = vdwg.mxu0
    %2581 = vmatpush.msra.mxu0 %v2558
    %2582 = vmatpush.msra.mxu0 %v2554
    %2583 = vmatpush.msra.mxu0 %v2550
    %2584 = vmatpush.msra.mxu0 %v2546
    %2585 = vmatpush.msra.mxu0 %v2542
    %2586 = vmatpush.msra.mxu0 %v2538
    %2587 = vmatpush.msra.mxu0 %v2534
    %2588 = vmatpush.msra.mxu0 %v2530
    %2589 = vmatpush.msra.mxu0 %v2526
    %2590 = vmatpush.msra.mxu0 %v2522
    %2591 = vmatpush.msra.mxu0 %v2518
    %2592 = vmatpush.msra.mxu0 %v2514
    %2593 = vmatpush.msra.mxu0 %v2510
    %2594 = vmatpush.msra.mxu0 %v2506
    %2595 = vmatpush.msra.mxu0 %v2502
    %2596 = vmatpush.msra.mxu0 %v2498
    %2597 = vmatmul.f32.gmra.mxu0 %v2332
    %v2598 = vpop.f32.mrf.mxu0
    %v2599 = vadd.f32 0.0, %v2598
    %2600 = vdwg.mxu0
    %2601 = vmatpush.msra.mxu0 %v2559
    %2602 = vmatpush.msra.mxu0 %v2555
    %2603 = vmatpush.msra.mxu0 %v2551
    %2604 = vmatpush.msra.mxu0 %v2547
    %2605 = vmatpush.msra.mxu0 %v2543
    %2606 = vmatpush.msra.mxu0 %v2539
    %2607 = vmatpush.msra.mxu0 %v2535
    %2608 = vmatpush.msra.mxu0 %v2531
    %2609 = vmatpush.msra.mxu0 %v2527
    %2610 = vmatpush.msra.mxu0 %v2523
    %2611 = vmatpush.msra.mxu0 %v2519
    %2612 = vmatpush.msra.mxu0 %v2515
    %2613 = vmatpush.msra.mxu0 %v2511
    %2614 = vmatpush.msra.mxu0 %v2507
    %2615 = vmatpush.msra.mxu0 %v2503
    %2616 = vmatpush.msra.mxu0 %v2499
    %2617 = vmatmul.f32.gmra.mxu0 %v2332
    %v2618 = vpop.f32.mrf.mxu0
    %v2619 = vadd.f32 0.0, %v2618
    %2620 = vdwg.mxu0
    %2621 = vmatpush.msra.mxu0 %v2560
    %2622 = vmatpush.msra.mxu0 %v2556
    %2623 = vmatpush.msra.mxu0 %v2552
    %2624 = vmatpush.msra.mxu0 %v2548
    %2625 = vmatpush.msra.mxu0 %v2544
    %2626 = vmatpush.msra.mxu0 %v2540
    %2627 = vmatpush.msra.mxu0 %v2536
    %2628 = vmatpush.msra.mxu0 %v2532
    %2629 = vmatpush.msra.mxu0 %v2528
    %2630 = vmatpush.msra.mxu0 %v2524
    %2631 = vmatpush.msra.mxu0 %v2520
    %2632 = vmatpush.msra.mxu0 %v2516
    %2633 = vmatpush.msra.mxu0 %v2512
    %2634 = vmatpush.msra.mxu0 %v2508
    %2635 = vmatpush.msra.mxu0 %v2504
    %2636 = vmatpush.msra.mxu0 %v2500
    %2637 = vmatmul.f32.gmra.mxu0 %v2332
    %v2638 = vpop.f32.mrf.mxu0
    %v2639 = vadd.f32 0.0, %v2638
    %2640 = vdwg.mxu0
    %v2641 = vadd.f32 %v2493, %v2579
    %v2642 = vadd.f32 %v2494, %v2599
    %v2643 = vadd.f32 %v2495, %v2619
    %v2644 = vadd.f32 %v2496, %v2639
    %v2645 = vxor.u32 %v2487, 2147483648
    %v2646 = vxor.u32 %v2488, 2147483648
    %v2647 = vxor.u32 %v2489, 2147483648
    %v2648 = vmul.f32 %v2645, 1.442695
    %v2649 = vpow.pop %v2648
    %v2650 = vmul.f32 %v2646, 1.442695
    %v2651 = vpow.pop %v2650
    %v2652 = vmul.f32 %v2647, 1.442695
    %v2653 = vpow.pop %v2652
    %v2654 = vadd.f32 %v2649, 1.0
    %v2655 = vadd.f32 %v2651, 1.0
    %v2656 = vadd.f32 %v2653, 1.0
    %v2657 = vrcp.pop %v2654
    %v2658 = vmul.f32 %v2654, %v2657
    %v2659 = vsub.f32 1.0, %v2658
    %v2660 = vmul.f32 %v2657, %v2659
    %v2661 = vadd.f32 %v2657, %v2660
    %vm2662 = vweird.f32 %v2654
    %vm2663 = vweird.f32 %v2657
    %vm2664 = vmor %vm2662, %vm2663
    %v2665 = vsel %vm2664, %v2657, %v2661
    %v2666 = vand.u32 2147483647, %v2654
    %vm2667 = vcmp.eq.f32.partialorder %v2666, 8.507059e+37
    %v2668 = vand.u32 %v2654, 2147483648
    %v2669 = vor.u32 1.1754944e-38, %v2668
    %v2670 = vsel %vm2667, %v2669, %v2665
    %v2671 = vmul.f32 1.0, %v2670
    %v2672 = vrcp.pop %v2655
    %v2673 = vmul.f32 %v2655, %v2672
    %v2674 = vsub.f32 1.0, %v2673
    %v2675 = vmul.f32 %v2672, %v2674
    %v2676 = vadd.f32 %v2672, %v2675
    %vm2677 = vweird.f32 %v2655
    %vm2678 = vweird.f32 %v2672
    %vm2679 = vmor %vm2677, %vm2678
    %v2680 = vsel %vm2679, %v2672, %v2676
    %v2681 = vand.u32 2147483647, %v2655
    %vm2682 = vcmp.eq.f32.partialorder %v2681, 8.507059e+37
    %v2683 = vand.u32 %v2655, 2147483648
    %v2684 = vor.u32 1.1754944e-38, %v2683
    %v2685 = vsel %vm2682, %v2684, %v2680
    %v2686 = vmul.f32 1.0, %v2685
    %v2687 = vrcp.pop %v2656
    %v2688 = vmul.f32 %v2656, %v2687
    %v2689 = vsub.f32 1.0, %v2688
    %v2690 = vmul.f32 %v2687, %v2689
    %v2691 = vadd.f32 %v2687, %v2690
    %vm2692 = vweird.f32 %v2656
    %vm2693 = vweird.f32 %v2687
    %vm2694 = vmor %vm2692, %vm2693
    %v2695 = vsel %vm2694, %v2687, %v2691
    %v2696 = vand.u32 2147483647, %v2656
    %vm2697 = vcmp.eq.f32.partialorder %v2696, 8.507059e+37
    %v2698 = vand.u32 %v2656, 2147483648
    %v2699 = vor.u32 1.1754944e-38, %v2698
    %v2700 = vsel %vm2697, %v2699, %v2695
    %v2701 = vmul.f32 1.0, %v2700
    %v2702 = vtanh.pop %v2490
    %v2703 = vxor.u32 %v2641, 2147483648
    %v2704 = vxor.u32 %v2642, 2147483648
    %v2705 = vxor.u32 %v2643, 2147483648
    %v2706 = vmul.f32 %v2703, 1.442695
    %v2707 = vpow.pop %v2706
    %v2708 = vmul.f32 %v2704, 1.442695
    %v2709 = vpow.pop %v2708
    %v2710 = vmul.f32 %v2705, 1.442695
    %v2711 = vpow.pop %v2710
    %v2712 = vadd.f32 %v2707, 1.0
    %v2713 = vadd.f32 %v2709, 1.0
    %v2714 = vadd.f32 %v2711, 1.0
    %v2715 = vrcp.pop %v2712
    %v2716 = vmul.f32 %v2712, %v2715
    %v2717 = vsub.f32 1.0, %v2716
    %v2718 = vmul.f32 %v2715, %v2717
    %v2719 = vadd.f32 %v2715, %v2718
    %vm2720 = vweird.f32 %v2712
    %vm2721 = vweird.f32 %v2715
    %vm2722 = vmor %vm2720, %vm2721
    %v2723 = vsel %vm2722, %v2715, %v2719
    %v2724 = vand.u32 2147483647, %v2712
    %vm2725 = vcmp.eq.f32.partialorder %v2724, 8.507059e+37
    %v2726 = vand.u32 %v2712, 2147483648
    %v2727 = vor.u32 1.1754944e-38, %v2726
    %v2728 = vsel %vm2725, %v2727, %v2723
    %v2729 = vmul.f32 1.0, %v2728
    %v2730 = vrcp.pop %v2713
    %v2731 = vmul.f32 %v2713, %v2730
    %v2732 = vsub.f32 1.0, %v2731
    %v2733 = vmul.f32 %v2730, %v2732
    %v2734 = vadd.f32 %v2730, %v2733
    %vm2735 = vweird.f32 %v2713
    %vm2736 = vweird.f32 %v2730
    %vm2737 = vmor %vm2735, %vm2736
    %v2738 = vsel %vm2737, %v2730, %v2734
    %v2739 = vand.u32 2147483647, %v2713
    %vm2740 = vcmp.eq.f32.partialorder %v2739, 8.507059e+37
    %v2741 = vand.u32 %v2713, 2147483648
    %v2742 = vor.u32 1.1754944e-38, %v2741
    %v2743 = vsel %vm2740, %v2742, %v2738
    %v2744 = vmul.f32 1.0, %v2743
    %v2745 = vrcp.pop %v2714
    %v2746 = vmul.f32 %v2714, %v2745
    %v2747 = vsub.f32 1.0, %v2746
    %v2748 = vmul.f32 %v2745, %v2747
    %v2749 = vadd.f32 %v2745, %v2748
    %vm2750 = vweird.f32 %v2714
    %vm2751 = vweird.f32 %v2745
    %vm2752 = vmor %vm2750, %vm2751
    %v2753 = vsel %vm2752, %v2745, %v2749
    %v2754 = vand.u32 2147483647, %v2714
    %vm2755 = vcmp.eq.f32.partialorder %v2754, 8.507059e+37
    %v2756 = vand.u32 %v2714, 2147483648
    %v2757 = vor.u32 1.1754944e-38, %v2756
    %v2758 = vsel %vm2755, %v2757, %v2753
    %v2759 = vmul.f32 1.0, %v2758
    %v2760 = vtanh.pop %v2644
    %v2761 = vmul.f32 %v2686, %v2325
    %v2762 = vmul.f32 %v2671, %v2702
    %v2763 = vadd.f32 %v2761, %v2762
    %v2764 = vtanh.pop %v2763
    %v2765 = vmul.f32 %v2701, %v2764
    %v2766 = vmul.f32 %v2744, %v2330
    %v2767 = vmul.f32 %v2729, %v2760
    %v2768 = vadd.f32 %v2766, %v2767
    %v2769 = vtanh.pop %v2768
    %v2770 = vmul.f32 %v2759, %v2769
    %s2771 = scalar_lea.vmem [#allocation4], 32
    %2772 = vst [vmem:[%s2771] sm:$0xff] %v2765
    %s2773 = scalar_lea.vmem [#allocation5], 24
    %2774 = vst [vmem:[%s2773] sm:$0xff] %v2770
    %s2775 = smul.addr %s1612, 8
    %s2776 = scalar_lea.vmem [#allocation2], %s2775
    %v2777 = vld [vmem:[%s2776] sm:$0xff]
    %v2778 = vld [vmem:[%s2776 + $0x8] sm:$0xff]
    %v2779 = vld [vmem:[%s2776 + $0x10] sm:$0xff]
    %v2780 = vld [vmem:[%s2776 + $0x18] sm:$0xff]
    %v2781 = vld [vmem:[#allocation6] sm:$0xff]
    %v2782 = vld [vmem:[#allocation6 + $0x8] sm:$0xff]
    %v2783 = vld [vmem:[#allocation6 + $0x10] sm:$0xff]
    %v2784 = vld [vmem:[#allocation6 + $0x18] sm:$0xff]
    %v2785 = vld [vmem:[#allocation6 + $0x20] sm:$0xff]
    %v2786 = vld [vmem:[#allocation6 + $0x28] sm:$0xff]
    %v2787 = vld [vmem:[#allocation6 + $0x30] sm:$0xff]
    %v2788 = vld [vmem:[#allocation6 + $0x38] sm:$0xff]
    %v2789 = vld [vmem:[#allocation6 + $0x40] sm:$0xff]
    %v2790 = vld [vmem:[#allocation6 + $0x48] sm:$0xff]
    %v2791 = vld [vmem:[#allocation6 + $0x50] sm:$0xff]
    %v2792 = vld [vmem:[#allocation6 + $0x58] sm:$0xff]
    %v2793 = vld [vmem:[#allocation6 + $0x60] sm:$0xff]
    %v2794 = vld [vmem:[#allocation6 + $0x68] sm:$0xff]
    %v2795 = vld [vmem:[#allocation6 + $0x70] sm:$0xff]
    %v2796 = vld [vmem:[#allocation6 + $0x78] sm:$0xff]
    %v2797 = vld [vmem:[#allocation6 + $0x80] sm:$0xff]
    %v2798 = vld [vmem:[#allocation6 + $0x88] sm:$0xff]
    %v2799 = vld [vmem:[#allocation6 + $0x90] sm:$0xff]
    %v2800 = vld [vmem:[#allocation6 + $0x98] sm:$0xff]
    %v2801 = vld [vmem:[#allocation6 + $0xa0] sm:$0xff]
    %v2802 = vld [vmem:[#allocation6 + $0xa8] sm:$0xff]
    %v2803 = vld [vmem:[#allocation6 + $0xb0] sm:$0xff]
    %v2804 = vld [vmem:[#allocation6 + $0xb8] sm:$0xff]
    %v2805 = vld [vmem:[#allocation6 + $0xc0] sm:$0xff]
    %v2806 = vld [vmem:[#allocation6 + $0xc8] sm:$0xff]
    %v2807 = vld [vmem:[#allocation6 + $0xd0] sm:$0xff]
    %v2808 = vld [vmem:[#allocation6 + $0xd8] sm:$0xff]
    %v2809 = vld [vmem:[#allocation6 + $0xe0] sm:$0xff]
    %v2810 = vld [vmem:[#allocation6 + $0xe8] sm:$0xff]
    %v2811 = vld [vmem:[#allocation6 + $0xf0] sm:$0xff]
    %v2812 = vld [vmem:[#allocation6 + $0xf8] sm:$0xff]
    %v2813 = vld [vmem:[#allocation6 + $0x100] sm:$0xff]
    %v2814 = vld [vmem:[#allocation6 + $0x108] sm:$0xff]
    %v2815 = vld [vmem:[#allocation6 + $0x110] sm:$0xff]
    %v2816 = vld [vmem:[#allocation6 + $0x118] sm:$0xff]
    %v2817 = vld [vmem:[#allocation6 + $0x120] sm:$0xff]
    %v2818 = vld [vmem:[#allocation6 + $0x128] sm:$0xff]
    %v2819 = vld [vmem:[#allocation6 + $0x130] sm:$0xff]
    %v2820 = vld [vmem:[#allocation6 + $0x138] sm:$0xff]
    %v2821 = vld [vmem:[#allocation6 + $0x140] sm:$0xff]
    %v2822 = vld [vmem:[#allocation6 + $0x148] sm:$0xff]
    %v2823 = vld [vmem:[#allocation6 + $0x150] sm:$0xff]
    %v2824 = vld [vmem:[#allocation6 + $0x158] sm:$0xff]
    %v2825 = vld [vmem:[#allocation6 + $0x160] sm:$0xff]
    %v2826 = vld [vmem:[#allocation6 + $0x168] sm:$0xff]
    %v2827 = vld [vmem:[#allocation6 + $0x170] sm:$0xff]
    %v2828 = vld [vmem:[#allocation6 + $0x178] sm:$0xff]
    %v2829 = vld [vmem:[#allocation6 + $0x180] sm:$0xff]
    %v2830 = vld [vmem:[#allocation6 + $0x188] sm:$0xff]
    %v2831 = vld [vmem:[#allocation6 + $0x190] sm:$0xff]
    %v2832 = vld [vmem:[#allocation6 + $0x198] sm:$0xff]
    %v2833 = vld [vmem:[#allocation6 + $0x1a0] sm:$0xff]
    %v2834 = vld [vmem:[#allocation6 + $0x1a8] sm:$0xff]
    %v2835 = vld [vmem:[#allocation6 + $0x1b0] sm:$0xff]
    %v2836 = vld [vmem:[#allocation6 + $0x1b8] sm:$0xff]
    %v2837 = vld [vmem:[#allocation6 + $0x1c0] sm:$0xff]
    %v2838 = vld [vmem:[#allocation6 + $0x1c8] sm:$0xff]
    %v2839 = vld [vmem:[#allocation6 + $0x1d0] sm:$0xff]
    %v2840 = vld [vmem:[#allocation6 + $0x1d8] sm:$0xff]
    %v2841 = vld [vmem:[#allocation6 + $0x1e0] sm:$0xff]
    %v2842 = vld [vmem:[#allocation6 + $0x1e8] sm:$0xff]
    %v2843 = vld [vmem:[#allocation6 + $0x1f0] sm:$0xff]
    %v2844 = vld [vmem:[#allocation6 + $0x1f8] sm:$0xff]
    %2845 = vmatpush.msra.mxu0 %v2841
    %2846 = vmatpush.msra.mxu0 %v2837
    %2847 = vmatpush.msra.mxu0 %v2833
    %2848 = vmatpush.msra.mxu0 %v2829
    %2849 = vmatpush.msra.mxu0 %v2825
    %2850 = vmatpush.msra.mxu0 %v2821
    %2851 = vmatpush.msra.mxu0 %v2817
    %2852 = vmatpush.msra.mxu0 %v2813
    %2853 = vmatpush.msra.mxu0 %v2809
    %2854 = vmatpush.msra.mxu0 %v2805
    %2855 = vmatpush.msra.mxu0 %v2801
    %2856 = vmatpush.msra.mxu0 %v2797
    %2857 = vmatpush.msra.mxu0 %v2793
    %2858 = vmatpush.msra.mxu0 %v2789
    %2859 = vmatpush.msra.mxu0 %v2785
    %2860 = vmatpush.msra.mxu0 %v2781
    %2861 = vmatmul.f32.gmra.mxu0 %v2765
    %v2862 = vpop.f32.mrf.mxu0
    %v2863 = vadd.f32 0.0, %v2862
    %2864 = vdwg.mxu0
    %2865 = vmatpush.msra.mxu0 %v2842
    %2866 = vmatpush.msra.mxu0 %v2838
    %2867 = vmatpush.msra.mxu0 %v2834
    %2868 = vmatpush.msra.mxu0 %v2830
    %2869 = vmatpush.msra.mxu0 %v2826
    %2870 = vmatpush.msra.mxu0 %v2822
    %2871 = vmatpush.msra.mxu0 %v2818
    %2872 = vmatpush.msra.mxu0 %v2814
    %2873 = vmatpush.msra.mxu0 %v2810
    %2874 = vmatpush.msra.mxu0 %v2806
    %2875 = vmatpush.msra.mxu0 %v2802
    %2876 = vmatpush.msra.mxu0 %v2798
    %2877 = vmatpush.msra.mxu0 %v2794
    %2878 = vmatpush.msra.mxu0 %v2790
    %2879 = vmatpush.msra.mxu0 %v2786
    %2880 = vmatpush.msra.mxu0 %v2782
    %2881 = vmatmul.f32.gmra.mxu0 %v2765
    %v2882 = vpop.f32.mrf.mxu0
    %v2883 = vadd.f32 0.0, %v2882
    %2884 = vdwg.mxu0
    %2885 = vmatpush.msra.mxu0 %v2843
    %2886 = vmatpush.msra.mxu0 %v2839
    %2887 = vmatpush.msra.mxu0 %v2835
    %2888 = vmatpush.msra.mxu0 %v2831
    %2889 = vmatpush.msra.mxu0 %v2827
    %2890 = vmatpush.msra.mxu0 %v2823
    %2891 = vmatpush.msra.mxu0 %v2819
    %2892 = vmatpush.msra.mxu0 %v2815
    %2893 = vmatpush.msra.mxu0 %v2811
    %2894 = vmatpush.msra.mxu0 %v2807
    %2895 = vmatpush.msra.mxu0 %v2803
    %2896 = vmatpush.msra.mxu0 %v2799
    %2897 = vmatpush.msra.mxu0 %v2795
    %2898 = vmatpush.msra.mxu0 %v2791
    %2899 = vmatpush.msra.mxu0 %v2787
    %2900 = vmatpush.msra.mxu0 %v2783
    %2901 = vmatmul.f32.gmra.mxu0 %v2765
    %v2902 = vpop.f32.mrf.mxu0
    %v2903 = vadd.f32 0.0, %v2902
    %2904 = vdwg.mxu0
    %2905 = vmatpush.msra.mxu0 %v2844
    %2906 = vmatpush.msra.mxu0 %v2840
    %2907 = vmatpush.msra.mxu0 %v2836
    %2908 = vmatpush.msra.mxu0 %v2832
    %2909 = vmatpush.msra.mxu0 %v2828
    %2910 = vmatpush.msra.mxu0 %v2824
    %2911 = vmatpush.msra.mxu0 %v2820
    %2912 = vmatpush.msra.mxu0 %v2816
    %2913 = vmatpush.msra.mxu0 %v2812
    %2914 = vmatpush.msra.mxu0 %v2808
    %2915 = vmatpush.msra.mxu0 %v2804
    %2916 = vmatpush.msra.mxu0 %v2800
    %2917 = vmatpush.msra.mxu0 %v2796
    %2918 = vmatpush.msra.mxu0 %v2792
    %2919 = vmatpush.msra.mxu0 %v2788
    %2920 = vmatpush.msra.mxu0 %v2784
    %2921 = vmatmul.f32.gmra.mxu0 %v2765
    %v2922 = vpop.f32.mrf.mxu0
    %v2923 = vadd.f32 0.0, %v2922
    %2924 = vdwg.mxu0
    %v2925 = vadd.f32 %v2777, %v2863
    %v2926 = vadd.f32 %v2778, %v2883
    %v2927 = vadd.f32 %v2779, %v2903
    %v2928 = vadd.f32 %v2780, %v2923
    %s2929 = smul.addr %s1457, 8
    %s2930 = scalar_lea.vmem [#allocation3], %s2929
    %v2931 = vld [vmem:[%s2930] sm:$0xff]
    %v2932 = vld [vmem:[%s2930 + $0x8] sm:$0xff]
    %v2933 = vld [vmem:[%s2930 + $0x10] sm:$0xff]
    %v2934 = vld [vmem:[%s2930 + $0x18] sm:$0xff]
    %v2935 = vld [vmem:[#allocation9] sm:$0xff]
    %v2936 = vld [vmem:[#allocation9 + $0x8] sm:$0xff]
    %v2937 = vld [vmem:[#allocation9 + $0x10] sm:$0xff]
    %v2938 = vld [vmem:[#allocation9 + $0x18] sm:$0xff]
    %v2939 = vld [vmem:[#allocation9 + $0x20] sm:$0xff]
    %v2940 = vld [vmem:[#allocation9 + $0x28] sm:$0xff]
    %v2941 = vld [vmem:[#allocation9 + $0x30] sm:$0xff]
    %v2942 = vld [vmem:[#allocation9 + $0x38] sm:$0xff]
    %v2943 = vld [vmem:[#allocation9 + $0x40] sm:$0xff]
    %v2944 = vld [vmem:[#allocation9 + $0x48] sm:$0xff]
    %v2945 = vld [vmem:[#allocation9 + $0x50] sm:$0xff]
    %v2946 = vld [vmem:[#allocation9 + $0x58] sm:$0xff]
    %v2947 = vld [vmem:[#allocation9 + $0x60] sm:$0xff]
    %v2948 = vld [vmem:[#allocation9 + $0x68] sm:$0xff]
    %v2949 = vld [vmem:[#allocation9 + $0x70] sm:$0xff]
    %v2950 = vld [vmem:[#allocation9 + $0x78] sm:$0xff]
    %v2951 = vld [vmem:[#allocation9 + $0x80] sm:$0xff]
    %v2952 = vld [vmem:[#allocation9 + $0x88] sm:$0xff]
    %v2953 = vld [vmem:[#allocation9 + $0x90] sm:$0xff]
    %v2954 = vld [vmem:[#allocation9 + $0x98] sm:$0xff]
    %v2955 = vld [vmem:[#allocation9 + $0xa0] sm:$0xff]
    %v2956 = vld [vmem:[#allocation9 + $0xa8] sm:$0xff]
    %v2957 = vld [vmem:[#allocation9 + $0xb0] sm:$0xff]
    %v2958 = vld [vmem:[#allocation9 + $0xb8] sm:$0xff]
    %v2959 = vld [vmem:[#allocation9 + $0xc0] sm:$0xff]
    %v2960 = vld [vmem:[#allocation9 + $0xc8] sm:$0xff]
    %v2961 = vld [vmem:[#allocation9 + $0xd0] sm:$0xff]
    %v2962 = vld [vmem:[#allocation9 + $0xd8] sm:$0xff]
    %v2963 = vld [vmem:[#allocation9 + $0xe0] sm:$0xff]
    %v2964 = vld [vmem:[#allocation9 + $0xe8] sm:$0xff]
    %v2965 = vld [vmem:[#allocation9 + $0xf0] sm:$0xff]
    %v2966 = vld [vmem:[#allocation9 + $0xf8] sm:$0xff]
    %v2967 = vld [vmem:[#allocation9 + $0x100] sm:$0xff]
    %v2968 = vld [vmem:[#allocation9 + $0x108] sm:$0xff]
    %v2969 = vld [vmem:[#allocation9 + $0x110] sm:$0xff]
    %v2970 = vld [vmem:[#allocation9 + $0x118] sm:$0xff]
    %v2971 = vld [vmem:[#allocation9 + $0x120] sm:$0xff]
    %v2972 = vld [vmem:[#allocation9 + $0x128] sm:$0xff]
    %v2973 = vld [vmem:[#allocation9 + $0x130] sm:$0xff]
    %v2974 = vld [vmem:[#allocation9 + $0x138] sm:$0xff]
    %v2975 = vld [vmem:[#allocation9 + $0x140] sm:$0xff]
    %v2976 = vld [vmem:[#allocation9 + $0x148] sm:$0xff]
    %v2977 = vld [vmem:[#allocation9 + $0x150] sm:$0xff]
    %v2978 = vld [vmem:[#allocation9 + $0x158] sm:$0xff]
    %v2979 = vld [vmem:[#allocation9 + $0x160] sm:$0xff]
    %v2980 = vld [vmem:[#allocation9 + $0x168] sm:$0xff]
    %v2981 = vld [vmem:[#allocation9 + $0x170] sm:$0xff]
    %v2982 = vld [vmem:[#allocation9 + $0x178] sm:$0xff]
    %v2983 = vld [vmem:[#allocation9 + $0x180] sm:$0xff]
    %v2984 = vld [vmem:[#allocation9 + $0x188] sm:$0xff]
    %v2985 = vld [vmem:[#allocation9 + $0x190] sm:$0xff]
    %v2986 = vld [vmem:[#allocation9 + $0x198] sm:$0xff]
    %v2987 = vld [vmem:[#allocation9 + $0x1a0] sm:$0xff]
    %v2988 = vld [vmem:[#allocation9 + $0x1a8] sm:$0xff]
    %v2989 = vld [vmem:[#allocation9 + $0x1b0] sm:$0xff]
    %v2990 = vld [vmem:[#allocation9 + $0x1b8] sm:$0xff]
    %v2991 = vld [vmem:[#allocation9 + $0x1c0] sm:$0xff]
    %v2992 = vld [vmem:[#allocation9 + $0x1c8] sm:$0xff]
    %v2993 = vld [vmem:[#allocation9 + $0x1d0] sm:$0xff]
    %v2994 = vld [vmem:[#allocation9 + $0x1d8] sm:$0xff]
    %v2995 = vld [vmem:[#allocation9 + $0x1e0] sm:$0xff]
    %v2996 = vld [vmem:[#allocation9 + $0x1e8] sm:$0xff]
    %v2997 = vld [vmem:[#allocation9 + $0x1f0] sm:$0xff]
    %v2998 = vld [vmem:[#allocation9 + $0x1f8] sm:$0xff]
    %2999 = vmatpush.msra.mxu0 %v2995
    %3000 = vmatpush.msra.mxu0 %v2991
    %3001 = vmatpush.msra.mxu0 %v2987
    %3002 = vmatpush.msra.mxu0 %v2983
    %3003 = vmatpush.msra.mxu0 %v2979
    %3004 = vmatpush.msra.mxu0 %v2975
    %3005 = vmatpush.msra.mxu0 %v2971
    %3006 = vmatpush.msra.mxu0 %v2967
    %3007 = vmatpush.msra.mxu0 %v2963
    %3008 = vmatpush.msra.mxu0 %v2959
    %3009 = vmatpush.msra.mxu0 %v2955
    %3010 = vmatpush.msra.mxu0 %v2951
    %3011 = vmatpush.msra.mxu0 %v2947
    %3012 = vmatpush.msra.mxu0 %v2943
    %3013 = vmatpush.msra.mxu0 %v2939
    %3014 = vmatpush.msra.mxu0 %v2935
    %3015 = vmatmul.f32.gmra.mxu0 %v2770
    %v3016 = vpop.f32.mrf.mxu0
    %v3017 = vadd.f32 0.0, %v3016
    %3018 = vdwg.mxu0
    %3019 = vmatpush.msra.mxu0 %v2996
    %3020 = vmatpush.msra.mxu0 %v2992
    %3021 = vmatpush.msra.mxu0 %v2988
    %3022 = vmatpush.msra.mxu0 %v2984
    %3023 = vmatpush.msra.mxu0 %v2980
    %3024 = vmatpush.msra.mxu0 %v2976
    %3025 = vmatpush.msra.mxu0 %v2972
    %3026 = vmatpush.msra.mxu0 %v2968
    %3027 = vmatpush.msra.mxu0 %v2964
    %3028 = vmatpush.msra.mxu0 %v2960
    %3029 = vmatpush.msra.mxu0 %v2956
    %3030 = vmatpush.msra.mxu0 %v2952
    %3031 = vmatpush.msra.mxu0 %v2948
    %3032 = vmatpush.msra.mxu0 %v2944
    %3033 = vmatpush.msra.mxu0 %v2940
    %3034 = vmatpush.msra.mxu0 %v2936
    %3035 = vmatmul.f32.gmra.mxu0 %v2770
    %v3036 = vpop.f32.mrf.mxu0
    %v3037 = vadd.f32 0.0, %v3036
    %3038 = vdwg.mxu0
    %3039 = vmatpush.msra.mxu0 %v2997
    %3040 = vmatpush.msra.mxu0 %v2993
    %3041 = vmatpush.msra.mxu0 %v2989
    %3042 = vmatpush.msra.mxu0 %v2985
    %3043 = vmatpush.msra.mxu0 %v2981
    %3044 = vmatpush.msra.mxu0 %v2977
    %3045 = vmatpush.msra.mxu0 %v2973
    %3046 = vmatpush.msra.mxu0 %v2969
    %3047 = vmatpush.msra.mxu0 %v2965
    %3048 = vmatpush.msra.mxu0 %v2961
    %3049 = vmatpush.msra.mxu0 %v2957
    %3050 = vmatpush.msra.mxu0 %v2953
    %3051 = vmatpush.msra.mxu0 %v2949
    %3052 = vmatpush.msra.mxu0 %v2945
    %3053 = vmatpush.msra.mxu0 %v2941
    %3054 = vmatpush.msra.mxu0 %v2937
    %3055 = vmatmul.f32.gmra.mxu0 %v2770
    %v3056 = vpop.f32.mrf.mxu0
    %v3057 = vadd.f32 0.0, %v3056
    %3058 = vdwg.mxu0
    %3059 = vmatpush.msra.mxu0 %v2998
    %3060 = vmatpush.msra.mxu0 %v2994
    %3061 = vmatpush.msra.mxu0 %v2990
    %3062 = vmatpush.msra.mxu0 %v2986
    %3063 = vmatpush.msra.mxu0 %v2982
    %3064 = vmatpush.msra.mxu0 %v2978
    %3065 = vmatpush.msra.mxu0 %v2974
    %3066 = vmatpush.msra.mxu0 %v2970
    %3067 = vmatpush.msra.mxu0 %v2966
    %3068 = vmatpush.msra.mxu0 %v2962
    %3069 = vmatpush.msra.mxu0 %v2958
    %3070 = vmatpush.msra.mxu0 %v2954
    %3071 = vmatpush.msra.mxu0 %v2950
    %3072 = vmatpush.msra.mxu0 %v2946
    %3073 = vmatpush.msra.mxu0 %v2942
    %3074 = vmatpush.msra.mxu0 %v2938
    %3075 = vmatmul.f32.gmra.mxu0 %v2770
    %v3076 = vpop.f32.mrf.mxu0
    %v3077 = vadd.f32 0.0, %v3076
    %3078 = vdwg.mxu0
    %v3079 = vadd.f32 %v2931, %v3017
    %v3080 = vadd.f32 %v2932, %v3037
    %v3081 = vadd.f32 %v2933, %v3057
    %v3082 = vadd.f32 %v2934, %v3077
    %v3083 = vxor.u32 %v2925, 2147483648
    %v3084 = vxor.u32 %v2926, 2147483648
    %v3085 = vxor.u32 %v2927, 2147483648
    %v3086 = vmul.f32 %v3083, 1.442695
    %v3087 = vpow.pop %v3086
    %v3088 = vmul.f32 %v3084, 1.442695
    %v3089 = vpow.pop %v3088
    %v3090 = vmul.f32 %v3085, 1.442695
    %v3091 = vpow.pop %v3090
    %v3092 = vadd.f32 %v3087, 1.0
    %v3093 = vadd.f32 %v3089, 1.0
    %v3094 = vadd.f32 %v3091, 1.0
    %v3095 = vrcp.pop %v3092
    %v3096 = vmul.f32 %v3092, %v3095
    %v3097 = vsub.f32 1.0, %v3096
    %v3098 = vmul.f32 %v3095, %v3097
    %v3099 = vadd.f32 %v3095, %v3098
    %vm3100 = vweird.f32 %v3092
    %vm3101 = vweird.f32 %v3095
    %vm3102 = vmor %vm3100, %vm3101
    %v3103 = vsel %vm3102, %v3095, %v3099
    %v3104 = vand.u32 2147483647, %v3092
    %vm3105 = vcmp.eq.f32.partialorder %v3104, 8.507059e+37
    %v3106 = vand.u32 %v3092, 2147483648
    %v3107 = vor.u32 1.1754944e-38, %v3106
    %v3108 = vsel %vm3105, %v3107, %v3103
    %v3109 = vmul.f32 1.0, %v3108
    %v3110 = vrcp.pop %v3093
    %v3111 = vmul.f32 %v3093, %v3110
    %v3112 = vsub.f32 1.0, %v3111
    %v3113 = vmul.f32 %v3110, %v3112
    %v3114 = vadd.f32 %v3110, %v3113
    %vm3115 = vweird.f32 %v3093
    %vm3116 = vweird.f32 %v3110
    %vm3117 = vmor %vm3115, %vm3116
    %v3118 = vsel %vm3117, %v3110, %v3114
    %v3119 = vand.u32 2147483647, %v3093
    %vm3120 = vcmp.eq.f32.partialorder %v3119, 8.507059e+37
    %v3121 = vand.u32 %v3093, 2147483648
    %v3122 = vor.u32 1.1754944e-38, %v3121
    %v3123 = vsel %vm3120, %v3122, %v3118
    %v3124 = vmul.f32 1.0, %v3123
    %v3125 = vrcp.pop %v3094
    %v3126 = vmul.f32 %v3094, %v3125
    %v3127 = vsub.f32 1.0, %v3126
    %v3128 = vmul.f32 %v3125, %v3127
    %v3129 = vadd.f32 %v3125, %v3128
    %vm3130 = vweird.f32 %v3094
    %vm3131 = vweird.f32 %v3125
    %vm3132 = vmor %vm3130, %vm3131
    %v3133 = vsel %vm3132, %v3125, %v3129
    %v3134 = vand.u32 2147483647, %v3094
    %vm3135 = vcmp.eq.f32.partialorder %v3134, 8.507059e+37
    %v3136 = vand.u32 %v3094, 2147483648
    %v3137 = vor.u32 1.1754944e-38, %v3136
    %v3138 = vsel %vm3135, %v3137, %v3133
    %v3139 = vmul.f32 1.0, %v3138
    %v3140 = vtanh.pop %v2928
    %v3141 = vxor.u32 %v3079, 2147483648
    %v3142 = vxor.u32 %v3080, 2147483648
    %v3143 = vxor.u32 %v3081, 2147483648
    %v3144 = vmul.f32 %v3141, 1.442695
    %v3145 = vpow.pop %v3144
    %v3146 = vmul.f32 %v3142, 1.442695
    %v3147 = vpow.pop %v3146
    %v3148 = vmul.f32 %v3143, 1.442695
    %v3149 = vpow.pop %v3148
    %v3150 = vadd.f32 %v3145, 1.0
    %v3151 = vadd.f32 %v3147, 1.0
    %v3152 = vadd.f32 %v3149, 1.0
    %v3153 = vrcp.pop %v3150
    %v3154 = vmul.f32 %v3150, %v3153
    %v3155 = vsub.f32 1.0, %v3154
    %v3156 = vmul.f32 %v3153, %v3155
    %v3157 = vadd.f32 %v3153, %v3156
    %vm3158 = vweird.f32 %v3150
    %vm3159 = vweird.f32 %v3153
    %vm3160 = vmor %vm3158, %vm3159
    %v3161 = vsel %vm3160, %v3153, %v3157
    %v3162 = vand.u32 2147483647, %v3150
    %vm3163 = vcmp.eq.f32.partialorder %v3162, 8.507059e+37
    %v3164 = vand.u32 %v3150, 2147483648
    %v3165 = vor.u32 1.1754944e-38, %v3164
    %v3166 = vsel %vm3163, %v3165, %v3161
    %v3167 = vmul.f32 1.0, %v3166
    %v3168 = vrcp.pop %v3151
    %v3169 = vmul.f32 %v3151, %v3168
    %v3170 = vsub.f32 1.0, %v3169
    %v3171 = vmul.f32 %v3168, %v3170
    %v3172 = vadd.f32 %v3168, %v3171
    %vm3173 = vweird.f32 %v3151
    %vm3174 = vweird.f32 %v3168
    %vm3175 = vmor %vm3173, %vm3174
    %v3176 = vsel %vm3175, %v3168, %v3172
    %v3177 = vand.u32 2147483647, %v3151
    %vm3178 = vcmp.eq.f32.partialorder %v3177, 8.507059e+37
    %v3179 = vand.u32 %v3151, 2147483648
    %v3180 = vor.u32 1.1754944e-38, %v3179
    %v3181 = vsel %vm3178, %v3180, %v3176
    %v3182 = vmul.f32 1.0, %v3181
    %v3183 = vrcp.pop %v3152
    %v3184 = vmul.f32 %v3152, %v3183
    %v3185 = vsub.f32 1.0, %v3184
    %v3186 = vmul.f32 %v3183, %v3185
    %v3187 = vadd.f32 %v3183, %v3186
    %vm3188 = vweird.f32 %v3152
    %vm3189 = vweird.f32 %v3183
    %vm3190 = vmor %vm3188, %vm3189
    %v3191 = vsel %vm3190, %v3183, %v3187
    %v3192 = vand.u32 2147483647, %v3152
    %vm3193 = vcmp.eq.f32.partialorder %v3192, 8.507059e+37
    %v3194 = vand.u32 %v3152, 2147483648
    %v3195 = vor.u32 1.1754944e-38, %v3194
    %v3196 = vsel %vm3193, %v3195, %v3191
    %v3197 = vmul.f32 1.0, %v3196
    %v3198 = vtanh.pop %v3082
    %v3199 = vmul.f32 %v3124, %v2763
    %v3200 = vmul.f32 %v3109, %v3140
    %v3201 = vadd.f32 %v3199, %v3200
    %v3202 = vtanh.pop %v3201
    %v3203 = vmul.f32 %v3139, %v3202
    %v3204 = vmul.f32 %v3182, %v2768
    %v3205 = vmul.f32 %v3167, %v3198
    %v3206 = vadd.f32 %v3204, %v3205
    %v3207 = vtanh.pop %v3206
    %v3208 = vmul.f32 %v3197, %v3207
    %s3209 = scalar_lea.vmem [#allocation4], 40
    %3210 = vst [vmem:[%s3209] sm:$0xff] %v3203
    %s3211 = scalar_lea.vmem [#allocation5], 16
    %3212 = vst [vmem:[%s3211] sm:$0xff] %v3208
    %s3213 = smul.addr %s1172, 8
    %s3214 = scalar_lea.vmem [#allocation2], %s3213
    %v3215 = vld [vmem:[%s3214] sm:$0xff]
    %v3216 = vld [vmem:[%s3214 + $0x8] sm:$0xff]
    %v3217 = vld [vmem:[%s3214 + $0x10] sm:$0xff]
    %v3218 = vld [vmem:[%s3214 + $0x18] sm:$0xff]
    %v3219 = vld [vmem:[#allocation6] sm:$0xff]
    %v3220 = vld [vmem:[#allocation6 + $0x8] sm:$0xff]
    %v3221 = vld [vmem:[#allocation6 + $0x10] sm:$0xff]
    %v3222 = vld [vmem:[#allocation6 + $0x18] sm:$0xff]
    %v3223 = vld [vmem:[#allocation6 + $0x20] sm:$0xff]
    %v3224 = vld [vmem:[#allocation6 + $0x28] sm:$0xff]
    %v3225 = vld [vmem:[#allocation6 + $0x30] sm:$0xff]
    %v3226 = vld [vmem:[#allocation6 + $0x38] sm:$0xff]
    %v3227 = vld [vmem:[#allocation6 + $0x40] sm:$0xff]
    %v3228 = vld [vmem:[#allocation6 + $0x48] sm:$0xff]
    %v3229 = vld [vmem:[#allocation6 + $0x50] sm:$0xff]
    %v3230 = vld [vmem:[#allocation6 + $0x58] sm:$0xff]
    %v3231 = vld [vmem:[#allocation6 + $0x60] sm:$0xff]
    %v3232 = vld [vmem:[#allocation6 + $0x68] sm:$0xff]
    %v3233 = vld [vmem:[#allocation6 + $0x70] sm:$0xff]
    %v3234 = vld [vmem:[#allocation6 + $0x78] sm:$0xff]
    %v3235 = vld [vmem:[#allocation6 + $0x80] sm:$0xff]
    %v3236 = vld [vmem:[#allocation6 + $0x88] sm:$0xff]
    %v3237 = vld [vmem:[#allocation6 + $0x90] sm:$0xff]
    %v3238 = vld [vmem:[#allocation6 + $0x98] sm:$0xff]
    %v3239 = vld [vmem:[#allocation6 + $0xa0] sm:$0xff]
    %v3240 = vld [vmem:[#allocation6 + $0xa8] sm:$0xff]
    %v3241 = vld [vmem:[#allocation6 + $0xb0] sm:$0xff]
    %v3242 = vld [vmem:[#allocation6 + $0xb8] sm:$0xff]
    %v3243 = vld [vmem:[#allocation6 + $0xc0] sm:$0xff]
    %v3244 = vld [vmem:[#allocation6 + $0xc8] sm:$0xff]
    %v3245 = vld [vmem:[#allocation6 + $0xd0] sm:$0xff]
    %v3246 = vld [vmem:[#allocation6 + $0xd8] sm:$0xff]
    %v3247 = vld [vmem:[#allocation6 + $0xe0] sm:$0xff]
    %v3248 = vld [vmem:[#allocation6 + $0xe8] sm:$0xff]
    %v3249 = vld [vmem:[#allocation6 + $0xf0] sm:$0xff]
    %v3250 = vld [vmem:[#allocation6 + $0xf8] sm:$0xff]
    %v3251 = vld [vmem:[#allocation6 + $0x100] sm:$0xff]
    %v3252 = vld [vmem:[#allocation6 + $0x108] sm:$0xff]
    %v3253 = vld [vmem:[#allocation6 + $0x110] sm:$0xff]
    %v3254 = vld [vmem:[#allocation6 + $0x118] sm:$0xff]
    %v3255 = vld [vmem:[#allocation6 + $0x120] sm:$0xff]
    %v3256 = vld [vmem:[#allocation6 + $0x128] sm:$0xff]
    %v3257 = vld [vmem:[#allocation6 + $0x130] sm:$0xff]
    %v3258 = vld [vmem:[#allocation6 + $0x138] sm:$0xff]
    %v3259 = vld [vmem:[#allocation6 + $0x140] sm:$0xff]
    %v3260 = vld [vmem:[#allocation6 + $0x148] sm:$0xff]
    %v3261 = vld [vmem:[#allocation6 + $0x150] sm:$0xff]
    %v3262 = vld [vmem:[#allocation6 + $0x158] sm:$0xff]
    %v3263 = vld [vmem:[#allocation6 + $0x160] sm:$0xff]
    %v3264 = vld [vmem:[#allocation6 + $0x168] sm:$0xff]
    %v3265 = vld [vmem:[#allocation6 + $0x170] sm:$0xff]
    %v3266 = vld [vmem:[#allocation6 + $0x178] sm:$0xff]
    %v3267 = vld [vmem:[#allocation6 + $0x180] sm:$0xff]
    %v3268 = vld [vmem:[#allocation6 + $0x188] sm:$0xff]
    %v3269 = vld [vmem:[#allocation6 + $0x190] sm:$0xff]
    %v3270 = vld [vmem:[#allocation6 + $0x198] sm:$0xff]
    %v3271 = vld [vmem:[#allocation6 + $0x1a0] sm:$0xff]
    %v3272 = vld [vmem:[#allocation6 + $0x1a8] sm:$0xff]
    %v3273 = vld [vmem:[#allocation6 + $0x1b0] sm:$0xff]
    %v3274 = vld [vmem:[#allocation6 + $0x1b8] sm:$0xff]
    %v3275 = vld [vmem:[#allocation6 + $0x1c0] sm:$0xff]
    %v3276 = vld [vmem:[#allocation6 + $0x1c8] sm:$0xff]
    %v3277 = vld [vmem:[#allocation6 + $0x1d0] sm:$0xff]
    %v3278 = vld [vmem:[#allocation6 + $0x1d8] sm:$0xff]
    %v3279 = vld [vmem:[#allocation6 + $0x1e0] sm:$0xff]
    %v3280 = vld [vmem:[#allocation6 + $0x1e8] sm:$0xff]
    %v3281 = vld [vmem:[#allocation6 + $0x1f0] sm:$0xff]
    %v3282 = vld [vmem:[#allocation6 + $0x1f8] sm:$0xff]
    %3283 = vmatpush.msra.mxu0 %v3279
    %3284 = vmatpush.msra.mxu0 %v3275
    %3285 = vmatpush.msra.mxu0 %v3271
    %3286 = vmatpush.msra.mxu0 %v3267
    %3287 = vmatpush.msra.mxu0 %v3263
    %3288 = vmatpush.msra.mxu0 %v3259
    %3289 = vmatpush.msra.mxu0 %v3255
    %3290 = vmatpush.msra.mxu0 %v3251
    %3291 = vmatpush.msra.mxu0 %v3247
    %3292 = vmatpush.msra.mxu0 %v3243
    %3293 = vmatpush.msra.mxu0 %v3239
    %3294 = vmatpush.msra.mxu0 %v3235
    %3295 = vmatpush.msra.mxu0 %v3231
    %3296 = vmatpush.msra.mxu0 %v3227
    %3297 = vmatpush.msra.mxu0 %v3223
    %3298 = vmatpush.msra.mxu0 %v3219
    %3299 = vmatmul.f32.gmra.mxu0 %v3203
    %v3300 = vpop.f32.mrf.mxu0
    %v3301 = vadd.f32 0.0, %v3300
    %3302 = vdwg.mxu0
    %3303 = vmatpush.msra.mxu0 %v3280
    %3304 = vmatpush.msra.mxu0 %v3276
    %3305 = vmatpush.msra.mxu0 %v3272
    %3306 = vmatpush.msra.mxu0 %v3268
    %3307 = vmatpush.msra.mxu0 %v3264
    %3308 = vmatpush.msra.mxu0 %v3260
    %3309 = vmatpush.msra.mxu0 %v3256
    %3310 = vmatpush.msra.mxu0 %v3252
    %3311 = vmatpush.msra.mxu0 %v3248
    %3312 = vmatpush.msra.mxu0 %v3244
    %3313 = vmatpush.msra.mxu0 %v3240
    %3314 = vmatpush.msra.mxu0 %v3236
    %3315 = vmatpush.msra.mxu0 %v3232
    %3316 = vmatpush.msra.mxu0 %v3228
    %3317 = vmatpush.msra.mxu0 %v3224
    %3318 = vmatpush.msra.mxu0 %v3220
    %3319 = vmatmul.f32.gmra.mxu0 %v3203
    %v3320 = vpop.f32.mrf.mxu0
    %v3321 = vadd.f32 0.0, %v3320
    %3322 = vdwg.mxu0
    %3323 = vmatpush.msra.mxu0 %v3281
    %3324 = vmatpush.msra.mxu0 %v3277
    %3325 = vmatpush.msra.mxu0 %v3273
    %3326 = vmatpush.msra.mxu0 %v3269
    %3327 = vmatpush.msra.mxu0 %v3265
    %3328 = vmatpush.msra.mxu0 %v3261
    %3329 = vmatpush.msra.mxu0 %v3257
    %3330 = vmatpush.msra.mxu0 %v3253
    %3331 = vmatpush.msra.mxu0 %v3249
    %3332 = vmatpush.msra.mxu0 %v3245
    %3333 = vmatpush.msra.mxu0 %v3241
    %3334 = vmatpush.msra.mxu0 %v3237
    %3335 = vmatpush.msra.mxu0 %v3233
    %3336 = vmatpush.msra.mxu0 %v3229
    %3337 = vmatpush.msra.mxu0 %v3225
    %3338 = vmatpush.msra.mxu0 %v3221
    %3339 = vmatmul.f32.gmra.mxu0 %v3203
    %v3340 = vpop.f32.mrf.mxu0
    %v3341 = vadd.f32 0.0, %v3340
    %3342 = vdwg.mxu0
    %3343 = vmatpush.msra.mxu0 %v3282
    %3344 = vmatpush.msra.mxu0 %v3278
    %3345 = vmatpush.msra.mxu0 %v3274
    %3346 = vmatpush.msra.mxu0 %v3270
    %3347 = vmatpush.msra.mxu0 %v3266
    %3348 = vmatpush.msra.mxu0 %v3262
    %3349 = vmatpush.msra.mxu0 %v3258
    %3350 = vmatpush.msra.mxu0 %v3254
    %3351 = vmatpush.msra.mxu0 %v3250
    %3352 = vmatpush.msra.mxu0 %v3246
    %3353 = vmatpush.msra.mxu0 %v3242
    %3354 = vmatpush.msra.mxu0 %v3238
    %3355 = vmatpush.msra.mxu0 %v3234
    %3356 = vmatpush.msra.mxu0 %v3230
    %3357 = vmatpush.msra.mxu0 %v3226
    %3358 = vmatpush.msra.mxu0 %v3222
    %3359 = vmatmul.f32.gmra.mxu0 %v3203
    %v3360 = vpop.f32.mrf.mxu0
    %v3361 = vadd.f32 0.0, %v3360
    %3362 = vdwg.mxu0
    %v3363 = vadd.f32 %v3215, %v3301
    %v3364 = vadd.f32 %v3216, %v3321
    %v3365 = vadd.f32 %v3217, %v3341
    %v3366 = vadd.f32 %v3218, %v3361
    %s3367 = smul.addr %s1017, 8
    %s3368 = scalar_lea.vmem [#allocation3], %s3367
    %v3369 = vld [vmem:[%s3368] sm:$0xff]
    %v3370 = vld [vmem:[%s3368 + $0x8] sm:$0xff]
    %v3371 = vld [vmem:[%s3368 + $0x10] sm:$0xff]
    %v3372 = vld [vmem:[%s3368 + $0x18] sm:$0xff]
    %v3373 = vld [vmem:[#allocation9] sm:$0xff]
    %v3374 = vld [vmem:[#allocation9 + $0x8] sm:$0xff]
    %v3375 = vld [vmem:[#allocation9 + $0x10] sm:$0xff]
    %v3376 = vld [vmem:[#allocation9 + $0x18] sm:$0xff]
    %v3377 = vld [vmem:[#allocation9 + $0x20] sm:$0xff]
    %v3378 = vld [vmem:[#allocation9 + $0x28] sm:$0xff]
    %v3379 = vld [vmem:[#allocation9 + $0x30] sm:$0xff]
    %v3380 = vld [vmem:[#allocation9 + $0x38] sm:$0xff]
    %v3381 = vld [vmem:[#allocation9 + $0x40] sm:$0xff]
    %v3382 = vld [vmem:[#allocation9 + $0x48] sm:$0xff]
    %v3383 = vld [vmem:[#allocation9 + $0x50] sm:$0xff]
    %v3384 = vld [vmem:[#allocation9 + $0x58] sm:$0xff]
    %v3385 = vld [vmem:[#allocation9 + $0x60] sm:$0xff]
    %v3386 = vld [vmem:[#allocation9 + $0x68] sm:$0xff]
    %v3387 = vld [vmem:[#allocation9 + $0x70] sm:$0xff]
    %v3388 = vld [vmem:[#allocation9 + $0x78] sm:$0xff]
    %v3389 = vld [vmem:[#allocation9 + $0x80] sm:$0xff]
    %v3390 = vld [vmem:[#allocation9 + $0x88] sm:$0xff]
    %v3391 = vld [vmem:[#allocation9 + $0x90] sm:$0xff]
    %v3392 = vld [vmem:[#allocation9 + $0x98] sm:$0xff]
    %v3393 = vld [vmem:[#allocation9 + $0xa0] sm:$0xff]
    %v3394 = vld [vmem:[#allocation9 + $0xa8] sm:$0xff]
    %v3395 = vld [vmem:[#allocation9 + $0xb0] sm:$0xff]
    %v3396 = vld [vmem:[#allocation9 + $0xb8] sm:$0xff]
    %v3397 = vld [vmem:[#allocation9 + $0xc0] sm:$0xff]
    %v3398 = vld [vmem:[#allocation9 + $0xc8] sm:$0xff]
    %v3399 = vld [vmem:[#allocation9 + $0xd0] sm:$0xff]
    %v3400 = vld [vmem:[#allocation9 + $0xd8] sm:$0xff]
    %v3401 = vld [vmem:[#allocation9 + $0xe0] sm:$0xff]
    %v3402 = vld [vmem:[#allocation9 + $0xe8] sm:$0xff]
    %v3403 = vld [vmem:[#allocation9 + $0xf0] sm:$0xff]
    %v3404 = vld [vmem:[#allocation9 + $0xf8] sm:$0xff]
    %v3405 = vld [vmem:[#allocation9 + $0x100] sm:$0xff]
    %v3406 = vld [vmem:[#allocation9 + $0x108] sm:$0xff]
    %v3407 = vld [vmem:[#allocation9 + $0x110] sm:$0xff]
    %v3408 = vld [vmem:[#allocation9 + $0x118] sm:$0xff]
    %v3409 = vld [vmem:[#allocation9 + $0x120] sm:$0xff]
    %v3410 = vld [vmem:[#allocation9 + $0x128] sm:$0xff]
    %v3411 = vld [vmem:[#allocation9 + $0x130] sm:$0xff]
    %v3412 = vld [vmem:[#allocation9 + $0x138] sm:$0xff]
    %v3413 = vld [vmem:[#allocation9 + $0x140] sm:$0xff]
    %v3414 = vld [vmem:[#allocation9 + $0x148] sm:$0xff]
    %v3415 = vld [vmem:[#allocation9 + $0x150] sm:$0xff]
    %v3416 = vld [vmem:[#allocation9 + $0x158] sm:$0xff]
    %v3417 = vld [vmem:[#allocation9 + $0x160] sm:$0xff]
    %v3418 = vld [vmem:[#allocation9 + $0x168] sm:$0xff]
    %v3419 = vld [vmem:[#allocation9 + $0x170] sm:$0xff]
    %v3420 = vld [vmem:[#allocation9 + $0x178] sm:$0xff]
    %v3421 = vld [vmem:[#allocation9 + $0x180] sm:$0xff]
    %v3422 = vld [vmem:[#allocation9 + $0x188] sm:$0xff]
    %v3423 = vld [vmem:[#allocation9 + $0x190] sm:$0xff]
    %v3424 = vld [vmem:[#allocation9 + $0x198] sm:$0xff]
    %v3425 = vld [vmem:[#allocation9 + $0x1a0] sm:$0xff]
    %v3426 = vld [vmem:[#allocation9 + $0x1a8] sm:$0xff]
    %v3427 = vld [vmem:[#allocation9 + $0x1b0] sm:$0xff]
    %v3428 = vld [vmem:[#allocation9 + $0x1b8] sm:$0xff]
    %v3429 = vld [vmem:[#allocation9 + $0x1c0] sm:$0xff]
    %v3430 = vld [vmem:[#allocation9 + $0x1c8] sm:$0xff]
    %v3431 = vld [vmem:[#allocation9 + $0x1d0] sm:$0xff]
    %v3432 = vld [vmem:[#allocation9 + $0x1d8] sm:$0xff]
    %v3433 = vld [vmem:[#allocation9 + $0x1e0] sm:$0xff]
    %v3434 = vld [vmem:[#allocation9 + $0x1e8] sm:$0xff]
    %v3435 = vld [vmem:[#allocation9 + $0x1f0] sm:$0xff]
    %v3436 = vld [vmem:[#allocation9 + $0x1f8] sm:$0xff]
    %3437 = vmatpush.msra.mxu0 %v3433
    %3438 = vmatpush.msra.mxu0 %v3429
    %3439 = vmatpush.msra.mxu0 %v3425
    %3440 = vmatpush.msra.mxu0 %v3421
    %3441 = vmatpush.msra.mxu0 %v3417
    %3442 = vmatpush.msra.mxu0 %v3413
    %3443 = vmatpush.msra.mxu0 %v3409
    %3444 = vmatpush.msra.mxu0 %v3405
    %3445 = vmatpush.msra.mxu0 %v3401
    %3446 = vmatpush.msra.mxu0 %v3397
    %3447 = vmatpush.msra.mxu0 %v3393
    %3448 = vmatpush.msra.mxu0 %v3389
    %3449 = vmatpush.msra.mxu0 %v3385
    %3450 = vmatpush.msra.mxu0 %v3381
    %3451 = vmatpush.msra.mxu0 %v3377
    %3452 = vmatpush.msra.mxu0 %v3373
    %3453 = vmatmul.f32.gmra.mxu0 %v3208
    %v3454 = vpop.f32.mrf.mxu0
    %v3455 = vadd.f32 0.0, %v3454
    %3456 = vdwg.mxu0
    %3457 = vmatpush.msra.mxu0 %v3434
    %3458 = vmatpush.msra.mxu0 %v3430
    %3459 = vmatpush.msra.mxu0 %v3426
    %3460 = vmatpush.msra.mxu0 %v3422
    %3461 = vmatpush.msra.mxu0 %v3418
    %3462 = vmatpush.msra.mxu0 %v3414
    %3463 = vmatpush.msra.mxu0 %v3410
    %3464 = vmatpush.msra.mxu0 %v3406
    %3465 = vmatpush.msra.mxu0 %v3402
    %3466 = vmatpush.msra.mxu0 %v3398
    %3467 = vmatpush.msra.mxu0 %v3394
    %3468 = vmatpush.msra.mxu0 %v3390
    %3469 = vmatpush.msra.mxu0 %v3386
    %3470 = vmatpush.msra.mxu0 %v3382
    %3471 = vmatpush.msra.mxu0 %v3378
    %3472 = vmatpush.msra.mxu0 %v3374
    %3473 = vmatmul.f32.gmra.mxu0 %v3208
    %v3474 = vpop.f32.mrf.mxu0
    %v3475 = vadd.f32 0.0, %v3474
    %3476 = vdwg.mxu0
    %3477 = vmatpush.msra.mxu0 %v3435
    %3478 = vmatpush.msra.mxu0 %v3431
    %3479 = vmatpush.msra.mxu0 %v3427
    %3480 = vmatpush.msra.mxu0 %v3423
    %3481 = vmatpush.msra.mxu0 %v3419
    %3482 = vmatpush.msra.mxu0 %v3415
    %3483 = vmatpush.msra.mxu0 %v3411
    %3484 = vmatpush.msra.mxu0 %v3407
    %3485 = vmatpush.msra.mxu0 %v3403
    %3486 = vmatpush.msra.mxu0 %v3399
    %3487 = vmatpush.msra.mxu0 %v3395
    %3488 = vmatpush.msra.mxu0 %v3391
    %3489 = vmatpush.msra.mxu0 %v3387
    %3490 = vmatpush.msra.mxu0 %v3383
    %3491 = vmatpush.msra.mxu0 %v3379
    %3492 = vmatpush.msra.mxu0 %v3375
    %3493 = vmatmul.f32.gmra.mxu0 %v3208
    %v3494 = vpop.f32.mrf.mxu0
    %v3495 = vadd.f32 0.0, %v3494
    %3496 = vdwg.mxu0
    %3497 = vmatpush.msra.mxu0 %v3436
    %3498 = vmatpush.msra.mxu0 %v3432
    %3499 = vmatpush.msra.mxu0 %v3428
    %3500 = vmatpush.msra.mxu0 %v3424
    %3501 = vmatpush.msra.mxu0 %v3420
    %3502 = vmatpush.msra.mxu0 %v3416
    %3503 = vmatpush.msra.mxu0 %v3412
    %3504 = vmatpush.msra.mxu0 %v3408
    %3505 = vmatpush.msra.mxu0 %v3404
    %3506 = vmatpush.msra.mxu0 %v3400
    %3507 = vmatpush.msra.mxu0 %v3396
    %3508 = vmatpush.msra.mxu0 %v3392
    %3509 = vmatpush.msra.mxu0 %v3388
    %3510 = vmatpush.msra.mxu0 %v3384
    %3511 = vmatpush.msra.mxu0 %v3380
    %3512 = vmatpush.msra.mxu0 %v3376
    %3513 = vmatmul.f32.gmra.mxu0 %v3208
    %v3514 = vpop.f32.mrf.mxu0
    %v3515 = vadd.f32 0.0, %v3514
    %3516 = vdwg.mxu0
    %v3517 = vadd.f32 %v3369, %v3455
    %v3518 = vadd.f32 %v3370, %v3475
    %v3519 = vadd.f32 %v3371, %v3495
    %v3520 = vadd.f32 %v3372, %v3515
    %v3521 = vxor.u32 %v3363, 2147483648
    %v3522 = vxor.u32 %v3364, 2147483648
    %v3523 = vxor.u32 %v3365, 2147483648
    %v3524 = vmul.f32 %v3521, 1.442695
    %v3525 = vpow.pop %v3524
    %v3526 = vmul.f32 %v3522, 1.442695
    %v3527 = vpow.pop %v3526
    %v3528 = vmul.f32 %v3523, 1.442695
    %v3529 = vpow.pop %v3528
    %v3530 = vadd.f32 %v3525, 1.0
    %v3531 = vadd.f32 %v3527, 1.0
    %v3532 = vadd.f32 %v3529, 1.0
    %v3533 = vrcp.pop %v3530
    %v3534 = vmul.f32 %v3530, %v3533
    %v3535 = vsub.f32 1.0, %v3534
    %v3536 = vmul.f32 %v3533, %v3535
    %v3537 = vadd.f32 %v3533, %v3536
    %vm3538 = vweird.f32 %v3530
    %vm3539 = vweird.f32 %v3533
    %vm3540 = vmor %vm3538, %vm3539
    %v3541 = vsel %vm3540, %v3533, %v3537
    %v3542 = vand.u32 2147483647, %v3530
    %vm3543 = vcmp.eq.f32.partialorder %v3542, 8.507059e+37
    %v3544 = vand.u32 %v3530, 2147483648
    %v3545 = vor.u32 1.1754944e-38, %v3544
    %v3546 = vsel %vm3543, %v3545, %v3541
    %v3547 = vmul.f32 1.0, %v3546
    %v3548 = vrcp.pop %v3531
    %v3549 = vmul.f32 %v3531, %v3548
    %v3550 = vsub.f32 1.0, %v3549
    %v3551 = vmul.f32 %v3548, %v3550
    %v3552 = vadd.f32 %v3548, %v3551
    %vm3553 = vweird.f32 %v3531
    %vm3554 = vweird.f32 %v3548
    %vm3555 = vmor %vm3553, %vm3554
    %v3556 = vsel %vm3555, %v3548, %v3552
    %v3557 = vand.u32 2147483647, %v3531
    %vm3558 = vcmp.eq.f32.partialorder %v3557, 8.507059e+37
    %v3559 = vand.u32 %v3531, 2147483648
    %v3560 = vor.u32 1.1754944e-38, %v3559
    %v3561 = vsel %vm3558, %v3560, %v3556
    %v3562 = vmul.f32 1.0, %v3561
    %v3563 = vrcp.pop %v3532
    %v3564 = vmul.f32 %v3532, %v3563
    %v3565 = vsub.f32 1.0, %v3564
    %v3566 = vmul.f32 %v3563, %v3565
    %v3567 = vadd.f32 %v3563, %v3566
    %vm3568 = vweird.f32 %v3532
    %vm3569 = vweird.f32 %v3563
    %vm3570 = vmor %vm3568, %vm3569
    %v3571 = vsel %vm3570, %v3563, %v3567
    %v3572 = vand.u32 2147483647, %v3532
    %vm3573 = vcmp.eq.f32.partialorder %v3572, 8.507059e+37
    %v3574 = vand.u32 %v3532, 2147483648
    %v3575 = vor.u32 1.1754944e-38, %v3574
    %v3576 = vsel %vm3573, %v3575, %v3571
    %v3577 = vmul.f32 1.0, %v3576
    %v3578 = vtanh.pop %v3366
    %v3579 = vxor.u32 %v3517, 2147483648
    %v3580 = vxor.u32 %v3518, 2147483648
    %v3581 = vxor.u32 %v3519, 2147483648
    %v3582 = vmul.f32 %v3579, 1.442695
    %v3583 = vpow.pop %v3582
    %v3584 = vmul.f32 %v3580, 1.442695
    %v3585 = vpow.pop %v3584
    %v3586 = vmul.f32 %v3581, 1.442695
    %v3587 = vpow.pop %v3586
    %v3588 = vadd.f32 %v3583, 1.0
    %v3589 = vadd.f32 %v3585, 1.0
    %v3590 = vadd.f32 %v3587, 1.0
    %v3591 = vrcp.pop %v3588
    %v3592 = vmul.f32 %v3588, %v3591
    %v3593 = vsub.f32 1.0, %v3592
    %v3594 = vmul.f32 %v3591, %v3593
    %v3595 = vadd.f32 %v3591, %v3594
    %vm3596 = vweird.f32 %v3588
    %vm3597 = vweird.f32 %v3591
    %vm3598 = vmor %vm3596, %vm3597
    %v3599 = vsel %vm3598, %v3591, %v3595
    %v3600 = vand.u32 2147483647, %v3588
    %vm3601 = vcmp.eq.f32.partialorder %v3600, 8.507059e+37
    %v3602 = vand.u32 %v3588, 2147483648
    %v3603 = vor.u32 1.1754944e-38, %v3602
    %v3604 = vsel %vm3601, %v3603, %v3599
    %v3605 = vmul.f32 1.0, %v3604
    %v3606 = vrcp.pop %v3589
    %v3607 = vmul.f32 %v3589, %v3606
    %v3608 = vsub.f32 1.0, %v3607
    %v3609 = vmul.f32 %v3606, %v3608
    %v3610 = vadd.f32 %v3606, %v3609
    %vm3611 = vweird.f32 %v3589
    %vm3612 = vweird.f32 %v3606
    %vm3613 = vmor %vm3611, %vm3612
    %v3614 = vsel %vm3613, %v3606, %v3610
    %v3615 = vand.u32 2147483647, %v3589
    %vm3616 = vcmp.eq.f32.partialorder %v3615, 8.507059e+37
    %v3617 = vand.u32 %v3589, 2147483648
    %v3618 = vor.u32 1.1754944e-38, %v3617
    %v3619 = vsel %vm3616, %v3618, %v3614
    %v3620 = vmul.f32 1.0, %v3619
    %v3621 = vrcp.pop %v3590
    %v3622 = vmul.f32 %v3590, %v3621
    %v3623 = vsub.f32 1.0, %v3622
    %v3624 = vmul.f32 %v3621, %v3623
    %v3625 = vadd.f32 %v3621, %v3624
    %vm3626 = vweird.f32 %v3590
    %vm3627 = vweird.f32 %v3621
    %vm3628 = vmor %vm3626, %vm3627
    %v3629 = vsel %vm3628, %v3621, %v3625
    %v3630 = vand.u32 2147483647, %v3590
    %vm3631 = vcmp.eq.f32.partialorder %v3630, 8.507059e+37
    %v3632 = vand.u32 %v3590, 2147483648
    %v3633 = vor.u32 1.1754944e-38, %v3632
    %v3634 = vsel %vm3631, %v3633, %v3629
    %v3635 = vmul.f32 1.0, %v3634
    %v3636 = vtanh.pop %v3520
    %v3637 = vmul.f32 %v3562, %v3201
    %v3638 = vmul.f32 %v3547, %v3578
    %v3639 = vadd.f32 %v3637, %v3638
    %v3640 = vtanh.pop %v3639
    %v3641 = vmul.f32 %v3577, %v3640
    %v3642 = vmul.f32 %v3620, %v3206
    %v3643 = vmul.f32 %v3605, %v3636
    %v3644 = vadd.f32 %v3642, %v3643
    %v3645 = vtanh.pop %v3644
    %v3646 = vmul.f32 %v3635, %v3645
    %s3647 = scalar_lea.vmem [#allocation4], 48
    %3648 = vst [vmem:[%s3647] sm:$0xff] %v3641
    %s3649 = scalar_lea.vmem [#allocation5], 8
    %3650 = vst [vmem:[%s3649] sm:$0xff] %v3646
    %s3651 = smul.addr %s733, 8
    %s3652 = scalar_lea.vmem [#allocation2], %s3651
    %v3653 = vld [vmem:[%s3652] sm:$0xff]
    %v3654 = vld [vmem:[%s3652 + $0x8] sm:$0xff]
    %v3655 = vld [vmem:[%s3652 + $0x10] sm:$0xff]
    %v3656 = vld [vmem:[%s3652 + $0x18] sm:$0xff]
    %v3657 = vld [vmem:[#allocation6] sm:$0xff]
    %v3658 = vld [vmem:[#allocation6 + $0x8] sm:$0xff]
    %v3659 = vld [vmem:[#allocation6 + $0x10] sm:$0xff]
    %v3660 = vld [vmem:[#allocation6 + $0x18] sm:$0xff]
    %v3661 = vld [vmem:[#allocation6 + $0x20] sm:$0xff]
    %v3662 = vld [vmem:[#allocation6 + $0x28] sm:$0xff]
    %v3663 = vld [vmem:[#allocation6 + $0x30] sm:$0xff]
    %v3664 = vld [vmem:[#allocation6 + $0x38] sm:$0xff]
    %v3665 = vld [vmem:[#allocation6 + $0x40] sm:$0xff]
    %v3666 = vld [vmem:[#allocation6 + $0x48] sm:$0xff]
    %v3667 = vld [vmem:[#allocation6 + $0x50] sm:$0xff]
    %v3668 = vld [vmem:[#allocation6 + $0x58] sm:$0xff]
    %v3669 = vld [vmem:[#allocation6 + $0x60] sm:$0xff]
    %v3670 = vld [vmem:[#allocation6 + $0x68] sm:$0xff]
    %v3671 = vld [vmem:[#allocation6 + $0x70] sm:$0xff]
    %v3672 = vld [vmem:[#allocation6 + $0x78] sm:$0xff]
    %v3673 = vld [vmem:[#allocation6 + $0x80] sm:$0xff]
    %v3674 = vld [vmem:[#allocation6 + $0x88] sm:$0xff]
    %v3675 = vld [vmem:[#allocation6 + $0x90] sm:$0xff]
    %v3676 = vld [vmem:[#allocation6 + $0x98] sm:$0xff]
    %v3677 = vld [vmem:[#allocation6 + $0xa0] sm:$0xff]
    %v3678 = vld [vmem:[#allocation6 + $0xa8] sm:$0xff]
    %v3679 = vld [vmem:[#allocation6 + $0xb0] sm:$0xff]
    %v3680 = vld [vmem:[#allocation6 + $0xb8] sm:$0xff]
    %v3681 = vld [vmem:[#allocation6 + $0xc0] sm:$0xff]
    %v3682 = vld [vmem:[#allocation6 + $0xc8] sm:$0xff]
    %v3683 = vld [vmem:[#allocation6 + $0xd0] sm:$0xff]
    %v3684 = vld [vmem:[#allocation6 + $0xd8] sm:$0xff]
    %v3685 = vld [vmem:[#allocation6 + $0xe0] sm:$0xff]
    %v3686 = vld [vmem:[#allocation6 + $0xe8] sm:$0xff]
    %v3687 = vld [vmem:[#allocation6 + $0xf0] sm:$0xff]
    %v3688 = vld [vmem:[#allocation6 + $0xf8] sm:$0xff]
    %v3689 = vld [vmem:[#allocation6 + $0x100] sm:$0xff]
    %v3690 = vld [vmem:[#allocation6 + $0x108] sm:$0xff]
    %v3691 = vld [vmem:[#allocation6 + $0x110] sm:$0xff]
    %v3692 = vld [vmem:[#allocation6 + $0x118] sm:$0xff]
    %v3693 = vld [vmem:[#allocation6 + $0x120] sm:$0xff]
    %v3694 = vld [vmem:[#allocation6 + $0x128] sm:$0xff]
    %v3695 = vld [vmem:[#allocation6 + $0x130] sm:$0xff]
    %v3696 = vld [vmem:[#allocation6 + $0x138] sm:$0xff]
    %v3697 = vld [vmem:[#allocation6 + $0x140] sm:$0xff]
    %v3698 = vld [vmem:[#allocation6 + $0x148] sm:$0xff]
    %v3699 = vld [vmem:[#allocation6 + $0x150] sm:$0xff]
    %v3700 = vld [vmem:[#allocation6 + $0x158] sm:$0xff]
    %v3701 = vld [vmem:[#allocation6 + $0x160] sm:$0xff]
    %v3702 = vld [vmem:[#allocation6 + $0x168] sm:$0xff]
    %v3703 = vld [vmem:[#allocation6 + $0x170] sm:$0xff]
    %v3704 = vld [vmem:[#allocation6 + $0x178] sm:$0xff]
    %v3705 = vld [vmem:[#allocation6 + $0x180] sm:$0xff]
    %v3706 = vld [vmem:[#allocation6 + $0x188] sm:$0xff]
    %v3707 = vld [vmem:[#allocation6 + $0x190] sm:$0xff]
    %v3708 = vld [vmem:[#allocation6 + $0x198] sm:$0xff]
    %v3709 = vld [vmem:[#allocation6 + $0x1a0] sm:$0xff]
    %v3710 = vld [vmem:[#allocation6 + $0x1a8] sm:$0xff]
    %v3711 = vld [vmem:[#allocation6 + $0x1b0] sm:$0xff]
    %v3712 = vld [vmem:[#allocation6 + $0x1b8] sm:$0xff]
    %v3713 = vld [vmem:[#allocation6 + $0x1c0] sm:$0xff]
    %v3714 = vld [vmem:[#allocation6 + $0x1c8] sm:$0xff]
    %v3715 = vld [vmem:[#allocation6 + $0x1d0] sm:$0xff]
    %v3716 = vld [vmem:[#allocation6 + $0x1d8] sm:$0xff]
    %v3717 = vld [vmem:[#allocation6 + $0x1e0] sm:$0xff]
    %v3718 = vld [vmem:[#allocation6 + $0x1e8] sm:$0xff]
    %v3719 = vld [vmem:[#allocation6 + $0x1f0] sm:$0xff]
    %v3720 = vld [vmem:[#allocation6 + $0x1f8] sm:$0xff]
    %3721 = vmatpush.msra.mxu0 %v3717
    %3722 = vmatpush.msra.mxu0 %v3713
    %3723 = vmatpush.msra.mxu0 %v3709
    %3724 = vmatpush.msra.mxu0 %v3705
    %3725 = vmatpush.msra.mxu0 %v3701
    %3726 = vmatpush.msra.mxu0 %v3697
    %3727 = vmatpush.msra.mxu0 %v3693
    %3728 = vmatpush.msra.mxu0 %v3689
    %3729 = vmatpush.msra.mxu0 %v3685
    %3730 = vmatpush.msra.mxu0 %v3681
    %3731 = vmatpush.msra.mxu0 %v3677
    %3732 = vmatpush.msra.mxu0 %v3673
    %3733 = vmatpush.msra.mxu0 %v3669
    %3734 = vmatpush.msra.mxu0 %v3665
    %3735 = vmatpush.msra.mxu0 %v3661
    %3736 = vmatpush.msra.mxu0 %v3657
    %3737 = vmatmul.f32.gmra.mxu0 %v3641
    %v3738 = vpop.f32.mrf.mxu0
    %v3739 = vadd.f32 0.0, %v3738
    %3740 = vdwg.mxu0
    %3741 = vmatpush.msra.mxu0 %v3718
    %3742 = vmatpush.msra.mxu0 %v3714
    %3743 = vmatpush.msra.mxu0 %v3710
    %3744 = vmatpush.msra.mxu0 %v3706
    %3745 = vmatpush.msra.mxu0 %v3702
    %3746 = vmatpush.msra.mxu0 %v3698
    %3747 = vmatpush.msra.mxu0 %v3694
    %3748 = vmatpush.msra.mxu0 %v3690
    %3749 = vmatpush.msra.mxu0 %v3686
    %3750 = vmatpush.msra.mxu0 %v3682
    %3751 = vmatpush.msra.mxu0 %v3678
    %3752 = vmatpush.msra.mxu0 %v3674
    %3753 = vmatpush.msra.mxu0 %v3670
    %3754 = vmatpush.msra.mxu0 %v3666
    %3755 = vmatpush.msra.mxu0 %v3662
    %3756 = vmatpush.msra.mxu0 %v3658
    %3757 = vmatmul.f32.gmra.mxu0 %v3641
    %v3758 = vpop.f32.mrf.mxu0
    %v3759 = vadd.f32 0.0, %v3758
    %3760 = vdwg.mxu0
    %3761 = vmatpush.msra.mxu0 %v3719
    %3762 = vmatpush.msra.mxu0 %v3715
    %3763 = vmatpush.msra.mxu0 %v3711
    %3764 = vmatpush.msra.mxu0 %v3707
    %3765 = vmatpush.msra.mxu0 %v3703
    %3766 = vmatpush.msra.mxu0 %v3699
    %3767 = vmatpush.msra.mxu0 %v3695
    %3768 = vmatpush.msra.mxu0 %v3691
    %3769 = vmatpush.msra.mxu0 %v3687
    %3770 = vmatpush.msra.mxu0 %v3683
    %3771 = vmatpush.msra.mxu0 %v3679
    %3772 = vmatpush.msra.mxu0 %v3675
    %3773 = vmatpush.msra.mxu0 %v3671
    %3774 = vmatpush.msra.mxu0 %v3667
    %3775 = vmatpush.msra.mxu0 %v3663
    %3776 = vmatpush.msra.mxu0 %v3659
    %3777 = vmatmul.f32.gmra.mxu0 %v3641
    %v3778 = vpop.f32.mrf.mxu0
    %v3779 = vadd.f32 0.0, %v3778
    %3780 = vdwg.mxu0
    %3781 = vmatpush.msra.mxu0 %v3720
    %3782 = vmatpush.msra.mxu0 %v3716
    %3783 = vmatpush.msra.mxu0 %v3712
    %3784 = vmatpush.msra.mxu0 %v3708
    %3785 = vmatpush.msra.mxu0 %v3704
    %3786 = vmatpush.msra.mxu0 %v3700
    %3787 = vmatpush.msra.mxu0 %v3696
    %3788 = vmatpush.msra.mxu0 %v3692
    %3789 = vmatpush.msra.mxu0 %v3688
    %3790 = vmatpush.msra.mxu0 %v3684
    %3791 = vmatpush.msra.mxu0 %v3680
    %3792 = vmatpush.msra.mxu0 %v3676
    %3793 = vmatpush.msra.mxu0 %v3672
    %3794 = vmatpush.msra.mxu0 %v3668
    %3795 = vmatpush.msra.mxu0 %v3664
    %3796 = vmatpush.msra.mxu0 %v3660
    %3797 = vmatmul.f32.gmra.mxu0 %v3641
    %v3798 = vpop.f32.mrf.mxu0
    %v3799 = vadd.f32 0.0, %v3798
    %3800 = vdwg.mxu0
    %v3801 = vadd.f32 %v3653, %v3739
    %v3802 = vadd.f32 %v3654, %v3759
    %v3803 = vadd.f32 %v3655, %v3779
    %v3804 = vadd.f32 %v3656, %v3799
    %s3805 = smul.addr %s578, 8
    %s3806 = scalar_lea.vmem [#allocation3], %s3805
    %v3807 = vld [vmem:[%s3806] sm:$0xff]
    %v3808 = vld [vmem:[%s3806 + $0x8] sm:$0xff]
    %v3809 = vld [vmem:[%s3806 + $0x10] sm:$0xff]
    %v3810 = vld [vmem:[%s3806 + $0x18] sm:$0xff]
    %v3811 = vld [vmem:[#allocation9] sm:$0xff]
    %v3812 = vld [vmem:[#allocation9 + $0x8] sm:$0xff]
    %v3813 = vld [vmem:[#allocation9 + $0x10] sm:$0xff]
    %v3814 = vld [vmem:[#allocation9 + $0x18] sm:$0xff]
    %v3815 = vld [vmem:[#allocation9 + $0x20] sm:$0xff]
    %v3816 = vld [vmem:[#allocation9 + $0x28] sm:$0xff]
    %v3817 = vld [vmem:[#allocation9 + $0x30] sm:$0xff]
    %v3818 = vld [vmem:[#allocation9 + $0x38] sm:$0xff]
    %v3819 = vld [vmem:[#allocation9 + $0x40] sm:$0xff]
    %v3820 = vld [vmem:[#allocation9 + $0x48] sm:$0xff]
    %v3821 = vld [vmem:[#allocation9 + $0x50] sm:$0xff]
    %v3822 = vld [vmem:[#allocation9 + $0x58] sm:$0xff]
    %v3823 = vld [vmem:[#allocation9 + $0x60] sm:$0xff]
    %v3824 = vld [vmem:[#allocation9 + $0x68] sm:$0xff]
    %v3825 = vld [vmem:[#allocation9 + $0x70] sm:$0xff]
    %v3826 = vld [vmem:[#allocation9 + $0x78] sm:$0xff]
    %v3827 = vld [vmem:[#allocation9 + $0x80] sm:$0xff]
    %v3828 = vld [vmem:[#allocation9 + $0x88] sm:$0xff]
    %v3829 = vld [vmem:[#allocation9 + $0x90] sm:$0xff]
    %v3830 = vld [vmem:[#allocation9 + $0x98] sm:$0xff]
    %v3831 = vld [vmem:[#allocation9 + $0xa0] sm:$0xff]
    %v3832 = vld [vmem:[#allocation9 + $0xa8] sm:$0xff]
    %v3833 = vld [vmem:[#allocation9 + $0xb0] sm:$0xff]
    %v3834 = vld [vmem:[#allocation9 + $0xb8] sm:$0xff]
    %v3835 = vld [vmem:[#allocation9 + $0xc0] sm:$0xff]
    %v3836 = vld [vmem:[#allocation9 + $0xc8] sm:$0xff]
    %v3837 = vld [vmem:[#allocation9 + $0xd0] sm:$0xff]
    %v3838 = vld [vmem:[#allocation9 + $0xd8] sm:$0xff]
    %v3839 = vld [vmem:[#allocation9 + $0xe0] sm:$0xff]
    %v3840 = vld [vmem:[#allocation9 + $0xe8] sm:$0xff]
    %v3841 = vld [vmem:[#allocation9 + $0xf0] sm:$0xff]
    %v3842 = vld [vmem:[#allocation9 + $0xf8] sm:$0xff]
    %v3843 = vld [vmem:[#allocation9 + $0x100] sm:$0xff]
    %v3844 = vld [vmem:[#allocation9 + $0x108] sm:$0xff]
    %v3845 = vld [vmem:[#allocation9 + $0x110] sm:$0xff]
    %v3846 = vld [vmem:[#allocation9 + $0x118] sm:$0xff]
    %v3847 = vld [vmem:[#allocation9 + $0x120] sm:$0xff]
    %v3848 = vld [vmem:[#allocation9 + $0x128] sm:$0xff]
    %v3849 = vld [vmem:[#allocation9 + $0x130] sm:$0xff]
    %v3850 = vld [vmem:[#allocation9 + $0x138] sm:$0xff]
    %v3851 = vld [vmem:[#allocation9 + $0x140] sm:$0xff]
    %v3852 = vld [vmem:[#allocation9 + $0x148] sm:$0xff]
    %v3853 = vld [vmem:[#allocation9 + $0x150] sm:$0xff]
    %v3854 = vld [vmem:[#allocation9 + $0x158] sm:$0xff]
    %v3855 = vld [vmem:[#allocation9 + $0x160] sm:$0xff]
    %v3856 = vld [vmem:[#allocation9 + $0x168] sm:$0xff]
    %v3857 = vld [vmem:[#allocation9 + $0x170] sm:$0xff]
    %v3858 = vld [vmem:[#allocation9 + $0x178] sm:$0xff]
    %v3859 = vld [vmem:[#allocation9 + $0x180] sm:$0xff]
    %v3860 = vld [vmem:[#allocation9 + $0x188] sm:$0xff]
    %v3861 = vld [vmem:[#allocation9 + $0x190] sm:$0xff]
    %v3862 = vld [vmem:[#allocation9 + $0x198] sm:$0xff]
    %v3863 = vld [vmem:[#allocation9 + $0x1a0] sm:$0xff]
    %v3864 = vld [vmem:[#allocation9 + $0x1a8] sm:$0xff]
    %v3865 = vld [vmem:[#allocation9 + $0x1b0] sm:$0xff]
    %v3866 = vld [vmem:[#allocation9 + $0x1b8] sm:$0xff]
    %v3867 = vld [vmem:[#allocation9 + $0x1c0] sm:$0xff]
    %v3868 = vld [vmem:[#allocation9 + $0x1c8] sm:$0xff]
    %v3869 = vld [vmem:[#allocation9 + $0x1d0] sm:$0xff]
    %v3870 = vld [vmem:[#allocation9 + $0x1d8] sm:$0xff]
    %v3871 = vld [vmem:[#allocation9 + $0x1e0] sm:$0xff]
    %v3872 = vld [vmem:[#allocation9 + $0x1e8] sm:$0xff]
    %v3873 = vld [vmem:[#allocation9 + $0x1f0] sm:$0xff]
    %v3874 = vld [vmem:[#allocation9 + $0x1f8] sm:$0xff]
    %3875 = vmatpush.msra.mxu0 %v3871
    %3876 = vmatpush.msra.mxu0 %v3867
    %3877 = vmatpush.msra.mxu0 %v3863
    %3878 = vmatpush.msra.mxu0 %v3859
    %3879 = vmatpush.msra.mxu0 %v3855
    %3880 = vmatpush.msra.mxu0 %v3851
    %3881 = vmatpush.msra.mxu0 %v3847
    %3882 = vmatpush.msra.mxu0 %v3843
    %3883 = vmatpush.msra.mxu0 %v3839
    %3884 = vmatpush.msra.mxu0 %v3835
    %3885 = vmatpush.msra.mxu0 %v3831
    %3886 = vmatpush.msra.mxu0 %v3827
    %3887 = vmatpush.msra.mxu0 %v3823
    %3888 = vmatpush.msra.mxu0 %v3819
    %3889 = vmatpush.msra.mxu0 %v3815
    %3890 = vmatpush.msra.mxu0 %v3811
    %3891 = vmatmul.f32.gmra.mxu0 %v3646
    %v3892 = vpop.f32.mrf.mxu0
    %v3893 = vadd.f32 0.0, %v3892
    %3894 = vdwg.mxu0
    %3895 = vmatpush.msra.mxu0 %v3872
    %3896 = vmatpush.msra.mxu0 %v3868
    %3897 = vmatpush.msra.mxu0 %v3864
    %3898 = vmatpush.msra.mxu0 %v3860
    %3899 = vmatpush.msra.mxu0 %v3856
    %3900 = vmatpush.msra.mxu0 %v3852
    %3901 = vmatpush.msra.mxu0 %v3848
    %3902 = vmatpush.msra.mxu0 %v3844
    %3903 = vmatpush.msra.mxu0 %v3840
    %3904 = vmatpush.msra.mxu0 %v3836
    %3905 = vmatpush.msra.mxu0 %v3832
    %3906 = vmatpush.msra.mxu0 %v3828
    %3907 = vmatpush.msra.mxu0 %v3824
    %3908 = vmatpush.msra.mxu0 %v3820
    %3909 = vmatpush.msra.mxu0 %v3816
    %3910 = vmatpush.msra.mxu0 %v3812
    %3911 = vmatmul.f32.gmra.mxu0 %v3646
    %v3912 = vpop.f32.mrf.mxu0
    %v3913 = vadd.f32 0.0, %v3912
    %3914 = vdwg.mxu0
    %3915 = vmatpush.msra.mxu0 %v3873
    %3916 = vmatpush.msra.mxu0 %v3869
    %3917 = vmatpush.msra.mxu0 %v3865
    %3918 = vmatpush.msra.mxu0 %v3861
    %3919 = vmatpush.msra.mxu0 %v3857
    %3920 = vmatpush.msra.mxu0 %v3853
    %3921 = vmatpush.msra.mxu0 %v3849
    %3922 = vmatpush.msra.mxu0 %v3845
    %3923 = vmatpush.msra.mxu0 %v3841
    %3924 = vmatpush.msra.mxu0 %v3837
    %3925 = vmatpush.msra.mxu0 %v3833
    %3926 = vmatpush.msra.mxu0 %v3829
    %3927 = vmatpush.msra.mxu0 %v3825
    %3928 = vmatpush.msra.mxu0 %v3821
    %3929 = vmatpush.msra.mxu0 %v3817
    %3930 = vmatpush.msra.mxu0 %v3813
    %3931 = vmatmul.f32.gmra.mxu0 %v3646
    %v3932 = vpop.f32.mrf.mxu0
    %v3933 = vadd.f32 0.0, %v3932
    %3934 = vdwg.mxu0
    %3935 = vmatpush.msra.mxu0 %v3874
    %3936 = vmatpush.msra.mxu0 %v3870
    %3937 = vmatpush.msra.mxu0 %v3866
    %3938 = vmatpush.msra.mxu0 %v3862
    %3939 = vmatpush.msra.mxu0 %v3858
    %3940 = vmatpush.msra.mxu0 %v3854
    %3941 = vmatpush.msra.mxu0 %v3850
    %3942 = vmatpush.msra.mxu0 %v3846
    %3943 = vmatpush.msra.mxu0 %v3842
    %3944 = vmatpush.msra.mxu0 %v3838
    %3945 = vmatpush.msra.mxu0 %v3834
    %3946 = vmatpush.msra.mxu0 %v3830
    %3947 = vmatpush.msra.mxu0 %v3826
    %3948 = vmatpush.msra.mxu0 %v3822
    %3949 = vmatpush.msra.mxu0 %v3818
    %3950 = vmatpush.msra.mxu0 %v3814
    %3951 = vmatmul.f32.gmra.mxu0 %v3646
    %v3952 = vpop.f32.mrf.mxu0
    %v3953 = vadd.f32 0.0, %v3952
    %3954 = vdwg.mxu0
    %v3955 = vadd.f32 %v3807, %v3893
    %v3956 = vadd.f32 %v3808, %v3913
    %v3957 = vadd.f32 %v3809, %v3933
    %v3958 = vadd.f32 %v3810, %v3953
    %v3959 = vxor.u32 %v3801, 2147483648
    %v3960 = vxor.u32 %v3802, 2147483648
    %v3961 = vxor.u32 %v3803, 2147483648
    %v3962 = vmul.f32 %v3959, 1.442695
    %v3963 = vpow.pop %v3962
    %v3964 = vmul.f32 %v3960, 1.442695
    %v3965 = vpow.pop %v3964
    %v3966 = vmul.f32 %v3961, 1.442695
    %v3967 = vpow.pop %v3966
    %v3968 = vadd.f32 %v3963, 1.0
    %v3969 = vadd.f32 %v3965, 1.0
    %v3970 = vadd.f32 %v3967, 1.0
    %v3971 = vrcp.pop %v3968
    %v3972 = vmul.f32 %v3968, %v3971
    %v3973 = vsub.f32 1.0, %v3972
    %v3974 = vmul.f32 %v3971, %v3973
    %v3975 = vadd.f32 %v3971, %v3974
    %vm3976 = vweird.f32 %v3968
    %vm3977 = vweird.f32 %v3971
    %vm3978 = vmor %vm3976, %vm3977
    %v3979 = vsel %vm3978, %v3971, %v3975
    %v3980 = vand.u32 2147483647, %v3968
    %vm3981 = vcmp.eq.f32.partialorder %v3980, 8.507059e+37
    %v3982 = vand.u32 %v3968, 2147483648
    %v3983 = vor.u32 1.1754944e-38, %v3982
    %v3984 = vsel %vm3981, %v3983, %v3979
    %v3985 = vmul.f32 1.0, %v3984
    %v3986 = vrcp.pop %v3969
    %v3987 = vmul.f32 %v3969, %v3986
    %v3988 = vsub.f32 1.0, %v3987
    %v3989 = vmul.f32 %v3986, %v3988
    %v3990 = vadd.f32 %v3986, %v3989
    %vm3991 = vweird.f32 %v3969
    %vm3992 = vweird.f32 %v3986
    %vm3993 = vmor %vm3991, %vm3992
    %v3994 = vsel %vm3993, %v3986, %v3990
    %v3995 = vand.u32 2147483647, %v3969
    %vm3996 = vcmp.eq.f32.partialorder %v3995, 8.507059e+37
    %v3997 = vand.u32 %v3969, 2147483648
    %v3998 = vor.u32 1.1754944e-38, %v3997
    %v3999 = vsel %vm3996, %v3998, %v3994
    %v4000 = vmul.f32 1.0, %v3999
    %v4001 = vrcp.pop %v3970
    %v4002 = vmul.f32 %v3970, %v4001
    %v4003 = vsub.f32 1.0, %v4002
    %v4004 = vmul.f32 %v4001, %v4003
    %v4005 = vadd.f32 %v4001, %v4004
    %vm4006 = vweird.f32 %v3970
    %vm4007 = vweird.f32 %v4001
    %vm4008 = vmor %vm4006, %vm4007
    %v4009 = vsel %vm4008, %v4001, %v4005
    %v4010 = vand.u32 2147483647, %v3970
    %vm4011 = vcmp.eq.f32.partialorder %v4010, 8.507059e+37
    %v4012 = vand.u32 %v3970, 2147483648
    %v4013 = vor.u32 1.1754944e-38, %v4012
    %v4014 = vsel %vm4011, %v4013, %v4009
    %v4015 = vmul.f32 1.0, %v4014
    %v4016 = vtanh.pop %v3804
    %v4017 = vxor.u32 %v3955, 2147483648
    %v4018 = vxor.u32 %v3956, 2147483648
    %v4019 = vxor.u32 %v3957, 2147483648
    %v4020 = vmul.f32 %v4017, 1.442695
    %v4021 = vpow.pop %v4020
    %v4022 = vmul.f32 %v4018, 1.442695
    %v4023 = vpow.pop %v4022
    %v4024 = vmul.f32 %v4019, 1.442695
    %v4025 = vpow.pop %v4024
    %v4026 = vadd.f32 %v4021, 1.0
    %v4027 = vadd.f32 %v4023, 1.0
    %v4028 = vadd.f32 %v4025, 1.0
    %v4029 = vrcp.pop %v4026
    %v4030 = vmul.f32 %v4026, %v4029
    %v4031 = vsub.f32 1.0, %v4030
    %v4032 = vmul.f32 %v4029, %v4031
    %v4033 = vadd.f32 %v4029, %v4032
    %vm4034 = vweird.f32 %v4026
    %vm4035 = vweird.f32 %v4029
    %vm4036 = vmor %vm4034, %vm4035
    %v4037 = vsel %vm4036, %v4029, %v4033
    %v4038 = vand.u32 2147483647, %v4026
    %vm4039 = vcmp.eq.f32.partialorder %v4038, 8.507059e+37
    %v4040 = vand.u32 %v4026, 2147483648
    %v4041 = vor.u32 1.1754944e-38, %v4040
    %v4042 = vsel %vm4039, %v4041, %v4037
    %v4043 = vmul.f32 1.0, %v4042
    %v4044 = vrcp.pop %v4027
    %v4045 = vmul.f32 %v4027, %v4044
    %v4046 = vsub.f32 1.0, %v4045
    %v4047 = vmul.f32 %v4044, %v4046
    %v4048 = vadd.f32 %v4044, %v4047
    %vm4049 = vweird.f32 %v4027
    %vm4050 = vweird.f32 %v4044
    %vm4051 = vmor %vm4049, %vm4050
    %v4052 = vsel %vm4051, %v4044, %v4048
    %v4053 = vand.u32 2147483647, %v4027
    %vm4054 = vcmp.eq.f32.partialorder %v4053, 8.507059e+37
    %v4055 = vand.u32 %v4027, 2147483648
    %v4056 = vor.u32 1.1754944e-38, %v4055
    %v4057 = vsel %vm4054, %v4056, %v4052
    %v4058 = vmul.f32 1.0, %v4057
    %v4059 = vrcp.pop %v4028
    %v4060 = vmul.f32 %v4028, %v4059
    %v4061 = vsub.f32 1.0, %v4060
    %v4062 = vmul.f32 %v4059, %v4061
    %v4063 = vadd.f32 %v4059, %v4062
    %vm4064 = vweird.f32 %v4028
    %vm4065 = vweird.f32 %v4059
    %vm4066 = vmor %vm4064, %vm4065
    %v4067 = vsel %vm4066, %v4059, %v4063
    %v4068 = vand.u32 2147483647, %v4028
    %vm4069 = vcmp.eq.f32.partialorder %v4068, 8.507059e+37
    %v4070 = vand.u32 %v4028, 2147483648
    %v4071 = vor.u32 1.1754944e-38, %v4070
    %v4072 = vsel %vm4069, %v4071, %v4067
    %v4073 = vmul.f32 1.0, %v4072
    %v4074 = vtanh.pop %v3958
    %v4075 = vmul.f32 %v4000, %v3639
    %v4076 = vmul.f32 %v3985, %v4016
    %v4077 = vadd.f32 %v4075, %v4076
    %v4078 = vtanh.pop %v4077
    %v4079 = vmul.f32 %v4015, %v4078
    %v4080 = vmul.f32 %v4058, %v3644
    %v4081 = vmul.f32 %v4043, %v4074
    %v4082 = vadd.f32 %v4080, %v4081
    %v4083 = vtanh.pop %v4082
    %v4084 = vmul.f32 %v4073, %v4083
    %s4085 = scalar_lea.vmem [#allocation4], 56
    %4086 = vst [vmem:[%s4085] sm:$0xff] %v4079
    %4087 = vst [vmem:[#allocation5] sm:$0xff] %v4084
    %v4088 = vld [vmem:[#allocation4] sm:$0xff]
    %v4089 = vld [vmem:[#allocation4 + $0x8] sm:$0xff]
    %v4090 = vld [vmem:[#allocation4 + $0x10] sm:$0xff]
    %v4091 = vld [vmem:[#allocation4 + $0x18] sm:$0xff]
    %v4092 = vld [vmem:[#allocation4 + $0x20] sm:$0xff]
    %v4093 = vld [vmem:[#allocation4 + $0x28] sm:$0xff]
    %v4094 = vld [vmem:[#allocation4 + $0x30] sm:$0xff]
    %v4095 = vld [vmem:[#allocation4 + $0x38] sm:$0xff]
    %v4096 = vld [vmem:[#allocation5] sm:$0xff]
    %v4097 = vld [vmem:[#allocation5 + $0x8] sm:$0xff]
    %v4098 = vld [vmem:[#allocation5 + $0x10] sm:$0xff]
    %v4099 = vld [vmem:[#allocation5 + $0x18] sm:$0xff]
    %v4100 = vld [vmem:[#allocation5 + $0x20] sm:$0xff]
    %v4101 = vld [vmem:[#allocation5 + $0x28] sm:$0xff]
    %v4102 = vld [vmem:[#allocation5 + $0x30] sm:$0xff]
    %v4103 = vld [vmem:[#allocation5 + $0x38] sm:$0xff]
    %v4104 = vld [vmem:[#allocation11] sm:$0xff]
    %v4105 = vld [vmem:[#allocation11 + $0x8] sm:$0xff]
    %v4106 = vld [vmem:[#allocation11 + $0x10] sm:$0xff]
    %v4107 = vld [vmem:[#allocation11 + $0x18] sm:$0xff]
    %v4108 = vld [vmem:[#allocation11 + $0x40] sm:$0xff]
    %v4109 = vld [vmem:[#allocation11 + $0x48] sm:$0xff]
    %v4110 = vld [vmem:[#allocation11 + $0x50] sm:$0xff]
    %v4111 = vld [vmem:[#allocation11 + $0x58] sm:$0xff]
    %v4112 = vld [vmem:[#allocation11 + $0x80] sm:$0xff]
    %v4113 = vld [vmem:[#allocation11 + $0x88] sm:$0xff]
    %v4114 = vld [vmem:[#allocation11 + $0x90] sm:$0xff]
    %v4115 = vld [vmem:[#allocation11 + $0x98] sm:$0xff]
    %v4116 = vld [vmem:[#allocation11 + $0xc0] sm:$0xff]
    %v4117 = vld [vmem:[#allocation11 + $0xc8] sm:$0xff]
    %v4118 = vld [vmem:[#allocation11 + $0xd0] sm:$0xff]
    %v4119 = vld [vmem:[#allocation11 + $0xd8] sm:$0xff]
    %v4120 = vld [vmem:[#allocation11 + $0x100] sm:$0xff]
    %v4121 = vld [vmem:[#allocation11 + $0x108] sm:$0xff]
    %v4122 = vld [vmem:[#allocation11 + $0x110] sm:$0xff]
    %v4123 = vld [vmem:[#allocation11 + $0x118] sm:$0xff]
    %v4124 = vld [vmem:[#allocation11 + $0x140] sm:$0xff]
    %v4125 = vld [vmem:[#allocation11 + $0x148] sm:$0xff]
    %v4126 = vld [vmem:[#allocation11 + $0x150] sm:$0xff]
    %v4127 = vld [vmem:[#allocation11 + $0x158] sm:$0xff]
    %v4128 = vld [vmem:[#allocation11 + $0x180] sm:$0xff]
    %v4129 = vld [vmem:[#allocation11 + $0x188] sm:$0xff]
    %v4130 = vld [vmem:[#allocation11 + $0x190] sm:$0xff]
    %v4131 = vld [vmem:[#allocation11 + $0x198] sm:$0xff]
    %v4132 = vld [vmem:[#allocation11 + $0x1c0] sm:$0xff]
    %v4133 = vld [vmem:[#allocation11 + $0x1c8] sm:$0xff]
    %v4134 = vld [vmem:[#allocation11 + $0x1d0] sm:$0xff]
    %v4135 = vld [vmem:[#allocation11 + $0x1d8] sm:$0xff]
    %v4136 = vld [vmem:[#allocation11 + $0x200] sm:$0xff]
    %v4137 = vld [vmem:[#allocation11 + $0x208] sm:$0xff]
    %v4138 = vld [vmem:[#allocation11 + $0x210] sm:$0xff]
    %v4139 = vld [vmem:[#allocation11 + $0x218] sm:$0xff]
    %v4140 = vld [vmem:[#allocation11 + $0x240] sm:$0xff]
    %v4141 = vld [vmem:[#allocation11 + $0x248] sm:$0xff]
    %v4142 = vld [vmem:[#allocation11 + $0x250] sm:$0xff]
    %v4143 = vld [vmem:[#allocation11 + $0x258] sm:$0xff]
    %v4144 = vld [vmem:[#allocation11 + $0x280] sm:$0xff]
    %v4145 = vld [vmem:[#allocation11 + $0x288] sm:$0xff]
    %v4146 = vld [vmem:[#allocation11 + $0x290] sm:$0xff]
    %v4147 = vld [vmem:[#allocation11 + $0x298] sm:$0xff]
    %v4148 = vld [vmem:[#allocation11 + $0x2c0] sm:$0xff]
    %v4149 = vld [vmem:[#allocation11 + $0x2c8] sm:$0xff]
    %v4150 = vld [vmem:[#allocation11 + $0x2d0] sm:$0xff]
    %v4151 = vld [vmem:[#allocation11 + $0x2d8] sm:$0xff]
    %v4152 = vld [vmem:[#allocation11 + $0x300] sm:$0xff]
    %v4153 = vld [vmem:[#allocation11 + $0x308] sm:$0xff]
    %v4154 = vld [vmem:[#allocation11 + $0x310] sm:$0xff]
    %v4155 = vld [vmem:[#allocation11 + $0x318] sm:$0xff]
    %v4156 = vld [vmem:[#allocation11 + $0x340] sm:$0xff]
    %v4157 = vld [vmem:[#allocation11 + $0x348] sm:$0xff]
    %v4158 = vld [vmem:[#allocation11 + $0x350] sm:$0xff]
    %v4159 = vld [vmem:[#allocation11 + $0x358] sm:$0xff]
    %v4160 = vld [vmem:[#allocation11 + $0x380] sm:$0xff]
    %v4161 = vld [vmem:[#allocation11 + $0x388] sm:$0xff]
    %v4162 = vld [vmem:[#allocation11 + $0x390] sm:$0xff]
    %v4163 = vld [vmem:[#allocation11 + $0x398] sm:$0xff]
    %v4164 = vld [vmem:[#allocation11 + $0x3c0] sm:$0xff]
    %v4165 = vld [vmem:[#allocation11 + $0x3c8] sm:$0xff]
    %v4166 = vld [vmem:[#allocation11 + $0x3d0] sm:$0xff]
    %v4167 = vld [vmem:[#allocation11 + $0x3d8] sm:$0xff]
    %v4168 = vld [vmem:[#allocation11 + $0x400] sm:$0xff]
    %v4169 = vld [vmem:[#allocation11 + $0x408] sm:$0xff]
    %v4170 = vld [vmem:[#allocation11 + $0x410] sm:$0xff]
    %v4171 = vld [vmem:[#allocation11 + $0x418] sm:$0xff]
    %v4172 = vld [vmem:[#allocation11 + $0x440] sm:$0xff]
    %v4173 = vld [vmem:[#allocation11 + $0x448] sm:$0xff]
    %v4174 = vld [vmem:[#allocation11 + $0x450] sm:$0xff]
    %v4175 = vld [vmem:[#allocation11 + $0x458] sm:$0xff]
    %v4176 = vld [vmem:[#allocation11 + $0x480] sm:$0xff]
    %v4177 = vld [vmem:[#allocation11 + $0x488] sm:$0xff]
    %v4178 = vld [vmem:[#allocation11 + $0x490] sm:$0xff]
    %v4179 = vld [vmem:[#allocation11 + $0x498] sm:$0xff]
    %v4180 = vld [vmem:[#allocation11 + $0x4c0] sm:$0xff]
    %v4181 = vld [vmem:[#allocation11 + $0x4c8] sm:$0xff]
    %v4182 = vld [vmem:[#allocation11 + $0x4d0] sm:$0xff]
    %v4183 = vld [vmem:[#allocation11 + $0x4d8] sm:$0xff]
    %v4184 = vld [vmem:[#allocation11 + $0x500] sm:$0xff]
    %v4185 = vld [vmem:[#allocation11 + $0x508] sm:$0xff]
    %v4186 = vld [vmem:[#allocation11 + $0x510] sm:$0xff]
    %v4187 = vld [vmem:[#allocation11 + $0x518] sm:$0xff]
    %v4188 = vld [vmem:[#allocation11 + $0x540] sm:$0xff]
    %v4189 = vld [vmem:[#allocation11 + $0x548] sm:$0xff]
    %v4190 = vld [vmem:[#allocation11 + $0x550] sm:$0xff]
    %v4191 = vld [vmem:[#allocation11 + $0x558] sm:$0xff]
    %v4192 = vld [vmem:[#allocation11 + $0x580] sm:$0xff]
    %v4193 = vld [vmem:[#allocation11 + $0x588] sm:$0xff]
    %v4194 = vld [vmem:[#allocation11 + $0x590] sm:$0xff]
    %v4195 = vld [vmem:[#allocation11 + $0x598] sm:$0xff]
    %v4196 = vld [vmem:[#allocation11 + $0x5c0] sm:$0xff]
    %v4197 = vld [vmem:[#allocation11 + $0x5c8] sm:$0xff]
    %v4198 = vld [vmem:[#allocation11 + $0x5d0] sm:$0xff]
    %v4199 = vld [vmem:[#allocation11 + $0x5d8] sm:$0xff]
    %v4200 = vld [vmem:[#allocation11 + $0x600] sm:$0xff]
    %v4201 = vld [vmem:[#allocation11 + $0x608] sm:$0xff]
    %v4202 = vld [vmem:[#allocation11 + $0x610] sm:$0xff]
    %v4203 = vld [vmem:[#allocation11 + $0x618] sm:$0xff]
    %v4204 = vld [vmem:[#allocation11 + $0x640] sm:$0xff]
    %v4205 = vld [vmem:[#allocation11 + $0x648] sm:$0xff]
    %v4206 = vld [vmem:[#allocation11 + $0x650] sm:$0xff]
    %v4207 = vld [vmem:[#allocation11 + $0x658] sm:$0xff]
    %v4208 = vld [vmem:[#allocation11 + $0x680] sm:$0xff]
    %v4209 = vld [vmem:[#allocation11 + $0x688] sm:$0xff]
    %v4210 = vld [vmem:[#allocation11 + $0x690] sm:$0xff]
    %v4211 = vld [vmem:[#allocation11 + $0x698] sm:$0xff]
    %v4212 = vld [vmem:[#allocation11 + $0x6c0] sm:$0xff]
    %v4213 = vld [vmem:[#allocation11 + $0x6c8] sm:$0xff]
    %v4214 = vld [vmem:[#allocation11 + $0x6d0] sm:$0xff]
    %v4215 = vld [vmem:[#allocation11 + $0x6d8] sm:$0xff]
    %v4216 = vld [vmem:[#allocation11 + $0x700] sm:$0xff]
    %v4217 = vld [vmem:[#allocation11 + $0x708] sm:$0xff]
    %v4218 = vld [vmem:[#allocation11 + $0x710] sm:$0xff]
    %v4219 = vld [vmem:[#allocation11 + $0x718] sm:$0xff]
    %v4220 = vld [vmem:[#allocation11 + $0x740] sm:$0xff]
    %v4221 = vld [vmem:[#allocation11 + $0x748] sm:$0xff]
    %v4222 = vld [vmem:[#allocation11 + $0x750] sm:$0xff]
    %v4223 = vld [vmem:[#allocation11 + $0x758] sm:$0xff]
    %v4224 = vld [vmem:[#allocation11 + $0x780] sm:$0xff]
    %v4225 = vld [vmem:[#allocation11 + $0x788] sm:$0xff]
    %v4226 = vld [vmem:[#allocation11 + $0x790] sm:$0xff]
    %v4227 = vld [vmem:[#allocation11 + $0x798] sm:$0xff]
    %v4228 = vld [vmem:[#allocation11 + $0x7c0] sm:$0xff]
    %v4229 = vld [vmem:[#allocation11 + $0x7c8] sm:$0xff]
    %v4230 = vld [vmem:[#allocation11 + $0x7d0] sm:$0xff]
    %v4231 = vld [vmem:[#allocation11 + $0x7d8] sm:$0xff]
    %4232 = vmatpush.msra.mxu0 %v4228
    %4233 = vmatpush.msra.mxu0 %v4224
    %4234 = vmatpush.msra.mxu0 %v4220
    %4235 = vmatpush.msra.mxu0 %v4216
    %4236 = vmatpush.msra.mxu0 %v4212
    %4237 = vmatpush.msra.mxu0 %v4208
    %4238 = vmatpush.msra.mxu0 %v4204
    %4239 = vmatpush.msra.mxu0 %v4200
    %4240 = vmatpush.msra.mxu0 %v4196
    %4241 = vmatpush.msra.mxu0 %v4192
    %4242 = vmatpush.msra.mxu0 %v4188
    %4243 = vmatpush.msra.mxu0 %v4184
    %4244 = vmatpush.msra.mxu0 %v4180
    %4245 = vmatpush.msra.mxu0 %v4176
    %4246 = vmatpush.msra.mxu0 %v4172
    %4247 = vmatpush.msra.mxu0 %v4168
    %4248 = vmatmul.f32.gmra.mxu0 %v4096
    %v4249 = vpop.f32.mrf.mxu0
    %v4250 = vadd.f32 0.0, %v4249
    %4251 = vmatmul.f32.gmra.mxu0 %v4097
    %v4252 = vpop.f32.mrf.mxu0
    %v4253 = vadd.f32 0.0, %v4252
    %4254 = vmatmul.f32.gmra.mxu0 %v4098
    %v4255 = vpop.f32.mrf.mxu0
    %v4256 = vadd.f32 0.0, %v4255
    %4257 = vmatmul.f32.gmra.mxu0 %v4099
    %v4258 = vpop.f32.mrf.mxu0
    %v4259 = vadd.f32 0.0, %v4258
    %4260 = vmatmul.f32.gmra.mxu0 %v4100
    %v4261 = vpop.f32.mrf.mxu0
    %v4262 = vadd.f32 0.0, %v4261
    %4263 = vmatmul.f32.gmra.mxu0 %v4101
    %v4264 = vpop.f32.mrf.mxu0
    %v4265 = vadd.f32 0.0, %v4264
    %4266 = vmatmul.f32.gmra.mxu0 %v4102
    %v4267 = vpop.f32.mrf.mxu0
    %v4268 = vadd.f32 0.0, %v4267
    %4269 = vmatmul.f32.gmra.mxu0 %v4103
    %v4270 = vpop.f32.mrf.mxu0
    %v4271 = vadd.f32 0.0, %v4270
    %4272 = vdwg.mxu0
    %4273 = vmatpush.msra.mxu0 %v4229
    %4274 = vmatpush.msra.mxu0 %v4225
    %4275 = vmatpush.msra.mxu0 %v4221
    %4276 = vmatpush.msra.mxu0 %v4217
    %4277 = vmatpush.msra.mxu0 %v4213
    %4278 = vmatpush.msra.mxu0 %v4209
    %4279 = vmatpush.msra.mxu0 %v4205
    %4280 = vmatpush.msra.mxu0 %v4201
    %4281 = vmatpush.msra.mxu0 %v4197
    %4282 = vmatpush.msra.mxu0 %v4193
    %4283 = vmatpush.msra.mxu0 %v4189
    %4284 = vmatpush.msra.mxu0 %v4185
    %4285 = vmatpush.msra.mxu0 %v4181
    %4286 = vmatpush.msra.mxu0 %v4177
    %4287 = vmatpush.msra.mxu0 %v4173
    %4288 = vmatpush.msra.mxu0 %v4169
    %4289 = vmatmul.f32.gmra.mxu0 %v4096
    %v4290 = vpop.f32.mrf.mxu0
    %v4291 = vadd.f32 0.0, %v4290
    %4292 = vmatmul.f32.gmra.mxu0 %v4097
    %v4293 = vpop.f32.mrf.mxu0
    %v4294 = vadd.f32 0.0, %v4293
    %4295 = vmatmul.f32.gmra.mxu0 %v4098
    %v4296 = vpop.f32.mrf.mxu0
    %v4297 = vadd.f32 0.0, %v4296
    %4298 = vmatmul.f32.gmra.mxu0 %v4099
    %v4299 = vpop.f32.mrf.mxu0
    %v4300 = vadd.f32 0.0, %v4299
    %4301 = vmatmul.f32.gmra.mxu0 %v4100
    %v4302 = vpop.f32.mrf.mxu0
    %v4303 = vadd.f32 0.0, %v4302
    %4304 = vmatmul.f32.gmra.mxu0 %v4101
    %v4305 = vpop.f32.mrf.mxu0
    %v4306 = vadd.f32 0.0, %v4305
    %4307 = vmatmul.f32.gmra.mxu0 %v4102
    %v4308 = vpop.f32.mrf.mxu0
    %v4309 = vadd.f32 0.0, %v4308
    %4310 = vmatmul.f32.gmra.mxu0 %v4103
    %v4311 = vpop.f32.mrf.mxu0
    %v4312 = vadd.f32 0.0, %v4311
    %4313 = vdwg.mxu0
    %4314 = vmatpush.msra.mxu0 %v4230
    %4315 = vmatpush.msra.mxu0 %v4226
    %4316 = vmatpush.msra.mxu0 %v4222
    %4317 = vmatpush.msra.mxu0 %v4218
    %4318 = vmatpush.msra.mxu0 %v4214
    %4319 = vmatpush.msra.mxu0 %v4210
    %4320 = vmatpush.msra.mxu0 %v4206
    %4321 = vmatpush.msra.mxu0 %v4202
    %4322 = vmatpush.msra.mxu0 %v4198
    %4323 = vmatpush.msra.mxu0 %v4194
    %4324 = vmatpush.msra.mxu0 %v4190
    %4325 = vmatpush.msra.mxu0 %v4186
    %4326 = vmatpush.msra.mxu0 %v4182
    %4327 = vmatpush.msra.mxu0 %v4178
    %4328 = vmatpush.msra.mxu0 %v4174
    %4329 = vmatpush.msra.mxu0 %v4170
    %4330 = vmatmul.f32.gmra.mxu0 %v4096
    %v4331 = vpop.f32.mrf.mxu0
    %v4332 = vadd.f32 0.0, %v4331
    %4333 = vmatmul.f32.gmra.mxu0 %v4097
    %v4334 = vpop.f32.mrf.mxu0
    %v4335 = vadd.f32 0.0, %v4334
    %4336 = vmatmul.f32.gmra.mxu0 %v4098
    %v4337 = vpop.f32.mrf.mxu0
    %v4338 = vadd.f32 0.0, %v4337
    %4339 = vmatmul.f32.gmra.mxu0 %v4099
    %v4340 = vpop.f32.mrf.mxu0
    %v4341 = vadd.f32 0.0, %v4340
    %4342 = vmatmul.f32.gmra.mxu0 %v4100
    %v4343 = vpop.f32.mrf.mxu0
    %v4344 = vadd.f32 0.0, %v4343
    %4345 = vmatmul.f32.gmra.mxu0 %v4101
    %v4346 = vpop.f32.mrf.mxu0
    %v4347 = vadd.f32 0.0, %v4346
    %4348 = vmatmul.f32.gmra.mxu0 %v4102
    %v4349 = vpop.f32.mrf.mxu0
    %v4350 = vadd.f32 0.0, %v4349
    %4351 = vmatmul.f32.gmra.mxu0 %v4103
    %v4352 = vpop.f32.mrf.mxu0
    %v4353 = vadd.f32 0.0, %v4352
    %4354 = vdwg.mxu0
    %4355 = vmatpush.msra.mxu0 %v4231
    %4356 = vmatpush.msra.mxu0 %v4227
    %4357 = vmatpush.msra.mxu0 %v4223
    %4358 = vmatpush.msra.mxu0 %v4219
    %4359 = vmatpush.msra.mxu0 %v4215
    %4360 = vmatpush.msra.mxu0 %v4211
    %4361 = vmatpush.msra.mxu0 %v4207
    %4362 = vmatpush.msra.mxu0 %v4203
    %4363 = vmatpush.msra.mxu0 %v4199
    %4364 = vmatpush.msra.mxu0 %v4195
    %4365 = vmatpush.msra.mxu0 %v4191
    %4366 = vmatpush.msra.mxu0 %v4187
    %4367 = vmatpush.msra.mxu0 %v4183
    %4368 = vmatpush.msra.mxu0 %v4179
    %4369 = vmatpush.msra.mxu0 %v4175
    %4370 = vmatpush.msra.mxu0 %v4171
    %4371 = vmatmul.f32.gmra.mxu0 %v4096
    %v4372 = vpop.f32.mrf.mxu0
    %v4373 = vadd.f32 0.0, %v4372
    %4374 = vmatmul.f32.gmra.mxu0 %v4097
    %v4375 = vpop.f32.mrf.mxu0
    %v4376 = vadd.f32 0.0, %v4375
    %4377 = vmatmul.f32.gmra.mxu0 %v4098
    %v4378 = vpop.f32.mrf.mxu0
    %v4379 = vadd.f32 0.0, %v4378
    %4380 = vmatmul.f32.gmra.mxu0 %v4099
    %v4381 = vpop.f32.mrf.mxu0
    %v4382 = vadd.f32 0.0, %v4381
    %4383 = vmatmul.f32.gmra.mxu0 %v4100
    %v4384 = vpop.f32.mrf.mxu0
    %v4385 = vadd.f32 0.0, %v4384
    %4386 = vmatmul.f32.gmra.mxu0 %v4101
    %v4387 = vpop.f32.mrf.mxu0
    %v4388 = vadd.f32 0.0, %v4387
    %4389 = vmatmul.f32.gmra.mxu0 %v4102
    %v4390 = vpop.f32.mrf.mxu0
    %v4391 = vadd.f32 0.0, %v4390
    %4392 = vmatmul.f32.gmra.mxu0 %v4103
    %v4393 = vpop.f32.mrf.mxu0
    %v4394 = vadd.f32 0.0, %v4393
    %4395 = vdwg.mxu0
    %4396 = vmatpush.msra.mxu0 %v4164
    %4397 = vmatpush.msra.mxu0 %v4160
    %4398 = vmatpush.msra.mxu0 %v4156
    %4399 = vmatpush.msra.mxu0 %v4152
    %4400 = vmatpush.msra.mxu0 %v4148
    %4401 = vmatpush.msra.mxu0 %v4144
    %4402 = vmatpush.msra.mxu0 %v4140
    %4403 = vmatpush.msra.mxu0 %v4136
    %4404 = vmatpush.msra.mxu0 %v4132
    %4405 = vmatpush.msra.mxu0 %v4128
    %4406 = vmatpush.msra.mxu0 %v4124
    %4407 = vmatpush.msra.mxu0 %v4120
    %4408 = vmatpush.msra.mxu0 %v4116
    %4409 = vmatpush.msra.mxu0 %v4112
    %4410 = vmatpush.msra.mxu0 %v4108
    %4411 = vmatpush.msra.mxu0 %v4104
    %4412 = vmatmul.f32.gmra.mxu0 %v4088
    %v4413 = vpop.f32.mrf.mxu0
    %v4414 = vadd.f32 %v4250, %v4413
    %4415 = vmatmul.f32.gmra.mxu0 %v4089
    %v4416 = vpop.f32.mrf.mxu0
    %v4417 = vadd.f32 %v4253, %v4416
    %4418 = vmatmul.f32.gmra.mxu0 %v4090
    %v4419 = vpop.f32.mrf.mxu0
    %v4420 = vadd.f32 %v4256, %v4419
    %4421 = vmatmul.f32.gmra.mxu0 %v4091
    %v4422 = vpop.f32.mrf.mxu0
    %v4423 = vadd.f32 %v4259, %v4422
    %4424 = vmatmul.f32.gmra.mxu0 %v4092
    %v4425 = vpop.f32.mrf.mxu0
    %v4426 = vadd.f32 %v4262, %v4425
    %4427 = vmatmul.f32.gmra.mxu0 %v4093
    %v4428 = vpop.f32.mrf.mxu0
    %v4429 = vadd.f32 %v4265, %v4428
    %4430 = vmatmul.f32.gmra.mxu0 %v4094
    %v4431 = vpop.f32.mrf.mxu0
    %v4432 = vadd.f32 %v4268, %v4431
    %4433 = vmatmul.f32.gmra.mxu0 %v4095
    %v4434 = vpop.f32.mrf.mxu0
    %v4435 = vadd.f32 %v4271, %v4434
    %4436 = vdwg.mxu0
    %4437 = vmatpush.msra.mxu0 %v4165
    %4438 = vmatpush.msra.mxu0 %v4161
    %4439 = vmatpush.msra.mxu0 %v4157
    %4440 = vmatpush.msra.mxu0 %v4153
    %4441 = vmatpush.msra.mxu0 %v4149
    %4442 = vmatpush.msra.mxu0 %v4145
    %4443 = vmatpush.msra.mxu0 %v4141
    %4444 = vmatpush.msra.mxu0 %v4137
    %4445 = vmatpush.msra.mxu0 %v4133
    %4446 = vmatpush.msra.mxu0 %v4129
    %4447 = vmatpush.msra.mxu0 %v4125
    %4448 = vmatpush.msra.mxu0 %v4121
    %4449 = vmatpush.msra.mxu0 %v4117
    %4450 = vmatpush.msra.mxu0 %v4113
    %4451 = vmatpush.msra.mxu0 %v4109
    %4452 = vmatpush.msra.mxu0 %v4105
    %4453 = vmatmul.f32.gmra.mxu0 %v4088
    %v4454 = vpop.f32.mrf.mxu0
    %v4455 = vadd.f32 %v4291, %v4454
    %4456 = vmatmul.f32.gmra.mxu0 %v4089
    %v4457 = vpop.f32.mrf.mxu0
    %v4458 = vadd.f32 %v4294, %v4457
    %4459 = vmatmul.f32.gmra.mxu0 %v4090
    %v4460 = vpop.f32.mrf.mxu0
    %v4461 = vadd.f32 %v4297, %v4460
    %4462 = vmatmul.f32.gmra.mxu0 %v4091
    %v4463 = vpop.f32.mrf.mxu0
    %v4464 = vadd.f32 %v4300, %v4463
    %4465 = vmatmul.f32.gmra.mxu0 %v4092
    %v4466 = vpop.f32.mrf.mxu0
    %v4467 = vadd.f32 %v4303, %v4466
    %4468 = vmatmul.f32.gmra.mxu0 %v4093
    %v4469 = vpop.f32.mrf.mxu0
    %v4470 = vadd.f32 %v4306, %v4469
    %4471 = vmatmul.f32.gmra.mxu0 %v4094
    %v4472 = vpop.f32.mrf.mxu0
    %v4473 = vadd.f32 %v4309, %v4472
    %4474 = vmatmul.f32.gmra.mxu0 %v4095
    %v4475 = vpop.f32.mrf.mxu0
    %v4476 = vadd.f32 %v4312, %v4475
    %4477 = vdwg.mxu0
    %4478 = vmatpush.msra.mxu0 %v4166
    %4479 = vmatpush.msra.mxu0 %v4162
    %4480 = vmatpush.msra.mxu0 %v4158
    %4481 = vmatpush.msra.mxu0 %v4154
    %4482 = vmatpush.msra.mxu0 %v4150
    %4483 = vmatpush.msra.mxu0 %v4146
    %4484 = vmatpush.msra.mxu0 %v4142
    %4485 = vmatpush.msra.mxu0 %v4138
    %4486 = vmatpush.msra.mxu0 %v4134
    %4487 = vmatpush.msra.mxu0 %v4130
    %4488 = vmatpush.msra.mxu0 %v4126
    %4489 = vmatpush.msra.mxu0 %v4122
    %4490 = vmatpush.msra.mxu0 %v4118
    %4491 = vmatpush.msra.mxu0 %v4114
    %4492 = vmatpush.msra.mxu0 %v4110
    %4493 = vmatpush.msra.mxu0 %v4106
    %4494 = vmatmul.f32.gmra.mxu0 %v4088
    %v4495 = vpop.f32.mrf.mxu0
    %v4496 = vadd.f32 %v4332, %v4495
    %4497 = vmatmul.f32.gmra.mxu0 %v4089
    %v4498 = vpop.f32.mrf.mxu0
    %v4499 = vadd.f32 %v4335, %v4498
    %4500 = vmatmul.f32.gmra.mxu0 %v4090
    %v4501 = vpop.f32.mrf.mxu0
    %v4502 = vadd.f32 %v4338, %v4501
    %4503 = vmatmul.f32.gmra.mxu0 %v4091
    %v4504 = vpop.f32.mrf.mxu0
    %v4505 = vadd.f32 %v4341, %v4504
    %4506 = vmatmul.f32.gmra.mxu0 %v4092
    %v4507 = vpop.f32.mrf.mxu0
    %v4508 = vadd.f32 %v4344, %v4507
    %4509 = vmatmul.f32.gmra.mxu0 %v4093
    %v4510 = vpop.f32.mrf.mxu0
    %v4511 = vadd.f32 %v4347, %v4510
    %4512 = vmatmul.f32.gmra.mxu0 %v4094
    %v4513 = vpop.f32.mrf.mxu0
    %v4514 = vadd.f32 %v4350, %v4513
    %4515 = vmatmul.f32.gmra.mxu0 %v4095
    %v4516 = vpop.f32.mrf.mxu0
    %v4517 = vadd.f32 %v4353, %v4516
    %4518 = vdwg.mxu0
    %4519 = vmatpush.msra.mxu0 %v4167
    %4520 = vmatpush.msra.mxu0 %v4163
    %4521 = vmatpush.msra.mxu0 %v4159
    %4522 = vmatpush.msra.mxu0 %v4155
    %4523 = vmatpush.msra.mxu0 %v4151
    %4524 = vmatpush.msra.mxu0 %v4147
    %4525 = vmatpush.msra.mxu0 %v4143
    %4526 = vmatpush.msra.mxu0 %v4139
    %4527 = vmatpush.msra.mxu0 %v4135
    %4528 = vmatpush.msra.mxu0 %v4131
    %4529 = vmatpush.msra.mxu0 %v4127
    %4530 = vmatpush.msra.mxu0 %v4123
    %4531 = vmatpush.msra.mxu0 %v4119
    %4532 = vmatpush.msra.mxu0 %v4115
    %4533 = vmatpush.msra.mxu0 %v4111
    %4534 = vmatpush.msra.mxu0 %v4107
    %4535 = vmatmul.f32.gmra.mxu0 %v4088
    %v4536 = vpop.f32.mrf.mxu0
    %v4537 = vadd.f32 %v4373, %v4536
    %4538 = vmatmul.f32.gmra.mxu0 %v4089
    %v4539 = vpop.f32.mrf.mxu0
    %v4540 = vadd.f32 %v4376, %v4539
    %4541 = vmatmul.f32.gmra.mxu0 %v4090
    %v4542 = vpop.f32.mrf.mxu0
    %v4543 = vadd.f32 %v4379, %v4542
    %4544 = vmatmul.f32.gmra.mxu0 %v4091
    %v4545 = vpop.f32.mrf.mxu0
    %v4546 = vadd.f32 %v4382, %v4545
    %4547 = vmatmul.f32.gmra.mxu0 %v4092
    %v4548 = vpop.f32.mrf.mxu0
    %v4549 = vadd.f32 %v4385, %v4548
    %4550 = vmatmul.f32.gmra.mxu0 %v4093
    %v4551 = vpop.f32.mrf.mxu0
    %v4552 = vadd.f32 %v4388, %v4551
    %4553 = vmatmul.f32.gmra.mxu0 %v4094
    %v4554 = vpop.f32.mrf.mxu0
    %v4555 = vadd.f32 %v4391, %v4554
    %4556 = vmatmul.f32.gmra.mxu0 %v4095
    %v4557 = vpop.f32.mrf.mxu0
    %v4558 = vadd.f32 %v4394, %v4557
    %4559 = vdwg.mxu0
    %v4560 = vld [vmem:[%s8] sm:$0xf]
    %v4562 = vperm.slane %v4560, 0
    %v4563 = vperm.slane %v4560, 1
    %v4564 = vperm.slane %v4560, 2
    %v4565 = vperm.slane %v4560, 3
    %v4570 = vadd.f32 %v4414, %v4562
    %v4571 = vadd.f32 %v4455, %v4563
    %v4572 = vadd.f32 %v4496, %v4564
    %v4573 = vadd.f32 %v4537, %v4565
    %v4574 = vadd.f32 %v4417, %v4562
    %v4575 = vadd.f32 %v4458, %v4563
    %v4576 = vadd.f32 %v4499, %v4564
    %v4577 = vadd.f32 %v4540, %v4565
    %v4578 = vadd.f32 %v4420, %v4562
    %v4579 = vadd.f32 %v4461, %v4563
    %v4580 = vadd.f32 %v4502, %v4564
    %v4581 = vadd.f32 %v4543, %v4565
    %v4582 = vadd.f32 %v4423, %v4562
    %v4583 = vadd.f32 %v4464, %v4563
    %v4584 = vadd.f32 %v4505, %v4564
    %v4585 = vadd.f32 %v4546, %v4565
    %v4586 = vadd.f32 %v4426, %v4562
    %v4587 = vadd.f32 %v4467, %v4563
    %v4588 = vadd.f32 %v4508, %v4564
    %v4589 = vadd.f32 %v4549, %v4565
    %v4590 = vadd.f32 %v4429, %v4562
    %v4591 = vadd.f32 %v4470, %v4563
    %v4592 = vadd.f32 %v4511, %v4564
    %v4593 = vadd.f32 %v4552, %v4565
    %v4594 = vadd.f32 %v4432, %v4562
    %v4595 = vadd.f32 %v4473, %v4563
    %v4596 = vadd.f32 %v4514, %v4564
    %v4597 = vadd.f32 %v4555, %v4565
    %v4598 = vadd.f32 %v4435, %v4562
    %v4599 = vadd.f32 %v4476, %v4563
    %v4600 = vadd.f32 %v4517, %v4564
    %v4601 = vadd.f32 %v4558, %v4565
    %4602 = vst [vmem:[#allocation2] sm:$0xff] %v4570
    %4603 = vst [vmem:[#allocation2 + $0x8] sm:$0xff] %v4571
    %4604 = vst [vmem:[#allocation2 + $0x10] sm:$0xff] %v4572
    %4605 = vst [vmem:[#allocation2 + $0x18] sm:$0xff] %v4573
    %4606 = vst [vmem:[#allocation2 + $0x20] sm:$0xff] %v4574
    %4607 = vst [vmem:[#allocation2 + $0x28] sm:$0xff] %v4575
    %4608 = vst [vmem:[#allocation2 + $0x30] sm:$0xff] %v4576
    %4609 = vst [vmem:[#allocation2 + $0x38] sm:$0xff] %v4577
    %4610 = vst [vmem:[#allocation2 + $0x40] sm:$0xff] %v4578
    %4611 = vst [vmem:[#allocation2 + $0x48] sm:$0xff] %v4579
    %4612 = vst [vmem:[#allocation2 + $0x50] sm:$0xff] %v4580
    %4613 = vst [vmem:[#allocation2 + $0x58] sm:$0xff] %v4581
    %4614 = vst [vmem:[#allocation2 + $0x60] sm:$0xff] %v4582
    %4615 = vst [vmem:[#allocation2 + $0x68] sm:$0xff] %v4583
    %4616 = vst [vmem:[#allocation2 + $0x70] sm:$0xff] %v4584
    %4617 = vst [vmem:[#allocation2 + $0x78] sm:$0xff] %v4585
    %4618 = vst [vmem:[#allocation2 + $0x80] sm:$0xff] %v4586
    %4619 = vst [vmem:[#allocation2 + $0x88] sm:$0xff] %v4587
    %4620 = vst [vmem:[#allocation2 + $0x90] sm:$0xff] %v4588
    %4621 = vst [vmem:[#allocation2 + $0x98] sm:$0xff] %v4589
    %4622 = vst [vmem:[#allocation2 + $0xa0] sm:$0xff] %v4590
    %4623 = vst [vmem:[#allocation2 + $0xa8] sm:$0xff] %v4591
    %4624 = vst [vmem:[#allocation2 + $0xb0] sm:$0xff] %v4592
    %4625 = vst [vmem:[#allocation2 + $0xb8] sm:$0xff] %v4593
    %4626 = vst [vmem:[#allocation2 + $0xc0] sm:$0xff] %v4594
    %4627 = vst [vmem:[#allocation2 + $0xc8] sm:$0xff] %v4595
    %4628 = vst [vmem:[#allocation2 + $0xd0] sm:$0xff] %v4596
    %4629 = vst [vmem:[#allocation2 + $0xd8] sm:$0xff] %v4597
    %4630 = vst [vmem:[#allocation2 + $0xe0] sm:$0xff] %v4598
    %4631 = vst [vmem:[#allocation2 + $0xe8] sm:$0xff] %v4599
    %4632 = vst [vmem:[#allocation2 + $0xf0] sm:$0xff] %v4600
    %4633 = vst [vmem:[#allocation2 + $0xf8] sm:$0xff] %v4601
    %v4634 = vld [vmem:[#allocation11 + $0x20] sm:$0xff]
    %v4635 = vld [vmem:[#allocation11 + $0x30] sm:$0xff]
    %v4636 = vld [vmem:[#allocation11 + $0x38] sm:$0xff]
    %v4637 = vld [vmem:[#allocation11 + $0x60] sm:$0xff]
    %v4638 = vld [vmem:[#allocation11 + $0x70] sm:$0xff]
    %v4639 = vld [vmem:[#allocation11 + $0x78] sm:$0xff]
    %v4640 = vld [vmem:[#allocation11 + $0xa0] sm:$0xff]
    %v4641 = vld [vmem:[#allocation11 + $0xb0] sm:$0xff]
    %v4642 = vld [vmem:[#allocation11 + $0xb8] sm:$0xff]
    %v4643 = vld [vmem:[#allocation11 + $0xe0] sm:$0xff]
    %v4644 = vld [vmem:[#allocation11 + $0xf0] sm:$0xff]
    %v4645 = vld [vmem:[#allocation11 + $0xf8] sm:$0xff]
    %v4646 = vld [vmem:[#allocation11 + $0x120] sm:$0xff]
    %v4647 = vld [vmem:[#allocation11 + $0x130] sm:$0xff]
    %v4648 = vld [vmem:[#allocation11 + $0x138] sm:$0xff]
    %v4649 = vld [vmem:[#allocation11 + $0x160] sm:$0xff]
    %v4650 = vld [vmem:[#allocation11 + $0x170] sm:$0xff]
    %v4651 = vld [vmem:[#allocation11 + $0x178] sm:$0xff]
    %v4652 = vld [vmem:[#allocation11 + $0x1a0] sm:$0xff]
    %v4653 = vld [vmem:[#allocation11 + $0x1b0] sm:$0xff]
    %v4654 = vld [vmem:[#allocation11 + $0x1b8] sm:$0xff]
    %v4655 = vld [vmem:[#allocation11 + $0x1e0] sm:$0xff]
    %v4656 = vld [vmem:[#allocation11 + $0x1f0] sm:$0xff]
    %v4657 = vld [vmem:[#allocation11 + $0x1f8] sm:$0xff]
    %v4658 = vld [vmem:[#allocation11 + $0x220] sm:$0xff]
    %v4659 = vld [vmem:[#allocation11 + $0x230] sm:$0xff]
    %v4660 = vld [vmem:[#allocation11 + $0x238] sm:$0xff]
    %v4661 = vld [vmem:[#allocation11 + $0x260] sm:$0xff]
    %v4662 = vld [vmem:[#allocation11 + $0x270] sm:$0xff]
    %v4663 = vld [vmem:[#allocation11 + $0x278] sm:$0xff]
    %v4664 = vld [vmem:[#allocation11 + $0x2a0] sm:$0xff]
    %v4665 = vld [vmem:[#allocation11 + $0x2b0] sm:$0xff]
    %v4666 = vld [vmem:[#allocation11 + $0x2b8] sm:$0xff]
    %v4667 = vld [vmem:[#allocation11 + $0x2e0] sm:$0xff]
    %v4668 = vld [vmem:[#allocation11 + $0x2f0] sm:$0xff]
    %v4669 = vld [vmem:[#allocation11 + $0x2f8] sm:$0xff]
    %v4670 = vld [vmem:[#allocation11 + $0x320] sm:$0xff]
    %v4671 = vld [vmem:[#allocation11 + $0x330] sm:$0xff]
    %v4672 = vld [vmem:[#allocation11 + $0x338] sm:$0xff]
    %v4673 = vld [vmem:[#allocation11 + $0x360] sm:$0xff]
    %v4674 = vld [vmem:[#allocation11 + $0x370] sm:$0xff]
    %v4675 = vld [vmem:[#allocation11 + $0x378] sm:$0xff]
    %v4676 = vld [vmem:[#allocation11 + $0x3a0] sm:$0xff]
    %v4677 = vld [vmem:[#allocation11 + $0x3b0] sm:$0xff]
    %v4678 = vld [vmem:[#allocation11 + $0x3b8] sm:$0xff]
    %v4679 = vld [vmem:[#allocation11 + $0x3e0] sm:$0xff]
    %v4680 = vld [vmem:[#allocation11 + $0x3f0] sm:$0xff]
    %v4681 = vld [vmem:[#allocation11 + $0x3f8] sm:$0xff]
    %v4682 = vld [vmem:[#allocation11 + $0x420] sm:$0xff]
    %v4683 = vld [vmem:[#allocation11 + $0x430] sm:$0xff]
    %v4684 = vld [vmem:[#allocation11 + $0x438] sm:$0xff]
    %v4685 = vld [vmem:[#allocation11 + $0x460] sm:$0xff]
    %v4686 = vld [vmem:[#allocation11 + $0x470] sm:$0xff]
    %v4687 = vld [vmem:[#allocation11 + $0x478] sm:$0xff]
    %v4688 = vld [vmem:[#allocation11 + $0x4a0] sm:$0xff]
    %v4689 = vld [vmem:[#allocation11 + $0x4b0] sm:$0xff]
    %v4690 = vld [vmem:[#allocation11 + $0x4b8] sm:$0xff]
    %v4691 = vld [vmem:[#allocation11 + $0x4e0] sm:$0xff]
    %v4692 = vld [vmem:[#allocation11 + $0x4f0] sm:$0xff]
    %v4693 = vld [vmem:[#allocation11 + $0x4f8] sm:$0xff]
    %v4694 = vld [vmem:[#allocation11 + $0x520] sm:$0xff]
    %v4695 = vld [vmem:[#allocation11 + $0x530] sm:$0xff]
    %v4696 = vld [vmem:[#allocation11 + $0x538] sm:$0xff]
    %v4697 = vld [vmem:[#allocation11 + $0x560] sm:$0xff]
    %v4698 = vld [vmem:[#allocation11 + $0x570] sm:$0xff]
    %v4699 = vld [vmem:[#allocation11 + $0x578] sm:$0xff]
    %v4700 = vld [vmem:[#allocation11 + $0x5a0] sm:$0xff]
    %v4701 = vld [vmem:[#allocation11 + $0x5b0] sm:$0xff]
    %v4702 = vld [vmem:[#allocation11 + $0x5b8] sm:$0xff]
    %v4703 = vld [vmem:[#allocation11 + $0x5e0] sm:$0xff]
    %v4704 = vld [vmem:[#allocation11 + $0x5f0] sm:$0xff]
    %v4705 = vld [vmem:[#allocation11 + $0x5f8] sm:$0xff]
    %v4706 = vld [vmem:[#allocation11 + $0x620] sm:$0xff]
    %v4707 = vld [vmem:[#allocation11 + $0x630] sm:$0xff]
    %v4708 = vld [vmem:[#allocation11 + $0x638] sm:$0xff]
    %v4709 = vld [vmem:[#allocation11 + $0x660] sm:$0xff]
    %v4710 = vld [vmem:[#allocation11 + $0x670] sm:$0xff]
    %v4711 = vld [vmem:[#allocation11 + $0x678] sm:$0xff]
    %v4712 = vld [vmem:[#allocation11 + $0x6a0] sm:$0xff]
    %v4713 = vld [vmem:[#allocation11 + $0x6b0] sm:$0xff]
    %v4714 = vld [vmem:[#allocation11 + $0x6b8] sm:$0xff]
    %v4715 = vld [vmem:[#allocation11 + $0x6e0] sm:$0xff]
    %v4716 = vld [vmem:[#allocation11 + $0x6f0] sm:$0xff]
    %v4717 = vld [vmem:[#allocation11 + $0x6f8] sm:$0xff]
    %v4718 = vld [vmem:[#allocation11 + $0x720] sm:$0xff]
    %v4719 = vld [vmem:[#allocation11 + $0x730] sm:$0xff]
    %v4720 = vld [vmem:[#allocation11 + $0x738] sm:$0xff]
    %v4721 = vld [vmem:[#allocation11 + $0x760] sm:$0xff]
    %v4722 = vld [vmem:[#allocation11 + $0x770] sm:$0xff]
    %v4723 = vld [vmem:[#allocation11 + $0x778] sm:$0xff]
    %v4724 = vld [vmem:[#allocation11 + $0x7a0] sm:$0xff]
    %v4725 = vld [vmem:[#allocation11 + $0x7b0] sm:$0xff]
    %v4726 = vld [vmem:[#allocation11 + $0x7b8] sm:$0xff]
    %v4727 = vld [vmem:[#allocation11 + $0x7e0] sm:$0xff]
    %v4728 = vld [vmem:[#allocation11 + $0x7f0] sm:$0xff]
    %v4729 = vld [vmem:[#allocation11 + $0x7f8] sm:$0xff]
    %4730 = vmatpush.msra.mxu0 %v4727
    %4731 = vmatpush.msra.mxu0 %v4724
    %4732 = vmatpush.msra.mxu0 %v4721
    %4733 = vmatpush.msra.mxu0 %v4718
    %4734 = vmatpush.msra.mxu0 %v4715
    %4735 = vmatpush.msra.mxu0 %v4712
    %4736 = vmatpush.msra.mxu0 %v4709
    %4737 = vmatpush.msra.mxu0 %v4706
    %4738 = vmatpush.msra.mxu0 %v4703
    %4739 = vmatpush.msra.mxu0 %v4700
    %4740 = vmatpush.msra.mxu0 %v4697
    %4741 = vmatpush.msra.mxu0 %v4694
    %4742 = vmatpush.msra.mxu0 %v4691
    %4743 = vmatpush.msra.mxu0 %v4688
    %4744 = vmatpush.msra.mxu0 %v4685
    %4745 = vmatpush.msra.mxu0 %v4682
    %4746 = vmatmul.f32.gmra.mxu0 %v4103
    %v4747 = vpop.f32.mrf.mxu0
    %v4748 = vadd.f32 0.0, %v4747
    %4749 = vdwg.mxu0
    %4750 = vmatpush.msra.mxu0 %v4728
    %4751 = vmatpush.msra.mxu0 %v4725
    %4752 = vmatpush.msra.mxu0 %v4722
    %4753 = vmatpush.msra.mxu0 %v4719
    %4754 = vmatpush.msra.mxu0 %v4716
    %4755 = vmatpush.msra.mxu0 %v4713
    %4756 = vmatpush.msra.mxu0 %v4710
    %4757 = vmatpush.msra.mxu0 %v4707
    %4758 = vmatpush.msra.mxu0 %v4704
    %4759 = vmatpush.msra.mxu0 %v4701
    %4760 = vmatpush.msra.mxu0 %v4698
    %4761 = vmatpush.msra.mxu0 %v4695
    %4762 = vmatpush.msra.mxu0 %v4692
    %4763 = vmatpush.msra.mxu0 %v4689
    %4764 = vmatpush.msra.mxu0 %v4686
    %4765 = vmatpush.msra.mxu0 %v4683
    %4766 = vmatmul.f32.gmra.mxu0 %v4103
    %v4767 = vpop.f32.mrf.mxu0
    %v4768 = vadd.f32 0.0, %v4767
    %4769 = vdwg.mxu0
    %4770 = vmatpush.msra.mxu0 %v4729
    %4771 = vmatpush.msra.mxu0 %v4726
    %4772 = vmatpush.msra.mxu0 %v4723
    %4773 = vmatpush.msra.mxu0 %v4720
    %4774 = vmatpush.msra.mxu0 %v4717
    %4775 = vmatpush.msra.mxu0 %v4714
    %4776 = vmatpush.msra.mxu0 %v4711
    %4777 = vmatpush.msra.mxu0 %v4708
    %4778 = vmatpush.msra.mxu0 %v4705
    %4779 = vmatpush.msra.mxu0 %v4702
    %4780 = vmatpush.msra.mxu0 %v4699
    %4781 = vmatpush.msra.mxu0 %v4696
    %4782 = vmatpush.msra.mxu0 %v4693
    %4783 = vmatpush.msra.mxu0 %v4690
    %4784 = vmatpush.msra.mxu0 %v4687
    %4785 = vmatpush.msra.mxu0 %v4684
    %4786 = vmatmul.f32.gmra.mxu0 %v4103
    %v4787 = vpop.f32.mrf.mxu0
    %v4788 = vadd.f32 0.0, %v4787
    %4789 = vdwg.mxu0
    %4790 = vmatpush.msra.mxu0 %v4679
    %4791 = vmatpush.msra.mxu0 %v4676
    %4792 = vmatpush.msra.mxu0 %v4673
    %4793 = vmatpush.msra.mxu0 %v4670
    %4794 = vmatpush.msra.mxu0 %v4667
    %4795 = vmatpush.msra.mxu0 %v4664
    %4796 = vmatpush.msra.mxu0 %v4661
    %4797 = vmatpush.msra.mxu0 %v4658
    %4798 = vmatpush.msra.mxu0 %v4655
    %4799 = vmatpush.msra.mxu0 %v4652
    %4800 = vmatpush.msra.mxu0 %v4649
    %4801 = vmatpush.msra.mxu0 %v4646
    %4802 = vmatpush.msra.mxu0 %v4643
    %4803 = vmatpush.msra.mxu0 %v4640
    %4804 = vmatpush.msra.mxu0 %v4637
    %4805 = vmatpush.msra.mxu0 %v4634
    %4806 = vmatmul.f32.gmra.mxu0 %v4095
    %v4807 = vpop.f32.mrf.mxu0
    %v4808 = vadd.f32 %v4748, %v4807
    %4809 = vdwg.mxu0
    %4810 = vmatpush.msra.mxu0 %v4680
    %4811 = vmatpush.msra.mxu0 %v4677
    %4812 = vmatpush.msra.mxu0 %v4674
    %4813 = vmatpush.msra.mxu0 %v4671
    %4814 = vmatpush.msra.mxu0 %v4668
    %4815 = vmatpush.msra.mxu0 %v4665
    %4816 = vmatpush.msra.mxu0 %v4662
    %4817 = vmatpush.msra.mxu0 %v4659
    %4818 = vmatpush.msra.mxu0 %v4656
    %4819 = vmatpush.msra.mxu0 %v4653
    %4820 = vmatpush.msra.mxu0 %v4650
    %4821 = vmatpush.msra.mxu0 %v4647
    %4822 = vmatpush.msra.mxu0 %v4644
    %4823 = vmatpush.msra.mxu0 %v4641
    %4824 = vmatpush.msra.mxu0 %v4638
    %4825 = vmatpush.msra.mxu0 %v4635
    %4826 = vmatmul.f32.gmra.mxu0 %v4095
    %v4827 = vpop.f32.mrf.mxu0
    %v4828 = vadd.f32 %v4768, %v4827
    %4829 = vdwg.mxu0
    %4830 = vmatpush.msra.mxu0 %v4681
    %4831 = vmatpush.msra.mxu0 %v4678
    %4832 = vmatpush.msra.mxu0 %v4675
    %4833 = vmatpush.msra.mxu0 %v4672
    %4834 = vmatpush.msra.mxu0 %v4669
    %4835 = vmatpush.msra.mxu0 %v4666
    %4836 = vmatpush.msra.mxu0 %v4663
    %4837 = vmatpush.msra.mxu0 %v4660
    %4838 = vmatpush.msra.mxu0 %v4657
    %4839 = vmatpush.msra.mxu0 %v4654
    %4840 = vmatpush.msra.mxu0 %v4651
    %4841 = vmatpush.msra.mxu0 %v4648
    %4842 = vmatpush.msra.mxu0 %v4645
    %4843 = vmatpush.msra.mxu0 %v4642
    %4844 = vmatpush.msra.mxu0 %v4639
    %4845 = vmatpush.msra.mxu0 %v4636
    %4846 = vmatmul.f32.gmra.mxu0 %v4095
    %v4847 = vpop.f32.mrf.mxu0
    %v4848 = vadd.f32 %v4788, %v4847
    %4849 = vdwg.mxu0
    %v4850 = vld [vmem:[%s8 + $0x4] sm:$0xf]
    %v4852 = vperm.slane %v4850, 0
    %v4853 = vperm.slane %v4850, 2
    %v4854 = vperm.slane %v4850, 3
    %v4858 = vadd.f32 %v4808, %v4852
    %v4859 = vadd.f32 %v4828, %v4853
    %v4860 = vadd.f32 %v4848, %v4854
    %v4861 = vld [vmem:[%s580] sm:$0xff]
    %v4862 = vld [vmem:[%s580 + $0x8] sm:$0xff]
    %v4863 = vld [vmem:[%s580 + $0x10] sm:$0xff]
    %v4864 = vld [vmem:[%s580 + $0x18] sm:$0xff]
    %v4865 = vld [vmem:[#allocation12] sm:$0xff]
    %v4866 = vld [vmem:[#allocation12 + $0x8] sm:$0xff]
    %v4867 = vld [vmem:[#allocation12 + $0x10] sm:$0xff]
    %v4868 = vld [vmem:[#allocation12 + $0x18] sm:$0xff]
    %v4869 = vld [vmem:[#allocation12 + $0x20] sm:$0xff]
    %v4870 = vld [vmem:[#allocation12 + $0x28] sm:$0xff]
    %v4871 = vld [vmem:[#allocation12 + $0x30] sm:$0xff]
    %v4872 = vld [vmem:[#allocation12 + $0x38] sm:$0xff]
    %v4873 = vld [vmem:[#allocation12 + $0x40] sm:$0xff]
    %v4874 = vld [vmem:[#allocation12 + $0x48] sm:$0xff]
    %v4875 = vld [vmem:[#allocation12 + $0x50] sm:$0xff]
    %v4876 = vld [vmem:[#allocation12 + $0x58] sm:$0xff]
    %v4877 = vld [vmem:[#allocation12 + $0x60] sm:$0xff]
    %v4878 = vld [vmem:[#allocation12 + $0x68] sm:$0xff]
    %v4879 = vld [vmem:[#allocation12 + $0x70] sm:$0xff]
    %v4880 = vld [vmem:[#allocation12 + $0x78] sm:$0xff]
    %v4881 = vld [vmem:[#allocation12 + $0x80] sm:$0xff]
    %v4882 = vld [vmem:[#allocation12 + $0x88] sm:$0xff]
    %v4883 = vld [vmem:[#allocation12 + $0x90] sm:$0xff]
    %v4884 = vld [vmem:[#allocation12 + $0x98] sm:$0xff]
    %v4885 = vld [vmem:[#allocation12 + $0xa0] sm:$0xff]
    %v4886 = vld [vmem:[#allocation12 + $0xa8] sm:$0xff]
    %v4887 = vld [vmem:[#allocation12 + $0xb0] sm:$0xff]
    %v4888 = vld [vmem:[#allocation12 + $0xb8] sm:$0xff]
    %v4889 = vld [vmem:[#allocation12 + $0xc0] sm:$0xff]
    %v4890 = vld [vmem:[#allocation12 + $0xc8] sm:$0xff]
    %v4891 = vld [vmem:[#allocation12 + $0xd0] sm:$0xff]
    %v4892 = vld [vmem:[#allocation12 + $0xd8] sm:$0xff]
    %v4893 = vld [vmem:[#allocation12 + $0xe0] sm:$0xff]
    %v4894 = vld [vmem:[#allocation12 + $0xe8] sm:$0xff]
    %v4895 = vld [vmem:[#allocation12 + $0xf0] sm:$0xff]
    %v4896 = vld [vmem:[#allocation12 + $0xf8] sm:$0xff]
    %v4897 = vld [vmem:[#allocation12 + $0x100] sm:$0xff]
    %v4898 = vld [vmem:[#allocation12 + $0x108] sm:$0xff]
    %v4899 = vld [vmem:[#allocation12 + $0x110] sm:$0xff]
    %v4900 = vld [vmem:[#allocation12 + $0x118] sm:$0xff]
    %v4901 = vld [vmem:[#allocation12 + $0x120] sm:$0xff]
    %v4902 = vld [vmem:[#allocation12 + $0x128] sm:$0xff]
    %v4903 = vld [vmem:[#allocation12 + $0x130] sm:$0xff]
    %v4904 = vld [vmem:[#allocation12 + $0x138] sm:$0xff]
    %v4905 = vld [vmem:[#allocation12 + $0x140] sm:$0xff]
    %v4906 = vld [vmem:[#allocation12 + $0x148] sm:$0xff]
    %v4907 = vld [vmem:[#allocation12 + $0x150] sm:$0xff]
    %v4908 = vld [vmem:[#allocation12 + $0x158] sm:$0xff]
    %v4909 = vld [vmem:[#allocation12 + $0x160] sm:$0xff]
    %v4910 = vld [vmem:[#allocation12 + $0x168] sm:$0xff]
    %v4911 = vld [vmem:[#allocation12 + $0x170] sm:$0xff]
    %v4912 = vld [vmem:[#allocation12 + $0x178] sm:$0xff]
    %v4913 = vld [vmem:[#allocation12 + $0x180] sm:$0xff]
    %v4914 = vld [vmem:[#allocation12 + $0x188] sm:$0xff]
    %v4915 = vld [vmem:[#allocation12 + $0x190] sm:$0xff]
    %v4916 = vld [vmem:[#allocation12 + $0x198] sm:$0xff]
    %v4917 = vld [vmem:[#allocation12 + $0x1a0] sm:$0xff]
    %v4918 = vld [vmem:[#allocation12 + $0x1a8] sm:$0xff]
    %v4919 = vld [vmem:[#allocation12 + $0x1b0] sm:$0xff]
    %v4920 = vld [vmem:[#allocation12 + $0x1b8] sm:$0xff]
    %v4921 = vld [vmem:[#allocation12 + $0x1c0] sm:$0xff]
    %v4922 = vld [vmem:[#allocation12 + $0x1c8] sm:$0xff]
    %v4923 = vld [vmem:[#allocation12 + $0x1d0] sm:$0xff]
    %v4924 = vld [vmem:[#allocation12 + $0x1d8] sm:$0xff]
    %v4925 = vld [vmem:[#allocation12 + $0x1e0] sm:$0xff]
    %v4926 = vld [vmem:[#allocation12 + $0x1e8] sm:$0xff]
    %v4927 = vld [vmem:[#allocation12 + $0x1f0] sm:$0xff]
    %v4928 = vld [vmem:[#allocation12 + $0x1f8] sm:$0xff]
    %4929 = vmatpush.msra.mxu0 %v4925
    %4930 = vmatpush.msra.mxu0 %v4921
    %4931 = vmatpush.msra.mxu0 %v4917
    %4932 = vmatpush.msra.mxu0 %v4913
    %4933 = vmatpush.msra.mxu0 %v4909
    %4934 = vmatpush.msra.mxu0 %v4905
    %4935 = vmatpush.msra.mxu0 %v4901
    %4936 = vmatpush.msra.mxu0 %v4897
    %4937 = vmatpush.msra.mxu0 %v4893
    %4938 = vmatpush.msra.mxu0 %v4889
    %4939 = vmatpush.msra.mxu0 %v4885
    %4940 = vmatpush.msra.mxu0 %v4881
    %4941 = vmatpush.msra.mxu0 %v4877
    %4942 = vmatpush.msra.mxu0 %v4873
    %4943 = vmatpush.msra.mxu0 %v4869
    %4944 = vmatpush.msra.mxu0 %v4865
    %4945 = vmatmul.f32.gmra.mxu0 0.0
    %v4946 = vpop.f32.mrf.mxu0
    %v4947 = vadd.f32 0.0, %v4946
    %4948 = vdwg.mxu0
    %4949 = vmatpush.msra.mxu0 %v4926
    %4950 = vmatpush.msra.mxu0 %v4922
    %4951 = vmatpush.msra.mxu0 %v4918
    %4952 = vmatpush.msra.mxu0 %v4914
    %4953 = vmatpush.msra.mxu0 %v4910
    %4954 = vmatpush.msra.mxu0 %v4906
    %4955 = vmatpush.msra.mxu0 %v4902
    %4956 = vmatpush.msra.mxu0 %v4898
    %4957 = vmatpush.msra.mxu0 %v4894
    %4958 = vmatpush.msra.mxu0 %v4890
    %4959 = vmatpush.msra.mxu0 %v4886
    %4960 = vmatpush.msra.mxu0 %v4882
    %4961 = vmatpush.msra.mxu0 %v4878
    %4962 = vmatpush.msra.mxu0 %v4874
    %4963 = vmatpush.msra.mxu0 %v4870
    %4964 = vmatpush.msra.mxu0 %v4866
    %4965 = vmatmul.f32.gmra.mxu0 0.0
    %v4966 = vpop.f32.mrf.mxu0
    %v4967 = vadd.f32 0.0, %v4966
    %4968 = vdwg.mxu0
    %4969 = vmatpush.msra.mxu0 %v4927
    %4970 = vmatpush.msra.mxu0 %v4923
    %4971 = vmatpush.msra.mxu0 %v4919
    %4972 = vmatpush.msra.mxu0 %v4915
    %4973 = vmatpush.msra.mxu0 %v4911
    %4974 = vmatpush.msra.mxu0 %v4907
    %4975 = vmatpush.msra.mxu0 %v4903
    %4976 = vmatpush.msra.mxu0 %v4899
    %4977 = vmatpush.msra.mxu0 %v4895
    %4978 = vmatpush.msra.mxu0 %v4891
    %4979 = vmatpush.msra.mxu0 %v4887
    %4980 = vmatpush.msra.mxu0 %v4883
    %4981 = vmatpush.msra.mxu0 %v4879
    %4982 = vmatpush.msra.mxu0 %v4875
    %4983 = vmatpush.msra.mxu0 %v4871
    %4984 = vmatpush.msra.mxu0 %v4867
    %4985 = vmatmul.f32.gmra.mxu0 0.0
    %v4986 = vpop.f32.mrf.mxu0
    %v4987 = vadd.f32 0.0, %v4986
    %4988 = vdwg.mxu0
    %4989 = vmatpush.msra.mxu0 %v4928
    %4990 = vmatpush.msra.mxu0 %v4924
    %4991 = vmatpush.msra.mxu0 %v4920
    %4992 = vmatpush.msra.mxu0 %v4916
    %4993 = vmatpush.msra.mxu0 %v4912
    %4994 = vmatpush.msra.mxu0 %v4908
    %4995 = vmatpush.msra.mxu0 %v4904
    %4996 = vmatpush.msra.mxu0 %v4900
    %4997 = vmatpush.msra.mxu0 %v4896
    %4998 = vmatpush.msra.mxu0 %v4892
    %4999 = vmatpush.msra.mxu0 %v4888
    %5000 = vmatpush.msra.mxu0 %v4884
    %5001 = vmatpush.msra.mxu0 %v4880
    %5002 = vmatpush.msra.mxu0 %v4876
    %5003 = vmatpush.msra.mxu0 %v4872
    %5004 = vmatpush.msra.mxu0 %v4868
    %5005 = vmatmul.f32.gmra.mxu0 0.0
    %v5006 = vpop.f32.mrf.mxu0
    %v5007 = vadd.f32 0.0, %v5006
    %5008 = vdwg.mxu0
    %v5009 = vadd.f32 %v4861, %v4947
    %v5010 = vadd.f32 %v4862, %v4967
    %v5011 = vadd.f32 %v4863, %v4987
    %v5012 = vadd.f32 %v4864, %v5007
    %v5013 = vxor.u32 %v5009, 2147483648
    %v5014 = vxor.u32 %v5010, 2147483648
    %v5015 = vxor.u32 %v5011, 2147483648
    %v5016 = vmul.f32 %v5013, 1.442695
    %v5017 = vpow.pop %v5016
    %v5018 = vmul.f32 %v5014, 1.442695
    %v5019 = vpow.pop %v5018
    %v5020 = vmul.f32 %v5015, 1.442695
    %v5021 = vpow.pop %v5020
    %v5022 = vadd.f32 %v5017, 1.0
    %v5023 = vadd.f32 %v5019, 1.0
    %v5024 = vadd.f32 %v5021, 1.0
    %v5025 = vrcp.pop %v5022
    %v5026 = vmul.f32 %v5022, %v5025
    %v5027 = vsub.f32 1.0, %v5026
    %v5028 = vmul.f32 %v5025, %v5027
    %v5029 = vadd.f32 %v5025, %v5028
    %vm5030 = vweird.f32 %v5022
    %vm5031 = vweird.f32 %v5025
    %vm5032 = vmor %vm5030, %vm5031
    %v5033 = vsel %vm5032, %v5025, %v5029
    %v5034 = vand.u32 2147483647, %v5022
    %vm5035 = vcmp.eq.f32.partialorder %v5034, 8.507059e+37
    %v5036 = vand.u32 %v5022, 2147483648
    %v5037 = vor.u32 1.1754944e-38, %v5036
    %v5038 = vsel %vm5035, %v5037, %v5033
    %v5039 = vmul.f32 1.0, %v5038
    %v5040 = vrcp.pop %v5023
    %v5041 = vmul.f32 %v5023, %v5040
    %v5042 = vsub.f32 1.0, %v5041
    %v5043 = vmul.f32 %v5040, %v5042
    %v5044 = vadd.f32 %v5040, %v5043
    %vm5045 = vweird.f32 %v5023
    %vm5046 = vweird.f32 %v5040
    %vm5047 = vmor %vm5045, %vm5046
    %v5048 = vsel %vm5047, %v5040, %v5044
    %v5049 = vand.u32 2147483647, %v5023
    %vm5050 = vcmp.eq.f32.partialorder %v5049, 8.507059e+37
    %v5051 = vand.u32 %v5023, 2147483648
    %v5052 = vor.u32 1.1754944e-38, %v5051
    %v5053 = vsel %vm5050, %v5052, %v5048
    %v5054 = vmul.f32 1.0, %v5053
    %v5055 = vrcp.pop %v5024
    %v5056 = vmul.f32 %v5024, %v5055
    %v5057 = vsub.f32 1.0, %v5056
    %v5058 = vmul.f32 %v5055, %v5057
    %v5059 = vadd.f32 %v5055, %v5058
    %vm5060 = vweird.f32 %v5024
    %vm5061 = vweird.f32 %v5055
    %vm5062 = vmor %vm5060, %vm5061
    %v5063 = vsel %vm5062, %v5055, %v5059
    %v5064 = vand.u32 2147483647, %v5024
    %vm5065 = vcmp.eq.f32.partialorder %v5064, 8.507059e+37
    %v5066 = vand.u32 %v5024, 2147483648
    %v5067 = vor.u32 1.1754944e-38, %v5066
    %v5068 = vsel %vm5065, %v5067, %v5063
    %v5069 = vmul.f32 1.0, %v5068
    %v5070 = vtanh.pop %v5012
    %v5071 = vmul.f32 %v5054, 0.0
    %v5072 = vmul.f32 %v5039, %v5070
    %v5073 = vadd.f32 %v5071, %v5072
    %v5074 = vtanh.pop %v5073
    %v5075 = vmul.f32 %v5069, %v5074
    %v5076 = vld [vmem:[%s1019] sm:$0xff]
    %v5077 = vld [vmem:[%s1019 + $0x8] sm:$0xff]
    %v5078 = vld [vmem:[%s1019 + $0x10] sm:$0xff]
    %v5079 = vld [vmem:[%s1019 + $0x18] sm:$0xff]
    %5080 = vmatpush.msra.mxu0 %v4925
    %5081 = vmatpush.msra.mxu0 %v4921
    %5082 = vmatpush.msra.mxu0 %v4917
    %5083 = vmatpush.msra.mxu0 %v4913
    %5084 = vmatpush.msra.mxu0 %v4909
    %5085 = vmatpush.msra.mxu0 %v4905
    %5086 = vmatpush.msra.mxu0 %v4901
    %5087 = vmatpush.msra.mxu0 %v4897
    %5088 = vmatpush.msra.mxu0 %v4893
    %5089 = vmatpush.msra.mxu0 %v4889
    %5090 = vmatpush.msra.mxu0 %v4885
    %5091 = vmatpush.msra.mxu0 %v4881
    %5092 = vmatpush.msra.mxu0 %v4877
    %5093 = vmatpush.msra.mxu0 %v4873
    %5094 = vmatpush.msra.mxu0 %v4869
    %5095 = vmatpush.msra.mxu0 %v4865
    %5096 = vmatmul.f32.gmra.mxu0 %v5075
    %v5097 = vpop.f32.mrf.mxu0
    %v5098 = vadd.f32 0.0, %v5097
    %5099 = vdwg.mxu0
    %5100 = vmatpush.msra.mxu0 %v4926
    %5101 = vmatpush.msra.mxu0 %v4922
    %5102 = vmatpush.msra.mxu0 %v4918
    %5103 = vmatpush.msra.mxu0 %v4914
    %5104 = vmatpush.msra.mxu0 %v4910
    %5105 = vmatpush.msra.mxu0 %v4906
    %5106 = vmatpush.msra.mxu0 %v4902
    %5107 = vmatpush.msra.mxu0 %v4898
    %5108 = vmatpush.msra.mxu0 %v4894
    %5109 = vmatpush.msra.mxu0 %v4890
    %5110 = vmatpush.msra.mxu0 %v4886
    %5111 = vmatpush.msra.mxu0 %v4882
    %5112 = vmatpush.msra.mxu0 %v4878
    %5113 = vmatpush.msra.mxu0 %v4874
    %5114 = vmatpush.msra.mxu0 %v4870
    %5115 = vmatpush.msra.mxu0 %v4866
    %5116 = vmatmul.f32.gmra.mxu0 %v5075
    %v5117 = vpop.f32.mrf.mxu0
    %v5118 = vadd.f32 0.0, %v5117
    %5119 = vdwg.mxu0
    %5120 = vmatpush.msra.mxu0 %v4927
    %5121 = vmatpush.msra.mxu0 %v4923
    %5122 = vmatpush.msra.mxu0 %v4919
    %5123 = vmatpush.msra.mxu0 %v4915
    %5124 = vmatpush.msra.mxu0 %v4911
    %5125 = vmatpush.msra.mxu0 %v4907
    %5126 = vmatpush.msra.mxu0 %v4903
    %5127 = vmatpush.msra.mxu0 %v4899
    %5128 = vmatpush.msra.mxu0 %v4895
    %5129 = vmatpush.msra.mxu0 %v4891
    %5130 = vmatpush.msra.mxu0 %v4887
    %5131 = vmatpush.msra.mxu0 %v4883
    %5132 = vmatpush.msra.mxu0 %v4879
    %5133 = vmatpush.msra.mxu0 %v4875
    %5134 = vmatpush.msra.mxu0 %v4871
    %5135 = vmatpush.msra.mxu0 %v4867
    %5136 = vmatmul.f32.gmra.mxu0 %v5075
    %v5137 = vpop.f32.mrf.mxu0
    %v5138 = vadd.f32 0.0, %v5137
    %5139 = vdwg.mxu0
    %5140 = vmatpush.msra.mxu0 %v4928
    %5141 = vmatpush.msra.mxu0 %v4924
    %5142 = vmatpush.msra.mxu0 %v4920
    %5143 = vmatpush.msra.mxu0 %v4916
    %5144 = vmatpush.msra.mxu0 %v4912
    %5145 = vmatpush.msra.mxu0 %v4908
    %5146 = vmatpush.msra.mxu0 %v4904
    %5147 = vmatpush.msra.mxu0 %v4900
    %5148 = vmatpush.msra.mxu0 %v4896
    %5149 = vmatpush.msra.mxu0 %v4892
    %5150 = vmatpush.msra.mxu0 %v4888
    %5151 = vmatpush.msra.mxu0 %v4884
    %5152 = vmatpush.msra.mxu0 %v4880
    %5153 = vmatpush.msra.mxu0 %v4876
    %5154 = vmatpush.msra.mxu0 %v4872
    %5155 = vmatpush.msra.mxu0 %v4868
    %5156 = vmatmul.f32.gmra.mxu0 %v5075
    %v5157 = vpop.f32.mrf.mxu0
    %v5158 = vadd.f32 0.0, %v5157
    %5159 = vdwg.mxu0
    %v5160 = vadd.f32 %v5076, %v5098
    %v5161 = vadd.f32 %v5077, %v5118
    %v5162 = vadd.f32 %v5078, %v5138
    %v5163 = vadd.f32 %v5079, %v5158
    %v5164 = vxor.u32 %v5160, 2147483648
    %v5165 = vxor.u32 %v5161, 2147483648
    %v5166 = vxor.u32 %v5162, 2147483648
    %v5167 = vmul.f32 %v5164, 1.442695
    %v5168 = vpow.pop %v5167
    %v5169 = vmul.f32 %v5165, 1.442695
    %v5170 = vpow.pop %v5169
    %v5171 = vmul.f32 %v5166, 1.442695
    %v5172 = vpow.pop %v5171
    %v5173 = vadd.f32 %v5168, 1.0
    %v5174 = vadd.f32 %v5170, 1.0
    %v5175 = vadd.f32 %v5172, 1.0
    %v5176 = vrcp.pop %v5173
    %v5177 = vmul.f32 %v5173, %v5176
    %v5178 = vsub.f32 1.0, %v5177
    %v5179 = vmul.f32 %v5176, %v5178
    %v5180 = vadd.f32 %v5176, %v5179
    %vm5181 = vweird.f32 %v5173
    %vm5182 = vweird.f32 %v5176
    %vm5183 = vmor %vm5181, %vm5182
    %v5184 = vsel %vm5183, %v5176, %v5180
    %v5185 = vand.u32 2147483647, %v5173
    %vm5186 = vcmp.eq.f32.partialorder %v5185, 8.507059e+37
    %v5187 = vand.u32 %v5173, 2147483648
    %v5188 = vor.u32 1.1754944e-38, %v5187
    %v5189 = vsel %vm5186, %v5188, %v5184
    %v5190 = vmul.f32 1.0, %v5189
    %v5191 = vrcp.pop %v5174
    %v5192 = vmul.f32 %v5174, %v5191
    %v5193 = vsub.f32 1.0, %v5192
    %v5194 = vmul.f32 %v5191, %v5193
    %v5195 = vadd.f32 %v5191, %v5194
    %vm5196 = vweird.f32 %v5174
    %vm5197 = vweird.f32 %v5191
    %vm5198 = vmor %vm5196, %vm5197
    %v5199 = vsel %vm5198, %v5191, %v5195
    %v5200 = vand.u32 2147483647, %v5174
    %vm5201 = vcmp.eq.f32.partialorder %v5200, 8.507059e+37
    %v5202 = vand.u32 %v5174, 2147483648
    %v5203 = vor.u32 1.1754944e-38, %v5202
    %v5204 = vsel %vm5201, %v5203, %v5199
    %v5205 = vmul.f32 1.0, %v5204
    %v5206 = vrcp.pop %v5175
    %v5207 = vmul.f32 %v5175, %v5206
    %v5208 = vsub.f32 1.0, %v5207
    %v5209 = vmul.f32 %v5206, %v5208
    %v5210 = vadd.f32 %v5206, %v5209
    %vm5211 = vweird.f32 %v5175
    %vm5212 = vweird.f32 %v5206
    %vm5213 = vmor %vm5211, %vm5212
    %v5214 = vsel %vm5213, %v5206, %v5210
    %v5215 = vand.u32 2147483647, %v5175
    %vm5216 = vcmp.eq.f32.partialorder %v5215, 8.507059e+37
    %v5217 = vand.u32 %v5175, 2147483648
    %v5218 = vor.u32 1.1754944e-38, %v5217
    %v5219 = vsel %vm5216, %v5218, %v5214
    %v5220 = vmul.f32 1.0, %v5219
    %v5221 = vtanh.pop %v5163
    %v5222 = vmul.f32 %v5205, %v5073
    %v5223 = vmul.f32 %v5190, %v5221
    %v5224 = vadd.f32 %v5222, %v5223
    %v5225 = vtanh.pop %v5224
    %v5226 = vmul.f32 %v5220, %v5225
    %v5227 = vld [vmem:[%s1459] sm:$0xff]
    %v5228 = vld [vmem:[%s1459 + $0x8] sm:$0xff]
    %v5229 = vld [vmem:[%s1459 + $0x10] sm:$0xff]
    %v5230 = vld [vmem:[%s1459 + $0x18] sm:$0xff]
    %5231 = vmatpush.msra.mxu0 %v4925
    %5232 = vmatpush.msra.mxu0 %v4921
    %5233 = vmatpush.msra.mxu0 %v4917
    %5234 = vmatpush.msra.mxu0 %v4913
    %5235 = vmatpush.msra.mxu0 %v4909
    %5236 = vmatpush.msra.mxu0 %v4905
    %5237 = vmatpush.msra.mxu0 %v4901
    %5238 = vmatpush.msra.mxu0 %v4897
    %5239 = vmatpush.msra.mxu0 %v4893
    %5240 = vmatpush.msra.mxu0 %v4889
    %5241 = vmatpush.msra.mxu0 %v4885
    %5242 = vmatpush.msra.mxu0 %v4881
    %5243 = vmatpush.msra.mxu0 %v4877
    %5244 = vmatpush.msra.mxu0 %v4873
    %5245 = vmatpush.msra.mxu0 %v4869
    %5246 = vmatpush.msra.mxu0 %v4865
    %5247 = vmatmul.f32.gmra.mxu0 %v5226
    %v5248 = vpop.f32.mrf.mxu0
    %v5249 = vadd.f32 0.0, %v5248
    %5250 = vdwg.mxu0
    %5251 = vmatpush.msra.mxu0 %v4926
    %5252 = vmatpush.msra.mxu0 %v4922
    %5253 = vmatpush.msra.mxu0 %v4918
    %5254 = vmatpush.msra.mxu0 %v4914
    %5255 = vmatpush.msra.mxu0 %v4910
    %5256 = vmatpush.msra.mxu0 %v4906
    %5257 = vmatpush.msra.mxu0 %v4902
    %5258 = vmatpush.msra.mxu0 %v4898
    %5259 = vmatpush.msra.mxu0 %v4894
    %5260 = vmatpush.msra.mxu0 %v4890
    %5261 = vmatpush.msra.mxu0 %v4886
    %5262 = vmatpush.msra.mxu0 %v4882
    %5263 = vmatpush.msra.mxu0 %v4878
    %5264 = vmatpush.msra.mxu0 %v4874
    %5265 = vmatpush.msra.mxu0 %v4870
    %5266 = vmatpush.msra.mxu0 %v4866
    %5267 = vmatmul.f32.gmra.mxu0 %v5226
    %v5268 = vpop.f32.mrf.mxu0
    %v5269 = vadd.f32 0.0, %v5268
    %5270 = vdwg.mxu0
    %5271 = vmatpush.msra.mxu0 %v4927
    %5272 = vmatpush.msra.mxu0 %v4923
    %5273 = vmatpush.msra.mxu0 %v4919
    %5274 = vmatpush.msra.mxu0 %v4915
    %5275 = vmatpush.msra.mxu0 %v4911
    %5276 = vmatpush.msra.mxu0 %v4907
    %5277 = vmatpush.msra.mxu0 %v4903
    %5278 = vmatpush.msra.mxu0 %v4899
    %5279 = vmatpush.msra.mxu0 %v4895
    %5280 = vmatpush.msra.mxu0 %v4891
    %5281 = vmatpush.msra.mxu0 %v4887
    %5282 = vmatpush.msra.mxu0 %v4883
    %5283 = vmatpush.msra.mxu0 %v4879
    %5284 = vmatpush.msra.mxu0 %v4875
    %5285 = vmatpush.msra.mxu0 %v4871
    %5286 = vmatpush.msra.mxu0 %v4867
    %5287 = vmatmul.f32.gmra.mxu0 %v5226
    %v5288 = vpop.f32.mrf.mxu0
    %v5289 = vadd.f32 0.0, %v5288
    %5290 = vdwg.mxu0
    %5291 = vmatpush.msra.mxu0 %v4928
    %5292 = vmatpush.msra.mxu0 %v4924
    %5293 = vmatpush.msra.mxu0 %v4920
    %5294 = vmatpush.msra.mxu0 %v4916
    %5295 = vmatpush.msra.mxu0 %v4912
    %5296 = vmatpush.msra.mxu0 %v4908
    %5297 = vmatpush.msra.mxu0 %v4904
    %5298 = vmatpush.msra.mxu0 %v4900
    %5299 = vmatpush.msra.mxu0 %v4896
    %5300 = vmatpush.msra.mxu0 %v4892
    %5301 = vmatpush.msra.mxu0 %v4888
    %5302 = vmatpush.msra.mxu0 %v4884
    %5303 = vmatpush.msra.mxu0 %v4880
    %5304 = vmatpush.msra.mxu0 %v4876
    %5305 = vmatpush.msra.mxu0 %v4872
    %5306 = vmatpush.msra.mxu0 %v4868
    %5307 = vmatmul.f32.gmra.mxu0 %v5226
    %v5308 = vpop.f32.mrf.mxu0
    %v5309 = vadd.f32 0.0, %v5308
    %5310 = vdwg.mxu0
    %v5311 = vadd.f32 %v5227, %v5249
    %v5312 = vadd.f32 %v5228, %v5269
    %v5313 = vadd.f32 %v5229, %v5289
    %v5314 = vadd.f32 %v5230, %v5309
    %v5315 = vxor.u32 %v5311, 2147483648
    %v5316 = vxor.u32 %v5312, 2147483648
    %v5317 = vxor.u32 %v5313, 2147483648
    %v5318 = vmul.f32 %v5315, 1.442695
    %v5319 = vpow.pop %v5318
    %v5320 = vmul.f32 %v5316, 1.442695
    %v5321 = vpow.pop %v5320
    %v5322 = vmul.f32 %v5317, 1.442695
    %v5323 = vpow.pop %v5322
    %v5324 = vadd.f32 %v5319, 1.0
    %v5325 = vadd.f32 %v5321, 1.0
    %v5326 = vadd.f32 %v5323, 1.0
    %v5327 = vrcp.pop %v5324
    %v5328 = vmul.f32 %v5324, %v5327
    %v5329 = vsub.f32 1.0, %v5328
    %v5330 = vmul.f32 %v5327, %v5329
    %v5331 = vadd.f32 %v5327, %v5330
    %vm5332 = vweird.f32 %v5324
    %vm5333 = vweird.f32 %v5327
    %vm5334 = vmor %vm5332, %vm5333
    %v5335 = vsel %vm5334, %v5327, %v5331
    %v5336 = vand.u32 2147483647, %v5324
    %vm5337 = vcmp.eq.f32.partialorder %v5336, 8.507059e+37
    %v5338 = vand.u32 %v5324, 2147483648
    %v5339 = vor.u32 1.1754944e-38, %v5338
    %v5340 = vsel %vm5337, %v5339, %v5335
    %v5341 = vmul.f32 1.0, %v5340
    %v5342 = vrcp.pop %v5325
    %v5343 = vmul.f32 %v5325, %v5342
    %v5344 = vsub.f32 1.0, %v5343
    %v5345 = vmul.f32 %v5342, %v5344
    %v5346 = vadd.f32 %v5342, %v5345
    %vm5347 = vweird.f32 %v5325
    %vm5348 = vweird.f32 %v5342
    %vm5349 = vmor %vm5347, %vm5348
    %v5350 = vsel %vm5349, %v5342, %v5346
    %v5351 = vand.u32 2147483647, %v5325
    %vm5352 = vcmp.eq.f32.partialorder %v5351, 8.507059e+37
    %v5353 = vand.u32 %v5325, 2147483648
    %v5354 = vor.u32 1.1754944e-38, %v5353
    %v5355 = vsel %vm5352, %v5354, %v5350
    %v5356 = vmul.f32 1.0, %v5355
    %v5357 = vrcp.pop %v5326
    %v5358 = vmul.f32 %v5326, %v5357
    %v5359 = vsub.f32 1.0, %v5358
    %v5360 = vmul.f32 %v5357, %v5359
    %v5361 = vadd.f32 %v5357, %v5360
    %vm5362 = vweird.f32 %v5326
    %vm5363 = vweird.f32 %v5357
    %vm5364 = vmor %vm5362, %vm5363
    %v5365 = vsel %vm5364, %v5357, %v5361
    %v5366 = vand.u32 2147483647, %v5326
    %vm5367 = vcmp.eq.f32.partialorder %v5366, 8.507059e+37
    %v5368 = vand.u32 %v5326, 2147483648
    %v5369 = vor.u32 1.1754944e-38, %v5368
    %v5370 = vsel %vm5367, %v5369, %v5365
    %v5371 = vmul.f32 1.0, %v5370
    %v5372 = vtanh.pop %v5314
    %v5373 = vmul.f32 %v5356, %v5224
    %v5374 = vmul.f32 %v5341, %v5372
    %v5375 = vadd.f32 %v5373, %v5374
    %v5376 = vtanh.pop %v5375
    %v5377 = vmul.f32 %v5371, %v5376
    %v5378 = vld [vmem:[%s1899] sm:$0xff]
    %v5379 = vld [vmem:[%s1899 + $0x8] sm:$0xff]
    %v5380 = vld [vmem:[%s1899 + $0x10] sm:$0xff]
    %v5381 = vld [vmem:[%s1899 + $0x18] sm:$0xff]
    %5382 = vmatpush.msra.mxu0 %v4925
    %5383 = vmatpush.msra.mxu0 %v4921
    %5384 = vmatpush.msra.mxu0 %v4917
    %5385 = vmatpush.msra.mxu0 %v4913
    %5386 = vmatpush.msra.mxu0 %v4909
    %5387 = vmatpush.msra.mxu0 %v4905
    %5388 = vmatpush.msra.mxu0 %v4901
    %5389 = vmatpush.msra.mxu0 %v4897
    %5390 = vmatpush.msra.mxu0 %v4893
    %5391 = vmatpush.msra.mxu0 %v4889
    %5392 = vmatpush.msra.mxu0 %v4885
    %5393 = vmatpush.msra.mxu0 %v4881
    %5394 = vmatpush.msra.mxu0 %v4877
    %5395 = vmatpush.msra.mxu0 %v4873
    %5396 = vmatpush.msra.mxu0 %v4869
    %5397 = vmatpush.msra.mxu0 %v4865
    %5398 = vmatmul.f32.gmra.mxu0 %v5377
    %v5399 = vpop.f32.mrf.mxu0
    %v5400 = vadd.f32 0.0, %v5399
    %5401 = vdwg.mxu0
    %5402 = vmatpush.msra.mxu0 %v4926
    %5403 = vmatpush.msra.mxu0 %v4922
    %5404 = vmatpush.msra.mxu0 %v4918
    %5405 = vmatpush.msra.mxu0 %v4914
    %5406 = vmatpush.msra.mxu0 %v4910
    %5407 = vmatpush.msra.mxu0 %v4906
    %5408 = vmatpush.msra.mxu0 %v4902
    %5409 = vmatpush.msra.mxu0 %v4898
    %5410 = vmatpush.msra.mxu0 %v4894
    %5411 = vmatpush.msra.mxu0 %v4890
    %5412 = vmatpush.msra.mxu0 %v4886
    %5413 = vmatpush.msra.mxu0 %v4882
    %5414 = vmatpush.msra.mxu0 %v4878
    %5415 = vmatpush.msra.mxu0 %v4874
    %5416 = vmatpush.msra.mxu0 %v4870
    %5417 = vmatpush.msra.mxu0 %v4866
    %5418 = vmatmul.f32.gmra.mxu0 %v5377
    %v5419 = vpop.f32.mrf.mxu0
    %v5420 = vadd.f32 0.0, %v5419
    %5421 = vdwg.mxu0
    %5422 = vmatpush.msra.mxu0 %v4927
    %5423 = vmatpush.msra.mxu0 %v4923
    %5424 = vmatpush.msra.mxu0 %v4919
    %5425 = vmatpush.msra.mxu0 %v4915
    %5426 = vmatpush.msra.mxu0 %v4911
    %5427 = vmatpush.msra.mxu0 %v4907
    %5428 = vmatpush.msra.mxu0 %v4903
    %5429 = vmatpush.msra.mxu0 %v4899
    %5430 = vmatpush.msra.mxu0 %v4895
    %5431 = vmatpush.msra.mxu0 %v4891
    %5432 = vmatpush.msra.mxu0 %v4887
    %5433 = vmatpush.msra.mxu0 %v4883
    %5434 = vmatpush.msra.mxu0 %v4879
    %5435 = vmatpush.msra.mxu0 %v4875
    %5436 = vmatpush.msra.mxu0 %v4871
    %5437 = vmatpush.msra.mxu0 %v4867
    %5438 = vmatmul.f32.gmra.mxu0 %v5377
    %v5439 = vpop.f32.mrf.mxu0
    %v5440 = vadd.f32 0.0, %v5439
    %5441 = vdwg.mxu0
    %5442 = vmatpush.msra.mxu0 %v4928
    %5443 = vmatpush.msra.mxu0 %v4924
    %5444 = vmatpush.msra.mxu0 %v4920
    %5445 = vmatpush.msra.mxu0 %v4916
    %5446 = vmatpush.msra.mxu0 %v4912
    %5447 = vmatpush.msra.mxu0 %v4908
    %5448 = vmatpush.msra.mxu0 %v4904
    %5449 = vmatpush.msra.mxu0 %v4900
    %5450 = vmatpush.msra.mxu0 %v4896
    %5451 = vmatpush.msra.mxu0 %v4892
    %5452 = vmatpush.msra.mxu0 %v4888
    %5453 = vmatpush.msra.mxu0 %v4884
    %5454 = vmatpush.msra.mxu0 %v4880
    %5455 = vmatpush.msra.mxu0 %v4876
    %5456 = vmatpush.msra.mxu0 %v4872
    %5457 = vmatpush.msra.mxu0 %v4868
    %5458 = vmatmul.f32.gmra.mxu0 %v5377
    %v5459 = vpop.f32.mrf.mxu0
    %v5460 = vadd.f32 0.0, %v5459
    %5461 = vdwg.mxu0
    %v5462 = vadd.f32 %v5378, %v5400
    %v5463 = vadd.f32 %v5379, %v5420
    %v5464 = vadd.f32 %v5380, %v5440
    %v5465 = vadd.f32 %v5381, %v5460
    %v5466 = vxor.u32 %v5462, 2147483648
    %v5467 = vxor.u32 %v5463, 2147483648
    %v5468 = vxor.u32 %v5464, 2147483648
    %v5469 = vmul.f32 %v5466, 1.442695
    %v5470 = vpow.pop %v5469
    %v5471 = vmul.f32 %v5467, 1.442695
    %v5472 = vpow.pop %v5471
    %v5473 = vmul.f32 %v5468, 1.442695
    %v5474 = vpow.pop %v5473
    %v5475 = vadd.f32 %v5470, 1.0
    %v5476 = vadd.f32 %v5472, 1.0
    %v5477 = vadd.f32 %v5474, 1.0
    %v5478 = vrcp.pop %v5475
    %v5479 = vmul.f32 %v5475, %v5478
    %v5480 = vsub.f32 1.0, %v5479
    %v5481 = vmul.f32 %v5478, %v5480
    %v5482 = vadd.f32 %v5478, %v5481
    %vm5483 = vweird.f32 %v5475
    %vm5484 = vweird.f32 %v5478
    %vm5485 = vmor %vm5483, %vm5484
    %v5486 = vsel %vm5485, %v5478, %v5482
    %v5487 = vand.u32 2147483647, %v5475
    %vm5488 = vcmp.eq.f32.partialorder %v5487, 8.507059e+37
    %v5489 = vand.u32 %v5475, 2147483648
    %v5490 = vor.u32 1.1754944e-38, %v5489
    %v5491 = vsel %vm5488, %v5490, %v5486
    %v5492 = vmul.f32 1.0, %v5491
    %v5493 = vrcp.pop %v5476
    %v5494 = vmul.f32 %v5476, %v5493
    %v5495 = vsub.f32 1.0, %v5494
    %v5496 = vmul.f32 %v5493, %v5495
    %v5497 = vadd.f32 %v5493, %v5496
    %vm5498 = vweird.f32 %v5476
    %vm5499 = vweird.f32 %v5493
    %vm5500 = vmor %vm5498, %vm5499
    %v5501 = vsel %vm5500, %v5493, %v5497
    %v5502 = vand.u32 2147483647, %v5476
    %vm5503 = vcmp.eq.f32.partialorder %v5502, 8.507059e+37
    %v5504 = vand.u32 %v5476, 2147483648
    %v5505 = vor.u32 1.1754944e-38, %v5504
    %v5506 = vsel %vm5503, %v5505, %v5501
    %v5507 = vmul.f32 1.0, %v5506
    %v5508 = vrcp.pop %v5477
    %v5509 = vmul.f32 %v5477, %v5508
    %v5510 = vsub.f32 1.0, %v5509
    %v5511 = vmul.f32 %v5508, %v5510
    %v5512 = vadd.f32 %v5508, %v5511
    %vm5513 = vweird.f32 %v5477
    %vm5514 = vweird.f32 %v5508
    %vm5515 = vmor %vm5513, %vm5514
    %v5516 = vsel %vm5515, %v5508, %v5512
    %v5517 = vand.u32 2147483647, %v5477
    %vm5518 = vcmp.eq.f32.partialorder %v5517, 8.507059e+37
    %v5519 = vand.u32 %v5477, 2147483648
    %v5520 = vor.u32 1.1754944e-38, %v5519
    %v5521 = vsel %vm5518, %v5520, %v5516
    %v5522 = vmul.f32 1.0, %v5521
    %v5523 = vtanh.pop %v5465
    %v5524 = vmul.f32 %v5507, %v5375
    %v5525 = vmul.f32 %v5492, %v5523
    %v5526 = vadd.f32 %v5524, %v5525
    %v5527 = vtanh.pop %v5526
    %v5528 = vmul.f32 %v5522, %v5527
    %v5529 = vld [vmem:[%s2338] sm:$0xff]
    %v5530 = vld [vmem:[%s2338 + $0x8] sm:$0xff]
    %v5531 = vld [vmem:[%s2338 + $0x10] sm:$0xff]
    %v5532 = vld [vmem:[%s2338 + $0x18] sm:$0xff]
    %5533 = vmatpush.msra.mxu0 %v4925
    %5534 = vmatpush.msra.mxu0 %v4921
    %5535 = vmatpush.msra.mxu0 %v4917
    %5536 = vmatpush.msra.mxu0 %v4913
    %5537 = vmatpush.msra.mxu0 %v4909
    %5538 = vmatpush.msra.mxu0 %v4905
    %5539 = vmatpush.msra.mxu0 %v4901
    %5540 = vmatpush.msra.mxu0 %v4897
    %5541 = vmatpush.msra.mxu0 %v4893
    %5542 = vmatpush.msra.mxu0 %v4889
    %5543 = vmatpush.msra.mxu0 %v4885
    %5544 = vmatpush.msra.mxu0 %v4881
    %5545 = vmatpush.msra.mxu0 %v4877
    %5546 = vmatpush.msra.mxu0 %v4873
    %5547 = vmatpush.msra.mxu0 %v4869
    %5548 = vmatpush.msra.mxu0 %v4865
    %5549 = vmatmul.f32.gmra.mxu0 %v5528
    %v5550 = vpop.f32.mrf.mxu0
    %v5551 = vadd.f32 0.0, %v5550
    %5552 = vdwg.mxu0
    %5553 = vmatpush.msra.mxu0 %v4926
    %5554 = vmatpush.msra.mxu0 %v4922
    %5555 = vmatpush.msra.mxu0 %v4918
    %5556 = vmatpush.msra.mxu0 %v4914
    %5557 = vmatpush.msra.mxu0 %v4910
    %5558 = vmatpush.msra.mxu0 %v4906
    %5559 = vmatpush.msra.mxu0 %v4902
    %5560 = vmatpush.msra.mxu0 %v4898
    %5561 = vmatpush.msra.mxu0 %v4894
    %5562 = vmatpush.msra.mxu0 %v4890
    %5563 = vmatpush.msra.mxu0 %v4886
    %5564 = vmatpush.msra.mxu0 %v4882
    %5565 = vmatpush.msra.mxu0 %v4878
    %5566 = vmatpush.msra.mxu0 %v4874
    %5567 = vmatpush.msra.mxu0 %v4870
    %5568 = vmatpush.msra.mxu0 %v4866
    %5569 = vmatmul.f32.gmra.mxu0 %v5528
    %v5570 = vpop.f32.mrf.mxu0
    %v5571 = vadd.f32 0.0, %v5570
    %5572 = vdwg.mxu0
    %5573 = vmatpush.msra.mxu0 %v4927
    %5574 = vmatpush.msra.mxu0 %v4923
    %5575 = vmatpush.msra.mxu0 %v4919
    %5576 = vmatpush.msra.mxu0 %v4915
    %5577 = vmatpush.msra.mxu0 %v4911
    %5578 = vmatpush.msra.mxu0 %v4907
    %5579 = vmatpush.msra.mxu0 %v4903
    %5580 = vmatpush.msra.mxu0 %v4899
    %5581 = vmatpush.msra.mxu0 %v4895
    %5582 = vmatpush.msra.mxu0 %v4891
    %5583 = vmatpush.msra.mxu0 %v4887
    %5584 = vmatpush.msra.mxu0 %v4883
    %5585 = vmatpush.msra.mxu0 %v4879
    %5586 = vmatpush.msra.mxu0 %v4875
    %5587 = vmatpush.msra.mxu0 %v4871
    %5588 = vmatpush.msra.mxu0 %v4867
    %5589 = vmatmul.f32.gmra.mxu0 %v5528
    %v5590 = vpop.f32.mrf.mxu0
    %v5591 = vadd.f32 0.0, %v5590
    %5592 = vdwg.mxu0
    %5593 = vmatpush.msra.mxu0 %v4928
    %5594 = vmatpush.msra.mxu0 %v4924
    %5595 = vmatpush.msra.mxu0 %v4920
    %5596 = vmatpush.msra.mxu0 %v4916
    %5597 = vmatpush.msra.mxu0 %v4912
    %5598 = vmatpush.msra.mxu0 %v4908
    %5599 = vmatpush.msra.mxu0 %v4904
    %5600 = vmatpush.msra.mxu0 %v4900
    %5601 = vmatpush.msra.mxu0 %v4896
    %5602 = vmatpush.msra.mxu0 %v4892
    %5603 = vmatpush.msra.mxu0 %v4888
    %5604 = vmatpush.msra.mxu0 %v4884
    %5605 = vmatpush.msra.mxu0 %v4880
    %5606 = vmatpush.msra.mxu0 %v4876
    %5607 = vmatpush.msra.mxu0 %v4872
    %5608 = vmatpush.msra.mxu0 %v4868
    %5609 = vmatmul.f32.gmra.mxu0 %v5528
    %v5610 = vpop.f32.mrf.mxu0
    %v5611 = vadd.f32 0.0, %v5610
    %5612 = vdwg.mxu0
    %v5613 = vadd.f32 %v5529, %v5551
    %v5614 = vadd.f32 %v5530, %v5571
    %v5615 = vadd.f32 %v5531, %v5591
    %v5616 = vadd.f32 %v5532, %v5611
    %v5617 = vxor.u32 %v5613, 2147483648
    %v5618 = vxor.u32 %v5614, 2147483648
    %v5619 = vxor.u32 %v5615, 2147483648
    %v5620 = vmul.f32 %v5617, 1.442695
    %v5621 = vpow.pop %v5620
    %v5622 = vmul.f32 %v5618, 1.442695
    %v5623 = vpow.pop %v5622
    %v5624 = vmul.f32 %v5619, 1.442695
    %v5625 = vpow.pop %v5624
    %v5626 = vadd.f32 %v5621, 1.0
    %v5627 = vadd.f32 %v5623, 1.0
    %v5628 = vadd.f32 %v5625, 1.0
    %v5629 = vrcp.pop %v5626
    %v5630 = vmul.f32 %v5626, %v5629
    %v5631 = vsub.f32 1.0, %v5630
    %v5632 = vmul.f32 %v5629, %v5631
    %v5633 = vadd.f32 %v5629, %v5632
    %vm5634 = vweird.f32 %v5626
    %vm5635 = vweird.f32 %v5629
    %vm5636 = vmor %vm5634, %vm5635
    %v5637 = vsel %vm5636, %v5629, %v5633
    %v5638 = vand.u32 2147483647, %v5626
    %vm5639 = vcmp.eq.f32.partialorder %v5638, 8.507059e+37
    %v5640 = vand.u32 %v5626, 2147483648
    %v5641 = vor.u32 1.1754944e-38, %v5640
    %v5642 = vsel %vm5639, %v5641, %v5637
    %v5643 = vmul.f32 1.0, %v5642
    %v5644 = vrcp.pop %v5627
    %v5645 = vmul.f32 %v5627, %v5644
    %v5646 = vsub.f32 1.0, %v5645
    %v5647 = vmul.f32 %v5644, %v5646
    %v5648 = vadd.f32 %v5644, %v5647
    %vm5649 = vweird.f32 %v5627
    %vm5650 = vweird.f32 %v5644
    %vm5651 = vmor %vm5649, %vm5650
    %v5652 = vsel %vm5651, %v5644, %v5648
    %v5653 = vand.u32 2147483647, %v5627
    %vm5654 = vcmp.eq.f32.partialorder %v5653, 8.507059e+37
    %v5655 = vand.u32 %v5627, 2147483648
    %v5656 = vor.u32 1.1754944e-38, %v5655
    %v5657 = vsel %vm5654, %v5656, %v5652
    %v5658 = vmul.f32 1.0, %v5657
    %v5659 = vrcp.pop %v5628
    %v5660 = vmul.f32 %v5628, %v5659
    %v5661 = vsub.f32 1.0, %v5660
    %v5662 = vmul.f32 %v5659, %v5661
    %v5663 = vadd.f32 %v5659, %v5662
    %vm5664 = vweird.f32 %v5628
    %vm5665 = vweird.f32 %v5659
    %vm5666 = vmor %vm5664, %vm5665
    %v5667 = vsel %vm5666, %v5659, %v5663
    %v5668 = vand.u32 2147483647, %v5628
    %vm5669 = vcmp.eq.f32.partialorder %v5668, 8.507059e+37
    %v5670 = vand.u32 %v5628, 2147483648
    %v5671 = vor.u32 1.1754944e-38, %v5670
    %v5672 = vsel %vm5669, %v5671, %v5667
    %v5673 = vmul.f32 1.0, %v5672
    %v5674 = vtanh.pop %v5616
    %v5675 = vmul.f32 %v5658, %v5526
    %v5676 = vmul.f32 %v5643, %v5674
    %v5677 = vadd.f32 %v5675, %v5676
    %v5678 = vtanh.pop %v5677
    %v5679 = vmul.f32 %v5673, %v5678
    %v5680 = vld [vmem:[%s2776] sm:$0xff]
    %v5681 = vld [vmem:[%s2776 + $0x8] sm:$0xff]
    %v5682 = vld [vmem:[%s2776 + $0x10] sm:$0xff]
    %v5683 = vld [vmem:[%s2776 + $0x18] sm:$0xff]
    %5684 = vmatpush.msra.mxu0 %v4925
    %5685 = vmatpush.msra.mxu0 %v4921
    %5686 = vmatpush.msra.mxu0 %v4917
    %5687 = vmatpush.msra.mxu0 %v4913
    %5688 = vmatpush.msra.mxu0 %v4909
    %5689 = vmatpush.msra.mxu0 %v4905
    %5690 = vmatpush.msra.mxu0 %v4901
    %5691 = vmatpush.msra.mxu0 %v4897
    %5692 = vmatpush.msra.mxu0 %v4893
    %5693 = vmatpush.msra.mxu0 %v4889
    %5694 = vmatpush.msra.mxu0 %v4885
    %5695 = vmatpush.msra.mxu0 %v4881
    %5696 = vmatpush.msra.mxu0 %v4877
    %5697 = vmatpush.msra.mxu0 %v4873
    %5698 = vmatpush.msra.mxu0 %v4869
    %5699 = vmatpush.msra.mxu0 %v4865
    %5700 = vmatmul.f32.gmra.mxu0 %v5679
    %v5701 = vpop.f32.mrf.mxu0
    %v5702 = vadd.f32 0.0, %v5701
    %5703 = vdwg.mxu0
    %5704 = vmatpush.msra.mxu0 %v4926
    %5705 = vmatpush.msra.mxu0 %v4922
    %5706 = vmatpush.msra.mxu0 %v4918
    %5707 = vmatpush.msra.mxu0 %v4914
    %5708 = vmatpush.msra.mxu0 %v4910
    %5709 = vmatpush.msra.mxu0 %v4906
    %5710 = vmatpush.msra.mxu0 %v4902
    %5711 = vmatpush.msra.mxu0 %v4898
    %5712 = vmatpush.msra.mxu0 %v4894
    %5713 = vmatpush.msra.mxu0 %v4890
    %5714 = vmatpush.msra.mxu0 %v4886
    %5715 = vmatpush.msra.mxu0 %v4882
    %5716 = vmatpush.msra.mxu0 %v4878
    %5717 = vmatpush.msra.mxu0 %v4874
    %5718 = vmatpush.msra.mxu0 %v4870
    %5719 = vmatpush.msra.mxu0 %v4866
    %5720 = vmatmul.f32.gmra.mxu0 %v5679
    %v5721 = vpop.f32.mrf.mxu0
    %v5722 = vadd.f32 0.0, %v5721
    %5723 = vdwg.mxu0
    %5724 = vmatpush.msra.mxu0 %v4927
    %5725 = vmatpush.msra.mxu0 %v4923
    %5726 = vmatpush.msra.mxu0 %v4919
    %5727 = vmatpush.msra.mxu0 %v4915
    %5728 = vmatpush.msra.mxu0 %v4911
    %5729 = vmatpush.msra.mxu0 %v4907
    %5730 = vmatpush.msra.mxu0 %v4903
    %5731 = vmatpush.msra.mxu0 %v4899
    %5732 = vmatpush.msra.mxu0 %v4895
    %5733 = vmatpush.msra.mxu0 %v4891
    %5734 = vmatpush.msra.mxu0 %v4887
    %5735 = vmatpush.msra.mxu0 %v4883
    %5736 = vmatpush.msra.mxu0 %v4879
    %5737 = vmatpush.msra.mxu0 %v4875
    %5738 = vmatpush.msra.mxu0 %v4871
    %5739 = vmatpush.msra.mxu0 %v4867
    %5740 = vmatmul.f32.gmra.mxu0 %v5679
    %v5741 = vpop.f32.mrf.mxu0
    %v5742 = vadd.f32 0.0, %v5741
    %5743 = vdwg.mxu0
    %5744 = vmatpush.msra.mxu0 %v4928
    %5745 = vmatpush.msra.mxu0 %v4924
    %5746 = vmatpush.msra.mxu0 %v4920
    %5747 = vmatpush.msra.mxu0 %v4916
    %5748 = vmatpush.msra.mxu0 %v4912
    %5749 = vmatpush.msra.mxu0 %v4908
    %5750 = vmatpush.msra.mxu0 %v4904
    %5751 = vmatpush.msra.mxu0 %v4900
    %5752 = vmatpush.msra.mxu0 %v4896
    %5753 = vmatpush.msra.mxu0 %v4892
    %5754 = vmatpush.msra.mxu0 %v4888
    %5755 = vmatpush.msra.mxu0 %v4884
    %5756 = vmatpush.msra.mxu0 %v4880
    %5757 = vmatpush.msra.mxu0 %v4876
    %5758 = vmatpush.msra.mxu0 %v4872
    %5759 = vmatpush.msra.mxu0 %v4868
    %5760 = vmatmul.f32.gmra.mxu0 %v5679
    %v5761 = vpop.f32.mrf.mxu0
    %v5762 = vadd.f32 0.0, %v5761
    %5763 = vdwg.mxu0
    %v5764 = vadd.f32 %v5680, %v5702
    %v5765 = vadd.f32 %v5681, %v5722
    %v5766 = vadd.f32 %v5682, %v5742
    %v5767 = vadd.f32 %v5683, %v5762
    %v5768 = vxor.u32 %v5764, 2147483648
    %v5769 = vxor.u32 %v5765, 2147483648
    %v5770 = vxor.u32 %v5766, 2147483648
    %v5771 = vmul.f32 %v5768, 1.442695
    %v5772 = vpow.pop %v5771
    %v5773 = vmul.f32 %v5769, 1.442695
    %v5774 = vpow.pop %v5773
    %v5775 = vmul.f32 %v5770, 1.442695
    %v5776 = vpow.pop %v5775
    %v5777 = vadd.f32 %v5772, 1.0
    %v5778 = vadd.f32 %v5774, 1.0
    %v5779 = vadd.f32 %v5776, 1.0
    %v5780 = vrcp.pop %v5777
    %v5781 = vmul.f32 %v5777, %v5780
    %v5782 = vsub.f32 1.0, %v5781
    %v5783 = vmul.f32 %v5780, %v5782
    %v5784 = vadd.f32 %v5780, %v5783
    %vm5785 = vweird.f32 %v5777
    %vm5786 = vweird.f32 %v5780
    %vm5787 = vmor %vm5785, %vm5786
    %v5788 = vsel %vm5787, %v5780, %v5784
    %v5789 = vand.u32 2147483647, %v5777
    %vm5790 = vcmp.eq.f32.partialorder %v5789, 8.507059e+37
    %v5791 = vand.u32 %v5777, 2147483648
    %v5792 = vor.u32 1.1754944e-38, %v5791
    %v5793 = vsel %vm5790, %v5792, %v5788
    %v5794 = vmul.f32 1.0, %v5793
    %v5795 = vrcp.pop %v5778
    %v5796 = vmul.f32 %v5778, %v5795
    %v5797 = vsub.f32 1.0, %v5796
    %v5798 = vmul.f32 %v5795, %v5797
    %v5799 = vadd.f32 %v5795, %v5798
    %vm5800 = vweird.f32 %v5778
    %vm5801 = vweird.f32 %v5795
    %vm5802 = vmor %vm5800, %vm5801
    %v5803 = vsel %vm5802, %v5795, %v5799
    %v5804 = vand.u32 2147483647, %v5778
    %vm5805 = vcmp.eq.f32.partialorder %v5804, 8.507059e+37
    %v5806 = vand.u32 %v5778, 2147483648
    %v5807 = vor.u32 1.1754944e-38, %v5806
    %v5808 = vsel %vm5805, %v5807, %v5803
    %v5809 = vmul.f32 1.0, %v5808
    %v5810 = vrcp.pop %v5779
    %v5811 = vmul.f32 %v5779, %v5810
    %v5812 = vsub.f32 1.0, %v5811
    %v5813 = vmul.f32 %v5810, %v5812
    %v5814 = vadd.f32 %v5810, %v5813
    %vm5815 = vweird.f32 %v5779
    %vm5816 = vweird.f32 %v5810
    %vm5817 = vmor %vm5815, %vm5816
    %v5818 = vsel %vm5817, %v5810, %v5814
    %v5819 = vand.u32 2147483647, %v5779
    %vm5820 = vcmp.eq.f32.partialorder %v5819, 8.507059e+37
    %v5821 = vand.u32 %v5779, 2147483648
    %v5822 = vor.u32 1.1754944e-38, %v5821
    %v5823 = vsel %vm5820, %v5822, %v5818
    %v5824 = vmul.f32 1.0, %v5823
    %v5825 = vtanh.pop %v5767
    %v5826 = vmul.f32 %v5809, %v5677
    %v5827 = vmul.f32 %v5794, %v5825
    %v5828 = vadd.f32 %v5826, %v5827
    %v5829 = vtanh.pop %v5828
    %v5830 = vmul.f32 %v5824, %v5829
    %v5831 = vld [vmem:[%s3214] sm:$0xff]
    %v5832 = vld [vmem:[%s3214 + $0x8] sm:$0xff]
    %v5833 = vld [vmem:[%s3214 + $0x10] sm:$0xff]
    %v5834 = vld [vmem:[%s3214 + $0x18] sm:$0xff]
    %5835 = vmatpush.msra.mxu0 %v4925
    %5836 = vmatpush.msra.mxu0 %v4921
    %5837 = vmatpush.msra.mxu0 %v4917
    %5838 = vmatpush.msra.mxu0 %v4913
    %5839 = vmatpush.msra.mxu0 %v4909
    %5840 = vmatpush.msra.mxu0 %v4905
    %5841 = vmatpush.msra.mxu0 %v4901
    %5842 = vmatpush.msra.mxu0 %v4897
    %5843 = vmatpush.msra.mxu0 %v4893
    %5844 = vmatpush.msra.mxu0 %v4889
    %5845 = vmatpush.msra.mxu0 %v4885
    %5846 = vmatpush.msra.mxu0 %v4881
    %5847 = vmatpush.msra.mxu0 %v4877
    %5848 = vmatpush.msra.mxu0 %v4873
    %5849 = vmatpush.msra.mxu0 %v4869
    %5850 = vmatpush.msra.mxu0 %v4865
    %5851 = vmatmul.f32.gmra.mxu0 %v5830
    %v5852 = vpop.f32.mrf.mxu0
    %v5853 = vadd.f32 0.0, %v5852
    %5854 = vdwg.mxu0
    %5855 = vmatpush.msra.mxu0 %v4926
    %5856 = vmatpush.msra.mxu0 %v4922
    %5857 = vmatpush.msra.mxu0 %v4918
    %5858 = vmatpush.msra.mxu0 %v4914
    %5859 = vmatpush.msra.mxu0 %v4910
    %5860 = vmatpush.msra.mxu0 %v4906
    %5861 = vmatpush.msra.mxu0 %v4902
    %5862 = vmatpush.msra.mxu0 %v4898
    %5863 = vmatpush.msra.mxu0 %v4894
    %5864 = vmatpush.msra.mxu0 %v4890
    %5865 = vmatpush.msra.mxu0 %v4886
    %5866 = vmatpush.msra.mxu0 %v4882
    %5867 = vmatpush.msra.mxu0 %v4878
    %5868 = vmatpush.msra.mxu0 %v4874
    %5869 = vmatpush.msra.mxu0 %v4870
    %5870 = vmatpush.msra.mxu0 %v4866
    %5871 = vmatmul.f32.gmra.mxu0 %v5830
    %v5872 = vpop.f32.mrf.mxu0
    %v5873 = vadd.f32 0.0, %v5872
    %5874 = vdwg.mxu0
    %5875 = vmatpush.msra.mxu0 %v4927
    %5876 = vmatpush.msra.mxu0 %v4923
    %5877 = vmatpush.msra.mxu0 %v4919
    %5878 = vmatpush.msra.mxu0 %v4915
    %5879 = vmatpush.msra.mxu0 %v4911
    %5880 = vmatpush.msra.mxu0 %v4907
    %5881 = vmatpush.msra.mxu0 %v4903
    %5882 = vmatpush.msra.mxu0 %v4899
    %5883 = vmatpush.msra.mxu0 %v4895
    %5884 = vmatpush.msra.mxu0 %v4891
    %5885 = vmatpush.msra.mxu0 %v4887
    %5886 = vmatpush.msra.mxu0 %v4883
    %5887 = vmatpush.msra.mxu0 %v4879
    %5888 = vmatpush.msra.mxu0 %v4875
    %5889 = vmatpush.msra.mxu0 %v4871
    %5890 = vmatpush.msra.mxu0 %v4867
    %5891 = vmatmul.f32.gmra.mxu0 %v5830
    %v5892 = vpop.f32.mrf.mxu0
    %v5893 = vadd.f32 0.0, %v5892
    %5894 = vdwg.mxu0
    %5895 = vmatpush.msra.mxu0 %v4928
    %5896 = vmatpush.msra.mxu0 %v4924
    %5897 = vmatpush.msra.mxu0 %v4920
    %5898 = vmatpush.msra.mxu0 %v4916
    %5899 = vmatpush.msra.mxu0 %v4912
    %5900 = vmatpush.msra.mxu0 %v4908
    %5901 = vmatpush.msra.mxu0 %v4904
    %5902 = vmatpush.msra.mxu0 %v4900
    %5903 = vmatpush.msra.mxu0 %v4896
    %5904 = vmatpush.msra.mxu0 %v4892
    %5905 = vmatpush.msra.mxu0 %v4888
    %5906 = vmatpush.msra.mxu0 %v4884
    %5907 = vmatpush.msra.mxu0 %v4880
    %5908 = vmatpush.msra.mxu0 %v4876
    %5909 = vmatpush.msra.mxu0 %v4872
    %5910 = vmatpush.msra.mxu0 %v4868
    %5911 = vmatmul.f32.gmra.mxu0 %v5830
    %v5912 = vpop.f32.mrf.mxu0
    %v5913 = vadd.f32 0.0, %v5912
    %5914 = vdwg.mxu0
    %v5915 = vadd.f32 %v5831, %v5853
    %v5916 = vadd.f32 %v5832, %v5873
    %v5917 = vadd.f32 %v5833, %v5893
    %v5918 = vadd.f32 %v5834, %v5913
    %v5919 = vxor.u32 %v5915, 2147483648
    %v5920 = vxor.u32 %v5916, 2147483648
    %v5921 = vxor.u32 %v5917, 2147483648
    %v5922 = vmul.f32 %v5919, 1.442695
    %v5923 = vpow.pop %v5922
    %v5924 = vmul.f32 %v5920, 1.442695
    %v5925 = vpow.pop %v5924
    %v5926 = vmul.f32 %v5921, 1.442695
    %v5927 = vpow.pop %v5926
    %v5928 = vadd.f32 %v5923, 1.0
    %v5929 = vadd.f32 %v5925, 1.0
    %v5930 = vadd.f32 %v5927, 1.0
    %v5931 = vrcp.pop %v5928
    %v5932 = vmul.f32 %v5928, %v5931
    %v5933 = vsub.f32 1.0, %v5932
    %v5934 = vmul.f32 %v5931, %v5933
    %v5935 = vadd.f32 %v5931, %v5934
    %vm5936 = vweird.f32 %v5928
    %vm5937 = vweird.f32 %v5931
    %vm5938 = vmor %vm5936, %vm5937
    %v5939 = vsel %vm5938, %v5931, %v5935
    %v5940 = vand.u32 2147483647, %v5928
    %vm5941 = vcmp.eq.f32.partialorder %v5940, 8.507059e+37
    %v5942 = vand.u32 %v5928, 2147483648
    %v5943 = vor.u32 1.1754944e-38, %v5942
    %v5944 = vsel %vm5941, %v5943, %v5939
    %v5945 = vmul.f32 1.0, %v5944
    %v5946 = vrcp.pop %v5929
    %v5947 = vmul.f32 %v5929, %v5946
    %v5948 = vsub.f32 1.0, %v5947
    %v5949 = vmul.f32 %v5946, %v5948
    %v5950 = vadd.f32 %v5946, %v5949
    %vm5951 = vweird.f32 %v5929
    %vm5952 = vweird.f32 %v5946
    %vm5953 = vmor %vm5951, %vm5952
    %v5954 = vsel %vm5953, %v5946, %v5950
    %v5955 = vand.u32 2147483647, %v5929
    %vm5956 = vcmp.eq.f32.partialorder %v5955, 8.507059e+37
    %v5957 = vand.u32 %v5929, 2147483648
    %v5958 = vor.u32 1.1754944e-38, %v5957
    %v5959 = vsel %vm5956, %v5958, %v5954
    %v5960 = vmul.f32 1.0, %v5959
    %v5961 = vrcp.pop %v5930
    %v5962 = vmul.f32 %v5930, %v5961
    %v5963 = vsub.f32 1.0, %v5962
    %v5964 = vmul.f32 %v5961, %v5963
    %v5965 = vadd.f32 %v5961, %v5964
    %vm5966 = vweird.f32 %v5930
    %vm5967 = vweird.f32 %v5961
    %vm5968 = vmor %vm5966, %vm5967
    %v5969 = vsel %vm5968, %v5961, %v5965
    %v5970 = vand.u32 2147483647, %v5930
    %vm5971 = vcmp.eq.f32.partialorder %v5970, 8.507059e+37
    %v5972 = vand.u32 %v5930, 2147483648
    %v5973 = vor.u32 1.1754944e-38, %v5972
    %v5974 = vsel %vm5971, %v5973, %v5969
    %v5975 = vmul.f32 1.0, %v5974
    %v5976 = vtanh.pop %v5918
    %v5977 = vmul.f32 %v5960, %v5828
    %v5978 = vmul.f32 %v5945, %v5976
    %v5979 = vadd.f32 %v5977, %v5978
    %v5980 = vtanh.pop %v5979
    %v5981 = vmul.f32 %v5975, %v5980
    %v5982 = vld [vmem:[%s3652] sm:$0xff]
    %v5983 = vld [vmem:[%s3652 + $0x8] sm:$0xff]
    %v5984 = vld [vmem:[%s3652 + $0x10] sm:$0xff]
    %v5985 = vld [vmem:[%s3652 + $0x18] sm:$0xff]
    %5986 = vmatpush.msra.mxu0 %v4925
    %5987 = vmatpush.msra.mxu0 %v4921
    %5988 = vmatpush.msra.mxu0 %v4917
    %5989 = vmatpush.msra.mxu0 %v4913
    %5990 = vmatpush.msra.mxu0 %v4909
    %5991 = vmatpush.msra.mxu0 %v4905
    %5992 = vmatpush.msra.mxu0 %v4901
    %5993 = vmatpush.msra.mxu0 %v4897
    %5994 = vmatpush.msra.mxu0 %v4893
    %5995 = vmatpush.msra.mxu0 %v4889
    %5996 = vmatpush.msra.mxu0 %v4885
    %5997 = vmatpush.msra.mxu0 %v4881
    %5998 = vmatpush.msra.mxu0 %v4877
    %5999 = vmatpush.msra.mxu0 %v4873
    %6000 = vmatpush.msra.mxu0 %v4869
    %6001 = vmatpush.msra.mxu0 %v4865
    %6002 = vmatmul.f32.gmra.mxu0 %v5981
    %v6003 = vpop.f32.mrf.mxu0
    %v6004 = vadd.f32 0.0, %v6003
    %6005 = vdwg.mxu0
    %6006 = vmatpush.msra.mxu0 %v4926
    %6007 = vmatpush.msra.mxu0 %v4922
    %6008 = vmatpush.msra.mxu0 %v4918
    %6009 = vmatpush.msra.mxu0 %v4914
    %6010 = vmatpush.msra.mxu0 %v4910
    %6011 = vmatpush.msra.mxu0 %v4906
    %6012 = vmatpush.msra.mxu0 %v4902
    %6013 = vmatpush.msra.mxu0 %v4898
    %6014 = vmatpush.msra.mxu0 %v4894
    %6015 = vmatpush.msra.mxu0 %v4890
    %6016 = vmatpush.msra.mxu0 %v4886
    %6017 = vmatpush.msra.mxu0 %v4882
    %6018 = vmatpush.msra.mxu0 %v4878
    %6019 = vmatpush.msra.mxu0 %v4874
    %6020 = vmatpush.msra.mxu0 %v4870
    %6021 = vmatpush.msra.mxu0 %v4866
    %6022 = vmatmul.f32.gmra.mxu0 %v5981
    %v6023 = vpop.f32.mrf.mxu0
    %v6024 = vadd.f32 0.0, %v6023
    %6025 = vdwg.mxu0
    %6026 = vmatpush.msra.mxu0 %v4927
    %6027 = vmatpush.msra.mxu0 %v4923
    %6028 = vmatpush.msra.mxu0 %v4919
    %6029 = vmatpush.msra.mxu0 %v4915
    %6030 = vmatpush.msra.mxu0 %v4911
    %6031 = vmatpush.msra.mxu0 %v4907
    %6032 = vmatpush.msra.mxu0 %v4903
    %6033 = vmatpush.msra.mxu0 %v4899
    %6034 = vmatpush.msra.mxu0 %v4895
    %6035 = vmatpush.msra.mxu0 %v4891
    %6036 = vmatpush.msra.mxu0 %v4887
    %6037 = vmatpush.msra.mxu0 %v4883
    %6038 = vmatpush.msra.mxu0 %v4879
    %6039 = vmatpush.msra.mxu0 %v4875
    %6040 = vmatpush.msra.mxu0 %v4871
    %6041 = vmatpush.msra.mxu0 %v4867
    %6042 = vmatmul.f32.gmra.mxu0 %v5981
    %v6043 = vpop.f32.mrf.mxu0
    %v6044 = vadd.f32 0.0, %v6043
    %6045 = vdwg.mxu0
    %6046 = vmatpush.msra.mxu0 %v4928
    %6047 = vmatpush.msra.mxu0 %v4924
    %6048 = vmatpush.msra.mxu0 %v4920
    %6049 = vmatpush.msra.mxu0 %v4916
    %6050 = vmatpush.msra.mxu0 %v4912
    %6051 = vmatpush.msra.mxu0 %v4908
    %6052 = vmatpush.msra.mxu0 %v4904
    %6053 = vmatpush.msra.mxu0 %v4900
    %6054 = vmatpush.msra.mxu0 %v4896
    %6055 = vmatpush.msra.mxu0 %v4892
    %6056 = vmatpush.msra.mxu0 %v4888
    %6057 = vmatpush.msra.mxu0 %v4884
    %6058 = vmatpush.msra.mxu0 %v4880
    %6059 = vmatpush.msra.mxu0 %v4876
    %6060 = vmatpush.msra.mxu0 %v4872
    %6061 = vmatpush.msra.mxu0 %v4868
    %6062 = vmatmul.f32.gmra.mxu0 %v5981
    %v6063 = vpop.f32.mrf.mxu0
    %v6064 = vadd.f32 0.0, %v6063
    %6065 = vdwg.mxu0
    %v6066 = vadd.f32 %v5982, %v6004
    %v6067 = vadd.f32 %v5983, %v6024
    %v6068 = vadd.f32 %v5984, %v6044
    %v6069 = vadd.f32 %v5985, %v6064
    %v6070 = vxor.u32 %v6066, 2147483648
    %v6071 = vxor.u32 %v6067, 2147483648
    %v6072 = vxor.u32 %v6068, 2147483648
    %v6073 = vmul.f32 %v6070, 1.442695
    %v6074 = vpow.pop %v6073
    %v6075 = vmul.f32 %v6071, 1.442695
    %v6076 = vpow.pop %v6075
    %v6077 = vmul.f32 %v6072, 1.442695
    %v6078 = vpow.pop %v6077
    %v6079 = vadd.f32 %v6074, 1.0
    %v6080 = vadd.f32 %v6076, 1.0
    %v6081 = vadd.f32 %v6078, 1.0
    %v6082 = vrcp.pop %v6079
    %v6083 = vmul.f32 %v6079, %v6082
    %v6084 = vsub.f32 1.0, %v6083
    %v6085 = vmul.f32 %v6082, %v6084
    %v6086 = vadd.f32 %v6082, %v6085
    %vm6087 = vweird.f32 %v6079
    %vm6088 = vweird.f32 %v6082
    %vm6089 = vmor %vm6087, %vm6088
    %v6090 = vsel %vm6089, %v6082, %v6086
    %v6091 = vand.u32 2147483647, %v6079
    %vm6092 = vcmp.eq.f32.partialorder %v6091, 8.507059e+37
    %v6093 = vand.u32 %v6079, 2147483648
    %v6094 = vor.u32 1.1754944e-38, %v6093
    %v6095 = vsel %vm6092, %v6094, %v6090
    %v6096 = vmul.f32 1.0, %v6095
    %v6097 = vrcp.pop %v6080
    %v6098 = vmul.f32 %v6080, %v6097
    %v6099 = vsub.f32 1.0, %v6098
    %v6100 = vmul.f32 %v6097, %v6099
    %v6101 = vadd.f32 %v6097, %v6100
    %vm6102 = vweird.f32 %v6080
    %vm6103 = vweird.f32 %v6097
    %vm6104 = vmor %vm6102, %vm6103
    %v6105 = vsel %vm6104, %v6097, %v6101
    %v6106 = vand.u32 2147483647, %v6080
    %vm6107 = vcmp.eq.f32.partialorder %v6106, 8.507059e+37
    %v6108 = vand.u32 %v6080, 2147483648
    %v6109 = vor.u32 1.1754944e-38, %v6108
    %v6110 = vsel %vm6107, %v6109, %v6105
    %v6111 = vmul.f32 1.0, %v6110
    %v6112 = vrcp.pop %v6081
    %v6113 = vmul.f32 %v6081, %v6112
    %v6114 = vsub.f32 1.0, %v6113
    %v6115 = vmul.f32 %v6112, %v6114
    %v6116 = vadd.f32 %v6112, %v6115
    %vm6117 = vweird.f32 %v6081
    %vm6118 = vweird.f32 %v6112
    %vm6119 = vmor %vm6117, %vm6118
    %v6120 = vsel %vm6119, %v6112, %v6116
    %v6121 = vand.u32 2147483647, %v6081
    %vm6122 = vcmp.eq.f32.partialorder %v6121, 8.507059e+37
    %v6123 = vand.u32 %v6081, 2147483648
    %v6124 = vor.u32 1.1754944e-38, %v6123
    %v6125 = vsel %vm6122, %v6124, %v6120
    %v6126 = vmul.f32 1.0, %v6125
    %v6127 = vtanh.pop %v6069
    %v6128 = vmul.f32 %v6111, %v5979
    %v6129 = vmul.f32 %v6096, %v6127
    %v6130 = vadd.f32 %v6128, %v6129
    %v6131 = vtanh.pop %v6130
    %v6132 = vmul.f32 %v6126, %v6131
    %v6133 = vxor.u32 %v4858, 2147483648
    %v6134 = vxor.u32 %v4859, 2147483648
    %v6135 = vmul.f32 %v6133, 1.442695
    %v6136 = vpow.pop %v6135
    %v6137 = vmul.f32 %v6134, 1.442695
    %v6138 = vpow.pop %v6137
    %v6139 = vadd.f32 %v6136, 1.0
    %v6140 = vadd.f32 %v6138, 1.0
    %v6141 = vrcp.pop %v6139
    %v6142 = vmul.f32 %v6139, %v6141
    %v6143 = vsub.f32 1.0, %v6142
    %v6144 = vmul.f32 %v6141, %v6143
    %v6145 = vadd.f32 %v6141, %v6144
    %vm6146 = vweird.f32 %v6139
    %vm6147 = vweird.f32 %v6141
    %vm6148 = vmor %vm6146, %vm6147
    %v6149 = vsel %vm6148, %v6141, %v6145
    %v6150 = vand.u32 2147483647, %v6139
    %vm6151 = vcmp.eq.f32.partialorder %v6150, 8.507059e+37
    %v6152 = vand.u32 %v6139, 2147483648
    %v6153 = vor.u32 1.1754944e-38, %v6152
    %v6154 = vsel %vm6151, %v6153, %v6149
    %v6155 = vmul.f32 1.0, %v6154
    %v6156 = vrcp.pop %v6140
    %v6157 = vmul.f32 %v6140, %v6156
    %v6158 = vsub.f32 1.0, %v6157
    %v6159 = vmul.f32 %v6156, %v6158
    %v6160 = vadd.f32 %v6156, %v6159
    %vm6161 = vweird.f32 %v6140
    %vm6162 = vweird.f32 %v6156
    %vm6163 = vmor %vm6161, %vm6162
    %v6164 = vsel %vm6163, %v6156, %v6160
    %v6165 = vand.u32 2147483647, %v6140
    %vm6166 = vcmp.eq.f32.partialorder %v6165, 8.507059e+37
    %v6167 = vand.u32 %v6140, 2147483648
    %v6168 = vor.u32 1.1754944e-38, %v6167
    %v6169 = vsel %vm6166, %v6168, %v6164
    %v6170 = vmul.f32 1.0, %v6169
    %v6171 = vtanh.pop %v4860
    %v6172 = vmul.f32 %v6155, %v6171
    %v6173 = vtanh.pop %v6172
    %v6174 = vmul.f32 %v6170, %v6173
    %v6175 = vld [vmem:[%s9] sm:$0xff]
    %v6176 = vld [vmem:[%s9 + $0x8] sm:$0xff]
    %v6177 = vld [vmem:[%s9 + $0x10] sm:$0xff]
    %v6178 = vld [vmem:[%s9 + $0x18] sm:$0xff]
    %v6179 = vld [vmem:[%s9 + $0x20] sm:$0xff]
    %v6180 = vld [vmem:[%s9 + $0x28] sm:$0xff]
    %v6181 = vld [vmem:[%s9 + $0x30] sm:$0xff]
    %v6182 = vld [vmem:[%s9 + $0x38] sm:$0xff]
    %v6183 = vld [vmem:[%s9 + $0x40] sm:$0xff]
    %v6184 = vld [vmem:[%s9 + $0x48] sm:$0xff]
    %v6185 = vld [vmem:[%s9 + $0x50] sm:$0xff]
    %v6186 = vld [vmem:[%s9 + $0x58] sm:$0xff]
    %v6187 = vld [vmem:[%s9 + $0x60] sm:$0xff]
    %v6188 = vld [vmem:[%s9 + $0x68] sm:$0xff]
    %v6189 = vld [vmem:[%s9 + $0x70] sm:$0xff]
    %v6190 = vld [vmem:[%s9 + $0x78] sm:$0xff]
    %v6191 = vld [vmem:[%s9 + $0x80] sm:$0xff]
    %v6192 = vld [vmem:[%s9 + $0x88] sm:$0xff]
    %v6193 = vld [vmem:[%s9 + $0x90] sm:$0xff]
    %v6194 = vld [vmem:[%s9 + $0x98] sm:$0xff]
    %v6195 = vld [vmem:[%s9 + $0xa0] sm:$0xff]
    %v6196 = vld [vmem:[%s9 + $0xa8] sm:$0xff]
    %v6197 = vld [vmem:[%s9 + $0xb0] sm:$0xff]
    %v6198 = vld [vmem:[%s9 + $0xb8] sm:$0xff]
    %v6199 = vld [vmem:[%s9 + $0xc0] sm:$0xff]
    %v6200 = vld [vmem:[%s9 + $0xc8] sm:$0xff]
    %v6201 = vld [vmem:[%s9 + $0xd0] sm:$0xff]
    %v6202 = vld [vmem:[%s9 + $0xd8] sm:$0xff]
    %v6203 = vld [vmem:[%s9 + $0xe0] sm:$0xff]
    %v6204 = vld [vmem:[%s9 + $0xe8] sm:$0xff]
    %v6205 = vld [vmem:[%s9 + $0xf0] sm:$0xff]
    %v6206 = vld [vmem:[%s9 + $0xf8] sm:$0xff]
    %6207 = vmatpush.msra.mxu0 %v6206
    %6208 = vmatpush.msra.mxu0 %v6205
    %6209 = vmatpush.msra.mxu0 %v6204
    %6210 = vmatpush.msra.mxu0 %v6203
    %6211 = vmatpush.msra.mxu0 %v6202
    %6212 = vmatpush.msra.mxu0 %v6201
    %6213 = vmatpush.msra.mxu0 %v6200
    %6214 = vmatpush.msra.mxu0 %v6199
    %6215 = vmatpush.msra.mxu0 %v6198
    %6216 = vmatpush.msra.mxu0 %v6197
    %6217 = vmatpush.msra.mxu0 %v6196
    %6218 = vmatpush.msra.mxu0 %v6195
    %6219 = vmatpush.msra.mxu0 %v6194
    %6220 = vmatpush.msra.mxu0 %v6193
    %6221 = vmatpush.msra.mxu0 %v6192
    %6222 = vmatpush.msra.mxu0 %v6191
    %6223 = vmatmul.f32.gmra.mxu0 %v6174
    %v6224 = vpop.f32.mrf.mxu0
    %v6225 = vadd.f32 0.0, %v6224
    %6226 = vdwg.mxu0
    %6227 = vmatpush.msra.mxu0 %v6190
    %6228 = vmatpush.msra.mxu0 %v6189
    %6229 = vmatpush.msra.mxu0 %v6188
    %6230 = vmatpush.msra.mxu0 %v6187
    %6231 = vmatpush.msra.mxu0 %v6186
    %6232 = vmatpush.msra.mxu0 %v6185
    %6233 = vmatpush.msra.mxu0 %v6184
    %6234 = vmatpush.msra.mxu0 %v6183
    %6235 = vmatpush.msra.mxu0 %v6182
    %6236 = vmatpush.msra.mxu0 %v6181
    %6237 = vmatpush.msra.mxu0 %v6180
    %6238 = vmatpush.msra.mxu0 %v6179
    %6239 = vmatpush.msra.mxu0 %v6178
    %6240 = vmatpush.msra.mxu0 %v6177
    %6241 = vmatpush.msra.mxu0 %v6176
    %6242 = vmatpush.msra.mxu0 %v6175
    %6243 = vmatmul.f32.gmra.mxu0 %v6132
    %v6244 = vpop.f32.mrf.mxu0
    %v6245 = vadd.f32 %v6225, %v6244
    %6246 = vdwg.mxu0
    %v6247 = vld [vmem:[%s10] sm:$0x1]
    %v6249 = vperm.slane %v6247, 0
    %v6251 = vadd.f32 %v6245, %v6249
    %vm6252 = vcmask 64512
    %6253 = vst.msk [vmem:[#allocation15] sm:$0xff] %vm6252, %v6251
    // Predicated region
    $region66: #{bilstm_forward.1} parent=1 // pred_check
      _
    $region67: #{bilstm_forward.1} parent=1 // pred_check_branch
      %6255 = sbr.rel (0) target = $region69
    $region68: #{bilstm_forward.1} parent=1 // pred_region
      %6257 = vsyncadd [#allocation8], 0
      %s6259 = sshll.u32 [#allocation15], 4
      %s6260 = int_to_ptr.vmem [resolvable:$true] %s6259
      %s6261 = sshll.u32 %s11, 4
      %s6262 = int_to_ptr.hbm [resolvable:$true] %s6261
      %6264 = dma.vmem_to_hbm [thread:$0]  %s6260, 128, %s6262, [#allocation8]
    $region69: #{bilstm_forward.1} parent=1 // pred_fallthru
      _
    // Predicated region
    $region70: #{bilstm_forward.1} parent=1 // pred_check
      _
    $region71: #{bilstm_forward.1} parent=1 // pred_check_branch
      %6266 = sbr.rel (0) target = $region73
    $region72: #{bilstm_forward.1} parent=1 // pred_region
      %6268 = dma.done [#allocation8], 128
    $region73: #{bilstm_forward.1} parent=1 // pred_fallthru
      _
    %6269 = vsyncpa [#allocation7], 1
    %6270 = vsyncpa [#allocation10], 1
    %6271 = vsyncpa [#allocation13], 1
    %6272 = vsyncpa [#allocation8], 1

</llo_original>
